<compile_context>
chip_gen: v5e
topology: v5e:2x2
jax: 0.10.0
libtpu: 0.0.40
codegen_flags: <defaults>
</compile_context>

<pallas_src>
import jax
import jax.numpy as jnp
from jax.experimental import pallas as pl
from jax.experimental.pallas import tpu as pltpu


def _round_up(x, m):
    return ((x + m - 1) // m) * m


def _conv3x3_merged(xw, w_ref, Ho, Wo, Cp):
    """3x3 conv as 3 MXU matmuls with the dy taps merged along K.

    xw:    (Ho+2, >=Wo+2, Cp) bf16 value (1-pixel halo around the Ho x Wo output)
    w_ref: (3, 3*Cp, Cp) bf16 ref laid out as [dx, dy*Cp + cin, cout]
    returns (Ho, Wo, Cp) f32
    """
    acc = None
    for dx in range(3):
        shifted = xw[:, dx:dx + Wo, :]                 # one sublane shift per dx (3 total)
        patch = jnp.concatenate(                       # dy merged along the lane (K) axis
            [shifted[0:Ho], shifted[1:Ho + 1], shifted[2:Ho + 2]], axis=-1
        ).reshape(Ho * Wo, 3 * Cp)
        d = jnp.dot(patch, w_ref[dx], preferred_element_type=jnp.float32)
        acc = d if acc is None else acc + d
    return acc.reshape(Ho, Wo, Cp)


def _make_kernel(H, W, TH, Wmid, Cp, *, manual_dma):
    Ho1 = TH + 2      # conv1 intermediate rows (keeps its own 1-pixel halo)
    Wwin = Wmid + 2   # input window width

    def body(xw, w1_ref, b1_ref, w2_ref, b2_ref, out_ref):
        r = pl.program_id(1)

        # ---- conv1 (+ folded BN1 scale) + bias + ReLU ------------------------
        h = _conv3x3_merged(xw, w1_ref, Ho1, Wmid, Cp)
        h = jnp.maximum(h + b1_ref[...], 0.0)

        # conv2 zero-pads its *input*: every intermediate position outside the
        # true image (row/col halo, bottom row pad, extra width pad) must be 0.
        rows = jax.lax.broadcasted_iota(jnp.int32, (Ho1, Wmid, 1), 0) + (r * TH - 1)
        cols = jax.lax.broadcasted_iota(jnp.int32, (Ho1, Wmid, 1), 1) - 1
        valid = (rows >= 0) & (rows < H) & (cols >= 0) & (cols < W)
        h = jnp.where(valid, h, 0.0).astype(jnp.bfloat16)

        # ---- conv2 (+ folded BN2 scale) + bias -------------------------------
        y = _conv3x3_merged(h, w2_ref, TH, W, Cp) + b2_ref[...]

        # ---- residual add + ReLU (f32 elementwise) ---------------------------
        # TODO(synk): residual carries bf16 rounding of the input window (an f32
        #             skip path would need a second f32 HBM read).
        identity = xw[2:TH + 2, 2:W + 2, :].astype(jnp.float32)
        out_ref[...] = jnp.maximum(y + identity, 0.0).astype(out_ref.dtype)

    if not manual_dma:
        # Whole-image (or single-row-tile) path: input auto-pipelined by BlockSpec.
        def kernel(xw_ref, w1_ref, b1_ref, w2_ref, b2_ref, out_ref):
            body(xw_ref[...], w1_ref, b1_ref, w2_ref, b2_ref, out_ref)
    else:
        # Row-tiled path: overlapping (TH+4)-row window DMA'd in-kernel from HBM,
        # so no overlapping-window copy of the input is ever materialized in HBM.
        def kernel(x_hbm, w1_ref, b1_ref, w2_ref, b2_ref, out_ref, xbuf, sem):
            n = pl.program_id(0)
            r = pl.program_id(1)
            copy = pltpu.make_async_copy(
                x_hbm.at[n, pl.ds(r * TH, TH + 4)], xbuf, sem)
            copy.start()
            copy.wait()
            # TODO(synk): cross-step double-buffered prefetch of the next window would
            #             hide this DMA; kept synchronous so both grid axes stay
            #             megacore-safe ("parallel") with no cross-step state.
            body(xbuf[...], w1_ref, b1_ref, w2_ref, b2_ref, out_ref)

    return kernel


def basic_block_pallas(x_nchw, params, *, row_tile=None, return_nhwc_padded=False):
    """params = (w1, g1, b1, m1, v1, w2, g2, b2, m2, v2); conv weights HWIO."""
    w1, g1, be1, m1, v1, w2, g2, be2, m2, v2 = params
    eps = 1e-5
    N, C, H, W = x_nchw.shape
    # TODO(synk): stride>1 / downsample / Cin!=Cout BasicBlock configurations not
    #             implemented (module defaults: stride=1, downsample=None).
    # TODO(synk): training-mode BN (batch statistics) not implemented; eval semantics.

    # Fold eval-mode BatchNorm: scale into conv weights, leaving a per-channel bias.
    inv1 = g1 / jnp.sqrt(v1 + eps)
    inv2 = g2 / jnp.sqrt(v2 + eps)
    w1f = w1 * inv1[None, None, None, :]
    w2f = w2 * inv2[None, None, None, :]
    b1f = be1 - m1 * inv1
    b2f = be2 - m2 * inv2

    Cp = _round_up(C, 128)             # lane-pad channels
    Wmid = _round_up(W + 2, 8)         # conv1 intermediate width, sublane aligned
    Wwin = Wmid + 2                    # input window width (2-pixel halo + align pad)

    def vmem_est(th):
        win = (th + 4) * Wwin * Cp * 2
        wts = 2 * 3 * 3 * Cp * Cp * 2
        patch = (th + 2) * Wmid * 3 * Cp * 2
        inter = (th + 2) * Wmid * Cp * (4 + 2) + (th + 2) * Wmid * Cp * 4
        out_t = th * W * Cp * 2
        return 2 * win + 2 * wts + patch + inter + 2 * out_t

    budget = 44 << 20                  # conservative vs v7x's 64 MiB physical VMEM
    if row_tile is not None:
        TH = max(1, min(int(row_tile), H))
    else:
        TH = next((c for c in (H, 64, 32, 16, 8)
                   if c <= H and vmem_est(c) <= budget), min(H, 8))
    R = -(-H // TH)
    Hp = R * TH

    # Single wrapper layout pass: NCHW->NHWC, bf16, channel pad, 2-pixel halo pad,
    # width-align pad, bottom pad up to R*TH rows. No overlapping-window copy.
    x = jnp.transpose(x_nchw, (0, 2, 3, 1)).astype(jnp.bfloat16)
    x = jnp.pad(x, ((0, 0), (2, 2 + Hp - H), (2, Wwin - 2 - W), (0, Cp - C)))
    # x: (N, Hp + 4, Wwin, Cp) bf16

    def prep_w(w):
        wp = jnp.zeros((3, 3, Cp, Cp), jnp.float32).at[:, :, :C, :C].set(w)
        # -> [dx, dy*Cp + cin, cout] so the dy taps are contiguous along K.
        return jnp.transpose(wp, (1, 0, 2, 3)).reshape(3, 3 * Cp, Cp).astype(jnp.bfloat16)

    def prep_b(b):
        return jnp.zeros((1, 1, Cp), jnp.float32).at[0, 0, :C].set(b)

    w1p, w2p = prep_w(w1f), prep_w(w2f)
    b1p, b2p = prep_b(b1f), prep_b(b2f)

    manual_dma = R > 1
    kernel = _make_kernel(H, W, TH, Wmid, Cp, manual_dma=manual_dma)

    # Single-buffer the grid-invariant weights only when they are big enough to
    # matter (Cp>=512 weights double-buffered would blow v5e's scoped VMEM).
    wspec_kwargs = {}
    if Cp >= 256:
        wspec_kwargs["pipeline_mode"] = pl.Buffered(1)
    weight_spec = pl.BlockSpec((3, 3 * Cp, Cp), lambda n, r: (0, 0, 0), **wspec_kwargs)
    bias_spec = pl.BlockSpec((1, 1, Cp), lambda n, r: (0, 0, 0))

    if manual_dma:
        x_spec = pl.BlockSpec(memory_space=pl.ANY)
        scratch = [pltpu.VMEM((TH + 4, Wwin, Cp), jnp.bfloat16),
                   pltpu.SemaphoreType.DMA]
    else:
        x_spec = pl.BlockSpec((None, TH + 4, Wwin, Cp), lambda n, r: (n, 0, 0, 0))
        scratch = []

    vmem_limit = int(min(max(vmem_est(TH) * 3 // 2, 32 << 20), 100 << 20))

    out = pl.pallas_call(
        kernel,
        out_shape=jax.ShapeDtypeStruct((N, Hp, W, Cp), jnp.bfloat16),
        grid=(N, R),
        in_specs=[x_spec, weight_spec, bias_spec, weight_spec, bias_spec],
        out_specs=pl.BlockSpec((None, TH, W, Cp), lambda n, r: (n, r, 0, 0)),
        scratch_shapes=scratch,
        compiler_params=pltpu.CompilerParams(
            dimension_semantics=("parallel", "parallel"),
            vmem_limit_bytes=vmem_limit),
    )(x, w1p, b1p, w2p, b2p)

    if return_nhwc_padded:
        return out                                   # bf16 (N, Hp, W, Cp) for chaining
    out = out[:, :H, :, :C].astype(jnp.float32)      # drop row/channel padding
    return jnp.transpose(out, (0, 3, 1, 2))          # -> NCHW f32 (module API compat)


def basic_block_reference(x_nchw, params):
    """Pure-JAX f32 reference (lax.conv) for correctness checking."""
    x = jnp.transpose(x_nchw, (0, 2, 3, 1)).astype(jnp.float32)
    w1, g1, be1, m1, v1, w2, g2, be2, m2, v2 = params
    eps = 1e-5

    def bn(y, g, b, m, v):
        return (y - m) / jnp.sqrt(v + eps) * g + b

    dn = jax.lax.conv_dimension_numbers(x.shape, w1.shape, ('NHWC', 'HWIO', 'NHWC'))
    h = jax.lax.conv_general_dilated(x, w1, (1, 1), 'SAME', dimension_numbers=dn)
    h = jnp.maximum(bn(h, g1, be1, m1, v1), 0.0)
    h2 = jax.lax.conv_general_dilated(h, w2, (1, 1), 'SAME', dimension_numbers=dn)
    h2 = bn(h2, g2, be2, m2, v2)
    out = jnp.maximum(h2 + x, 0.0)
    return jnp.transpose(out, (0, 3, 1, 2))


if __name__ == "__main__":
    # Small shapes: batch=2, inplanes=planes=4 (identity add valid), 16x16 spatial.
    N, C, H, W = 2, 4, 16, 16
    key = jax.random.PRNGKey(0)
    ks = jax.random.split(key, 11)

    x = jax.random.normal(ks[0], (N, C, H, W), jnp.float32)

    # Deterministic synthetic parameters (PyTorch BasicBlock shapes, stored HWIO).
    w1 = jax.random.normal(ks[1], (3, 3, C, C), jnp.float32) * 0.1
    w2 = jax.random.normal(ks[2], (3, 3, C, C), jnp.float32) * 0.1
    g1 = 1.0 + 0.1 * jax.random.normal(ks[3], (C,), jnp.float32)
    be1 = 0.1 * jax.random.normal(ks[4], (C,), jnp.float32)
    m1 = 0.1 * jax.random.normal(ks[5], (C,), jnp.float32)
    v1 = jnp.abs(jax.random.normal(ks[6], (C,), jnp.float32)) + 0.5
    g2 = 1.0 + 0.1 * jax.random.normal(ks[7], (C,), jnp.float32)
    be2 = 0.1 * jax.random.normal(ks[8], (C,), jnp.float32)
    m2 = 0.1 * jax.random.normal(ks[9], (C,), jnp.float32)
    v2 = jnp.abs(jax.random.normal(ks[10], (C,), jnp.float32)) + 0.5

    params = (w1, g1, be1, m1, v1, w2, g2, be2, m2, v2)

    ref = jax.block_until_ready(basic_block_reference(x, params))

    # Path A: whole-image tile (default), input auto-pipelined via BlockSpec.
    out_a = jax.block_until_ready(basic_block_pallas(x, params))
    # Path B: row-tiled, manual in-kernel DMA of the overlapping row window.
    out_b = jax.block_until_ready(basic_block_pallas(x, params, row_tile=8))

    for name, out in (("whole-image", out_a), ("row-tiled", out_b)):
        assert out.shape == (N, C, H, W), (name, out.shape)
        # bf16 matmul inputs / bf16 store vs f32 reference -> loose tolerance.
        if not jnp.allclose(out, ref, atol=5e-2, rtol=5e-2):
            err = float(jnp.max(jnp.abs(out - ref)))
            raise AssertionError(
                f"Pallas BasicBlock ({name}) mismatch vs reference (max |err|={err})")

    print("KERNEL_OK")
</pallas_src>

<mosaic_0001>
module attributes {stable_mosaic.version = 11 : i64} {
  func.func @kernel(%arg0: i32, %arg1: i32, %arg2: memref<1x20x26x128xbf16, #tpu.memory_space<vmem>>, %arg3: memref<3x384x128xbf16, #tpu.memory_space<vmem>>, %arg4: memref<1x1x128xf32, #tpu.memory_space<vmem>>, %arg5: memref<3x384x128xbf16, #tpu.memory_space<vmem>>, %arg6: memref<1x1x128xf32, #tpu.memory_space<vmem>>, %arg7: memref<1x16x16x128xbf16, #tpu.memory_space<vmem>>) attributes {dimension_semantics = [#tpu.dimension_semantics<parallel>, #tpu.dimension_semantics<parallel>], iteration_bounds = array<i64: 2, 1>, scalar_prefetch = 0 : i64, scratch_operands = 0 : i64, tpu.core_type = #tpu.core_type<tc>, window_params = [{transform_indices = @transform_0, window_bounds = array<i64: 1, 20, 26, 128>}, {pipeline_mode = #tpu.pipeline_mode<synchronous>, transform_indices = @transform_1, window_bounds = array<i64: 3, 384, 128>}, {pipeline_mode = #tpu.pipeline_mode<synchronous>, transform_indices = @transform_2, window_bounds = array<i64: 1, 1, 128>}, {pipeline_mode = #tpu.pipeline_mode<synchronous>, transform_indices = @transform_3, window_bounds = array<i64: 3, 384, 128>}, {pipeline_mode = #tpu.pipeline_mode<synchronous>, transform_indices = @transform_4, window_bounds = array<i64: 1, 1, 128>}, {transform_indices = @transform_5, window_bounds = array<i64: 1, 16, 16, 128>}]} {
    %c0 = arith.constant 0 : index
    %c0_0 = arith.constant 0 : index
    %c0_1 = arith.constant 0 : index
    %c0_2 = arith.constant 0 : index
    %0 = vector.load %arg2[%c0, %c0_0, %c0_1, %c0_2] : memref<1x20x26x128xbf16, #tpu.memory_space<vmem>>, vector<1x20x26x128xbf16>
    %1 = vector.shape_cast %0 : vector<1x20x26x128xbf16> to vector<20x26x128xbf16>
    %2 = vector.extract_strided_slice %1 {offsets = [0, 0, 0], sizes = [20, 24, 128], strides = [1, 1, 1]} : vector<20x26x128xbf16> to vector<20x24x128xbf16>
    %3 = vector.extract_strided_slice %2 {offsets = [0, 0, 0], sizes = [18, 24, 128], strides = [1, 1, 1]} : vector<20x24x128xbf16> to vector<18x24x128xbf16>
    %4 = vector.extract_strided_slice %2 {offsets = [1, 0, 0], sizes = [18, 24, 128], strides = [1, 1, 1]} : vector<20x24x128xbf16> to vector<18x24x128xbf16>
    %5 = vector.extract_strided_slice %2 {offsets = [2, 0, 0], sizes = [18, 24, 128], strides = [1, 1, 1]} : vector<20x24x128xbf16> to vector<18x24x128xbf16>
    %6 = tpu.concatenate %3, %4, %5 in 2 : vector<18x24x128xbf16>, vector<18x24x128xbf16>, vector<18x24x128xbf16> -> vector<18x24x384xbf16>
    %7 = vector.shape_cast %6 : vector<18x24x384xbf16> to vector<432x384xbf16>
    %c0_3 = arith.constant 0 : index
    %c0_4 = arith.constant 0 : index
    %c0_5 = arith.constant 0 : index
    %8 = vector.load %arg3[%c0_3, %c0_4, %c0_5] : memref<3x384x128xbf16, #tpu.memory_space<vmem>>, vector<1x384x128xbf16>
    %9 = vector.shape_cast %8 : vector<1x384x128xbf16> to vector<384x128xbf16>
    %cst = arith.constant dense<0.000000e+00> : vector<432x128xf32>
    %10 = tpu.matmul %7, %9, %cst {dimension_numbers = #tpu.dot_dimension_numbers<[1], [0], [0], [1], [0, 0, 1, 1], [], []>} : vector<432x384xbf16>, vector<384x128xbf16>, vector<432x128xf32> -> vector<432x128xf32>
    %11 = vector.extract_strided_slice %1 {offsets = [0, 1, 0], sizes = [20, 24, 128], strides = [1, 1, 1]} : vector<20x26x128xbf16> to vector<20x24x128xbf16>
    %12 = vector.extract_strided_slice %11 {offsets = [0, 0, 0], sizes = [18, 24, 128], strides = [1, 1, 1]} : vector<20x24x128xbf16> to vector<18x24x128xbf16>
    %13 = vector.extract_strided_slice %11 {offsets = [1, 0, 0], sizes = [18, 24, 128], strides = [1, 1, 1]} : vector<20x24x128xbf16> to vector<18x24x128xbf16>
    %14 = vector.extract_strided_slice %11 {offsets = [2, 0, 0], sizes = [18, 24, 128], strides = [1, 1, 1]} : vector<20x24x128xbf16> to vector<18x24x128xbf16>
    %15 = tpu.concatenate %12, %13, %14 in 2 : vector<18x24x128xbf16>, vector<18x24x128xbf16>, vector<18x24x128xbf16> -> vector<18x24x384xbf16>
    %16 = vector.shape_cast %15 : vector<18x24x384xbf16> to vector<432x384xbf16>
    %c1 = arith.constant 1 : index
    %c0_6 = arith.constant 0 : index
    %c0_7 = arith.constant 0 : index
    %17 = vector.load %arg3[%c1, %c0_6, %c0_7] : memref<3x384x128xbf16, #tpu.memory_space<vmem>>, vector<1x384x128xbf16>
    %18 = vector.shape_cast %17 : vector<1x384x128xbf16> to vector<384x128xbf16>
    %cst_8 = arith.constant dense<0.000000e+00> : vector<432x128xf32>
    %19 = tpu.matmul %16, %18, %cst_8 {dimension_numbers = #tpu.dot_dimension_numbers<[1], [0], [0], [1], [0, 0, 1, 1], [], []>} : vector<432x384xbf16>, vector<384x128xbf16>, vector<432x128xf32> -> vector<432x128xf32>
    %20 = arith.addf %10, %19 : vector<432x128xf32>
    %21 = vector.extract_strided_slice %1 {offsets = [0, 2, 0], sizes = [20, 24, 128], strides = [1, 1, 1]} : vector<20x26x128xbf16> to vector<20x24x128xbf16>
    %22 = vector.extract_strided_slice %21 {offsets = [0, 0, 0], sizes = [18, 24, 128], strides = [1, 1, 1]} : vector<20x24x128xbf16> to vector<18x24x128xbf16>
    %23 = vector.extract_strided_slice %21 {offsets = [1, 0, 0], sizes = [18, 24, 128], strides = [1, 1, 1]} : vector<20x24x128xbf16> to vector<18x24x128xbf16>
    %24 = vector.extract_strided_slice %21 {offsets = [2, 0, 0], sizes = [18, 24, 128], strides = [1, 1, 1]} : vector<20x24x128xbf16> to vector<18x24x128xbf16>
    %25 = tpu.concatenate %22, %23, %24 in 2 : vector<18x24x128xbf16>, vector<18x24x128xbf16>, vector<18x24x128xbf16> -> vector<18x24x384xbf16>
    %26 = vector.shape_cast %25 : vector<18x24x384xbf16> to vector<432x384xbf16>
    %c2 = arith.constant 2 : index
    %c0_9 = arith.constant 0 : index
    %c0_10 = arith.constant 0 : index
    %27 = vector.load %arg3[%c2, %c0_9, %c0_10] : memref<3x384x128xbf16, #tpu.memory_space<vmem>>, vector<1x384x128xbf16>
    %28 = vector.shape_cast %27 : vector<1x384x128xbf16> to vector<384x128xbf16>
    %cst_11 = arith.constant dense<0.000000e+00> : vector<432x128xf32>
    %29 = tpu.matmul %26, %28, %cst_11 {dimension_numbers = #tpu.dot_dimension_numbers<[1], [0], [0], [1], [0, 0, 1, 1], [], []>} : vector<432x384xbf16>, vector<384x128xbf16>, vector<432x128xf32> -> vector<432x128xf32>
    %30 = arith.addf %20, %29 : vector<432x128xf32>
    %31 = vector.shape_cast %30 : vector<432x128xf32> to vector<18x24x128xf32>
    %c0_12 = arith.constant 0 : index
    %c0_13 = arith.constant 0 : index
    %c0_14 = arith.constant 0 : index
    %32 = vector.load %arg4[%c0_12, %c0_13, %c0_14] : memref<1x1x128xf32, #tpu.memory_space<vmem>>, vector<1x1x128xf32>
    %33 = vector.broadcast %32 : vector<1x1x128xf32> to vector<18x24x128xf32>
    %34 = arith.addf %31, %33 : vector<18x24x128xf32>
    %cst_15 = arith.constant 0.000000e+00 : f32
    %35 = vector.broadcast %cst_15 : f32 to vector<18x24x128xf32>
    %36 = arith.maximumf %34, %35 : vector<18x24x128xf32>
    %37 = tpu.iota {dimensions = array<i32: 0>} : vector<18x24x1xi32>
    %c16_i32 = arith.constant 16 : i32
    %38 = arith.muli %arg1, %c16_i32 : i32
    %c1_i32 = arith.constant 1 : i32
    %39 = arith.subi %38, %c1_i32 : i32
    %40 = vector.broadcast %39 : i32 to vector<18x24x1xi32>
    %41 = arith.addi %37, %40 : vector<18x24x1xi32>
    %42 = tpu.iota {dimensions = array<i32: 1>} : vector<18x24x1xi32>
    %c1_i32_16 = arith.constant 1 : i32
    %43 = vector.broadcast %c1_i32_16 : i32 to vector<18x24x1xi32>
    %44 = arith.subi %42, %43 : vector<18x24x1xi32>
    %c0_i32 = arith.constant 0 : i32
    %45 = vector.broadcast %c0_i32 : i32 to vector<18x24x1xi32>
    %46 = arith.cmpi sge, %41, %45 : vector<18x24x1xi32>
    %c16_i32_17 = arith.constant 16 : i32
    %47 = vector.broadcast %c16_i32_17 : i32 to vector<18x24x1xi32>
    %48 = arith.cmpi slt, %41, %47 : vector<18x24x1xi32>
    %49 = arith.andi %46, %48 : vector<18x24x1xi1>
    %c0_i32_18 = arith.constant 0 : i32
    %50 = vector.broadcast %c0_i32_18 : i32 to vector<18x24x1xi32>
    %51 = arith.cmpi sge, %44, %50 : vector<18x24x1xi32>
    %52 = arith.andi %49, %51 : vector<18x24x1xi1>
    %c16_i32_19 = arith.constant 16 : i32
    %53 = vector.broadcast %c16_i32_19 : i32 to vector<18x24x1xi32>
    %54 = arith.cmpi slt, %44, %53 : vector<18x24x1xi32>
    %55 = arith.andi %52, %54 : vector<18x24x1xi1>
    %cst_20 = arith.constant 0.000000e+00 : f32
    %56 = vector.shape_cast %55 : vector<18x24x1xi1> to vector<18x24x1xi1>
    %57 = vector.broadcast %56 : vector<18x24x1xi1> to vector<18x24x128xi1>
    %58 = vector.broadcast %cst_20 : f32 to vector<18x24x128xf32>
    %59 = arith.select %57, %36, %58 : vector<18x24x128xi1>, vector<18x24x128xf32>
    %60 = arith.truncf %59 : vector<18x24x128xf32> to vector<18x24x128xbf16>
    %61 = vector.extract_strided_slice %60 {offsets = [0, 0, 0], sizes = [18, 16, 128], strides = [1, 1, 1]} : vector<18x24x128xbf16> to vector<18x16x128xbf16>
    %62 = vector.extract_strided_slice %61 {offsets = [0, 0, 0], sizes = [16, 16, 128], strides = [1, 1, 1]} : vector<18x16x128xbf16> to vector<16x16x128xbf16>
    %63 = vector.extract_strided_slice %61 {offsets = [1, 0, 0], sizes = [16, 16, 128], strides = [1, 1, 1]} : vector<18x16x128xbf16> to vector<16x16x128xbf16>
    %64 = vector.extract_strided_slice %61 {offsets = [2, 0, 0], sizes = [16, 16, 128], strides = [1, 1, 1]} : vector<18x16x128xbf16> to vector<16x16x128xbf16>
    %65 = tpu.concatenate %62, %63, %64 in 2 : vector<16x16x128xbf16>, vector<16x16x128xbf16>, vector<16x16x128xbf16> -> vector<16x16x384xbf16>
    %66 = vector.shape_cast %65 : vector<16x16x384xbf16> to vector<256x384xbf16>
    %c0_21 = arith.constant 0 : index
    %c0_22 = arith.constant 0 : index
    %c0_23 = arith.constant 0 : index
    %67 = vector.load %arg5[%c0_21, %c0_22, %c0_23] : memref<3x384x128xbf16, #tpu.memory_space<vmem>>, vector<1x384x128xbf16>
    %68 = vector.shape_cast %67 : vector<1x384x128xbf16> to vector<384x128xbf16>
    %cst_24 = arith.constant dense<0.000000e+00> : vector<256x128xf32>
    %69 = tpu.matmul %66, %68, %cst_24 {dimension_numbers = #tpu.dot_dimension_numbers<[1], [0], [0], [1], [0, 0, 1, 1], [], []>} : vector<256x384xbf16>, vector<384x128xbf16>, vector<256x128xf32> -> vector<256x128xf32>
    %70 = vector.extract_strided_slice %60 {offsets = [0, 1, 0], sizes = [18, 16, 128], strides = [1, 1, 1]} : vector<18x24x128xbf16> to vector<18x16x128xbf16>
    %71 = vector.extract_strided_slice %70 {offsets = [0, 0, 0], sizes = [16, 16, 128], strides = [1, 1, 1]} : vector<18x16x128xbf16> to vector<16x16x128xbf16>
    %72 = vector.extract_strided_slice %70 {offsets = [1, 0, 0], sizes = [16, 16, 128], strides = [1, 1, 1]} : vector<18x16x128xbf16> to vector<16x16x128xbf16>
    %73 = vector.extract_strided_slice %70 {offsets = [2, 0, 0], sizes = [16, 16, 128], strides = [1, 1, 1]} : vector<18x16x128xbf16> to vector<16x16x128xbf16>
    %74 = tpu.concatenate %71, %72, %73 in 2 : vector<16x16x128xbf16>, vector<16x16x128xbf16>, vector<16x16x128xbf16> -> vector<16x16x384xbf16>
    %75 = vector.shape_cast %74 : vector<16x16x384xbf16> to vector<256x384xbf16>
    %c1_25 = arith.constant 1 : index
    %c0_26 = arith.constant 0 : index
    %c0_27 = arith.constant 0 : index
    %76 = vector.load %arg5[%c1_25, %c0_26, %c0_27] : memref<3x384x128xbf16, #tpu.memory_space<vmem>>, vector<1x384x128xbf16>
    %77 = vector.shape_cast %76 : vector<1x384x128xbf16> to vector<384x128xbf16>
    %cst_28 = arith.constant dense<0.000000e+00> : vector<256x128xf32>
    %78 = tpu.matmul %75, %77, %cst_28 {dimension_numbers = #tpu.dot_dimension_numbers<[1], [0], [0], [1], [0, 0, 1, 1], [], []>} : vector<256x384xbf16>, vector<384x128xbf16>, vector<256x128xf32> -> vector<256x128xf32>
    %79 = arith.addf %69, %78 : vector<256x128xf32>
    %80 = vector.extract_strided_slice %60 {offsets = [0, 2, 0], sizes = [18, 16, 128], strides = [1, 1, 1]} : vector<18x24x128xbf16> to vector<18x16x128xbf16>
    %81 = vector.extract_strided_slice %80 {offsets = [0, 0, 0], sizes = [16, 16, 128], strides = [1, 1, 1]} : vector<18x16x128xbf16> to vector<16x16x128xbf16>
    %82 = vector.extract_strided_slice %80 {offsets = [1, 0, 0], sizes = [16, 16, 128], strides = [1, 1, 1]} : vector<18x16x128xbf16> to vector<16x16x128xbf16>
    %83 = vector.extract_strided_slice %80 {offsets = [2, 0, 0], sizes = [16, 16, 128], strides = [1, 1, 1]} : vector<18x16x128xbf16> to vector<16x16x128xbf16>
    %84 = tpu.concatenate %81, %82, %83 in 2 : vector<16x16x128xbf16>, vector<16x16x128xbf16>, vector<16x16x128xbf16> -> vector<16x16x384xbf16>
    %85 = vector.shape_cast %84 : vector<16x16x384xbf16> to vector<256x384xbf16>
    %c2_29 = arith.constant 2 : index
    %c0_30 = arith.constant 0 : index
    %c0_31 = arith.constant 0 : index
    %86 = vector.load %arg5[%c2_29, %c0_30, %c0_31] : memref<3x384x128xbf16, #tpu.memory_space<vmem>>, vector<1x384x128xbf16>
    %87 = vector.shape_cast %86 : vector<1x384x128xbf16> to vector<384x128xbf16>
    %cst_32 = arith.constant dense<0.000000e+00> : vector<256x128xf32>
    %88 = tpu.matmul %85, %87, %cst_32 {dimension_numbers = #tpu.dot_dimension_numbers<[1], [0], [0], [1], [0, 0, 1, 1], [], []>} : vector<256x384xbf16>, vector<384x128xbf16>, vector<256x128xf32> -> vector<256x128xf32>
    %89 = arith.addf %79, %88 : vector<256x128xf32>
    %90 = vector.shape_cast %89 : vector<256x128xf32> to vector<16x16x128xf32>
    %c0_33 = arith.constant 0 : index
    %c0_34 = arith.constant 0 : index
    %c0_35 = arith.constant 0 : index
    %91 = vector.load %arg6[%c0_33, %c0_34, %c0_35] : memref<1x1x128xf32, #tpu.memory_space<vmem>>, vector<1x1x128xf32>
    %92 = vector.broadcast %91 : vector<1x1x128xf32> to vector<16x16x128xf32>
    %93 = arith.addf %90, %92 : vector<16x16x128xf32>
    %94 = vector.extract_strided_slice %1 {offsets = [2, 2, 0], sizes = [16, 16, 128], strides = [1, 1, 1]} : vector<20x26x128xbf16> to vector<16x16x128xbf16>
    %95 = arith.extf %94 : vector<16x16x128xbf16> to vector<16x16x128xf32>
    %96 = arith.addf %93, %95 : vector<16x16x128xf32>
    %cst_36 = arith.constant 0.000000e+00 : f32
    %97 = vector.broadcast %cst_36 : f32 to vector<16x16x128xf32>
    %98 = arith.maximumf %96, %97 : vector<16x16x128xf32>
    %99 = arith.truncf %98 : vector<16x16x128xf32> to vector<16x16x128xbf16>
    %c0_37 = arith.constant 0 : index
    %c0_38 = arith.constant 0 : index
    %c0_39 = arith.constant 0 : index
    %c0_40 = arith.constant 0 : index
    %100 = vector.load %arg7[%c0_37, %c0_38, %c0_39, %c0_40] : memref<1x16x16x128xbf16, #tpu.memory_space<vmem>>, vector<1x16x16x128xbf16>
    %101 = vector.shape_cast %100 : vector<1x16x16x128xbf16> to vector<16x16x128xbf16>
    %102 = vector.shape_cast %99 : vector<16x16x128xbf16> to vector<1x16x16x128xbf16>
    tpu.vector_store %arg7[%c0_37, %c0_38, %c0_39, %c0_40], %102 {strides = array<i32>} : memref<1x16x16x128xbf16, #tpu.memory_space<vmem>>, vector<1x16x16x128xbf16>,
    return
  }
  func.func @transform_0(%arg0: i32, %arg1: i32) -> (i32, i32, i32, i32) {
    %c0_i32 = arith.constant 0 : i32
    %c0_i32_0 = arith.constant 0 : i32
    %c0_i32_1 = arith.constant 0 : i32
    %c0_i32_2 = arith.constant 0 : i32
    return %arg0, %c0_i32, %c0_i32_0, %c0_i32_1 : i32, i32, i32, i32
  }
  func.func @transform_1(%arg0: i32, %arg1: i32) -> (i32, i32, i32) {
    %c0_i32 = arith.constant 0 : i32
    %c0_i32_0 = arith.constant 0 : i32
    %c0_i32_1 = arith.constant 0 : i32
    %c0_i32_2 = arith.constant 0 : i32
    return %c0_i32, %c0_i32_0, %c0_i32_1 : i32, i32, i32
  }
  func.func @transform_2(%arg0: i32, %arg1: i32) -> (i32, i32, i32) {
    %c0_i32 = arith.constant 0 : i32
    %c0_i32_0 = arith.constant 0 : i32
    %c0_i32_1 = arith.constant 0 : i32
    %c0_i32_2 = arith.constant 0 : i32
    return %c0_i32, %c0_i32_0, %c0_i32_1 : i32, i32, i32
  }
  func.func @transform_3(%arg0: i32, %arg1: i32) -> (i32, i32, i32) {
    %c0_i32 = arith.constant 0 : i32
    %c0_i32_0 = arith.constant 0 : i32
    %c0_i32_1 = arith.constant 0 : i32
    %c0_i32_2 = arith.constant 0 : i32
    return %c0_i32, %c0_i32_0, %c0_i32_1 : i32, i32, i32
  }
  func.func @transform_4(%arg0: i32, %arg1: i32) -> (i32, i32, i32) {
    %c0_i32 = arith.constant 0 : i32
    %c0_i32_0 = arith.constant 0 : i32
    %c0_i32_1 = arith.constant 0 : i32
    %c0_i32_2 = arith.constant 0 : i32
    return %c0_i32, %c0_i32_0, %c0_i32_1 : i32, i32, i32
  }
  func.func @transform_5(%arg0: i32, %arg1: i32) -> (i32, i32, i32, i32) {
    %c0_i32 = arith.constant 0 : i32
    %c0_i32_0 = arith.constant 0 : i32
    %c0_i32_1 = arith.constant 0 : i32
    return %arg0, %arg1, %c0_i32, %c0_i32_0 : i32, i32, i32, i32
  }
}

</mosaic_0001>

<llo_original>
// kernel: tpu_custom_call.1
$region0: #{tpu_custom_call.1}
  #allocation0 [shape = 'u32[]', space=smem, size = 0x4, offset = 0x4, fixed_abs, tag = 'smem constant byte address 0x4 - core index']
  #allocation1 [shape = 'u32[72,128]{1,0:T(1,128)}', space=vmem, size = 0x9000, scoped, tag = 'internal scratch']
  %s0 = inlined_call_operand.vmem [shape: bf16[2,20,26,128], index: 0, kind: input, shape index: {}]
  %s1 = inlined_call_operand.vmem [shape: bf16[3,384,128], index: 1, kind: input, shape index: {}]
  %s2 = inlined_call_operand.vmem [shape: f32[1,1,128], index: 2, kind: input, shape index: {}]
  %s3 = inlined_call_operand.vmem [shape: bf16[3,384,128], index: 3, kind: input, shape index: {}]
  %s4 = inlined_call_operand.vmem [shape: f32[1,1,128], index: 4, kind: input, shape index: {}]
  %s5 = inlined_call_operand.hbm [shape: bf16[2,16,16,128], index: 5, kind: output, shape index: {}]
  %s6 = sld [smem:[#allocation0]]
  $region53: #{tpu_custom_call.1} parent=0
    _
  %s8 = ssub.s32 1, %s6
  %s9 = scalar_select 0, %s8, %s6
  $region1: #{tpu_custom_call.1} parent=0
    #allocation2 [shape = 'u8[131072]{0}', space=vmem, size = 0x20000, scoped, tag = 'output window, operand 0']
    #allocation3 [shape = 's32[2]{0}', space=sflag, size = 0x8, scoped, tag = 'scoped memory for tpu_custom_call.1']
    %10 = vsyncpa [#allocation3], 0
    %s11 = scalar_lea.sflag [#allocation3], 1
    %12 = vsyncpa %s11, 0
    loop: start=0, step=1, limit=4
    $region2: #{tpu_custom_call.1} parent=1 // loop_pre_header
      _
    $region3: #{tpu_custom_call.1} parent=1 // loop_header
      %s14 = sphi 0, %s18
      %p15 = scmp.ge.s32.totalorder %s14, 4
      %s21 = sphi 0, %s33
      %s22 = sphi 0, %s29
      %s23 = sphi 0, %s21
      %s24 = sphi 0, %s22
      %s25 = sphi 0, %s23
      %s26 = sphi 0, %s24
      %s36 = sphi 0, %s38
      %s39 = sphi 0, %s36
      %s40 = sphi 0, %s39
      %s56 = sphi 0, %s40
      %s60 = sphi 0, %s60
      %s62 = sphi 0, %s60
      %s63 = sphi 0, %s62
      %s77 = sphi 0, %s63
      %s81 = sphi 0, %s81
      %s83 = sphi 0, %s81
      %s84 = sphi 0, %s83
      %s98 = sphi 0, %s84
      %s102 = sphi 0, %s102
      %s104 = sphi 0, %s102
      %s105 = sphi 0, %s104
      %s119 = sphi 0, %s105
      %s123 = sphi 0, %s123
      %s125 = sphi 0, %s123
      %s126 = sphi 0, %s125
      %s140 = sphi 0, %s126
      %s148 = sphi 0, %s150
      %s151 = sphi 0, %s148
      %s152 = sphi 0, %s151
      %s168 = sphi 0, %s152
    $region4: #{tpu_custom_call.1} parent=1 // loop_header_branch
      %17 = sbr.rel (%p15) target = $region8
    $region5: #{tpu_custom_call.1} parent=1 // loop_body
      %s19 = ssub.s32 %s14, 1
      %s20 = ssub.s32 %s14, 2
      %s27 = sadd.s32 1, %s22
      %p28 = scmp.ge.s32.totalorder %s27, 1
      %s29 = scalar_select %p28, 0, %s27
      %s30 = sadd.s32 1, %s21
      %s31 = scalar_select %p28, %s30, %s21
      %p32 = scmp.ge.s32.totalorder %s31, 2
      %s33 = scalar_select %p32, 0, %s31
      %s34 = ssub.s32 %s21, %s33
      %p35 = scmp.eq.s32.totalorder %s34, 0
      %s37 = sadd.s32 %s36, 1
      %s38 = scalar_select %p35, %s36, %s37
      %p41 = pneg %p35
      %p42 = scmp.eq.s32.totalorder %s14, 1
      %p43 = por %p41, %p42
      %p44 = scmp.ne.s32.totalorder %s36, %s39
      %p45 = scmp.eq.s32.totalorder %s14, 0
      %p46 = por %p44, %p45
      %p47 = scmp.ne.s32.totalorder %s36, %s39
      %p48 = scmp.eq.s32.totalorder %s19, 1
      %p49 = por %p47, %p48
      %p50 = scmp.ne.s32.totalorder %s39, %s40
      %p51 = scmp.eq.s32.totalorder %s19, 0
      %p52 = por %p50, %p51
      %p53 = scmp.ne.s32.totalorder %s39, %s40
      %p54 = scmp.eq.s32.totalorder %s20, 1
      %p55 = por %p53, %p54
      %p57 = scmp.ne.s32.totalorder %s40, %s56
      %p58 = scmp.eq.s32.totalorder %s20, 0
      %p59 = por %p57, %p58
      %s61 = sadd.s32 %s60, 1
      %p64 = scmp.eq.s32.totalorder %s14, 1
      %p65 = scmp.ne.s32.totalorder %s60, %s62
      %p66 = scmp.eq.s32.totalorder %s14, 0
      %p67 = por %p65, %p66
      %p68 = scmp.ne.s32.totalorder %s60, %s62
      %p69 = scmp.eq.s32.totalorder %s19, 1
      %p70 = por %p68, %p69
      %p71 = scmp.ne.s32.totalorder %s62, %s63
      %p72 = scmp.eq.s32.totalorder %s19, 0
      %p73 = por %p71, %p72
      %p74 = scmp.ne.s32.totalorder %s62, %s63
      %p75 = scmp.eq.s32.totalorder %s20, 1
      %p76 = por %p74, %p75
      %p78 = scmp.ne.s32.totalorder %s63, %s77
      %p79 = scmp.eq.s32.totalorder %s20, 0
      %p80 = por %p78, %p79
      %s82 = sadd.s32 %s81, 1
      %p85 = scmp.eq.s32.totalorder %s14, 1
      %p86 = scmp.ne.s32.totalorder %s81, %s83
      %p87 = scmp.eq.s32.totalorder %s14, 0
      %p88 = por %p86, %p87
      %p89 = scmp.ne.s32.totalorder %s81, %s83
      %p90 = scmp.eq.s32.totalorder %s19, 1
      %p91 = por %p89, %p90
      %p92 = scmp.ne.s32.totalorder %s83, %s84
      %p93 = scmp.eq.s32.totalorder %s19, 0
      %p94 = por %p92, %p93
      %p95 = scmp.ne.s32.totalorder %s83, %s84
      %p96 = scmp.eq.s32.totalorder %s20, 1
      %p97 = por %p95, %p96
      %p99 = scmp.ne.s32.totalorder %s84, %s98
      %p100 = scmp.eq.s32.totalorder %s20, 0
      %p101 = por %p99, %p100
      %s103 = sadd.s32 %s102, 1
      %p106 = scmp.eq.s32.totalorder %s14, 1
      %p107 = scmp.ne.s32.totalorder %s102, %s104
      %p108 = scmp.eq.s32.totalorder %s14, 0
      %p109 = por %p107, %p108
      %p110 = scmp.ne.s32.totalorder %s102, %s104
      %p111 = scmp.eq.s32.totalorder %s19, 1
      %p112 = por %p110, %p111
      %p113 = scmp.ne.s32.totalorder %s104, %s105
      %p114 = scmp.eq.s32.totalorder %s19, 0
      %p115 = por %p113, %p114
      %p116 = scmp.ne.s32.totalorder %s104, %s105
      %p117 = scmp.eq.s32.totalorder %s20, 1
      %p118 = por %p116, %p117
      %p120 = scmp.ne.s32.totalorder %s105, %s119
      %p121 = scmp.eq.s32.totalorder %s20, 0
      %p122 = por %p120, %p121
      %s124 = sadd.s32 %s123, 1
      %p127 = scmp.eq.s32.totalorder %s14, 1
      %p128 = scmp.ne.s32.totalorder %s123, %s125
      %p129 = scmp.eq.s32.totalorder %s14, 0
      %p130 = por %p128, %p129
      %p131 = scmp.ne.s32.totalorder %s123, %s125
      %p132 = scmp.eq.s32.totalorder %s19, 1
      %p133 = por %p131, %p132
      %p134 = scmp.ne.s32.totalorder %s125, %s126
      %p135 = scmp.eq.s32.totalorder %s19, 0
      %p136 = por %p134, %p135
      %p137 = scmp.ne.s32.totalorder %s125, %s126
      %p138 = scmp.eq.s32.totalorder %s20, 1
      %p139 = por %p137, %p138
      %p141 = scmp.ne.s32.totalorder %s126, %s140
      %p142 = scmp.eq.s32.totalorder %s20, 0
      %p143 = por %p141, %p142
      %s144 = ssub.s32 %s21, %s33
      %s145 = ssub.s32 %s22, %s29
      %s146 = sor.u32 %s144, %s145
      %p147 = scmp.eq.s32.totalorder %s146, 0
      %s149 = sadd.s32 %s148, 1
      %s150 = scalar_select %p147, %s148, %s149
      %p153 = pneg %p147
      %p154 = scmp.eq.s32.totalorder %s14, 1
      %p155 = por %p153, %p154
      %p156 = scmp.ne.s32.totalorder %s148, %s151
      %p157 = scmp.eq.s32.totalorder %s14, 0
      %p158 = por %p156, %p157
      %p159 = scmp.ne.s32.totalorder %s148, %s151
      %p160 = scmp.eq.s32.totalorder %s19, 1
      %p161 = por %p159, %p160
      %p162 = scmp.ne.s32.totalorder %s151, %s152
      %p163 = scmp.eq.s32.totalorder %s19, 0
      %p164 = por %p162, %p163
      %p165 = scmp.ne.s32.totalorder %s151, %s152
      %p166 = scmp.eq.s32.totalorder %s20, 1
      %p167 = por %p165, %p166
      %p169 = scmp.ne.s32.totalorder %s152, %s168
      %p170 = scmp.eq.s32.totalorder %s20, 0
      %p171 = por %p169, %p170
      %p172 = scmp.le.s32.totalorder 1, %s14
      %p173 = scmp.lt.s32.totalorder %s14, 3
      %p174 = pnand %p172, %p173
      %p175 = pneg %p174
      // Predicated region
      $region9: #{tpu_custom_call.1} parent=5 // pred_check
        _
      $region10: #{tpu_custom_call.1} parent=5 // pred_check_branch
        %177 = sbr.rel (%p174) target = $region12
      $region11: #{tpu_custom_call.1} parent=5 // pred_region
        %s178 = ssub.s32 %s14, 1
        // Predicated region
        $region13: #{tpu_custom_call.1} parent=11 // pred_check
          %p179 = pneg %p73
        $region14: #{tpu_custom_call.1} parent=11 // pred_check_branch
          %181 = sbr.rel (%p179) target = $region16
        $region15: #{tpu_custom_call.1} parent=11 // pred_region
          _
        $region16: #{tpu_custom_call.1} parent=11 // pred_fallthru
          _
        // Predicated region
        $region17: #{tpu_custom_call.1} parent=11 // pred_check
          %p182 = pneg %p94
        $region18: #{tpu_custom_call.1} parent=11 // pred_check_branch
          %184 = sbr.rel (%p182) target = $region20
        $region19: #{tpu_custom_call.1} parent=11 // pred_region
          _
        $region20: #{tpu_custom_call.1} parent=11 // pred_fallthru
          _
        // Predicated region
        $region21: #{tpu_custom_call.1} parent=11 // pred_check
          %p185 = pneg %p115
        $region22: #{tpu_custom_call.1} parent=11 // pred_check_branch
          %187 = sbr.rel (%p185) target = $region24
        $region23: #{tpu_custom_call.1} parent=11 // pred_region
          _
        $region24: #{tpu_custom_call.1} parent=11 // pred_fallthru
          _
        // Predicated region
        $region25: #{tpu_custom_call.1} parent=11 // pred_check
          %p188 = pneg %p136
        $region26: #{tpu_custom_call.1} parent=11 // pred_check_branch
          %190 = sbr.rel (%p188) target = $region28
        $region27: #{tpu_custom_call.1} parent=11 // pred_region
          _
        $region28: #{tpu_custom_call.1} parent=11 // pred_fallthru
          _
      $region12: #{tpu_custom_call.1} parent=5 // pred_fallthru
        _
      %p191 = scmp.lt.s32.totalorder %s14, 2
      // Predicated region
      $region29: #{tpu_custom_call.1} parent=5 // pred_check
        %p192 = pneg %p191
      $region30: #{tpu_custom_call.1} parent=5 // pred_check_branch
        %194 = sbr.rel (%p192) target = $region32
      $region31: #{tpu_custom_call.1} parent=5 // pred_region
        // Predicated region
        $region33: #{tpu_custom_call.1} parent=31 // pred_check
          %p195 = pneg %p46
        $region34: #{tpu_custom_call.1} parent=31 // pred_check_branch
          %197 = sbr.rel (%p195) target = $region36
        $region35: #{tpu_custom_call.1} parent=31 // pred_region
          %p198 = scmp.lt.s32.totalorder %s21, 1
          %s199 = scalar_select %p198, %s21, 1
          %s200 = smul.addr %s199, 80
          %s201 = smul.addr %s200, 4
          %s202 = scalar_lea.vmem %s0, %s201
        $region36: #{tpu_custom_call.1} parent=31 // pred_fallthru
          _
      $region32: #{tpu_custom_call.1} parent=5 // pred_fallthru
        _
      %p203 = scmp.le.s32.totalorder 1, %s14
      %p204 = scmp.lt.s32.totalorder %s14, 3
      %p205 = pnand %p203, %p204
      %p206 = pneg %p205
      // Predicated region
      $region37: #{tpu_custom_call.1} parent=5 // pred_check
        _
      $region38: #{tpu_custom_call.1} parent=5 // pred_check_branch
        %208 = sbr.rel (%p205) target = $region40
      $region39: #{tpu_custom_call.1} parent=5 // pred_region
        %s209 = ssub.s32 %s14, 1
        %p210 = scmp.lt.s32.totalorder %s23, 1
        %s211 = scalar_select %p210, %s23, 1
        %s212 = smul.addr %s211, 80
        %s213 = smul.addr %s212, 4
        %s214 = scalar_lea.vmem %s0, %s213
        %p215 = pneg %p52
        %p216 = pneg %p49
        %p217 = pneg %p73
        %p218 = pneg %p70
        %p219 = pneg %p94
        %p220 = pneg %p91
        %p221 = pneg %p115
        %p222 = pneg %p112
        %p223 = pneg %p136
        %p224 = pneg %p133
        %p225 = pneg %p164
        %p226 = pneg %p161
        %s227 = sand.u32 %s151, 1
        %s228 = scalar_lea.sflag [#allocation3], %s227
        %s229 = sand.u32 %s151, 1
        %s230 = smul.addr %s229, 128
        %s231 = scalar_lea.vmem [#allocation2], %s230
        %p232 = scmp.lt.s32.totalorder %s23, 1
        %s233 = scalar_select %p232, %s23, 1
        %s234 = smul.addr %s233, 80
        %s235 = smul.addr %s234, 4
        %s236 = scalar_lea.vmem %s0, %s235
        %s237 = smul.u32 16, %s24
        %v238 = vld [vmem:[%s236] sm:$0xf]
        %v239 = vld [vmem:[%s236 + $0x4] sm:$0xf]
        %v240 = vld [vmem:[%s236 + $0x8] sm:$0xf]
        %v241 = vld [vmem:[%s236 + $0xc] sm:$0x1]
        %v242 = vld [vmem:[%s236 + $0x10] sm:$0xf]
        %v243 = vld [vmem:[%s236 + $0x14] sm:$0xf]
        %v244 = vld [vmem:[%s236 + $0x18] sm:$0xf]
        %v245 = vld [vmem:[%s236 + $0x1c] sm:$0x1]
        %v246 = vld [vmem:[%s236 + $0x20] sm:$0xf]
        %v247 = vld [vmem:[%s236 + $0x24] sm:$0xf]
        %v248 = vld [vmem:[%s236 + $0x28] sm:$0xf]
        %v249 = vld [vmem:[%s236 + $0x2c] sm:$0x1]
        %v250 = vld [vmem:[%s236 + $0x30] sm:$0xf]
        %v251 = vld [vmem:[%s236 + $0x34] sm:$0xf]
        %v252 = vld [vmem:[%s236 + $0x38] sm:$0xf]
        %v253 = vld [vmem:[%s236 + $0x3c] sm:$0x1]
        %v254 = vld [vmem:[%s236 + $0x40] sm:$0xf]
        %v255 = vld [vmem:[%s236 + $0x44] sm:$0xf]
        %v256 = vld [vmem:[%s236 + $0x48] sm:$0xf]
        %v257 = vld [vmem:[%s236 + $0x4c] sm:$0x1]
        %v258 = vld [vmem:[%s236 + $0x50] sm:$0xf]
        %v259 = vld [vmem:[%s236 + $0x54] sm:$0xf]
        %v260 = vld [vmem:[%s236 + $0x58] sm:$0xf]
        %v261 = vld [vmem:[%s236 + $0x5c] sm:$0x1]
        %v262 = vld [vmem:[%s236 + $0x60] sm:$0xf]
        %v263 = vld [vmem:[%s236 + $0x64] sm:$0xf]
        %v264 = vld [vmem:[%s236 + $0x68] sm:$0xf]
        %v265 = vld [vmem:[%s236 + $0x6c] sm:$0x1]
        %v266 = vld [vmem:[%s236 + $0x70] sm:$0xf]
        %v267 = vld [vmem:[%s236 + $0x74] sm:$0xf]
        %v268 = vld [vmem:[%s236 + $0x78] sm:$0xf]
        %v269 = vld [vmem:[%s236 + $0x7c] sm:$0x1]
        %v270 = vld [vmem:[%s236 + $0x80] sm:$0xf]
        %v271 = vld [vmem:[%s236 + $0x84] sm:$0xf]
        %v272 = vld [vmem:[%s236 + $0x88] sm:$0xf]
        %v273 = vld [vmem:[%s236 + $0x8c] sm:$0x1]
        %v274 = vld [vmem:[%s236 + $0x90] sm:$0xf]
        %v275 = vld [vmem:[%s236 + $0x94] sm:$0xf]
        %v276 = vld [vmem:[%s236 + $0x98] sm:$0xf]
        %v277 = vld [vmem:[%s236 + $0x9c] sm:$0x1]
        %v278 = vld [vmem:[%s236 + $0xa0] sm:$0xf]
        %v279 = vld [vmem:[%s236 + $0xa4] sm:$0xf]
        %v280 = vld [vmem:[%s236 + $0xa8] sm:$0xf]
        %v281 = vld [vmem:[%s236 + $0xac] sm:$0x1]
        %v282 = vld [vmem:[%s236 + $0xb0] sm:$0xf]
        %v283 = vld [vmem:[%s236 + $0xb4] sm:$0xf]
        %v284 = vld [vmem:[%s236 + $0xb8] sm:$0xf]
        %v285 = vld [vmem:[%s236 + $0xbc] sm:$0x1]
        %v286 = vld [vmem:[%s236 + $0xc0] sm:$0xf]
        %v287 = vld [vmem:[%s236 + $0xc4] sm:$0xf]
        %v288 = vld [vmem:[%s236 + $0xc8] sm:$0xf]
        %v289 = vld [vmem:[%s236 + $0xcc] sm:$0x1]
        %v290 = vld [vmem:[%s236 + $0xd0] sm:$0xf]
        %v291 = vld [vmem:[%s236 + $0xd4] sm:$0xf]
        %v292 = vld [vmem:[%s236 + $0xd8] sm:$0xf]
        %v293 = vld [vmem:[%s236 + $0xdc] sm:$0x1]
        %v294 = vld [vmem:[%s236 + $0xe0] sm:$0xf]
        %v295 = vld [vmem:[%s236 + $0xe4] sm:$0xf]
        %v296 = vld [vmem:[%s236 + $0xe8] sm:$0xf]
        %v297 = vld [vmem:[%s236 + $0xec] sm:$0x1]
        %v298 = vld [vmem:[%s236 + $0xf0] sm:$0xf]
        %v299 = vld [vmem:[%s236 + $0xf4] sm:$0xf]
        %v300 = vld [vmem:[%s236 + $0xf8] sm:$0xf]
        %v301 = vld [vmem:[%s236 + $0xfc] sm:$0x1]
        %v302 = vld [vmem:[%s236 + $0x100] sm:$0xf]
        %v303 = vld [vmem:[%s236 + $0x104] sm:$0xf]
        %v304 = vld [vmem:[%s236 + $0x108] sm:$0xf]
        %v305 = vld [vmem:[%s236 + $0x10c] sm:$0x1]
        %v306 = vld [vmem:[%s236 + $0x110] sm:$0xf]
        %v307 = vld [vmem:[%s236 + $0x114] sm:$0xf]
        %v308 = vld [vmem:[%s236 + $0x118] sm:$0xf]
        %v309 = vld [vmem:[%s236 + $0x11c] sm:$0x1]
        %v310 = vld [vmem:[%s236 + $0x120] sm:$0xf]
        %v311 = vld [vmem:[%s236 + $0x124] sm:$0xf]
        %v312 = vld [vmem:[%s236 + $0x128] sm:$0xf]
        %v313 = vld [vmem:[%s236 + $0x12c] sm:$0x1]
        %v314 = vld [vmem:[%s236 + $0x130] sm:$0xf]
        %v315 = vld [vmem:[%s236 + $0x134] sm:$0xf]
        %v316 = vld [vmem:[%s236 + $0x138] sm:$0xf]
        %v317 = vld [vmem:[%s236 + $0x13c] sm:$0x1]
        %v372 = vunpack.c.l.b16 %v238
        %v373 = vunpack.c.l.b16 %v239
        %v374 = vunpack.c.l.b16 %v240
        %v375 = vunpack.c.l.b16 %v242
        %v376 = vunpack.c.l.b16 %v243
        %v377 = vunpack.c.l.b16 %v244
        %v378 = vunpack.c.l.b16 %v246
        %v379 = vunpack.c.l.b16 %v247
        %v380 = vunpack.c.l.b16 %v248
        %v381 = vunpack.c.l.b16 %v250
        %v382 = vunpack.c.l.b16 %v251
        %v383 = vunpack.c.l.b16 %v252
        %v384 = vunpack.c.l.b16 %v254
        %v385 = vunpack.c.l.b16 %v255
        %v386 = vunpack.c.l.b16 %v256
        %v387 = vunpack.c.l.b16 %v258
        %v388 = vunpack.c.l.b16 %v259
        %v389 = vunpack.c.l.b16 %v260
        %v390 = vunpack.c.l.b16 %v262
        %v391 = vunpack.c.l.b16 %v263
        %v392 = vunpack.c.l.b16 %v264
        %v393 = vunpack.c.l.b16 %v266
        %v394 = vunpack.c.l.b16 %v267
        %v395 = vunpack.c.l.b16 %v268
        %v396 = vunpack.c.l.b16 %v270
        %v397 = vunpack.c.l.b16 %v271
        %v398 = vunpack.c.l.b16 %v272
        %v399 = vunpack.c.l.b16 %v274
        %v400 = vunpack.c.l.b16 %v275
        %v401 = vunpack.c.l.b16 %v276
        %v402 = vunpack.c.l.b16 %v278
        %v403 = vunpack.c.l.b16 %v279
        %v404 = vunpack.c.l.b16 %v280
        %v405 = vunpack.c.l.b16 %v282
        %v406 = vunpack.c.l.b16 %v283
        %v407 = vunpack.c.l.b16 %v284
        %v408 = vunpack.c.l.b16 %v286
        %v409 = vunpack.c.l.b16 %v287
        %v410 = vunpack.c.l.b16 %v288
        %v411 = vunpack.c.l.b16 %v290
        %v412 = vunpack.c.l.b16 %v291
        %v413 = vunpack.c.l.b16 %v292
        %v414 = vunpack.c.l.b16 %v294
        %v415 = vunpack.c.l.b16 %v295
        %v416 = vunpack.c.l.b16 %v296
        %v417 = vunpack.c.l.b16 %v298
        %v418 = vunpack.c.l.b16 %v299
        %v419 = vunpack.c.l.b16 %v300
        %v420 = vunpack.c.l.b16 %v302
        %v421 = vunpack.c.l.b16 %v303
        %v422 = vunpack.c.l.b16 %v304
        %v423 = vunpack.c.l.b16 %v306
        %v424 = vunpack.c.l.b16 %v307
        %v425 = vunpack.c.l.b16 %v308
        %v429 = vunpack.c.l.b16 %v310
        %v430 = vunpack.c.l.b16 %v311
        %v431 = vunpack.c.l.b16 %v312
        %v435 = vunpack.c.l.b16 %v314
        %v436 = vunpack.c.l.b16 %v315
        %v437 = vunpack.c.l.b16 %v316
        %v438 = vld [vmem:[%s1] sm:$0xf]
        %v439 = vld [vmem:[%s1 + $0x4] sm:$0xf]
        %v440 = vld [vmem:[%s1 + $0x8] sm:$0xf]
        %v441 = vld [vmem:[%s1 + $0xc] sm:$0xf]
        %v442 = vld [vmem:[%s1 + $0x10] sm:$0xf]
        %v443 = vld [vmem:[%s1 + $0x14] sm:$0xf]
        %v444 = vld [vmem:[%s1 + $0x18] sm:$0xf]
        %v445 = vld [vmem:[%s1 + $0x1c] sm:$0xf]
        %v446 = vld [vmem:[%s1 + $0x20] sm:$0xf]
        %v447 = vld [vmem:[%s1 + $0x24] sm:$0xf]
        %v448 = vld [vmem:[%s1 + $0x28] sm:$0xf]
        %v449 = vld [vmem:[%s1 + $0x2c] sm:$0xf]
        %v450 = vld [vmem:[%s1 + $0x30] sm:$0xf]
        %v451 = vld [vmem:[%s1 + $0x34] sm:$0xf]
        %v452 = vld [vmem:[%s1 + $0x38] sm:$0xf]
        %v453 = vld [vmem:[%s1 + $0x3c] sm:$0xf]
        %v454 = vld [vmem:[%s1 + $0x40] sm:$0xf]
        %v455 = vld [vmem:[%s1 + $0x44] sm:$0xf]
        %v456 = vld [vmem:[%s1 + $0x48] sm:$0xf]
        %v457 = vld [vmem:[%s1 + $0x4c] sm:$0xf]
        %v458 = vld [vmem:[%s1 + $0x50] sm:$0xf]
        %v459 = vld [vmem:[%s1 + $0x54] sm:$0xf]
        %v460 = vld [vmem:[%s1 + $0x58] sm:$0xf]
        %v461 = vld [vmem:[%s1 + $0x5c] sm:$0xf]
        %v462 = vld [vmem:[%s1 + $0x60] sm:$0xf]
        %v463 = vld [vmem:[%s1 + $0x64] sm:$0xf]
        %v464 = vld [vmem:[%s1 + $0x68] sm:$0xf]
        %v465 = vld [vmem:[%s1 + $0x6c] sm:$0xf]
        %v466 = vld [vmem:[%s1 + $0x70] sm:$0xf]
        %v467 = vld [vmem:[%s1 + $0x74] sm:$0xf]
        %v468 = vld [vmem:[%s1 + $0x78] sm:$0xf]
        %v469 = vld [vmem:[%s1 + $0x7c] sm:$0xf]
        %v470 = vld [vmem:[%s1 + $0x80] sm:$0xf]
        %v471 = vld [vmem:[%s1 + $0x84] sm:$0xf]
        %v472 = vld [vmem:[%s1 + $0x88] sm:$0xf]
        %v473 = vld [vmem:[%s1 + $0x8c] sm:$0xf]
        %v474 = vld [vmem:[%s1 + $0x90] sm:$0xf]
        %v475 = vld [vmem:[%s1 + $0x94] sm:$0xf]
        %v476 = vld [vmem:[%s1 + $0x98] sm:$0xf]
        %v477 = vld [vmem:[%s1 + $0x9c] sm:$0xf]
        %v478 = vld [vmem:[%s1 + $0xa0] sm:$0xf]
        %v479 = vld [vmem:[%s1 + $0xa4] sm:$0xf]
        %v480 = vld [vmem:[%s1 + $0xa8] sm:$0xf]
        %v481 = vld [vmem:[%s1 + $0xac] sm:$0xf]
        %v482 = vld [vmem:[%s1 + $0xb0] sm:$0xf]
        %v483 = vld [vmem:[%s1 + $0xb4] sm:$0xf]
        %v484 = vld [vmem:[%s1 + $0xb8] sm:$0xf]
        %v485 = vld [vmem:[%s1 + $0xbc] sm:$0xf]
        %v504 = vunpack.c.l.b16 %v241
        %v505 = vunpack.c.l.b16 %v245
        %v506 = vunpack.c.l.b16 %v249
        %v507 = vunpack.c.l.b16 %v253
        %v508 = vunpack.c.l.b16 %v257
        %v509 = vunpack.c.l.b16 %v261
        %v510 = vunpack.c.l.b16 %v265
        %v511 = vunpack.c.l.b16 %v269
        %v512 = vunpack.c.l.b16 %v273
        %v513 = vunpack.c.l.b16 %v277
        %v514 = vunpack.c.l.b16 %v281
        %v515 = vunpack.c.l.b16 %v285
        %v516 = vunpack.c.l.b16 %v289
        %v517 = vunpack.c.l.b16 %v293
        %v518 = vunpack.c.l.b16 %v297
        %v519 = vunpack.c.l.b16 %v301
        %v520 = vunpack.c.l.b16 %v305
        %v521 = vunpack.c.l.b16 %v309
        %v523 = vunpack.c.l.b16 %v313
        %v525 = vunpack.c.l.b16 %v317
        %v526 = vpack.c.b16 %v375, %v372
        %v527 = vpack.c.b16 %v378, %v378
        %v528 = vpack.c.b16 %v376, %v373
        %v529 = vpack.c.b16 %v379, %v379
        %v530 = vpack.c.b16 %v377, %v374
        %v531 = vpack.c.b16 %v380, %v380
        %v532 = vpack.c.b16 %v505, %v504
        %v533 = vpack.c.b16 %v506, %v506
        %v534 = vpack.c.b16 %v378, %v375
        %v535 = vpack.c.b16 %v381, %v381
        %v536 = vpack.c.b16 %v379, %v376
        %v537 = vpack.c.b16 %v382, %v382
        %v538 = vpack.c.b16 %v380, %v377
        %v539 = vpack.c.b16 %v383, %v383
        %v540 = vpack.c.b16 %v506, %v505
        %v541 = vpack.c.b16 %v507, %v507
        %v542 = vpack.c.b16 %v381, %v378
        %v543 = vpack.c.b16 %v384, %v384
        %v544 = vpack.c.b16 %v382, %v379
        %v545 = vpack.c.b16 %v385, %v385
        %v546 = vpack.c.b16 %v383, %v380
        %v547 = vpack.c.b16 %v386, %v386
        %v548 = vpack.c.b16 %v507, %v506
        %v549 = vpack.c.b16 %v508, %v508
        %v550 = vpack.c.b16 %v384, %v381
        %v551 = vpack.c.b16 %v387, %v387
        %v552 = vpack.c.b16 %v385, %v382
        %v553 = vpack.c.b16 %v388, %v388
        %v554 = vpack.c.b16 %v386, %v383
        %v555 = vpack.c.b16 %v389, %v389
        %v556 = vpack.c.b16 %v508, %v507
        %v557 = vpack.c.b16 %v509, %v509
        %v558 = vpack.c.b16 %v387, %v384
        %v559 = vpack.c.b16 %v390, %v390
        %v560 = vpack.c.b16 %v388, %v385
        %v561 = vpack.c.b16 %v391, %v391
        %v562 = vpack.c.b16 %v389, %v386
        %v563 = vpack.c.b16 %v392, %v392
        %v564 = vpack.c.b16 %v509, %v508
        %v565 = vpack.c.b16 %v510, %v510
        %v566 = vpack.c.b16 %v390, %v387
        %v567 = vpack.c.b16 %v393, %v393
        %v568 = vpack.c.b16 %v391, %v388
        %v569 = vpack.c.b16 %v394, %v394
        %v570 = vpack.c.b16 %v392, %v389
        %v571 = vpack.c.b16 %v395, %v395
        %v572 = vpack.c.b16 %v510, %v509
        %v573 = vpack.c.b16 %v511, %v511
        %v574 = vpack.c.b16 %v393, %v390
        %v575 = vpack.c.b16 %v396, %v396
        %v576 = vpack.c.b16 %v394, %v391
        %v577 = vpack.c.b16 %v397, %v397
        %v578 = vpack.c.b16 %v395, %v392
        %v579 = vpack.c.b16 %v398, %v398
        %v580 = vpack.c.b16 %v511, %v510
        %v581 = vpack.c.b16 %v512, %v512
        %v582 = vpack.c.b16 %v396, %v393
        %v583 = vpack.c.b16 %v399, %v399
        %v584 = vpack.c.b16 %v397, %v394
        %v585 = vpack.c.b16 %v400, %v400
        %v586 = vpack.c.b16 %v398, %v395
        %v587 = vpack.c.b16 %v401, %v401
        %v588 = vpack.c.b16 %v512, %v511
        %v589 = vpack.c.b16 %v513, %v513
        %v590 = vpack.c.b16 %v399, %v396
        %v591 = vpack.c.b16 %v402, %v402
        %v592 = vpack.c.b16 %v400, %v397
        %v593 = vpack.c.b16 %v403, %v403
        %v594 = vpack.c.b16 %v401, %v398
        %v595 = vpack.c.b16 %v404, %v404
        %v596 = vpack.c.b16 %v513, %v512
        %v597 = vpack.c.b16 %v514, %v514
        %v598 = vpack.c.b16 %v402, %v399
        %v599 = vpack.c.b16 %v405, %v405
        %v600 = vpack.c.b16 %v403, %v400
        %v601 = vpack.c.b16 %v406, %v406
        %v602 = vpack.c.b16 %v404, %v401
        %v603 = vpack.c.b16 %v407, %v407
        %v604 = vpack.c.b16 %v514, %v513
        %v605 = vpack.c.b16 %v515, %v515
        %v606 = vpack.c.b16 %v405, %v402
        %v607 = vpack.c.b16 %v408, %v408
        %v608 = vpack.c.b16 %v406, %v403
        %v609 = vpack.c.b16 %v409, %v409
        %v610 = vpack.c.b16 %v407, %v404
        %v611 = vpack.c.b16 %v410, %v410
        %v612 = vpack.c.b16 %v515, %v514
        %v613 = vpack.c.b16 %v516, %v516
        %v614 = vpack.c.b16 %v408, %v405
        %v615 = vpack.c.b16 %v411, %v411
        %v616 = vpack.c.b16 %v409, %v406
        %v617 = vpack.c.b16 %v412, %v412
        %v618 = vpack.c.b16 %v410, %v407
        %v619 = vpack.c.b16 %v413, %v413
        %v620 = vpack.c.b16 %v516, %v515
        %v621 = vpack.c.b16 %v517, %v517
        %v622 = vpack.c.b16 %v411, %v408
        %v623 = vpack.c.b16 %v414, %v414
        %v624 = vpack.c.b16 %v412, %v409
        %v625 = vpack.c.b16 %v415, %v415
        %v626 = vpack.c.b16 %v413, %v410
        %v627 = vpack.c.b16 %v416, %v416
        %v628 = vpack.c.b16 %v517, %v516
        %v629 = vpack.c.b16 %v518, %v518
        %v630 = vpack.c.b16 %v414, %v411
        %v631 = vpack.c.b16 %v417, %v417
        %v632 = vpack.c.b16 %v415, %v412
        %v633 = vpack.c.b16 %v418, %v418
        %v634 = vpack.c.b16 %v416, %v413
        %v635 = vpack.c.b16 %v419, %v419
        %v636 = vpack.c.b16 %v518, %v517
        %v637 = vpack.c.b16 %v519, %v519
        %v638 = vpack.c.b16 %v417, %v414
        %v639 = vpack.c.b16 %v420, %v420
        %v640 = vpack.c.b16 %v418, %v415
        %v641 = vpack.c.b16 %v421, %v421
        %v642 = vpack.c.b16 %v419, %v416
        %v643 = vpack.c.b16 %v422, %v422
        %v644 = vpack.c.b16 %v519, %v518
        %v645 = vpack.c.b16 %v520, %v520
        %v646 = vpack.c.b16 %v420, %v417
        %v647 = vpack.c.b16 %v423, %v423
        %v648 = vpack.c.b16 %v421, %v418
        %v649 = vpack.c.b16 %v424, %v424
        %v650 = vpack.c.b16 %v422, %v419
        %v651 = vpack.c.b16 %v425, %v425
        %v652 = vpack.c.b16 %v520, %v519
        %v653 = vpack.c.b16 %v521, %v521
        %v654 = vpack.c.b16 %v423, %v420
        %v655 = vpack.c.b16 %v429, %v429
        %v656 = vpack.c.b16 %v424, %v421
        %v657 = vpack.c.b16 %v430, %v430
        %v658 = vpack.c.b16 %v425, %v422
        %v659 = vpack.c.b16 %v431, %v431
        %v660 = vpack.c.b16 %v521, %v520
        %v661 = vpack.c.b16 %v523, %v523
        %v662 = vpack.c.b16 %v429, %v423
        %v663 = vpack.c.b16 %v435, %v435
        %v664 = vpack.c.b16 %v430, %v424
        %v665 = vpack.c.b16 %v436, %v436
        %v666 = vpack.c.b16 %v431, %v425
        %v667 = vpack.c.b16 %v437, %v437
        %v668 = vpack.c.b16 %v523, %v521
        %v669 = vpack.c.b16 %v525, %v525
        %vm670 = vsmask.f32 3328
        %vm671 = vsmask.f32 7440
        %vm672 = vmor %vm670, %vm671
        %v674 = vshrl.u32 %v526, 16
        %v676 = vrot.slane %v674, 4
        %v677 = vshll.u32 %v526, 16
        %v679 = vrot.slane %v677, 5
        %v680 = vor.u32 %v676, %v679
        %v681 = vrot.slane %v680, 4
        %v683 = vshll.u32 %v528, 16
        %v685 = vrot.slane %v683, 5
        %v686 = vsel %vm672, %v681, %v685
        %v688 = vshrl.u32 %v527, 16
        %v690 = vrot.slane %v688, 4
        %v691 = vshll.u32 %v527, 16
        %v693 = vrot.slane %v691, 5
        %v694 = vor.u32 %v690, %v693
        %v695 = vrot.slane %v694, 4
        %v697 = vshll.u32 %v529, 16
        %v699 = vrot.slane %v697, 5
        %v700 = vsel %vm672, %v695, %v699
        %v701 = vshrl.u32 %v528, 16
        %v703 = vrot.slane %v701, 4
        %v704 = vor.u32 %v703, %v685
        %v705 = vrot.slane %v704, 4
        %v707 = vshll.u32 %v530, 16
        %v709 = vrot.slane %v707, 5
        %v710 = vsel %vm672, %v705, %v709
        %v711 = vshrl.u32 %v529, 16
        %v713 = vrot.slane %v711, 4
        %v714 = vor.u32 %v713, %v699
        %v715 = vrot.slane %v714, 4
        %v717 = vshll.u32 %v531, 16
        %v719 = vrot.slane %v717, 5
        %v720 = vsel %vm672, %v715, %v719
        %v721 = vshrl.u32 %v530, 16
        %v723 = vrot.slane %v721, 4
        %v724 = vor.u32 %v723, %v709
        %v725 = vrot.slane %v724, 4
        %v727 = vshll.u32 %v532, 16
        %v729 = vrot.slane %v727, 5
        %v730 = vsel %vm672, %v725, %v729
        %v731 = vshrl.u32 %v531, 16
        %v733 = vrot.slane %v731, 4
        %v734 = vor.u32 %v733, %v719
        %v735 = vrot.slane %v734, 4
        %v737 = vshll.u32 %v533, 16
        %v739 = vrot.slane %v737, 5
        %v740 = vsel %vm672, %v735, %v739
        %v742 = vshrl.u32 %v534, 16
        %v744 = vrot.slane %v742, 4
        %v745 = vshll.u32 %v534, 16
        %v747 = vrot.slane %v745, 5
        %v748 = vor.u32 %v744, %v747
        %v749 = vrot.slane %v748, 4
        %v751 = vshll.u32 %v536, 16
        %v753 = vrot.slane %v751, 5
        %v754 = vsel %vm672, %v749, %v753
        %v756 = vshrl.u32 %v535, 16
        %v758 = vrot.slane %v756, 4
        %v759 = vshll.u32 %v535, 16
        %v761 = vrot.slane %v759, 5
        %v762 = vor.u32 %v758, %v761
        %v763 = vrot.slane %v762, 4
        %v765 = vshll.u32 %v537, 16
        %v767 = vrot.slane %v765, 5
        %v768 = vsel %vm672, %v763, %v767
        %v769 = vshrl.u32 %v536, 16
        %v771 = vrot.slane %v769, 4
        %v772 = vor.u32 %v771, %v753
        %v773 = vrot.slane %v772, 4
        %v775 = vshll.u32 %v538, 16
        %v777 = vrot.slane %v775, 5
        %v778 = vsel %vm672, %v773, %v777
        %v779 = vshrl.u32 %v537, 16
        %v781 = vrot.slane %v779, 4
        %v782 = vor.u32 %v781, %v767
        %v783 = vrot.slane %v782, 4
        %v785 = vshll.u32 %v539, 16
        %v787 = vrot.slane %v785, 5
        %v788 = vsel %vm672, %v783, %v787
        %v789 = vshrl.u32 %v538, 16
        %v791 = vrot.slane %v789, 4
        %v792 = vor.u32 %v791, %v777
        %v793 = vrot.slane %v792, 4
        %v795 = vshll.u32 %v540, 16
        %v797 = vrot.slane %v795, 5
        %v798 = vsel %vm672, %v793, %v797
        %v799 = vshrl.u32 %v539, 16
        %v801 = vrot.slane %v799, 4
        %v802 = vor.u32 %v801, %v787
        %v803 = vrot.slane %v802, 4
        %v805 = vshll.u32 %v541, 16
        %v807 = vrot.slane %v805, 5
        %v808 = vsel %vm672, %v803, %v807
        %v810 = vshrl.u32 %v542, 16
        %v812 = vrot.slane %v810, 4
        %v813 = vshll.u32 %v542, 16
        %v815 = vrot.slane %v813, 5
        %v816 = vor.u32 %v812, %v815
        %v817 = vrot.slane %v816, 4
        %v819 = vshll.u32 %v544, 16
        %v821 = vrot.slane %v819, 5
        %v822 = vsel %vm672, %v817, %v821
        %v824 = vshrl.u32 %v543, 16
        %v826 = vrot.slane %v824, 4
        %v827 = vshll.u32 %v543, 16
        %v829 = vrot.slane %v827, 5
        %v830 = vor.u32 %v826, %v829
        %v831 = vrot.slane %v830, 4
        %v833 = vshll.u32 %v545, 16
        %v835 = vrot.slane %v833, 5
        %v836 = vsel %vm672, %v831, %v835
        %v837 = vshrl.u32 %v544, 16
        %v839 = vrot.slane %v837, 4
        %v840 = vor.u32 %v839, %v821
        %v841 = vrot.slane %v840, 4
        %v843 = vshll.u32 %v546, 16
        %v845 = vrot.slane %v843, 5
        %v846 = vsel %vm672, %v841, %v845
        %v847 = vshrl.u32 %v545, 16
        %v849 = vrot.slane %v847, 4
        %v850 = vor.u32 %v849, %v835
        %v851 = vrot.slane %v850, 4
        %v853 = vshll.u32 %v547, 16
        %v855 = vrot.slane %v853, 5
        %v856 = vsel %vm672, %v851, %v855
        %v857 = vshrl.u32 %v546, 16
        %v859 = vrot.slane %v857, 4
        %v860 = vor.u32 %v859, %v845
        %v861 = vrot.slane %v860, 4
        %v863 = vshll.u32 %v548, 16
        %v865 = vrot.slane %v863, 5
        %v866 = vsel %vm672, %v861, %v865
        %v867 = vshrl.u32 %v547, 16
        %v869 = vrot.slane %v867, 4
        %v870 = vor.u32 %v869, %v855
        %v871 = vrot.slane %v870, 4
        %v873 = vshll.u32 %v549, 16
        %v875 = vrot.slane %v873, 5
        %v876 = vsel %vm672, %v871, %v875
        %v878 = vshrl.u32 %v550, 16
        %v880 = vrot.slane %v878, 4
        %v881 = vshll.u32 %v550, 16
        %v883 = vrot.slane %v881, 5
        %v884 = vor.u32 %v880, %v883
        %v885 = vrot.slane %v884, 4
        %v887 = vshll.u32 %v552, 16
        %v889 = vrot.slane %v887, 5
        %v890 = vsel %vm672, %v885, %v889
        %v892 = vshrl.u32 %v551, 16
        %v894 = vrot.slane %v892, 4
        %v895 = vshll.u32 %v551, 16
        %v897 = vrot.slane %v895, 5
        %v898 = vor.u32 %v894, %v897
        %v899 = vrot.slane %v898, 4
        %v901 = vshll.u32 %v553, 16
        %v903 = vrot.slane %v901, 5
        %v904 = vsel %vm672, %v899, %v903
        %v905 = vshrl.u32 %v552, 16
        %v907 = vrot.slane %v905, 4
        %v908 = vor.u32 %v907, %v889
        %v909 = vrot.slane %v908, 4
        %v911 = vshll.u32 %v554, 16
        %v913 = vrot.slane %v911, 5
        %v914 = vsel %vm672, %v909, %v913
        %v915 = vshrl.u32 %v553, 16
        %v917 = vrot.slane %v915, 4
        %v918 = vor.u32 %v917, %v903
        %v919 = vrot.slane %v918, 4
        %v921 = vshll.u32 %v555, 16
        %v923 = vrot.slane %v921, 5
        %v924 = vsel %vm672, %v919, %v923
        %v925 = vshrl.u32 %v554, 16
        %v927 = vrot.slane %v925, 4
        %v928 = vor.u32 %v927, %v913
        %v929 = vrot.slane %v928, 4
        %v931 = vshll.u32 %v556, 16
        %v933 = vrot.slane %v931, 5
        %v934 = vsel %vm672, %v929, %v933
        %v935 = vshrl.u32 %v555, 16
        %v937 = vrot.slane %v935, 4
        %v938 = vor.u32 %v937, %v923
        %v939 = vrot.slane %v938, 4
        %v941 = vshll.u32 %v557, 16
        %v943 = vrot.slane %v941, 5
        %v944 = vsel %vm672, %v939, %v943
        %v946 = vshrl.u32 %v558, 16
        %v948 = vrot.slane %v946, 4
        %v949 = vshll.u32 %v558, 16
        %v951 = vrot.slane %v949, 5
        %v952 = vor.u32 %v948, %v951
        %v953 = vrot.slane %v952, 4
        %v955 = vshll.u32 %v560, 16
        %v957 = vrot.slane %v955, 5
        %v958 = vsel %vm672, %v953, %v957
        %v960 = vshrl.u32 %v559, 16
        %v962 = vrot.slane %v960, 4
        %v963 = vshll.u32 %v559, 16
        %v965 = vrot.slane %v963, 5
        %v966 = vor.u32 %v962, %v965
        %v967 = vrot.slane %v966, 4
        %v969 = vshll.u32 %v561, 16
        %v971 = vrot.slane %v969, 5
        %v972 = vsel %vm672, %v967, %v971
        %v973 = vshrl.u32 %v560, 16
        %v975 = vrot.slane %v973, 4
        %v976 = vor.u32 %v975, %v957
        %v977 = vrot.slane %v976, 4
        %v979 = vshll.u32 %v562, 16
        %v981 = vrot.slane %v979, 5
        %v982 = vsel %vm672, %v977, %v981
        %v983 = vshrl.u32 %v561, 16
        %v985 = vrot.slane %v983, 4
        %v986 = vor.u32 %v985, %v971
        %v987 = vrot.slane %v986, 4
        %v989 = vshll.u32 %v563, 16
        %v991 = vrot.slane %v989, 5
        %v992 = vsel %vm672, %v987, %v991
        %v993 = vshrl.u32 %v562, 16
        %v995 = vrot.slane %v993, 4
        %v996 = vor.u32 %v995, %v981
        %v997 = vrot.slane %v996, 4
        %v999 = vshll.u32 %v564, 16
        %v1001 = vrot.slane %v999, 5
        %v1002 = vsel %vm672, %v997, %v1001
        %v1003 = vshrl.u32 %v563, 16
        %v1005 = vrot.slane %v1003, 4
        %v1006 = vor.u32 %v1005, %v991
        %v1007 = vrot.slane %v1006, 4
        %v1009 = vshll.u32 %v565, 16
        %v1011 = vrot.slane %v1009, 5
        %v1012 = vsel %vm672, %v1007, %v1011
        %v1014 = vshrl.u32 %v566, 16
        %v1016 = vrot.slane %v1014, 4
        %v1017 = vshll.u32 %v566, 16
        %v1019 = vrot.slane %v1017, 5
        %v1020 = vor.u32 %v1016, %v1019
        %v1021 = vrot.slane %v1020, 4
        %v1023 = vshll.u32 %v568, 16
        %v1025 = vrot.slane %v1023, 5
        %v1026 = vsel %vm672, %v1021, %v1025
        %v1028 = vshrl.u32 %v567, 16
        %v1030 = vrot.slane %v1028, 4
        %v1031 = vshll.u32 %v567, 16
        %v1033 = vrot.slane %v1031, 5
        %v1034 = vor.u32 %v1030, %v1033
        %v1035 = vrot.slane %v1034, 4
        %v1037 = vshll.u32 %v569, 16
        %v1039 = vrot.slane %v1037, 5
        %v1040 = vsel %vm672, %v1035, %v1039
        %v1041 = vshrl.u32 %v568, 16
        %v1043 = vrot.slane %v1041, 4
        %v1044 = vor.u32 %v1043, %v1025
        %v1045 = vrot.slane %v1044, 4
        %v1047 = vshll.u32 %v570, 16
        %v1049 = vrot.slane %v1047, 5
        %v1050 = vsel %vm672, %v1045, %v1049
        %v1051 = vshrl.u32 %v569, 16
        %v1053 = vrot.slane %v1051, 4
        %v1054 = vor.u32 %v1053, %v1039
        %v1055 = vrot.slane %v1054, 4
        %v1057 = vshll.u32 %v571, 16
        %v1059 = vrot.slane %v1057, 5
        %v1060 = vsel %vm672, %v1055, %v1059
        %v1061 = vshrl.u32 %v570, 16
        %v1063 = vrot.slane %v1061, 4
        %v1064 = vor.u32 %v1063, %v1049
        %v1065 = vrot.slane %v1064, 4
        %v1067 = vshll.u32 %v572, 16
        %v1069 = vrot.slane %v1067, 5
        %v1070 = vsel %vm672, %v1065, %v1069
        %v1071 = vshrl.u32 %v571, 16
        %v1073 = vrot.slane %v1071, 4
        %v1074 = vor.u32 %v1073, %v1059
        %v1075 = vrot.slane %v1074, 4
        %v1077 = vshll.u32 %v573, 16
        %v1079 = vrot.slane %v1077, 5
        %v1080 = vsel %vm672, %v1075, %v1079
        %v1082 = vshrl.u32 %v574, 16
        %v1084 = vrot.slane %v1082, 4
        %v1085 = vshll.u32 %v574, 16
        %v1087 = vrot.slane %v1085, 5
        %v1088 = vor.u32 %v1084, %v1087
        %v1089 = vrot.slane %v1088, 4
        %v1091 = vshll.u32 %v576, 16
        %v1093 = vrot.slane %v1091, 5
        %v1094 = vsel %vm672, %v1089, %v1093
        %v1096 = vshrl.u32 %v575, 16
        %v1098 = vrot.slane %v1096, 4
        %v1099 = vshll.u32 %v575, 16
        %v1101 = vrot.slane %v1099, 5
        %v1102 = vor.u32 %v1098, %v1101
        %v1103 = vrot.slane %v1102, 4
        %v1105 = vshll.u32 %v577, 16
        %v1107 = vrot.slane %v1105, 5
        %v1108 = vsel %vm672, %v1103, %v1107
        %v1109 = vshrl.u32 %v576, 16
        %v1111 = vrot.slane %v1109, 4
        %v1112 = vor.u32 %v1111, %v1093
        %v1113 = vrot.slane %v1112, 4
        %v1115 = vshll.u32 %v578, 16
        %v1117 = vrot.slane %v1115, 5
        %v1118 = vsel %vm672, %v1113, %v1117
        %v1119 = vshrl.u32 %v577, 16
        %v1121 = vrot.slane %v1119, 4
        %v1122 = vor.u32 %v1121, %v1107
        %v1123 = vrot.slane %v1122, 4
        %v1125 = vshll.u32 %v579, 16
        %v1127 = vrot.slane %v1125, 5
        %v1128 = vsel %vm672, %v1123, %v1127
        %v1129 = vshrl.u32 %v578, 16
        %v1131 = vrot.slane %v1129, 4
        %v1132 = vor.u32 %v1131, %v1117
        %v1133 = vrot.slane %v1132, 4
        %v1135 = vshll.u32 %v580, 16
        %v1137 = vrot.slane %v1135, 5
        %v1138 = vsel %vm672, %v1133, %v1137
        %v1139 = vshrl.u32 %v579, 16
        %v1141 = vrot.slane %v1139, 4
        %v1142 = vor.u32 %v1141, %v1127
        %v1143 = vrot.slane %v1142, 4
        %v1145 = vshll.u32 %v581, 16
        %v1147 = vrot.slane %v1145, 5
        %v1148 = vsel %vm672, %v1143, %v1147
        %v1150 = vshrl.u32 %v582, 16
        %v1152 = vrot.slane %v1150, 4
        %v1153 = vshll.u32 %v582, 16
        %v1155 = vrot.slane %v1153, 5
        %v1156 = vor.u32 %v1152, %v1155
        %v1157 = vrot.slane %v1156, 4
        %v1159 = vshll.u32 %v584, 16
        %v1161 = vrot.slane %v1159, 5
        %v1162 = vsel %vm672, %v1157, %v1161
        %v1164 = vshrl.u32 %v583, 16
        %v1166 = vrot.slane %v1164, 4
        %v1167 = vshll.u32 %v583, 16
        %v1169 = vrot.slane %v1167, 5
        %v1170 = vor.u32 %v1166, %v1169
        %v1171 = vrot.slane %v1170, 4
        %v1173 = vshll.u32 %v585, 16
        %v1175 = vrot.slane %v1173, 5
        %v1176 = vsel %vm672, %v1171, %v1175
        %v1177 = vshrl.u32 %v584, 16
        %v1179 = vrot.slane %v1177, 4
        %v1180 = vor.u32 %v1179, %v1161
        %v1181 = vrot.slane %v1180, 4
        %v1183 = vshll.u32 %v586, 16
        %v1185 = vrot.slane %v1183, 5
        %v1186 = vsel %vm672, %v1181, %v1185
        %v1187 = vshrl.u32 %v585, 16
        %v1189 = vrot.slane %v1187, 4
        %v1190 = vor.u32 %v1189, %v1175
        %v1191 = vrot.slane %v1190, 4
        %v1193 = vshll.u32 %v587, 16
        %v1195 = vrot.slane %v1193, 5
        %v1196 = vsel %vm672, %v1191, %v1195
        %v1197 = vshrl.u32 %v586, 16
        %v1199 = vrot.slane %v1197, 4
        %v1200 = vor.u32 %v1199, %v1185
        %v1201 = vrot.slane %v1200, 4
        %v1203 = vshll.u32 %v588, 16
        %v1205 = vrot.slane %v1203, 5
        %v1206 = vsel %vm672, %v1201, %v1205
        %v1207 = vshrl.u32 %v587, 16
        %v1209 = vrot.slane %v1207, 4
        %v1210 = vor.u32 %v1209, %v1195
        %v1211 = vrot.slane %v1210, 4
        %v1213 = vshll.u32 %v589, 16
        %v1215 = vrot.slane %v1213, 5
        %v1216 = vsel %vm672, %v1211, %v1215
        %v1218 = vshrl.u32 %v590, 16
        %v1220 = vrot.slane %v1218, 4
        %v1221 = vshll.u32 %v590, 16
        %v1223 = vrot.slane %v1221, 5
        %v1224 = vor.u32 %v1220, %v1223
        %v1225 = vrot.slane %v1224, 4
        %v1227 = vshll.u32 %v592, 16
        %v1229 = vrot.slane %v1227, 5
        %v1230 = vsel %vm672, %v1225, %v1229
        %v1232 = vshrl.u32 %v591, 16
        %v1234 = vrot.slane %v1232, 4
        %v1235 = vshll.u32 %v591, 16
        %v1237 = vrot.slane %v1235, 5
        %v1238 = vor.u32 %v1234, %v1237
        %v1239 = vrot.slane %v1238, 4
        %v1241 = vshll.u32 %v593, 16
        %v1243 = vrot.slane %v1241, 5
        %v1244 = vsel %vm672, %v1239, %v1243
        %v1245 = vshrl.u32 %v592, 16
        %v1247 = vrot.slane %v1245, 4
        %v1248 = vor.u32 %v1247, %v1229
        %v1249 = vrot.slane %v1248, 4
        %v1251 = vshll.u32 %v594, 16
        %v1253 = vrot.slane %v1251, 5
        %v1254 = vsel %vm672, %v1249, %v1253
        %v1255 = vshrl.u32 %v593, 16
        %v1257 = vrot.slane %v1255, 4
        %v1258 = vor.u32 %v1257, %v1243
        %v1259 = vrot.slane %v1258, 4
        %v1261 = vshll.u32 %v595, 16
        %v1263 = vrot.slane %v1261, 5
        %v1264 = vsel %vm672, %v1259, %v1263
        %v1265 = vshrl.u32 %v594, 16
        %v1267 = vrot.slane %v1265, 4
        %v1268 = vor.u32 %v1267, %v1253
        %v1269 = vrot.slane %v1268, 4
        %v1271 = vshll.u32 %v596, 16
        %v1273 = vrot.slane %v1271, 5
        %v1274 = vsel %vm672, %v1269, %v1273
        %v1275 = vshrl.u32 %v595, 16
        %v1277 = vrot.slane %v1275, 4
        %v1278 = vor.u32 %v1277, %v1263
        %v1279 = vrot.slane %v1278, 4
        %v1281 = vshll.u32 %v597, 16
        %v1283 = vrot.slane %v1281, 5
        %v1284 = vsel %vm672, %v1279, %v1283
        %v1286 = vshrl.u32 %v598, 16
        %v1288 = vrot.slane %v1286, 4
        %v1289 = vshll.u32 %v598, 16
        %v1291 = vrot.slane %v1289, 5
        %v1292 = vor.u32 %v1288, %v1291
        %v1293 = vrot.slane %v1292, 4
        %v1295 = vshll.u32 %v600, 16
        %v1297 = vrot.slane %v1295, 5
        %v1298 = vsel %vm672, %v1293, %v1297
        %v1300 = vshrl.u32 %v599, 16
        %v1302 = vrot.slane %v1300, 4
        %v1303 = vshll.u32 %v599, 16
        %v1305 = vrot.slane %v1303, 5
        %v1306 = vor.u32 %v1302, %v1305
        %v1307 = vrot.slane %v1306, 4
        %v1309 = vshll.u32 %v601, 16
        %v1311 = vrot.slane %v1309, 5
        %v1312 = vsel %vm672, %v1307, %v1311
        %v1313 = vshrl.u32 %v600, 16
        %v1315 = vrot.slane %v1313, 4
        %v1316 = vor.u32 %v1315, %v1297
        %v1317 = vrot.slane %v1316, 4
        %v1319 = vshll.u32 %v602, 16
        %v1321 = vrot.slane %v1319, 5
        %v1322 = vsel %vm672, %v1317, %v1321
        %v1323 = vshrl.u32 %v601, 16
        %v1325 = vrot.slane %v1323, 4
        %v1326 = vor.u32 %v1325, %v1311
        %v1327 = vrot.slane %v1326, 4
        %v1329 = vshll.u32 %v603, 16
        %v1331 = vrot.slane %v1329, 5
        %v1332 = vsel %vm672, %v1327, %v1331
        %v1333 = vshrl.u32 %v602, 16
        %v1335 = vrot.slane %v1333, 4
        %v1336 = vor.u32 %v1335, %v1321
        %v1337 = vrot.slane %v1336, 4
        %v1339 = vshll.u32 %v604, 16
        %v1341 = vrot.slane %v1339, 5
        %v1342 = vsel %vm672, %v1337, %v1341
        %v1343 = vshrl.u32 %v603, 16
        %v1345 = vrot.slane %v1343, 4
        %v1346 = vor.u32 %v1345, %v1331
        %v1347 = vrot.slane %v1346, 4
        %v1349 = vshll.u32 %v605, 16
        %v1351 = vrot.slane %v1349, 5
        %v1352 = vsel %vm672, %v1347, %v1351
        %v1354 = vshrl.u32 %v606, 16
        %v1356 = vrot.slane %v1354, 4
        %v1357 = vshll.u32 %v606, 16
        %v1359 = vrot.slane %v1357, 5
        %v1360 = vor.u32 %v1356, %v1359
        %v1361 = vrot.slane %v1360, 4
        %v1363 = vshll.u32 %v608, 16
        %v1365 = vrot.slane %v1363, 5
        %v1366 = vsel %vm672, %v1361, %v1365
        %v1368 = vshrl.u32 %v607, 16
        %v1370 = vrot.slane %v1368, 4
        %v1371 = vshll.u32 %v607, 16
        %v1373 = vrot.slane %v1371, 5
        %v1374 = vor.u32 %v1370, %v1373
        %v1375 = vrot.slane %v1374, 4
        %v1377 = vshll.u32 %v609, 16
        %v1379 = vrot.slane %v1377, 5
        %v1380 = vsel %vm672, %v1375, %v1379
        %v1381 = vshrl.u32 %v608, 16
        %v1383 = vrot.slane %v1381, 4
        %v1384 = vor.u32 %v1383, %v1365
        %v1385 = vrot.slane %v1384, 4
        %v1387 = vshll.u32 %v610, 16
        %v1389 = vrot.slane %v1387, 5
        %v1390 = vsel %vm672, %v1385, %v1389
        %v1391 = vshrl.u32 %v609, 16
        %v1393 = vrot.slane %v1391, 4
        %v1394 = vor.u32 %v1393, %v1379
        %v1395 = vrot.slane %v1394, 4
        %v1397 = vshll.u32 %v611, 16
        %v1399 = vrot.slane %v1397, 5
        %v1400 = vsel %vm672, %v1395, %v1399
        %v1401 = vshrl.u32 %v610, 16
        %v1403 = vrot.slane %v1401, 4
        %v1404 = vor.u32 %v1403, %v1389
        %v1405 = vrot.slane %v1404, 4
        %v1407 = vshll.u32 %v612, 16
        %v1409 = vrot.slane %v1407, 5
        %v1410 = vsel %vm672, %v1405, %v1409
        %v1411 = vshrl.u32 %v611, 16
        %v1413 = vrot.slane %v1411, 4
        %v1414 = vor.u32 %v1413, %v1399
        %v1415 = vrot.slane %v1414, 4
        %v1417 = vshll.u32 %v613, 16
        %v1419 = vrot.slane %v1417, 5
        %v1420 = vsel %vm672, %v1415, %v1419
        %v1422 = vshrl.u32 %v614, 16
        %v1424 = vrot.slane %v1422, 4
        %v1425 = vshll.u32 %v614, 16
        %v1427 = vrot.slane %v1425, 5
        %v1428 = vor.u32 %v1424, %v1427
        %v1429 = vrot.slane %v1428, 4
        %v1431 = vshll.u32 %v616, 16
        %v1433 = vrot.slane %v1431, 5
        %v1434 = vsel %vm672, %v1429, %v1433
        %v1436 = vshrl.u32 %v615, 16
        %v1438 = vrot.slane %v1436, 4
        %v1439 = vshll.u32 %v615, 16
        %v1441 = vrot.slane %v1439, 5
        %v1442 = vor.u32 %v1438, %v1441
        %v1443 = vrot.slane %v1442, 4
        %v1445 = vshll.u32 %v617, 16
        %v1447 = vrot.slane %v1445, 5
        %v1448 = vsel %vm672, %v1443, %v1447
        %v1449 = vshrl.u32 %v616, 16
        %v1451 = vrot.slane %v1449, 4
        %v1452 = vor.u32 %v1451, %v1433
        %v1453 = vrot.slane %v1452, 4
        %v1455 = vshll.u32 %v618, 16
        %v1457 = vrot.slane %v1455, 5
        %v1458 = vsel %vm672, %v1453, %v1457
        %v1459 = vshrl.u32 %v617, 16
        %v1461 = vrot.slane %v1459, 4
        %v1462 = vor.u32 %v1461, %v1447
        %v1463 = vrot.slane %v1462, 4
        %v1465 = vshll.u32 %v619, 16
        %v1467 = vrot.slane %v1465, 5
        %v1468 = vsel %vm672, %v1463, %v1467
        %v1469 = vshrl.u32 %v618, 16
        %v1471 = vrot.slane %v1469, 4
        %v1472 = vor.u32 %v1471, %v1457
        %v1473 = vrot.slane %v1472, 4
        %v1475 = vshll.u32 %v620, 16
        %v1477 = vrot.slane %v1475, 5
        %v1478 = vsel %vm672, %v1473, %v1477
        %v1479 = vshrl.u32 %v619, 16
        %v1481 = vrot.slane %v1479, 4
        %v1482 = vor.u32 %v1481, %v1467
        %v1483 = vrot.slane %v1482, 4
        %v1485 = vshll.u32 %v621, 16
        %v1487 = vrot.slane %v1485, 5
        %v1488 = vsel %vm672, %v1483, %v1487
        %v1490 = vshrl.u32 %v622, 16
        %v1492 = vrot.slane %v1490, 4
        %v1493 = vshll.u32 %v622, 16
        %v1495 = vrot.slane %v1493, 5
        %v1496 = vor.u32 %v1492, %v1495
        %v1497 = vrot.slane %v1496, 4
        %v1499 = vshll.u32 %v624, 16
        %v1501 = vrot.slane %v1499, 5
        %v1502 = vsel %vm672, %v1497, %v1501
        %v1504 = vshrl.u32 %v623, 16
        %v1506 = vrot.slane %v1504, 4
        %v1507 = vshll.u32 %v623, 16
        %v1509 = vrot.slane %v1507, 5
        %v1510 = vor.u32 %v1506, %v1509
        %v1511 = vrot.slane %v1510, 4
        %v1513 = vshll.u32 %v625, 16
        %v1515 = vrot.slane %v1513, 5
        %v1516 = vsel %vm672, %v1511, %v1515
        %v1517 = vshrl.u32 %v624, 16
        %v1519 = vrot.slane %v1517, 4
        %v1520 = vor.u32 %v1519, %v1501
        %v1521 = vrot.slane %v1520, 4
        %v1523 = vshll.u32 %v626, 16
        %v1525 = vrot.slane %v1523, 5
        %v1526 = vsel %vm672, %v1521, %v1525
        %v1527 = vshrl.u32 %v625, 16
        %v1529 = vrot.slane %v1527, 4
        %v1530 = vor.u32 %v1529, %v1515
        %v1531 = vrot.slane %v1530, 4
        %v1533 = vshll.u32 %v627, 16
        %v1535 = vrot.slane %v1533, 5
        %v1536 = vsel %vm672, %v1531, %v1535
        %v1537 = vshrl.u32 %v626, 16
        %v1539 = vrot.slane %v1537, 4
        %v1540 = vor.u32 %v1539, %v1525
        %v1541 = vrot.slane %v1540, 4
        %v1543 = vshll.u32 %v628, 16
        %v1545 = vrot.slane %v1543, 5
        %v1546 = vsel %vm672, %v1541, %v1545
        %v1547 = vshrl.u32 %v627, 16
        %v1549 = vrot.slane %v1547, 4
        %v1550 = vor.u32 %v1549, %v1535
        %v1551 = vrot.slane %v1550, 4
        %v1553 = vshll.u32 %v629, 16
        %v1555 = vrot.slane %v1553, 5
        %v1556 = vsel %vm672, %v1551, %v1555
        %v1558 = vshrl.u32 %v630, 16
        %v1560 = vrot.slane %v1558, 4
        %v1561 = vshll.u32 %v630, 16
        %v1563 = vrot.slane %v1561, 5
        %v1564 = vor.u32 %v1560, %v1563
        %v1565 = vrot.slane %v1564, 4
        %v1567 = vshll.u32 %v632, 16
        %v1569 = vrot.slane %v1567, 5
        %v1570 = vsel %vm672, %v1565, %v1569
        %v1572 = vshrl.u32 %v631, 16
        %v1574 = vrot.slane %v1572, 4
        %v1575 = vshll.u32 %v631, 16
        %v1577 = vrot.slane %v1575, 5
        %v1578 = vor.u32 %v1574, %v1577
        %v1579 = vrot.slane %v1578, 4
        %v1581 = vshll.u32 %v633, 16
        %v1583 = vrot.slane %v1581, 5
        %v1584 = vsel %vm672, %v1579, %v1583
        %v1585 = vshrl.u32 %v632, 16
        %v1587 = vrot.slane %v1585, 4
        %v1588 = vor.u32 %v1587, %v1569
        %v1589 = vrot.slane %v1588, 4
        %v1591 = vshll.u32 %v634, 16
        %v1593 = vrot.slane %v1591, 5
        %v1594 = vsel %vm672, %v1589, %v1593
        %v1595 = vshrl.u32 %v633, 16
        %v1597 = vrot.slane %v1595, 4
        %v1598 = vor.u32 %v1597, %v1583
        %v1599 = vrot.slane %v1598, 4
        %v1601 = vshll.u32 %v635, 16
        %v1603 = vrot.slane %v1601, 5
        %v1604 = vsel %vm672, %v1599, %v1603
        %v1605 = vshrl.u32 %v634, 16
        %v1607 = vrot.slane %v1605, 4
        %v1608 = vor.u32 %v1607, %v1593
        %v1609 = vrot.slane %v1608, 4
        %v1611 = vshll.u32 %v636, 16
        %v1613 = vrot.slane %v1611, 5
        %v1614 = vsel %vm672, %v1609, %v1613
        %v1615 = vshrl.u32 %v635, 16
        %v1617 = vrot.slane %v1615, 4
        %v1618 = vor.u32 %v1617, %v1603
        %v1619 = vrot.slane %v1618, 4
        %v1621 = vshll.u32 %v637, 16
        %v1623 = vrot.slane %v1621, 5
        %v1624 = vsel %vm672, %v1619, %v1623
        %v1626 = vshrl.u32 %v638, 16
        %v1628 = vrot.slane %v1626, 4
        %v1629 = vshll.u32 %v638, 16
        %v1631 = vrot.slane %v1629, 5
        %v1632 = vor.u32 %v1628, %v1631
        %v1633 = vrot.slane %v1632, 4
        %v1635 = vshll.u32 %v640, 16
        %v1637 = vrot.slane %v1635, 5
        %v1638 = vsel %vm672, %v1633, %v1637
        %v1640 = vshrl.u32 %v639, 16
        %v1642 = vrot.slane %v1640, 4
        %v1643 = vshll.u32 %v639, 16
        %v1645 = vrot.slane %v1643, 5
        %v1646 = vor.u32 %v1642, %v1645
        %v1647 = vrot.slane %v1646, 4
        %v1649 = vshll.u32 %v641, 16
        %v1651 = vrot.slane %v1649, 5
        %v1652 = vsel %vm672, %v1647, %v1651
        %v1653 = vshrl.u32 %v640, 16
        %v1655 = vrot.slane %v1653, 4
        %v1656 = vor.u32 %v1655, %v1637
        %v1657 = vrot.slane %v1656, 4
        %v1659 = vshll.u32 %v642, 16
        %v1661 = vrot.slane %v1659, 5
        %v1662 = vsel %vm672, %v1657, %v1661
        %v1663 = vshrl.u32 %v641, 16
        %v1665 = vrot.slane %v1663, 4
        %v1666 = vor.u32 %v1665, %v1651
        %v1667 = vrot.slane %v1666, 4
        %v1669 = vshll.u32 %v643, 16
        %v1671 = vrot.slane %v1669, 5
        %v1672 = vsel %vm672, %v1667, %v1671
        %v1673 = vshrl.u32 %v642, 16
        %v1675 = vrot.slane %v1673, 4
        %v1676 = vor.u32 %v1675, %v1661
        %v1677 = vrot.slane %v1676, 4
        %v1679 = vshll.u32 %v644, 16
        %v1681 = vrot.slane %v1679, 5
        %v1682 = vsel %vm672, %v1677, %v1681
        %v1683 = vshrl.u32 %v643, 16
        %v1685 = vrot.slane %v1683, 4
        %v1686 = vor.u32 %v1685, %v1671
        %v1687 = vrot.slane %v1686, 4
        %v1689 = vshll.u32 %v645, 16
        %v1691 = vrot.slane %v1689, 5
        %v1692 = vsel %vm672, %v1687, %v1691
        %v1694 = vshrl.u32 %v646, 16
        %v1696 = vrot.slane %v1694, 4
        %v1697 = vshll.u32 %v646, 16
        %v1699 = vrot.slane %v1697, 5
        %v1700 = vor.u32 %v1696, %v1699
        %v1701 = vrot.slane %v1700, 4
        %v1703 = vshll.u32 %v648, 16
        %v1705 = vrot.slane %v1703, 5
        %v1706 = vsel %vm672, %v1701, %v1705
        %v1708 = vshrl.u32 %v647, 16
        %v1710 = vrot.slane %v1708, 4
        %v1711 = vshll.u32 %v647, 16
        %v1713 = vrot.slane %v1711, 5
        %v1714 = vor.u32 %v1710, %v1713
        %v1715 = vrot.slane %v1714, 4
        %v1717 = vshll.u32 %v649, 16
        %v1719 = vrot.slane %v1717, 5
        %v1720 = vsel %vm672, %v1715, %v1719
        %v1721 = vshrl.u32 %v648, 16
        %v1723 = vrot.slane %v1721, 4
        %v1724 = vor.u32 %v1723, %v1705
        %v1725 = vrot.slane %v1724, 4
        %v1727 = vshll.u32 %v650, 16
        %v1729 = vrot.slane %v1727, 5
        %v1730 = vsel %vm672, %v1725, %v1729
        %v1731 = vshrl.u32 %v649, 16
        %v1733 = vrot.slane %v1731, 4
        %v1734 = vor.u32 %v1733, %v1719
        %v1735 = vrot.slane %v1734, 4
        %v1737 = vshll.u32 %v651, 16
        %v1739 = vrot.slane %v1737, 5
        %v1740 = vsel %vm672, %v1735, %v1739
        %v1741 = vshrl.u32 %v650, 16
        %v1743 = vrot.slane %v1741, 4
        %v1744 = vor.u32 %v1743, %v1729
        %v1745 = vrot.slane %v1744, 4
        %v1747 = vshll.u32 %v652, 16
        %v1749 = vrot.slane %v1747, 5
        %v1750 = vsel %vm672, %v1745, %v1749
        %v1751 = vshrl.u32 %v651, 16
        %v1753 = vrot.slane %v1751, 4
        %v1754 = vor.u32 %v1753, %v1739
        %v1755 = vrot.slane %v1754, 4
        %v1757 = vshll.u32 %v653, 16
        %v1759 = vrot.slane %v1757, 5
        %v1760 = vsel %vm672, %v1755, %v1759
        %v1762 = vshrl.u32 %v654, 16
        %v1764 = vrot.slane %v1762, 4
        %v1765 = vshll.u32 %v654, 16
        %v1767 = vrot.slane %v1765, 5
        %v1768 = vor.u32 %v1764, %v1767
        %v1769 = vrot.slane %v1768, 4
        %v1771 = vshll.u32 %v656, 16
        %v1773 = vrot.slane %v1771, 5
        %v1774 = vsel %vm672, %v1769, %v1773
        %v1776 = vshrl.u32 %v655, 16
        %v1778 = vrot.slane %v1776, 4
        %v1779 = vshll.u32 %v655, 16
        %v1781 = vrot.slane %v1779, 5
        %v1782 = vor.u32 %v1778, %v1781
        %v1783 = vrot.slane %v1782, 4
        %v1785 = vshll.u32 %v657, 16
        %v1787 = vrot.slane %v1785, 5
        %v1788 = vsel %vm672, %v1783, %v1787
        %v1789 = vshrl.u32 %v656, 16
        %v1791 = vrot.slane %v1789, 4
        %v1792 = vor.u32 %v1791, %v1773
        %v1793 = vrot.slane %v1792, 4
        %v1795 = vshll.u32 %v658, 16
        %v1797 = vrot.slane %v1795, 5
        %v1798 = vsel %vm672, %v1793, %v1797
        %v1799 = vshrl.u32 %v657, 16
        %v1801 = vrot.slane %v1799, 4
        %v1802 = vor.u32 %v1801, %v1787
        %v1803 = vrot.slane %v1802, 4
        %v1805 = vshll.u32 %v659, 16
        %v1807 = vrot.slane %v1805, 5
        %v1808 = vsel %vm672, %v1803, %v1807
        %v1809 = vshrl.u32 %v658, 16
        %v1811 = vrot.slane %v1809, 4
        %v1812 = vor.u32 %v1811, %v1797
        %v1813 = vrot.slane %v1812, 4
        %v1815 = vshll.u32 %v660, 16
        %v1817 = vrot.slane %v1815, 5
        %v1818 = vsel %vm672, %v1813, %v1817
        %v1819 = vshrl.u32 %v659, 16
        %v1821 = vrot.slane %v1819, 4
        %v1822 = vor.u32 %v1821, %v1807
        %v1823 = vrot.slane %v1822, 4
        %v1825 = vshll.u32 %v661, 16
        %v1827 = vrot.slane %v1825, 5
        %v1828 = vsel %vm672, %v1823, %v1827
        %v1830 = vshrl.u32 %v662, 16
        %v1832 = vrot.slane %v1830, 4
        %v1833 = vshll.u32 %v662, 16
        %v1835 = vrot.slane %v1833, 5
        %v1836 = vor.u32 %v1832, %v1835
        %v1837 = vrot.slane %v1836, 4
        %v1839 = vshll.u32 %v664, 16
        %v1841 = vrot.slane %v1839, 5
        %v1842 = vsel %vm672, %v1837, %v1841
        %v1844 = vshrl.u32 %v663, 16
        %v1846 = vrot.slane %v1844, 4
        %v1847 = vshll.u32 %v663, 16
        %v1849 = vrot.slane %v1847, 5
        %v1850 = vor.u32 %v1846, %v1849
        %v1851 = vrot.slane %v1850, 4
        %v1853 = vshll.u32 %v665, 16
        %v1855 = vrot.slane %v1853, 5
        %v1856 = vsel %vm672, %v1851, %v1855
        %v1857 = vshrl.u32 %v664, 16
        %v1859 = vrot.slane %v1857, 4
        %v1860 = vor.u32 %v1859, %v1841
        %v1861 = vrot.slane %v1860, 4
        %v1863 = vshll.u32 %v666, 16
        %v1865 = vrot.slane %v1863, 5
        %v1866 = vsel %vm672, %v1861, %v1865
        %v1867 = vshrl.u32 %v665, 16
        %v1869 = vrot.slane %v1867, 4
        %v1870 = vor.u32 %v1869, %v1855
        %v1871 = vrot.slane %v1870, 4
        %v1873 = vshll.u32 %v667, 16
        %v1875 = vrot.slane %v1873, 5
        %v1876 = vsel %vm672, %v1871, %v1875
        %v1877 = vshrl.u32 %v666, 16
        %v1879 = vrot.slane %v1877, 4
        %v1880 = vor.u32 %v1879, %v1865
        %v1881 = vrot.slane %v1880, 4
        %v1883 = vshll.u32 %v668, 16
        %v1885 = vrot.slane %v1883, 5
        %v1886 = vsel %vm672, %v1881, %v1885
        %v1887 = vshrl.u32 %v667, 16
        %v1889 = vrot.slane %v1887, 4
        %v1890 = vor.u32 %v1889, %v1875
        %v1891 = vrot.slane %v1890, 4
        %v1893 = vshll.u32 %v669, 16
        %v1895 = vrot.slane %v1893, 5
        %v1896 = vsel %vm672, %v1891, %v1895
        %s1897 = scalar_lea.vmem %s1, 192
        %v1898 = vld [vmem:[%s1897] sm:$0xf]
        %v1899 = vld [vmem:[%s1897 + $0x4] sm:$0xf]
        %v1900 = vld [vmem:[%s1897 + $0x8] sm:$0xf]
        %v1901 = vld [vmem:[%s1897 + $0xc] sm:$0xf]
        %v1902 = vld [vmem:[%s1897 + $0x10] sm:$0xf]
        %v1903 = vld [vmem:[%s1897 + $0x14] sm:$0xf]
        %v1904 = vld [vmem:[%s1897 + $0x18] sm:$0xf]
        %v1905 = vld [vmem:[%s1897 + $0x1c] sm:$0xf]
        %v1906 = vld [vmem:[%s1897 + $0x20] sm:$0xf]
        %v1907 = vld [vmem:[%s1897 + $0x24] sm:$0xf]
        %v1908 = vld [vmem:[%s1897 + $0x28] sm:$0xf]
        %v1909 = vld [vmem:[%s1897 + $0x2c] sm:$0xf]
        %v1910 = vld [vmem:[%s1897 + $0x30] sm:$0xf]
        %v1911 = vld [vmem:[%s1897 + $0x34] sm:$0xf]
        %v1912 = vld [vmem:[%s1897 + $0x38] sm:$0xf]
        %v1913 = vld [vmem:[%s1897 + $0x3c] sm:$0xf]
        %v1914 = vld [vmem:[%s1897 + $0x40] sm:$0xf]
        %v1915 = vld [vmem:[%s1897 + $0x44] sm:$0xf]
        %v1916 = vld [vmem:[%s1897 + $0x48] sm:$0xf]
        %v1917 = vld [vmem:[%s1897 + $0x4c] sm:$0xf]
        %v1918 = vld [vmem:[%s1897 + $0x50] sm:$0xf]
        %v1919 = vld [vmem:[%s1897 + $0x54] sm:$0xf]
        %v1920 = vld [vmem:[%s1897 + $0x58] sm:$0xf]
        %v1921 = vld [vmem:[%s1897 + $0x5c] sm:$0xf]
        %v1922 = vld [vmem:[%s1897 + $0x60] sm:$0xf]
        %v1923 = vld [vmem:[%s1897 + $0x64] sm:$0xf]
        %v1924 = vld [vmem:[%s1897 + $0x68] sm:$0xf]
        %v1925 = vld [vmem:[%s1897 + $0x6c] sm:$0xf]
        %v1926 = vld [vmem:[%s1897 + $0x70] sm:$0xf]
        %v1927 = vld [vmem:[%s1897 + $0x74] sm:$0xf]
        %v1928 = vld [vmem:[%s1897 + $0x78] sm:$0xf]
        %v1929 = vld [vmem:[%s1897 + $0x7c] sm:$0xf]
        %v1930 = vld [vmem:[%s1897 + $0x80] sm:$0xf]
        %v1931 = vld [vmem:[%s1897 + $0x84] sm:$0xf]
        %v1932 = vld [vmem:[%s1897 + $0x88] sm:$0xf]
        %v1933 = vld [vmem:[%s1897 + $0x8c] sm:$0xf]
        %v1934 = vld [vmem:[%s1897 + $0x90] sm:$0xf]
        %v1935 = vld [vmem:[%s1897 + $0x94] sm:$0xf]
        %v1936 = vld [vmem:[%s1897 + $0x98] sm:$0xf]
        %v1937 = vld [vmem:[%s1897 + $0x9c] sm:$0xf]
        %v1938 = vld [vmem:[%s1897 + $0xa0] sm:$0xf]
        %v1939 = vld [vmem:[%s1897 + $0xa4] sm:$0xf]
        %v1940 = vld [vmem:[%s1897 + $0xa8] sm:$0xf]
        %v1941 = vld [vmem:[%s1897 + $0xac] sm:$0xf]
        %v1942 = vld [vmem:[%s1897 + $0xb0] sm:$0xf]
        %v1943 = vld [vmem:[%s1897 + $0xb4] sm:$0xf]
        %v1944 = vld [vmem:[%s1897 + $0xb8] sm:$0xf]
        %v1945 = vld [vmem:[%s1897 + $0xbc] sm:$0xf]
        %v1946 = vunpack.c.l.b16 %v686
        %v1947 = vunpack.c.h.b16 %v686
        %v1948 = vunpack.c.l.b16 %v700
        %v1949 = vunpack.c.l.b16 %v710
        %v1950 = vunpack.c.h.b16 %v710
        %v1951 = vunpack.c.l.b16 %v720
        %v1952 = vunpack.c.l.b16 %v730
        %v1953 = vunpack.c.h.b16 %v730
        %v1954 = vunpack.c.l.b16 %v740
        %v1955 = vunpack.c.l.b16 %v754
        %v1956 = vunpack.c.h.b16 %v754
        %v1957 = vunpack.c.l.b16 %v768
        %v1958 = vunpack.c.l.b16 %v778
        %v1959 = vunpack.c.h.b16 %v778
        %v1960 = vunpack.c.l.b16 %v788
        %v1961 = vunpack.c.l.b16 %v798
        %v1962 = vunpack.c.h.b16 %v798
        %v1963 = vunpack.c.l.b16 %v808
        %v1964 = vunpack.c.l.b16 %v822
        %v1965 = vunpack.c.h.b16 %v822
        %v1966 = vunpack.c.l.b16 %v836
        %v1967 = vunpack.c.l.b16 %v846
        %v1968 = vunpack.c.h.b16 %v846
        %v1969 = vunpack.c.l.b16 %v856
        %v1970 = vunpack.c.l.b16 %v866
        %v1971 = vunpack.c.h.b16 %v866
        %v1972 = vunpack.c.l.b16 %v876
        %v1973 = vunpack.c.l.b16 %v890
        %v1974 = vunpack.c.h.b16 %v890
        %v1975 = vunpack.c.l.b16 %v904
        %v1976 = vunpack.c.l.b16 %v914
        %v1977 = vunpack.c.h.b16 %v914
        %v1978 = vunpack.c.l.b16 %v924
        %v1979 = vunpack.c.l.b16 %v934
        %v1980 = vunpack.c.h.b16 %v934
        %v1981 = vunpack.c.l.b16 %v944
        %v1982 = vunpack.c.l.b16 %v958
        %v1983 = vunpack.c.h.b16 %v958
        %v1984 = vunpack.c.l.b16 %v972
        %v1985 = vunpack.c.l.b16 %v982
        %v1986 = vunpack.c.h.b16 %v982
        %v1987 = vunpack.c.l.b16 %v992
        %v1988 = vunpack.c.l.b16 %v1002
        %v1989 = vunpack.c.h.b16 %v1002
        %v1990 = vunpack.c.l.b16 %v1012
        %v1991 = vunpack.c.l.b16 %v1026
        %v1992 = vunpack.c.h.b16 %v1026
        %v1993 = vunpack.c.l.b16 %v1040
        %v1994 = vunpack.c.l.b16 %v1050
        %v1995 = vunpack.c.h.b16 %v1050
        %v1996 = vunpack.c.l.b16 %v1060
        %v1997 = vunpack.c.l.b16 %v1070
        %v1998 = vunpack.c.h.b16 %v1070
        %v1999 = vunpack.c.l.b16 %v1080
        %v2000 = vunpack.c.l.b16 %v1094
        %v2001 = vunpack.c.h.b16 %v1094
        %v2002 = vunpack.c.l.b16 %v1108
        %v2003 = vunpack.c.l.b16 %v1118
        %v2004 = vunpack.c.h.b16 %v1118
        %v2005 = vunpack.c.l.b16 %v1128
        %v2006 = vunpack.c.l.b16 %v1138
        %v2007 = vunpack.c.h.b16 %v1138
        %v2008 = vunpack.c.l.b16 %v1148
        %v2009 = vunpack.c.l.b16 %v1162
        %v2010 = vunpack.c.h.b16 %v1162
        %v2011 = vunpack.c.l.b16 %v1176
        %v2012 = vunpack.c.l.b16 %v1186
        %v2013 = vunpack.c.h.b16 %v1186
        %v2014 = vunpack.c.l.b16 %v1196
        %v2015 = vunpack.c.l.b16 %v1206
        %v2016 = vunpack.c.h.b16 %v1206
        %v2017 = vunpack.c.l.b16 %v1216
        %v2018 = vunpack.c.l.b16 %v1230
        %v2019 = vunpack.c.h.b16 %v1230
        %v2020 = vunpack.c.l.b16 %v1244
        %v2021 = vunpack.c.l.b16 %v1254
        %v2022 = vunpack.c.h.b16 %v1254
        %v2023 = vunpack.c.l.b16 %v1264
        %v2024 = vunpack.c.l.b16 %v1274
        %v2025 = vunpack.c.h.b16 %v1274
        %v2026 = vunpack.c.l.b16 %v1284
        %v2027 = vunpack.c.l.b16 %v1298
        %v2028 = vunpack.c.h.b16 %v1298
        %v2029 = vunpack.c.l.b16 %v1312
        %v2030 = vunpack.c.l.b16 %v1322
        %v2031 = vunpack.c.h.b16 %v1322
        %v2032 = vunpack.c.l.b16 %v1332
        %v2033 = vunpack.c.l.b16 %v1342
        %v2034 = vunpack.c.h.b16 %v1342
        %v2035 = vunpack.c.l.b16 %v1352
        %v2036 = vunpack.c.l.b16 %v1366
        %v2037 = vunpack.c.h.b16 %v1366
        %v2038 = vunpack.c.l.b16 %v1380
        %v2039 = vunpack.c.l.b16 %v1390
        %v2040 = vunpack.c.h.b16 %v1390
        %v2041 = vunpack.c.l.b16 %v1400
        %v2042 = vunpack.c.l.b16 %v1410
        %v2043 = vunpack.c.h.b16 %v1410
        %v2044 = vunpack.c.l.b16 %v1420
        %v2045 = vunpack.c.l.b16 %v1434
        %v2046 = vunpack.c.h.b16 %v1434
        %v2047 = vunpack.c.l.b16 %v1448
        %v2048 = vunpack.c.l.b16 %v1458
        %v2049 = vunpack.c.h.b16 %v1458
        %v2050 = vunpack.c.l.b16 %v1468
        %v2051 = vunpack.c.l.b16 %v1478
        %v2052 = vunpack.c.h.b16 %v1478
        %v2053 = vunpack.c.l.b16 %v1488
        %v2054 = vunpack.c.l.b16 %v1502
        %v2055 = vunpack.c.h.b16 %v1502
        %v2056 = vunpack.c.l.b16 %v1516
        %v2057 = vunpack.c.l.b16 %v1526
        %v2058 = vunpack.c.h.b16 %v1526
        %v2059 = vunpack.c.l.b16 %v1536
        %v2060 = vunpack.c.l.b16 %v1546
        %v2061 = vunpack.c.h.b16 %v1546
        %v2062 = vunpack.c.l.b16 %v1556
        %v2063 = vunpack.c.l.b16 %v1570
        %v2064 = vunpack.c.h.b16 %v1570
        %v2065 = vunpack.c.l.b16 %v1584
        %v2066 = vunpack.c.l.b16 %v1594
        %v2067 = vunpack.c.h.b16 %v1594
        %v2068 = vunpack.c.l.b16 %v1604
        %v2069 = vunpack.c.l.b16 %v1614
        %v2070 = vunpack.c.h.b16 %v1614
        %v2071 = vunpack.c.l.b16 %v1624
        %v2072 = vunpack.c.l.b16 %v1638
        %v2073 = vunpack.c.h.b16 %v1638
        %v2074 = vunpack.c.l.b16 %v1652
        %v2075 = vunpack.c.l.b16 %v1662
        %v2076 = vunpack.c.h.b16 %v1662
        %v2077 = vunpack.c.l.b16 %v1672
        %v2078 = vunpack.c.l.b16 %v1682
        %v2079 = vunpack.c.h.b16 %v1682
        %v2080 = vunpack.c.l.b16 %v1692
        %v2081 = vunpack.c.l.b16 %v1706
        %v2082 = vunpack.c.h.b16 %v1706
        %v2083 = vunpack.c.l.b16 %v1720
        %v2084 = vunpack.c.l.b16 %v1730
        %v2085 = vunpack.c.h.b16 %v1730
        %v2086 = vunpack.c.l.b16 %v1740
        %v2087 = vunpack.c.l.b16 %v1750
        %v2088 = vunpack.c.h.b16 %v1750
        %v2089 = vunpack.c.l.b16 %v1760
        %v2090 = vunpack.c.l.b16 %v1774
        %v2091 = vunpack.c.h.b16 %v1774
        %v2092 = vunpack.c.l.b16 %v1788
        %v2093 = vunpack.c.l.b16 %v1798
        %v2094 = vunpack.c.h.b16 %v1798
        %v2095 = vunpack.c.l.b16 %v1808
        %v2096 = vunpack.c.l.b16 %v1818
        %v2097 = vunpack.c.h.b16 %v1818
        %v2098 = vunpack.c.l.b16 %v1828
        %v2099 = vunpack.c.l.b16 %v1842
        %v2100 = vunpack.c.h.b16 %v1842
        %v2101 = vunpack.c.l.b16 %v1856
        %v2102 = vunpack.c.l.b16 %v1866
        %v2103 = vunpack.c.h.b16 %v1866
        %v2104 = vunpack.c.l.b16 %v1876
        %v2105 = vunpack.c.l.b16 %v1886
        %v2106 = vunpack.c.h.b16 %v1886
        %v2107 = vunpack.c.l.b16 %v1896
        %v2108 = vpack.c.b16 %v1949, %v1946
        %v2109 = vpack.c.b16 %v1950, %v1947
        %v2110 = vpack.c.b16 %v1951, %v1948
        %v2111 = vpack.c.b16 %v1955, %v1952
        %v2112 = vpack.c.b16 %v1956, %v1953
        %v2113 = vpack.c.b16 %v1957, %v1954
        %v2114 = vpack.c.b16 %v1961, %v1958
        %v2115 = vpack.c.b16 %v1962, %v1959
        %v2116 = vpack.c.b16 %v1963, %v1960
        %v2117 = vpack.c.b16 %v1967, %v1964
        %v2118 = vpack.c.b16 %v1968, %v1965
        %v2119 = vpack.c.b16 %v1969, %v1966
        %v2120 = vpack.c.b16 %v1973, %v1970
        %v2121 = vpack.c.b16 %v1974, %v1971
        %v2122 = vpack.c.b16 %v1975, %v1972
        %v2123 = vpack.c.b16 %v1979, %v1976
        %v2124 = vpack.c.b16 %v1980, %v1977
        %v2125 = vpack.c.b16 %v1981, %v1978
        %v2126 = vpack.c.b16 %v1985, %v1982
        %v2127 = vpack.c.b16 %v1986, %v1983
        %v2128 = vpack.c.b16 %v1987, %v1984
        %v2129 = vpack.c.b16 %v1991, %v1988
        %v2130 = vpack.c.b16 %v1992, %v1989
        %v2131 = vpack.c.b16 %v1993, %v1990
        %v2132 = vpack.c.b16 %v1997, %v1994
        %v2133 = vpack.c.b16 %v1998, %v1995
        %v2134 = vpack.c.b16 %v1999, %v1996
        %v2135 = vpack.c.b16 %v2003, %v2000
        %v2136 = vpack.c.b16 %v2004, %v2001
        %v2137 = vpack.c.b16 %v2005, %v2002
        %v2138 = vpack.c.b16 %v2009, %v2006
        %v2139 = vpack.c.b16 %v2010, %v2007
        %v2140 = vpack.c.b16 %v2011, %v2008
        %v2141 = vpack.c.b16 %v2015, %v2012
        %v2142 = vpack.c.b16 %v2016, %v2013
        %v2143 = vpack.c.b16 %v2017, %v2014
        %v2144 = vpack.c.b16 %v2021, %v2018
        %v2145 = vpack.c.b16 %v2022, %v2019
        %v2146 = vpack.c.b16 %v2023, %v2020
        %v2147 = vpack.c.b16 %v2027, %v2024
        %v2148 = vpack.c.b16 %v2028, %v2025
        %v2149 = vpack.c.b16 %v2029, %v2026
        %v2150 = vpack.c.b16 %v2033, %v2030
        %v2151 = vpack.c.b16 %v2034, %v2031
        %v2152 = vpack.c.b16 %v2035, %v2032
        %v2153 = vpack.c.b16 %v2039, %v2036
        %v2154 = vpack.c.b16 %v2040, %v2037
        %v2155 = vpack.c.b16 %v2041, %v2038
        %v2156 = vpack.c.b16 %v2045, %v2042
        %v2157 = vpack.c.b16 %v2046, %v2043
        %v2158 = vpack.c.b16 %v2047, %v2044
        %v2159 = vpack.c.b16 %v2051, %v2048
        %v2160 = vpack.c.b16 %v2052, %v2049
        %v2161 = vpack.c.b16 %v2053, %v2050
        %v2162 = vpack.c.b16 %v2057, %v2054
        %v2163 = vpack.c.b16 %v2058, %v2055
        %v2164 = vpack.c.b16 %v2059, %v2056
        %v2165 = vpack.c.b16 %v2063, %v2060
        %v2166 = vpack.c.b16 %v2064, %v2061
        %v2167 = vpack.c.b16 %v2065, %v2062
        %v2168 = vpack.c.b16 %v2069, %v2066
        %v2169 = vpack.c.b16 %v2070, %v2067
        %v2170 = vpack.c.b16 %v2071, %v2068
        %v2171 = vpack.c.b16 %v2075, %v2072
        %v2172 = vpack.c.b16 %v2076, %v2073
        %v2173 = vpack.c.b16 %v2077, %v2074
        %v2174 = vpack.c.b16 %v2081, %v2078
        %v2175 = vpack.c.b16 %v2082, %v2079
        %v2176 = vpack.c.b16 %v2083, %v2080
        %v2177 = vpack.c.b16 %v2087, %v2084
        %v2178 = vpack.c.b16 %v2088, %v2085
        %v2179 = vpack.c.b16 %v2089, %v2086
        %v2180 = vpack.c.b16 %v2093, %v2090
        %v2181 = vpack.c.b16 %v2094, %v2091
        %v2182 = vpack.c.b16 %v2095, %v2092
        %v2183 = vpack.c.b16 %v2099, %v2096
        %v2184 = vpack.c.b16 %v2100, %v2097
        %v2185 = vpack.c.b16 %v2101, %v2098
        %v2186 = vpack.c.b16 %v2105, %v2102
        %v2187 = vpack.c.b16 %v2106, %v2103
        %v2188 = vpack.c.b16 %v2107, %v2104
        %v2318 = vunpack.c.l.b16 %v1898
        %v2319 = vunpack.c.l.b16 %v1899
        %v2320 = vunpack.c.l.b16 %v1900
        %v2321 = vunpack.c.l.b16 %v1901
        %v2322 = vunpack.c.l.b16 %v1902
        %v2323 = vunpack.c.l.b16 %v1903
        %v2324 = vunpack.c.l.b16 %v1904
        %v2325 = vunpack.c.l.b16 %v1905
        %v2326 = vunpack.c.l.b16 %v1906
        %v2327 = vunpack.c.l.b16 %v1907
        %v2328 = vunpack.c.l.b16 %v1908
        %v2329 = vunpack.c.l.b16 %v1909
        %v2330 = vunpack.c.l.b16 %v1910
        %v2331 = vunpack.c.l.b16 %v1911
        %v2332 = vunpack.c.l.b16 %v1912
        %v2333 = vunpack.c.l.b16 %v1913
        %v2334 = vunpack.c.l.b16 %v1914
        %v2335 = vunpack.c.l.b16 %v1915
        %v2336 = vunpack.c.l.b16 %v1916
        %v2337 = vunpack.c.l.b16 %v1917
        %v2338 = vunpack.c.l.b16 %v1918
        %v2339 = vunpack.c.l.b16 %v1919
        %v2340 = vunpack.c.l.b16 %v1920
        %v2341 = vunpack.c.l.b16 %v1921
        %v2342 = vunpack.c.l.b16 %v1922
        %v2343 = vunpack.c.l.b16 %v1923
        %v2344 = vunpack.c.l.b16 %v1924
        %v2345 = vunpack.c.l.b16 %v1925
        %v2346 = vunpack.c.l.b16 %v1926
        %v2347 = vunpack.c.l.b16 %v1927
        %v2348 = vunpack.c.l.b16 %v1928
        %v2349 = vunpack.c.l.b16 %v1929
        %v2350 = vunpack.c.l.b16 %v1930
        %v2351 = vunpack.c.l.b16 %v1931
        %v2352 = vunpack.c.l.b16 %v1932
        %v2353 = vunpack.c.l.b16 %v1933
        %v2354 = vunpack.c.l.b16 %v1934
        %v2355 = vunpack.c.l.b16 %v1935
        %v2356 = vunpack.c.l.b16 %v1936
        %v2357 = vunpack.c.l.b16 %v1937
        %v2358 = vunpack.c.l.b16 %v1938
        %v2359 = vunpack.c.l.b16 %v1939
        %v2360 = vunpack.c.l.b16 %v1940
        %v2361 = vunpack.c.l.b16 %v1941
        %v2362 = vunpack.c.l.b16 %v1942
        %v2363 = vunpack.c.l.b16 %v1943
        %v2364 = vunpack.c.l.b16 %v1944
        %v2365 = vunpack.c.l.b16 %v1945
        %v2366 = vpack.c.b16 %v2319, %v2318
        %v2367 = vpack.c.b16 %v2321, %v2320
        %v2368 = vpack.c.b16 %v2323, %v2322
        %v2369 = vpack.c.b16 %v2325, %v2324
        %v2370 = vpack.c.b16 %v2327, %v2326
        %v2371 = vpack.c.b16 %v2329, %v2328
        %v2372 = vpack.c.b16 %v2331, %v2330
        %v2373 = vpack.c.b16 %v2333, %v2332
        %v2374 = vpack.c.b16 %v2335, %v2334
        %v2375 = vpack.c.b16 %v2337, %v2336
        %v2376 = vpack.c.b16 %v2339, %v2338
        %v2377 = vpack.c.b16 %v2341, %v2340
        %v2378 = vpack.c.b16 %v2343, %v2342
        %v2379 = vpack.c.b16 %v2345, %v2344
        %v2380 = vpack.c.b16 %v2347, %v2346
        %v2381 = vpack.c.b16 %v2349, %v2348
        %v2382 = vpack.c.b16 %v2351, %v2350
        %v2383 = vpack.c.b16 %v2353, %v2352
        %v2384 = vpack.c.b16 %v2355, %v2354
        %v2385 = vpack.c.b16 %v2357, %v2356
        %v2386 = vpack.c.b16 %v2359, %v2358
        %v2387 = vpack.c.b16 %v2361, %v2360
        %v2388 = vpack.c.b16 %v2363, %v2362
        %v2389 = vpack.c.b16 %v2365, %v2364
        %2414 = vmatpush.bf16.msra.mxu0 %v2373
        %2415 = vmatpush.bf16.msra.mxu0 %v2372
        %2416 = vmatpush.bf16.msra.mxu0 %v2371
        %2417 = vmatpush.bf16.msra.mxu0 %v2370
        %2418 = vmatpush.bf16.msra.mxu0 %v2369
        %2419 = vmatpush.bf16.msra.mxu0 %v2368
        %2420 = vmatpush.bf16.msra.mxu0 %v2367
        %2421 = vmatpush.bf16.msra.mxu0 %v2366
        %2422 = vmatmul.bf16.gmra.mxu0 %v2108
        %v2423 = vpop.f32.mrf.mxu0
        %v2424 = vadd.f32 0.0, %v2423
        %v2425 = vpop.f32.mrf.mxu0
        %v2426 = vadd.f32 0.0, %v2425
        %2427 = vmatmul.bf16.gmra.mxu0 %v2111
        %v2428 = vpop.f32.mrf.mxu0
        %v2429 = vadd.f32 0.0, %v2428
        %v2430 = vpop.f32.mrf.mxu0
        %v2431 = vadd.f32 0.0, %v2430
        %2432 = vmatmul.bf16.gmra.mxu0 %v2114
        %v2433 = vpop.f32.mrf.mxu0
        %v2434 = vadd.f32 0.0, %v2433
        %v2435 = vpop.f32.mrf.mxu0
        %v2436 = vadd.f32 0.0, %v2435
        %2437 = vmatmul.bf16.gmra.mxu0 %v2117
        %v2438 = vpop.f32.mrf.mxu0
        %v2439 = vadd.f32 0.0, %v2438
        %v2440 = vpop.f32.mrf.mxu0
        %v2441 = vadd.f32 0.0, %v2440
        %2442 = vmatmul.bf16.gmra.mxu0 %v2120
        %v2443 = vpop.f32.mrf.mxu0
        %v2444 = vadd.f32 0.0, %v2443
        %v2445 = vpop.f32.mrf.mxu0
        %v2446 = vadd.f32 0.0, %v2445
        %2447 = vmatmul.bf16.gmra.mxu0 %v2123
        %v2448 = vpop.f32.mrf.mxu0
        %v2449 = vadd.f32 0.0, %v2448
        %v2450 = vpop.f32.mrf.mxu0
        %v2451 = vadd.f32 0.0, %v2450
        %2452 = vmatmul.bf16.gmra.mxu0 %v2126
        %v2453 = vpop.f32.mrf.mxu0
        %v2454 = vadd.f32 0.0, %v2453
        %v2455 = vpop.f32.mrf.mxu0
        %v2456 = vadd.f32 0.0, %v2455
        %2457 = vmatmul.bf16.gmra.mxu0 %v2129
        %v2458 = vpop.f32.mrf.mxu0
        %v2459 = vadd.f32 0.0, %v2458
        %v2460 = vpop.f32.mrf.mxu0
        %v2461 = vadd.f32 0.0, %v2460
        %2462 = vmatmul.bf16.gmra.mxu0 %v2132
        %v2463 = vpop.f32.mrf.mxu0
        %v2464 = vadd.f32 0.0, %v2463
        %v2465 = vpop.f32.mrf.mxu0
        %v2466 = vadd.f32 0.0, %v2465
        %2467 = vmatmul.bf16.gmra.mxu0 %v2135
        %v2468 = vpop.f32.mrf.mxu0
        %v2469 = vadd.f32 0.0, %v2468
        %v2470 = vpop.f32.mrf.mxu0
        %v2471 = vadd.f32 0.0, %v2470
        %2472 = vmatmul.bf16.gmra.mxu0 %v2138
        %v2473 = vpop.f32.mrf.mxu0
        %v2474 = vadd.f32 0.0, %v2473
        %v2475 = vpop.f32.mrf.mxu0
        %v2476 = vadd.f32 0.0, %v2475
        %2477 = vmatmul.bf16.gmra.mxu0 %v2141
        %v2478 = vpop.f32.mrf.mxu0
        %v2479 = vadd.f32 0.0, %v2478
        %v2480 = vpop.f32.mrf.mxu0
        %v2481 = vadd.f32 0.0, %v2480
        %2482 = vmatmul.bf16.gmra.mxu0 %v2144
        %v2483 = vpop.f32.mrf.mxu0
        %v2484 = vadd.f32 0.0, %v2483
        %v2485 = vpop.f32.mrf.mxu0
        %v2486 = vadd.f32 0.0, %v2485
        %2487 = vmatmul.bf16.gmra.mxu0 %v2147
        %v2488 = vpop.f32.mrf.mxu0
        %v2489 = vadd.f32 0.0, %v2488
        %v2490 = vpop.f32.mrf.mxu0
        %v2491 = vadd.f32 0.0, %v2490
        %2492 = vmatmul.bf16.gmra.mxu0 %v2150
        %v2493 = vpop.f32.mrf.mxu0
        %v2494 = vadd.f32 0.0, %v2493
        %v2495 = vpop.f32.mrf.mxu0
        %v2496 = vadd.f32 0.0, %v2495
        %2497 = vmatmul.bf16.gmra.mxu0 %v2153
        %v2498 = vpop.f32.mrf.mxu0
        %v2499 = vadd.f32 0.0, %v2498
        %v2500 = vpop.f32.mrf.mxu0
        %v2501 = vadd.f32 0.0, %v2500
        %2502 = vmatmul.bf16.gmra.mxu0 %v2156
        %v2503 = vpop.f32.mrf.mxu0
        %v2504 = vadd.f32 0.0, %v2503
        %v2505 = vpop.f32.mrf.mxu0
        %v2506 = vadd.f32 0.0, %v2505
        %2507 = vmatmul.bf16.gmra.mxu0 %v2159
        %v2508 = vpop.f32.mrf.mxu0
        %v2509 = vadd.f32 0.0, %v2508
        %v2510 = vpop.f32.mrf.mxu0
        %v2511 = vadd.f32 0.0, %v2510
        %2512 = vmatmul.bf16.gmra.mxu0 %v2162
        %v2513 = vpop.f32.mrf.mxu0
        %v2514 = vadd.f32 0.0, %v2513
        %v2515 = vpop.f32.mrf.mxu0
        %v2516 = vadd.f32 0.0, %v2515
        %2517 = vmatmul.bf16.gmra.mxu0 %v2165
        %v2518 = vpop.f32.mrf.mxu0
        %v2519 = vadd.f32 0.0, %v2518
        %v2520 = vpop.f32.mrf.mxu0
        %v2521 = vadd.f32 0.0, %v2520
        %2522 = vmatmul.bf16.gmra.mxu0 %v2168
        %v2523 = vpop.f32.mrf.mxu0
        %v2524 = vadd.f32 0.0, %v2523
        %v2525 = vpop.f32.mrf.mxu0
        %v2526 = vadd.f32 0.0, %v2525
        %2527 = vmatmul.bf16.gmra.mxu0 %v2171
        %v2528 = vpop.f32.mrf.mxu0
        %v2529 = vadd.f32 0.0, %v2528
        %v2530 = vpop.f32.mrf.mxu0
        %v2531 = vadd.f32 0.0, %v2530
        %2532 = vmatmul.bf16.gmra.mxu0 %v2174
        %v2533 = vpop.f32.mrf.mxu0
        %v2534 = vadd.f32 0.0, %v2533
        %v2535 = vpop.f32.mrf.mxu0
        %v2536 = vadd.f32 0.0, %v2535
        %2537 = vmatmul.bf16.gmra.mxu0 %v2177
        %v2538 = vpop.f32.mrf.mxu0
        %v2539 = vadd.f32 0.0, %v2538
        %v2540 = vpop.f32.mrf.mxu0
        %v2541 = vadd.f32 0.0, %v2540
        %2542 = vmatmul.bf16.gmra.mxu0 %v2180
        %v2543 = vpop.f32.mrf.mxu0
        %v2544 = vadd.f32 0.0, %v2543
        %v2545 = vpop.f32.mrf.mxu0
        %v2546 = vadd.f32 0.0, %v2545
        %2547 = vmatmul.bf16.gmra.mxu0 %v2183
        %v2548 = vpop.f32.mrf.mxu0
        %v2549 = vadd.f32 0.0, %v2548
        %v2550 = vpop.f32.mrf.mxu0
        %v2551 = vadd.f32 0.0, %v2550
        %2552 = vmatmul.bf16.gmra.mxu0 %v2186
        %v2553 = vpop.f32.mrf.mxu0
        %v2554 = vadd.f32 0.0, %v2553
        %v2555 = vpop.f32.mrf.mxu0
        %v2556 = vadd.f32 0.0, %v2555
        %2557 = vdwg.mxu0
        %2558 = vmatpush.bf16.msra.mxu0 %v2381
        %2559 = vmatpush.bf16.msra.mxu0 %v2380
        %2560 = vmatpush.bf16.msra.mxu0 %v2379
        %2561 = vmatpush.bf16.msra.mxu0 %v2378
        %2562 = vmatpush.bf16.msra.mxu0 %v2377
        %2563 = vmatpush.bf16.msra.mxu0 %v2376
        %2564 = vmatpush.bf16.msra.mxu0 %v2375
        %2565 = vmatpush.bf16.msra.mxu0 %v2374
        %2566 = vmatmul.bf16.gmra.mxu0 %v2109
        %v2567 = vpop.f32.mrf.mxu0
        %v2568 = vadd.f32 %v2424, %v2567
        %v2569 = vpop.f32.mrf.mxu0
        %v2570 = vadd.f32 %v2426, %v2569
        %2571 = vmatmul.bf16.gmra.mxu0 %v2112
        %v2572 = vpop.f32.mrf.mxu0
        %v2573 = vadd.f32 %v2429, %v2572
        %v2574 = vpop.f32.mrf.mxu0
        %v2575 = vadd.f32 %v2431, %v2574
        %2576 = vmatmul.bf16.gmra.mxu0 %v2115
        %v2577 = vpop.f32.mrf.mxu0
        %v2578 = vadd.f32 %v2434, %v2577
        %v2579 = vpop.f32.mrf.mxu0
        %v2580 = vadd.f32 %v2436, %v2579
        %2581 = vmatmul.bf16.gmra.mxu0 %v2118
        %v2582 = vpop.f32.mrf.mxu0
        %v2583 = vadd.f32 %v2439, %v2582
        %v2584 = vpop.f32.mrf.mxu0
        %v2585 = vadd.f32 %v2441, %v2584
        %2586 = vmatmul.bf16.gmra.mxu0 %v2121
        %v2587 = vpop.f32.mrf.mxu0
        %v2588 = vadd.f32 %v2444, %v2587
        %v2589 = vpop.f32.mrf.mxu0
        %v2590 = vadd.f32 %v2446, %v2589
        %2591 = vmatmul.bf16.gmra.mxu0 %v2124
        %v2592 = vpop.f32.mrf.mxu0
        %v2593 = vadd.f32 %v2449, %v2592
        %v2594 = vpop.f32.mrf.mxu0
        %v2595 = vadd.f32 %v2451, %v2594
        %2596 = vmatmul.bf16.gmra.mxu0 %v2127
        %v2597 = vpop.f32.mrf.mxu0
        %v2598 = vadd.f32 %v2454, %v2597
        %v2599 = vpop.f32.mrf.mxu0
        %v2600 = vadd.f32 %v2456, %v2599
        %2601 = vmatmul.bf16.gmra.mxu0 %v2130
        %v2602 = vpop.f32.mrf.mxu0
        %v2603 = vadd.f32 %v2459, %v2602
        %v2604 = vpop.f32.mrf.mxu0
        %v2605 = vadd.f32 %v2461, %v2604
        %2606 = vmatmul.bf16.gmra.mxu0 %v2133
        %v2607 = vpop.f32.mrf.mxu0
        %v2608 = vadd.f32 %v2464, %v2607
        %v2609 = vpop.f32.mrf.mxu0
        %v2610 = vadd.f32 %v2466, %v2609
        %2611 = vmatmul.bf16.gmra.mxu0 %v2136
        %v2612 = vpop.f32.mrf.mxu0
        %v2613 = vadd.f32 %v2469, %v2612
        %v2614 = vpop.f32.mrf.mxu0
        %v2615 = vadd.f32 %v2471, %v2614
        %2616 = vmatmul.bf16.gmra.mxu0 %v2139
        %v2617 = vpop.f32.mrf.mxu0
        %v2618 = vadd.f32 %v2474, %v2617
        %v2619 = vpop.f32.mrf.mxu0
        %v2620 = vadd.f32 %v2476, %v2619
        %2621 = vmatmul.bf16.gmra.mxu0 %v2142
        %v2622 = vpop.f32.mrf.mxu0
        %v2623 = vadd.f32 %v2479, %v2622
        %v2624 = vpop.f32.mrf.mxu0
        %v2625 = vadd.f32 %v2481, %v2624
        %2626 = vmatmul.bf16.gmra.mxu0 %v2145
        %v2627 = vpop.f32.mrf.mxu0
        %v2628 = vadd.f32 %v2484, %v2627
        %v2629 = vpop.f32.mrf.mxu0
        %v2630 = vadd.f32 %v2486, %v2629
        %2631 = vmatmul.bf16.gmra.mxu0 %v2148
        %v2632 = vpop.f32.mrf.mxu0
        %v2633 = vadd.f32 %v2489, %v2632
        %v2634 = vpop.f32.mrf.mxu0
        %v2635 = vadd.f32 %v2491, %v2634
        %2636 = vmatmul.bf16.gmra.mxu0 %v2151
        %v2637 = vpop.f32.mrf.mxu0
        %v2638 = vadd.f32 %v2494, %v2637
        %v2639 = vpop.f32.mrf.mxu0
        %v2640 = vadd.f32 %v2496, %v2639
        %2641 = vmatmul.bf16.gmra.mxu0 %v2154
        %v2642 = vpop.f32.mrf.mxu0
        %v2643 = vadd.f32 %v2499, %v2642
        %v2644 = vpop.f32.mrf.mxu0
        %v2645 = vadd.f32 %v2501, %v2644
        %2646 = vmatmul.bf16.gmra.mxu0 %v2157
        %v2647 = vpop.f32.mrf.mxu0
        %v2648 = vadd.f32 %v2504, %v2647
        %v2649 = vpop.f32.mrf.mxu0
        %v2650 = vadd.f32 %v2506, %v2649
        %2651 = vmatmul.bf16.gmra.mxu0 %v2160
        %v2652 = vpop.f32.mrf.mxu0
        %v2653 = vadd.f32 %v2509, %v2652
        %v2654 = vpop.f32.mrf.mxu0
        %v2655 = vadd.f32 %v2511, %v2654
        %2656 = vmatmul.bf16.gmra.mxu0 %v2163
        %v2657 = vpop.f32.mrf.mxu0
        %v2658 = vadd.f32 %v2514, %v2657
        %v2659 = vpop.f32.mrf.mxu0
        %v2660 = vadd.f32 %v2516, %v2659
        %2661 = vmatmul.bf16.gmra.mxu0 %v2166
        %v2662 = vpop.f32.mrf.mxu0
        %v2663 = vadd.f32 %v2519, %v2662
        %v2664 = vpop.f32.mrf.mxu0
        %v2665 = vadd.f32 %v2521, %v2664
        %2666 = vmatmul.bf16.gmra.mxu0 %v2169
        %v2667 = vpop.f32.mrf.mxu0
        %v2668 = vadd.f32 %v2524, %v2667
        %v2669 = vpop.f32.mrf.mxu0
        %v2670 = vadd.f32 %v2526, %v2669
        %2671 = vmatmul.bf16.gmra.mxu0 %v2172
        %v2672 = vpop.f32.mrf.mxu0
        %v2673 = vadd.f32 %v2529, %v2672
        %v2674 = vpop.f32.mrf.mxu0
        %v2675 = vadd.f32 %v2531, %v2674
        %2676 = vmatmul.bf16.gmra.mxu0 %v2175
        %v2677 = vpop.f32.mrf.mxu0
        %v2678 = vadd.f32 %v2534, %v2677
        %v2679 = vpop.f32.mrf.mxu0
        %v2680 = vadd.f32 %v2536, %v2679
        %2681 = vmatmul.bf16.gmra.mxu0 %v2178
        %v2682 = vpop.f32.mrf.mxu0
        %v2683 = vadd.f32 %v2539, %v2682
        %v2684 = vpop.f32.mrf.mxu0
        %v2685 = vadd.f32 %v2541, %v2684
        %2686 = vmatmul.bf16.gmra.mxu0 %v2181
        %v2687 = vpop.f32.mrf.mxu0
        %v2688 = vadd.f32 %v2544, %v2687
        %v2689 = vpop.f32.mrf.mxu0
        %v2690 = vadd.f32 %v2546, %v2689
        %2691 = vmatmul.bf16.gmra.mxu0 %v2184
        %v2692 = vpop.f32.mrf.mxu0
        %v2693 = vadd.f32 %v2549, %v2692
        %v2694 = vpop.f32.mrf.mxu0
        %v2695 = vadd.f32 %v2551, %v2694
        %2696 = vmatmul.bf16.gmra.mxu0 %v2187
        %v2697 = vpop.f32.mrf.mxu0
        %v2698 = vadd.f32 %v2554, %v2697
        %v2699 = vpop.f32.mrf.mxu0
        %v2700 = vadd.f32 %v2556, %v2699
        %2701 = vdwg.mxu0
        %2702 = vmatpush.bf16.msra.mxu0 %v2389
        %2703 = vmatpush.bf16.msra.mxu0 %v2388
        %2704 = vmatpush.bf16.msra.mxu0 %v2387
        %2705 = vmatpush.bf16.msra.mxu0 %v2386
        %2706 = vmatpush.bf16.msra.mxu0 %v2385
        %2707 = vmatpush.bf16.msra.mxu0 %v2384
        %2708 = vmatpush.bf16.msra.mxu0 %v2383
        %2709 = vmatpush.bf16.msra.mxu0 %v2382
        %2710 = vmatmul.bf16.gmra.mxu0 %v2110
        %v2711 = vpop.f32.mrf.mxu0
        %v2712 = vadd.f32 %v2568, %v2711
        %v2713 = vpop.f32.mrf.mxu0
        %v2714 = vadd.f32 %v2570, %v2713
        %2715 = vmatmul.bf16.gmra.mxu0 %v2113
        %v2716 = vpop.f32.mrf.mxu0
        %v2717 = vadd.f32 %v2573, %v2716
        %v2718 = vpop.f32.mrf.mxu0
        %v2719 = vadd.f32 %v2575, %v2718
        %2720 = vmatmul.bf16.gmra.mxu0 %v2116
        %v2721 = vpop.f32.mrf.mxu0
        %v2722 = vadd.f32 %v2578, %v2721
        %v2723 = vpop.f32.mrf.mxu0
        %v2724 = vadd.f32 %v2580, %v2723
        %2725 = vmatmul.bf16.gmra.mxu0 %v2119
        %v2726 = vpop.f32.mrf.mxu0
        %v2727 = vadd.f32 %v2583, %v2726
        %v2728 = vpop.f32.mrf.mxu0
        %v2729 = vadd.f32 %v2585, %v2728
        %2730 = vmatmul.bf16.gmra.mxu0 %v2122
        %v2731 = vpop.f32.mrf.mxu0
        %v2732 = vadd.f32 %v2588, %v2731
        %v2733 = vpop.f32.mrf.mxu0
        %v2734 = vadd.f32 %v2590, %v2733
        %2735 = vmatmul.bf16.gmra.mxu0 %v2125
        %v2736 = vpop.f32.mrf.mxu0
        %v2737 = vadd.f32 %v2593, %v2736
        %v2738 = vpop.f32.mrf.mxu0
        %v2739 = vadd.f32 %v2595, %v2738
        %2740 = vmatmul.bf16.gmra.mxu0 %v2128
        %v2741 = vpop.f32.mrf.mxu0
        %v2742 = vadd.f32 %v2598, %v2741
        %v2743 = vpop.f32.mrf.mxu0
        %v2744 = vadd.f32 %v2600, %v2743
        %2745 = vmatmul.bf16.gmra.mxu0 %v2131
        %v2746 = vpop.f32.mrf.mxu0
        %v2747 = vadd.f32 %v2603, %v2746
        %v2748 = vpop.f32.mrf.mxu0
        %v2749 = vadd.f32 %v2605, %v2748
        %2750 = vmatmul.bf16.gmra.mxu0 %v2134
        %v2751 = vpop.f32.mrf.mxu0
        %v2752 = vadd.f32 %v2608, %v2751
        %v2753 = vpop.f32.mrf.mxu0
        %v2754 = vadd.f32 %v2610, %v2753
        %2755 = vmatmul.bf16.gmra.mxu0 %v2137
        %v2756 = vpop.f32.mrf.mxu0
        %v2757 = vadd.f32 %v2613, %v2756
        %v2758 = vpop.f32.mrf.mxu0
        %v2759 = vadd.f32 %v2615, %v2758
        %2760 = vmatmul.bf16.gmra.mxu0 %v2140
        %v2761 = vpop.f32.mrf.mxu0
        %v2762 = vadd.f32 %v2618, %v2761
        %v2763 = vpop.f32.mrf.mxu0
        %v2764 = vadd.f32 %v2620, %v2763
        %2765 = vmatmul.bf16.gmra.mxu0 %v2143
        %v2766 = vpop.f32.mrf.mxu0
        %v2767 = vadd.f32 %v2623, %v2766
        %v2768 = vpop.f32.mrf.mxu0
        %v2769 = vadd.f32 %v2625, %v2768
        %2770 = vmatmul.bf16.gmra.mxu0 %v2146
        %v2771 = vpop.f32.mrf.mxu0
        %v2772 = vadd.f32 %v2628, %v2771
        %v2773 = vpop.f32.mrf.mxu0
        %v2774 = vadd.f32 %v2630, %v2773
        %2775 = vmatmul.bf16.gmra.mxu0 %v2149
        %v2776 = vpop.f32.mrf.mxu0
        %v2777 = vadd.f32 %v2633, %v2776
        %v2778 = vpop.f32.mrf.mxu0
        %v2779 = vadd.f32 %v2635, %v2778
        %2780 = vmatmul.bf16.gmra.mxu0 %v2152
        %v2781 = vpop.f32.mrf.mxu0
        %v2782 = vadd.f32 %v2638, %v2781
        %v2783 = vpop.f32.mrf.mxu0
        %v2784 = vadd.f32 %v2640, %v2783
        %2785 = vmatmul.bf16.gmra.mxu0 %v2155
        %v2786 = vpop.f32.mrf.mxu0
        %v2787 = vadd.f32 %v2643, %v2786
        %v2788 = vpop.f32.mrf.mxu0
        %v2789 = vadd.f32 %v2645, %v2788
        %2790 = vmatmul.bf16.gmra.mxu0 %v2158
        %v2791 = vpop.f32.mrf.mxu0
        %v2792 = vadd.f32 %v2648, %v2791
        %v2793 = vpop.f32.mrf.mxu0
        %v2794 = vadd.f32 %v2650, %v2793
        %2795 = vmatmul.bf16.gmra.mxu0 %v2161
        %v2796 = vpop.f32.mrf.mxu0
        %v2797 = vadd.f32 %v2653, %v2796
        %v2798 = vpop.f32.mrf.mxu0
        %v2799 = vadd.f32 %v2655, %v2798
        %2800 = vmatmul.bf16.gmra.mxu0 %v2164
        %v2801 = vpop.f32.mrf.mxu0
        %v2802 = vadd.f32 %v2658, %v2801
        %v2803 = vpop.f32.mrf.mxu0
        %v2804 = vadd.f32 %v2660, %v2803
        %2805 = vmatmul.bf16.gmra.mxu0 %v2167
        %v2806 = vpop.f32.mrf.mxu0
        %v2807 = vadd.f32 %v2663, %v2806
        %v2808 = vpop.f32.mrf.mxu0
        %v2809 = vadd.f32 %v2665, %v2808
        %2810 = vmatmul.bf16.gmra.mxu0 %v2170
        %v2811 = vpop.f32.mrf.mxu0
        %v2812 = vadd.f32 %v2668, %v2811
        %v2813 = vpop.f32.mrf.mxu0
        %v2814 = vadd.f32 %v2670, %v2813
        %2815 = vmatmul.bf16.gmra.mxu0 %v2173
        %v2816 = vpop.f32.mrf.mxu0
        %v2817 = vadd.f32 %v2673, %v2816
        %v2818 = vpop.f32.mrf.mxu0
        %v2819 = vadd.f32 %v2675, %v2818
        %2820 = vmatmul.bf16.gmra.mxu0 %v2176
        %v2821 = vpop.f32.mrf.mxu0
        %v2822 = vadd.f32 %v2678, %v2821
        %v2823 = vpop.f32.mrf.mxu0
        %v2824 = vadd.f32 %v2680, %v2823
        %2825 = vmatmul.bf16.gmra.mxu0 %v2179
        %v2826 = vpop.f32.mrf.mxu0
        %v2827 = vadd.f32 %v2683, %v2826
        %v2828 = vpop.f32.mrf.mxu0
        %v2829 = vadd.f32 %v2685, %v2828
        %2830 = vmatmul.bf16.gmra.mxu0 %v2182
        %v2831 = vpop.f32.mrf.mxu0
        %v2832 = vadd.f32 %v2688, %v2831
        %v2833 = vpop.f32.mrf.mxu0
        %v2834 = vadd.f32 %v2690, %v2833
        %2835 = vmatmul.bf16.gmra.mxu0 %v2185
        %v2836 = vpop.f32.mrf.mxu0
        %v2837 = vadd.f32 %v2693, %v2836
        %v2838 = vpop.f32.mrf.mxu0
        %v2839 = vadd.f32 %v2695, %v2838
        %2840 = vmatmul.bf16.gmra.mxu0 %v2188
        %v2841 = vpop.f32.mrf.mxu0
        %v2842 = vadd.f32 %v2698, %v2841
        %v2843 = vpop.f32.mrf.mxu0
        %v2844 = vadd.f32 %v2700, %v2843
        %2845 = vdwg.mxu0
        %v2846 = vpack.c.b16 %v373, %v372
        %v2847 = vpack.c.b16 %v376, %v375
        %v2848 = vpack.c.b16 %v379, %v378
        %v2849 = vpack.c.b16 %v375, %v374
        %v2850 = vpack.c.b16 %v378, %v377
        %v2851 = vpack.c.b16 %v381, %v380
        %v2852 = vpack.c.b16 %v377, %v376
        %v2853 = vpack.c.b16 %v380, %v379
        %v2854 = vpack.c.b16 %v383, %v382
        %v2855 = vpack.c.b16 %v382, %v381
        %v2856 = vpack.c.b16 %v385, %v384
        %v2857 = vpack.c.b16 %v384, %v383
        %v2858 = vpack.c.b16 %v387, %v386
        %v2859 = vpack.c.b16 %v386, %v385
        %v2860 = vpack.c.b16 %v389, %v388
        %v2861 = vpack.c.b16 %v388, %v387
        %v2862 = vpack.c.b16 %v391, %v390
        %v2863 = vpack.c.b16 %v390, %v389
        %v2864 = vpack.c.b16 %v393, %v392
        %v2865 = vpack.c.b16 %v392, %v391
        %v2866 = vpack.c.b16 %v395, %v394
        %v2867 = vpack.c.b16 %v394, %v393
        %v2868 = vpack.c.b16 %v397, %v396
        %v2869 = vpack.c.b16 %v396, %v395
        %v2870 = vpack.c.b16 %v399, %v398
        %v2871 = vpack.c.b16 %v398, %v397
        %v2872 = vpack.c.b16 %v401, %v400
        %v2873 = vpack.c.b16 %v400, %v399
        %v2874 = vpack.c.b16 %v403, %v402
        %v2875 = vpack.c.b16 %v402, %v401
        %v2876 = vpack.c.b16 %v405, %v404
        %v2877 = vpack.c.b16 %v404, %v403
        %v2878 = vpack.c.b16 %v407, %v406
        %v2879 = vpack.c.b16 %v406, %v405
        %v2880 = vpack.c.b16 %v409, %v408
        %v2881 = vpack.c.b16 %v408, %v407
        %v2882 = vpack.c.b16 %v411, %v410
        %v2883 = vpack.c.b16 %v410, %v409
        %v2884 = vpack.c.b16 %v413, %v412
        %v2885 = vpack.c.b16 %v412, %v411
        %v2886 = vpack.c.b16 %v415, %v414
        %v2887 = vpack.c.b16 %v414, %v413
        %v2888 = vpack.c.b16 %v417, %v416
        %v2889 = vpack.c.b16 %v416, %v415
        %v2890 = vpack.c.b16 %v419, %v418
        %v2891 = vpack.c.b16 %v418, %v417
        %v2892 = vpack.c.b16 %v421, %v420
        %v2893 = vpack.c.b16 %v420, %v419
        %v2894 = vpack.c.b16 %v423, %v422
        %v2895 = vpack.c.b16 %v422, %v421
        %v2896 = vpack.c.b16 %v425, %v424
        %v2897 = vpack.c.b16 %v424, %v423
        %v2898 = vpack.c.b16 %v430, %v429
        %v2899 = vpack.c.b16 %v429, %v425
        %v2900 = vpack.c.b16 %v435, %v431
        %v2901 = vpack.c.b16 %v431, %v430
        %v2902 = vpack.c.b16 %v437, %v436
        %v3008 = vunpack.c.l.b16 %v438
        %v3009 = vunpack.c.l.b16 %v439
        %v3010 = vunpack.c.l.b16 %v440
        %v3011 = vunpack.c.l.b16 %v441
        %v3012 = vunpack.c.l.b16 %v442
        %v3013 = vunpack.c.l.b16 %v443
        %v3014 = vunpack.c.l.b16 %v444
        %v3015 = vunpack.c.l.b16 %v445
        %v3016 = vunpack.c.l.b16 %v446
        %v3017 = vunpack.c.l.b16 %v447
        %v3018 = vunpack.c.l.b16 %v448
        %v3019 = vunpack.c.l.b16 %v449
        %v3020 = vunpack.c.l.b16 %v450
        %v3021 = vunpack.c.l.b16 %v451
        %v3022 = vunpack.c.l.b16 %v452
        %v3023 = vunpack.c.l.b16 %v453
        %v3024 = vunpack.c.l.b16 %v454
        %v3025 = vunpack.c.l.b16 %v455
        %v3026 = vunpack.c.l.b16 %v456
        %v3027 = vunpack.c.l.b16 %v457
        %v3028 = vunpack.c.l.b16 %v458
        %v3029 = vunpack.c.l.b16 %v459
        %v3030 = vunpack.c.l.b16 %v460
        %v3031 = vunpack.c.l.b16 %v461
        %v3032 = vunpack.c.l.b16 %v462
        %v3033 = vunpack.c.l.b16 %v463
        %v3034 = vunpack.c.l.b16 %v464
        %v3035 = vunpack.c.l.b16 %v465
        %v3036 = vunpack.c.l.b16 %v466
        %v3037 = vunpack.c.l.b16 %v467
        %v3038 = vunpack.c.l.b16 %v468
        %v3039 = vunpack.c.l.b16 %v469
        %v3040 = vunpack.c.l.b16 %v470
        %v3041 = vunpack.c.l.b16 %v471
        %v3042 = vunpack.c.l.b16 %v472
        %v3043 = vunpack.c.l.b16 %v473
        %v3044 = vunpack.c.l.b16 %v474
        %v3045 = vunpack.c.l.b16 %v475
        %v3046 = vunpack.c.l.b16 %v476
        %v3047 = vunpack.c.l.b16 %v477
        %v3048 = vunpack.c.l.b16 %v478
        %v3049 = vunpack.c.l.b16 %v479
        %v3050 = vunpack.c.l.b16 %v480
        %v3051 = vunpack.c.l.b16 %v481
        %v3052 = vunpack.c.l.b16 %v482
        %v3053 = vunpack.c.l.b16 %v483
        %v3054 = vunpack.c.l.b16 %v484
        %v3055 = vunpack.c.l.b16 %v485
        %v3056 = vpack.c.b16 %v3009, %v3008
        %v3057 = vpack.c.b16 %v3011, %v3010
        %v3058 = vpack.c.b16 %v3013, %v3012
        %v3059 = vpack.c.b16 %v3015, %v3014
        %v3060 = vpack.c.b16 %v3017, %v3016
        %v3061 = vpack.c.b16 %v3019, %v3018
        %v3062 = vpack.c.b16 %v3021, %v3020
        %v3063 = vpack.c.b16 %v3023, %v3022
        %v3064 = vpack.c.b16 %v3025, %v3024
        %v3065 = vpack.c.b16 %v3027, %v3026
        %v3066 = vpack.c.b16 %v3029, %v3028
        %v3067 = vpack.c.b16 %v3031, %v3030
        %v3068 = vpack.c.b16 %v3033, %v3032
        %v3069 = vpack.c.b16 %v3035, %v3034
        %v3070 = vpack.c.b16 %v3037, %v3036
        %v3071 = vpack.c.b16 %v3039, %v3038
        %v3072 = vpack.c.b16 %v3041, %v3040
        %v3073 = vpack.c.b16 %v3043, %v3042
        %v3074 = vpack.c.b16 %v3045, %v3044
        %v3075 = vpack.c.b16 %v3047, %v3046
        %v3076 = vpack.c.b16 %v3049, %v3048
        %v3077 = vpack.c.b16 %v3051, %v3050
        %v3078 = vpack.c.b16 %v3053, %v3052
        %v3079 = vpack.c.b16 %v3055, %v3054
        %3104 = vmatpush.bf16.msra.mxu0 %v3063
        %3105 = vmatpush.bf16.msra.mxu0 %v3062
        %3106 = vmatpush.bf16.msra.mxu0 %v3061
        %3107 = vmatpush.bf16.msra.mxu0 %v3060
        %3108 = vmatpush.bf16.msra.mxu0 %v3059
        %3109 = vmatpush.bf16.msra.mxu0 %v3058
        %3110 = vmatpush.bf16.msra.mxu0 %v3057
        %3111 = vmatpush.bf16.msra.mxu0 %v3056
        %3112 = vmatmul.bf16.gmra.mxu0 %v2846
        %v3113 = vpop.f32.mrf.mxu0
        %v3114 = vadd.f32 %v2712, %v3113
        %v3115 = vpop.f32.mrf.mxu0
        %v3116 = vadd.f32 %v2714, %v3115
        %3117 = vmatmul.bf16.gmra.mxu0 %v2849
        %v3118 = vpop.f32.mrf.mxu0
        %v3119 = vadd.f32 %v2717, %v3118
        %v3120 = vpop.f32.mrf.mxu0
        %v3121 = vadd.f32 %v2719, %v3120
        %3122 = vmatmul.bf16.gmra.mxu0 %v2852
        %v3123 = vpop.f32.mrf.mxu0
        %v3124 = vadd.f32 %v2722, %v3123
        %v3125 = vpop.f32.mrf.mxu0
        %v3126 = vadd.f32 %v2724, %v3125
        %3127 = vmatmul.bf16.gmra.mxu0 %v2848
        %v3128 = vpop.f32.mrf.mxu0
        %v3129 = vadd.f32 %v2727, %v3128
        %v3130 = vpop.f32.mrf.mxu0
        %v3131 = vadd.f32 %v2729, %v3130
        %3132 = vmatmul.bf16.gmra.mxu0 %v2851
        %v3133 = vpop.f32.mrf.mxu0
        %v3134 = vadd.f32 %v2732, %v3133
        %v3135 = vpop.f32.mrf.mxu0
        %v3136 = vadd.f32 %v2734, %v3135
        %3137 = vmatmul.bf16.gmra.mxu0 %v2854
        %v3138 = vpop.f32.mrf.mxu0
        %v3139 = vadd.f32 %v2737, %v3138
        %v3140 = vpop.f32.mrf.mxu0
        %v3141 = vadd.f32 %v2739, %v3140
        %3142 = vmatmul.bf16.gmra.mxu0 %v2856
        %v3143 = vpop.f32.mrf.mxu0
        %v3144 = vadd.f32 %v2742, %v3143
        %v3145 = vpop.f32.mrf.mxu0
        %v3146 = vadd.f32 %v2744, %v3145
        %3147 = vmatmul.bf16.gmra.mxu0 %v2858
        %v3148 = vpop.f32.mrf.mxu0
        %v3149 = vadd.f32 %v2747, %v3148
        %v3150 = vpop.f32.mrf.mxu0
        %v3151 = vadd.f32 %v2749, %v3150
        %3152 = vmatmul.bf16.gmra.mxu0 %v2860
        %v3153 = vpop.f32.mrf.mxu0
        %v3154 = vadd.f32 %v2752, %v3153
        %v3155 = vpop.f32.mrf.mxu0
        %v3156 = vadd.f32 %v2754, %v3155
        %3157 = vmatmul.bf16.gmra.mxu0 %v2862
        %v3158 = vpop.f32.mrf.mxu0
        %v3159 = vadd.f32 %v2757, %v3158
        %v3160 = vpop.f32.mrf.mxu0
        %v3161 = vadd.f32 %v2759, %v3160
        %3162 = vmatmul.bf16.gmra.mxu0 %v2864
        %v3163 = vpop.f32.mrf.mxu0
        %v3164 = vadd.f32 %v2762, %v3163
        %v3165 = vpop.f32.mrf.mxu0
        %v3166 = vadd.f32 %v2764, %v3165
        %3167 = vmatmul.bf16.gmra.mxu0 %v2866
        %v3168 = vpop.f32.mrf.mxu0
        %v3169 = vadd.f32 %v2767, %v3168
        %v3170 = vpop.f32.mrf.mxu0
        %v3171 = vadd.f32 %v2769, %v3170
        %3172 = vmatmul.bf16.gmra.mxu0 %v2868
        %v3173 = vpop.f32.mrf.mxu0
        %v3174 = vadd.f32 %v2772, %v3173
        %v3175 = vpop.f32.mrf.mxu0
        %v3176 = vadd.f32 %v2774, %v3175
        %3177 = vmatmul.bf16.gmra.mxu0 %v2870
        %v3178 = vpop.f32.mrf.mxu0
        %v3179 = vadd.f32 %v2777, %v3178
        %v3180 = vpop.f32.mrf.mxu0
        %v3181 = vadd.f32 %v2779, %v3180
        %3182 = vmatmul.bf16.gmra.mxu0 %v2872
        %v3183 = vpop.f32.mrf.mxu0
        %v3184 = vadd.f32 %v2782, %v3183
        %v3185 = vpop.f32.mrf.mxu0
        %v3186 = vadd.f32 %v2784, %v3185
        %3187 = vmatmul.bf16.gmra.mxu0 %v2874
        %v3188 = vpop.f32.mrf.mxu0
        %v3189 = vadd.f32 %v2787, %v3188
        %v3190 = vpop.f32.mrf.mxu0
        %v3191 = vadd.f32 %v2789, %v3190
        %3192 = vmatmul.bf16.gmra.mxu0 %v2876
        %v3193 = vpop.f32.mrf.mxu0
        %v3194 = vadd.f32 %v2792, %v3193
        %v3195 = vpop.f32.mrf.mxu0
        %v3196 = vadd.f32 %v2794, %v3195
        %3197 = vmatmul.bf16.gmra.mxu0 %v2878
        %v3198 = vpop.f32.mrf.mxu0
        %v3199 = vadd.f32 %v2797, %v3198
        %v3200 = vpop.f32.mrf.mxu0
        %v3201 = vadd.f32 %v2799, %v3200
        %3202 = vmatmul.bf16.gmra.mxu0 %v2880
        %v3203 = vpop.f32.mrf.mxu0
        %v3204 = vadd.f32 %v2802, %v3203
        %v3205 = vpop.f32.mrf.mxu0
        %v3206 = vadd.f32 %v2804, %v3205
        %3207 = vmatmul.bf16.gmra.mxu0 %v2882
        %v3208 = vpop.f32.mrf.mxu0
        %v3209 = vadd.f32 %v2807, %v3208
        %v3210 = vpop.f32.mrf.mxu0
        %v3211 = vadd.f32 %v2809, %v3210
        %3212 = vmatmul.bf16.gmra.mxu0 %v2884
        %v3213 = vpop.f32.mrf.mxu0
        %v3214 = vadd.f32 %v2812, %v3213
        %v3215 = vpop.f32.mrf.mxu0
        %v3216 = vadd.f32 %v2814, %v3215
        %3217 = vmatmul.bf16.gmra.mxu0 %v2886
        %v3218 = vpop.f32.mrf.mxu0
        %v3219 = vadd.f32 %v2817, %v3218
        %v3220 = vpop.f32.mrf.mxu0
        %v3221 = vadd.f32 %v2819, %v3220
        %3222 = vmatmul.bf16.gmra.mxu0 %v2888
        %v3223 = vpop.f32.mrf.mxu0
        %v3224 = vadd.f32 %v2822, %v3223
        %v3225 = vpop.f32.mrf.mxu0
        %v3226 = vadd.f32 %v2824, %v3225
        %3227 = vmatmul.bf16.gmra.mxu0 %v2890
        %v3228 = vpop.f32.mrf.mxu0
        %v3229 = vadd.f32 %v2827, %v3228
        %v3230 = vpop.f32.mrf.mxu0
        %v3231 = vadd.f32 %v2829, %v3230
        %3232 = vmatmul.bf16.gmra.mxu0 %v2892
        %v3233 = vpop.f32.mrf.mxu0
        %v3234 = vadd.f32 %v2832, %v3233
        %v3235 = vpop.f32.mrf.mxu0
        %v3236 = vadd.f32 %v2834, %v3235
        %3237 = vmatmul.bf16.gmra.mxu0 %v2894
        %v3238 = vpop.f32.mrf.mxu0
        %v3239 = vadd.f32 %v2837, %v3238
        %v3240 = vpop.f32.mrf.mxu0
        %v3241 = vadd.f32 %v2839, %v3240
        %3242 = vmatmul.bf16.gmra.mxu0 %v2896
        %v3243 = vpop.f32.mrf.mxu0
        %v3244 = vadd.f32 %v2842, %v3243
        %v3245 = vpop.f32.mrf.mxu0
        %v3246 = vadd.f32 %v2844, %v3245
        %3247 = vdwg.mxu0
        %3248 = vmatpush.bf16.msra.mxu0 %v3071
        %3249 = vmatpush.bf16.msra.mxu0 %v3070
        %3250 = vmatpush.bf16.msra.mxu0 %v3069
        %3251 = vmatpush.bf16.msra.mxu0 %v3068
        %3252 = vmatpush.bf16.msra.mxu0 %v3067
        %3253 = vmatpush.bf16.msra.mxu0 %v3066
        %3254 = vmatpush.bf16.msra.mxu0 %v3065
        %3255 = vmatpush.bf16.msra.mxu0 %v3064
        %3256 = vmatmul.bf16.gmra.mxu0 %v2847
        %v3257 = vpop.f32.mrf.mxu0
        %v3258 = vadd.f32 %v3114, %v3257
        %v3259 = vpop.f32.mrf.mxu0
        %v3260 = vadd.f32 %v3116, %v3259
        %3261 = vmatmul.bf16.gmra.mxu0 %v2850
        %v3262 = vpop.f32.mrf.mxu0
        %v3263 = vadd.f32 %v3119, %v3262
        %v3264 = vpop.f32.mrf.mxu0
        %v3265 = vadd.f32 %v3121, %v3264
        %3266 = vmatmul.bf16.gmra.mxu0 %v2853
        %v3267 = vpop.f32.mrf.mxu0
        %v3268 = vadd.f32 %v3124, %v3267
        %v3269 = vpop.f32.mrf.mxu0
        %v3270 = vadd.f32 %v3126, %v3269
        %3271 = vmatmul.bf16.gmra.mxu0 %v2855
        %v3272 = vpop.f32.mrf.mxu0
        %v3273 = vadd.f32 %v3129, %v3272
        %v3274 = vpop.f32.mrf.mxu0
        %v3275 = vadd.f32 %v3131, %v3274
        %3276 = vmatmul.bf16.gmra.mxu0 %v2857
        %v3277 = vpop.f32.mrf.mxu0
        %v3278 = vadd.f32 %v3134, %v3277
        %v3279 = vpop.f32.mrf.mxu0
        %v3280 = vadd.f32 %v3136, %v3279
        %3281 = vmatmul.bf16.gmra.mxu0 %v2859
        %v3282 = vpop.f32.mrf.mxu0
        %v3283 = vadd.f32 %v3139, %v3282
        %v3284 = vpop.f32.mrf.mxu0
        %v3285 = vadd.f32 %v3141, %v3284
        %3286 = vmatmul.bf16.gmra.mxu0 %v2861
        %v3287 = vpop.f32.mrf.mxu0
        %v3288 = vadd.f32 %v3144, %v3287
        %v3289 = vpop.f32.mrf.mxu0
        %v3290 = vadd.f32 %v3146, %v3289
        %3291 = vmatmul.bf16.gmra.mxu0 %v2863
        %v3292 = vpop.f32.mrf.mxu0
        %v3293 = vadd.f32 %v3149, %v3292
        %v3294 = vpop.f32.mrf.mxu0
        %v3295 = vadd.f32 %v3151, %v3294
        %3296 = vmatmul.bf16.gmra.mxu0 %v2865
        %v3297 = vpop.f32.mrf.mxu0
        %v3298 = vadd.f32 %v3154, %v3297
        %v3299 = vpop.f32.mrf.mxu0
        %v3300 = vadd.f32 %v3156, %v3299
        %3301 = vmatmul.bf16.gmra.mxu0 %v2867
        %v3302 = vpop.f32.mrf.mxu0
        %v3303 = vadd.f32 %v3159, %v3302
        %v3304 = vpop.f32.mrf.mxu0
        %v3305 = vadd.f32 %v3161, %v3304
        %3306 = vmatmul.bf16.gmra.mxu0 %v2869
        %v3307 = vpop.f32.mrf.mxu0
        %v3308 = vadd.f32 %v3164, %v3307
        %v3309 = vpop.f32.mrf.mxu0
        %v3310 = vadd.f32 %v3166, %v3309
        %3311 = vmatmul.bf16.gmra.mxu0 %v2871
        %v3312 = vpop.f32.mrf.mxu0
        %v3313 = vadd.f32 %v3169, %v3312
        %v3314 = vpop.f32.mrf.mxu0
        %v3315 = vadd.f32 %v3171, %v3314
        %3316 = vmatmul.bf16.gmra.mxu0 %v2873
        %v3317 = vpop.f32.mrf.mxu0
        %v3318 = vadd.f32 %v3174, %v3317
        %v3319 = vpop.f32.mrf.mxu0
        %v3320 = vadd.f32 %v3176, %v3319
        %3321 = vmatmul.bf16.gmra.mxu0 %v2875
        %v3322 = vpop.f32.mrf.mxu0
        %v3323 = vadd.f32 %v3179, %v3322
        %v3324 = vpop.f32.mrf.mxu0
        %v3325 = vadd.f32 %v3181, %v3324
        %3326 = vmatmul.bf16.gmra.mxu0 %v2877
        %v3327 = vpop.f32.mrf.mxu0
        %v3328 = vadd.f32 %v3184, %v3327
        %v3329 = vpop.f32.mrf.mxu0
        %v3330 = vadd.f32 %v3186, %v3329
        %3331 = vmatmul.bf16.gmra.mxu0 %v2879
        %v3332 = vpop.f32.mrf.mxu0
        %v3333 = vadd.f32 %v3189, %v3332
        %v3334 = vpop.f32.mrf.mxu0
        %v3335 = vadd.f32 %v3191, %v3334
        %3336 = vmatmul.bf16.gmra.mxu0 %v2881
        %v3337 = vpop.f32.mrf.mxu0
        %v3338 = vadd.f32 %v3194, %v3337
        %v3339 = vpop.f32.mrf.mxu0
        %v3340 = vadd.f32 %v3196, %v3339
        %3341 = vmatmul.bf16.gmra.mxu0 %v2883
        %v3342 = vpop.f32.mrf.mxu0
        %v3343 = vadd.f32 %v3199, %v3342
        %v3344 = vpop.f32.mrf.mxu0
        %v3345 = vadd.f32 %v3201, %v3344
        %3346 = vmatmul.bf16.gmra.mxu0 %v2885
        %v3347 = vpop.f32.mrf.mxu0
        %v3348 = vadd.f32 %v3204, %v3347
        %v3349 = vpop.f32.mrf.mxu0
        %v3350 = vadd.f32 %v3206, %v3349
        %3351 = vmatmul.bf16.gmra.mxu0 %v2887
        %v3352 = vpop.f32.mrf.mxu0
        %v3353 = vadd.f32 %v3209, %v3352
        %v3354 = vpop.f32.mrf.mxu0
        %v3355 = vadd.f32 %v3211, %v3354
        %3356 = vmatmul.bf16.gmra.mxu0 %v2889
        %v3357 = vpop.f32.mrf.mxu0
        %v3358 = vadd.f32 %v3214, %v3357
        %v3359 = vpop.f32.mrf.mxu0
        %v3360 = vadd.f32 %v3216, %v3359
        %3361 = vmatmul.bf16.gmra.mxu0 %v2891
        %v3362 = vpop.f32.mrf.mxu0
        %v3363 = vadd.f32 %v3219, %v3362
        %v3364 = vpop.f32.mrf.mxu0
        %v3365 = vadd.f32 %v3221, %v3364
        %3366 = vmatmul.bf16.gmra.mxu0 %v2893
        %v3367 = vpop.f32.mrf.mxu0
        %v3368 = vadd.f32 %v3224, %v3367
        %v3369 = vpop.f32.mrf.mxu0
        %v3370 = vadd.f32 %v3226, %v3369
        %3371 = vmatmul.bf16.gmra.mxu0 %v2895
        %v3372 = vpop.f32.mrf.mxu0
        %v3373 = vadd.f32 %v3229, %v3372
        %v3374 = vpop.f32.mrf.mxu0
        %v3375 = vadd.f32 %v3231, %v3374
        %3376 = vmatmul.bf16.gmra.mxu0 %v2897
        %v3377 = vpop.f32.mrf.mxu0
        %v3378 = vadd.f32 %v3234, %v3377
        %v3379 = vpop.f32.mrf.mxu0
        %v3380 = vadd.f32 %v3236, %v3379
        %3381 = vmatmul.bf16.gmra.mxu0 %v2899
        %v3382 = vpop.f32.mrf.mxu0
        %v3383 = vadd.f32 %v3239, %v3382
        %v3384 = vpop.f32.mrf.mxu0
        %v3385 = vadd.f32 %v3241, %v3384
        %3386 = vmatmul.bf16.gmra.mxu0 %v2901
        %v3387 = vpop.f32.mrf.mxu0
        %v3388 = vadd.f32 %v3244, %v3387
        %v3389 = vpop.f32.mrf.mxu0
        %v3390 = vadd.f32 %v3246, %v3389
        %3391 = vdwg.mxu0
        %3392 = vmatpush.bf16.msra.mxu0 %v3079
        %3393 = vmatpush.bf16.msra.mxu0 %v3078
        %3394 = vmatpush.bf16.msra.mxu0 %v3077
        %3395 = vmatpush.bf16.msra.mxu0 %v3076
        %3396 = vmatpush.bf16.msra.mxu0 %v3075
        %3397 = vmatpush.bf16.msra.mxu0 %v3074
        %3398 = vmatpush.bf16.msra.mxu0 %v3073
        %3399 = vmatpush.bf16.msra.mxu0 %v3072
        %3400 = vmatmul.bf16.gmra.mxu0 %v2848
        %v3401 = vpop.f32.mrf.mxu0
        %v3402 = vadd.f32 %v3258, %v3401
        %v3403 = vpop.f32.mrf.mxu0
        %v3404 = vadd.f32 %v3260, %v3403
        %3405 = vmatmul.bf16.gmra.mxu0 %v2851
        %v3406 = vpop.f32.mrf.mxu0
        %v3407 = vadd.f32 %v3263, %v3406
        %v3408 = vpop.f32.mrf.mxu0
        %v3409 = vadd.f32 %v3265, %v3408
        %3410 = vmatmul.bf16.gmra.mxu0 %v2854
        %v3411 = vpop.f32.mrf.mxu0
        %v3412 = vadd.f32 %v3268, %v3411
        %v3413 = vpop.f32.mrf.mxu0
        %v3414 = vadd.f32 %v3270, %v3413
        %3415 = vmatmul.bf16.gmra.mxu0 %v2856
        %v3416 = vpop.f32.mrf.mxu0
        %v3417 = vadd.f32 %v3273, %v3416
        %v3418 = vpop.f32.mrf.mxu0
        %v3419 = vadd.f32 %v3275, %v3418
        %3420 = vmatmul.bf16.gmra.mxu0 %v2858
        %v3421 = vpop.f32.mrf.mxu0
        %v3422 = vadd.f32 %v3278, %v3421
        %v3423 = vpop.f32.mrf.mxu0
        %v3424 = vadd.f32 %v3280, %v3423
        %3425 = vmatmul.bf16.gmra.mxu0 %v2860
        %v3426 = vpop.f32.mrf.mxu0
        %v3427 = vadd.f32 %v3283, %v3426
        %v3428 = vpop.f32.mrf.mxu0
        %v3429 = vadd.f32 %v3285, %v3428
        %3430 = vmatmul.bf16.gmra.mxu0 %v2862
        %v3431 = vpop.f32.mrf.mxu0
        %v3432 = vadd.f32 %v3288, %v3431
        %v3433 = vpop.f32.mrf.mxu0
        %v3434 = vadd.f32 %v3290, %v3433
        %3435 = vmatmul.bf16.gmra.mxu0 %v2864
        %v3436 = vpop.f32.mrf.mxu0
        %v3437 = vadd.f32 %v3293, %v3436
        %v3438 = vpop.f32.mrf.mxu0
        %v3439 = vadd.f32 %v3295, %v3438
        %3440 = vmatmul.bf16.gmra.mxu0 %v2866
        %v3441 = vpop.f32.mrf.mxu0
        %v3442 = vadd.f32 %v3298, %v3441
        %v3443 = vpop.f32.mrf.mxu0
        %v3444 = vadd.f32 %v3300, %v3443
        %3445 = vmatmul.bf16.gmra.mxu0 %v2868
        %v3446 = vpop.f32.mrf.mxu0
        %v3447 = vadd.f32 %v3303, %v3446
        %v3448 = vpop.f32.mrf.mxu0
        %v3449 = vadd.f32 %v3305, %v3448
        %3450 = vmatmul.bf16.gmra.mxu0 %v2870
        %v3451 = vpop.f32.mrf.mxu0
        %v3452 = vadd.f32 %v3308, %v3451
        %v3453 = vpop.f32.mrf.mxu0
        %v3454 = vadd.f32 %v3310, %v3453
        %3455 = vmatmul.bf16.gmra.mxu0 %v2872
        %v3456 = vpop.f32.mrf.mxu0
        %v3457 = vadd.f32 %v3313, %v3456
        %v3458 = vpop.f32.mrf.mxu0
        %v3459 = vadd.f32 %v3315, %v3458
        %3460 = vmatmul.bf16.gmra.mxu0 %v2874
        %v3461 = vpop.f32.mrf.mxu0
        %v3462 = vadd.f32 %v3318, %v3461
        %v3463 = vpop.f32.mrf.mxu0
        %v3464 = vadd.f32 %v3320, %v3463
        %3465 = vmatmul.bf16.gmra.mxu0 %v2876
        %v3466 = vpop.f32.mrf.mxu0
        %v3467 = vadd.f32 %v3323, %v3466
        %v3468 = vpop.f32.mrf.mxu0
        %v3469 = vadd.f32 %v3325, %v3468
        %3470 = vmatmul.bf16.gmra.mxu0 %v2878
        %v3471 = vpop.f32.mrf.mxu0
        %v3472 = vadd.f32 %v3328, %v3471
        %v3473 = vpop.f32.mrf.mxu0
        %v3474 = vadd.f32 %v3330, %v3473
        %3475 = vmatmul.bf16.gmra.mxu0 %v2880
        %v3476 = vpop.f32.mrf.mxu0
        %v3477 = vadd.f32 %v3333, %v3476
        %v3478 = vpop.f32.mrf.mxu0
        %v3479 = vadd.f32 %v3335, %v3478
        %3480 = vmatmul.bf16.gmra.mxu0 %v2882
        %v3481 = vpop.f32.mrf.mxu0
        %v3482 = vadd.f32 %v3338, %v3481
        %v3483 = vpop.f32.mrf.mxu0
        %v3484 = vadd.f32 %v3340, %v3483
        %3485 = vmatmul.bf16.gmra.mxu0 %v2884
        %v3486 = vpop.f32.mrf.mxu0
        %v3487 = vadd.f32 %v3343, %v3486
        %v3488 = vpop.f32.mrf.mxu0
        %v3489 = vadd.f32 %v3345, %v3488
        %3490 = vmatmul.bf16.gmra.mxu0 %v2886
        %v3491 = vpop.f32.mrf.mxu0
        %v3492 = vadd.f32 %v3348, %v3491
        %v3493 = vpop.f32.mrf.mxu0
        %v3494 = vadd.f32 %v3350, %v3493
        %3495 = vmatmul.bf16.gmra.mxu0 %v2888
        %v3496 = vpop.f32.mrf.mxu0
        %v3497 = vadd.f32 %v3353, %v3496
        %v3498 = vpop.f32.mrf.mxu0
        %v3499 = vadd.f32 %v3355, %v3498
        %3500 = vmatmul.bf16.gmra.mxu0 %v2890
        %v3501 = vpop.f32.mrf.mxu0
        %v3502 = vadd.f32 %v3358, %v3501
        %v3503 = vpop.f32.mrf.mxu0
        %v3504 = vadd.f32 %v3360, %v3503
        %3505 = vmatmul.bf16.gmra.mxu0 %v2892
        %v3506 = vpop.f32.mrf.mxu0
        %v3507 = vadd.f32 %v3363, %v3506
        %v3508 = vpop.f32.mrf.mxu0
        %v3509 = vadd.f32 %v3365, %v3508
        %3510 = vmatmul.bf16.gmra.mxu0 %v2894
        %v3511 = vpop.f32.mrf.mxu0
        %v3512 = vadd.f32 %v3368, %v3511
        %v3513 = vpop.f32.mrf.mxu0
        %v3514 = vadd.f32 %v3370, %v3513
        %3515 = vmatmul.bf16.gmra.mxu0 %v2896
        %v3516 = vpop.f32.mrf.mxu0
        %v3517 = vadd.f32 %v3373, %v3516
        %v3518 = vpop.f32.mrf.mxu0
        %v3519 = vadd.f32 %v3375, %v3518
        %3520 = vmatmul.bf16.gmra.mxu0 %v2898
        %v3521 = vpop.f32.mrf.mxu0
        %v3522 = vadd.f32 %v3378, %v3521
        %v3523 = vpop.f32.mrf.mxu0
        %v3524 = vadd.f32 %v3380, %v3523
        %3525 = vmatmul.bf16.gmra.mxu0 %v2900
        %v3526 = vpop.f32.mrf.mxu0
        %v3527 = vadd.f32 %v3383, %v3526
        %v3528 = vpop.f32.mrf.mxu0
        %v3529 = vadd.f32 %v3385, %v3528
        %3530 = vmatmul.bf16.gmra.mxu0 %v2902
        %v3531 = vpop.f32.mrf.mxu0
        %v3532 = vadd.f32 %v3388, %v3531
        %v3533 = vpop.f32.mrf.mxu0
        %v3534 = vadd.f32 %v3390, %v3533
        %3535 = vdwg.mxu0
        %vm3536 = vcmask 1042432
        %vm3537 = vcmask 1046532
        %vm3538 = vmor %vm3536, %vm3537
        %v3539 = vrot.slane %v526, 5
        %v3540 = vrot.slane %v3539, 4
        %v3541 = vrot.slane %v528, 5
        %v3542 = vsel %vm3538, %v3540, %v3541
        %v3543 = vrot.slane %v527, 5
        %v3544 = vrot.slane %v3543, 4
        %v3545 = vrot.slane %v529, 5
        %v3546 = vsel %vm3538, %v3544, %v3545
        %v3547 = vrot.slane %v3541, 4
        %v3548 = vrot.slane %v530, 5
        %v3549 = vsel %vm3538, %v3547, %v3548
        %v3550 = vrot.slane %v3545, 4
        %v3551 = vrot.slane %v531, 5
        %v3552 = vsel %vm3538, %v3550, %v3551
        %v3553 = vrot.slane %v3548, 4
        %v3554 = vrot.slane %v532, 5
        %v3555 = vsel %vm3538, %v3553, %v3554
        %v3556 = vrot.slane %v3551, 4
        %v3557 = vrot.slane %v533, 5
        %v3558 = vsel %vm3538, %v3556, %v3557
        %v3559 = vrot.slane %v534, 5
        %v3560 = vrot.slane %v3559, 4
        %v3561 = vrot.slane %v536, 5
        %v3562 = vsel %vm3538, %v3560, %v3561
        %v3563 = vrot.slane %v535, 5
        %v3564 = vrot.slane %v3563, 4
        %v3565 = vrot.slane %v537, 5
        %v3566 = vsel %vm3538, %v3564, %v3565
        %v3567 = vrot.slane %v3561, 4
        %v3568 = vrot.slane %v538, 5
        %v3569 = vsel %vm3538, %v3567, %v3568
        %v3570 = vrot.slane %v3565, 4
        %v3571 = vrot.slane %v539, 5
        %v3572 = vsel %vm3538, %v3570, %v3571
        %v3573 = vrot.slane %v3568, 4
        %v3574 = vrot.slane %v540, 5
        %v3575 = vsel %vm3538, %v3573, %v3574
        %v3576 = vrot.slane %v3571, 4
        %v3577 = vrot.slane %v541, 5
        %v3578 = vsel %vm3538, %v3576, %v3577
        %v3579 = vrot.slane %v542, 5
        %v3580 = vrot.slane %v3579, 4
        %v3581 = vrot.slane %v544, 5
        %v3582 = vsel %vm3538, %v3580, %v3581
        %v3583 = vrot.slane %v543, 5
        %v3584 = vrot.slane %v3583, 4
        %v3585 = vrot.slane %v545, 5
        %v3586 = vsel %vm3538, %v3584, %v3585
        %v3587 = vrot.slane %v3581, 4
        %v3588 = vrot.slane %v546, 5
        %v3589 = vsel %vm3538, %v3587, %v3588
        %v3590 = vrot.slane %v3585, 4
        %v3591 = vrot.slane %v547, 5
        %v3592 = vsel %vm3538, %v3590, %v3591
        %v3593 = vrot.slane %v3588, 4
        %v3594 = vrot.slane %v548, 5
        %v3595 = vsel %vm3538, %v3593, %v3594
        %v3596 = vrot.slane %v3591, 4
        %v3597 = vrot.slane %v549, 5
        %v3598 = vsel %vm3538, %v3596, %v3597
        %v3599 = vrot.slane %v550, 5
        %v3600 = vrot.slane %v3599, 4
        %v3601 = vrot.slane %v552, 5
        %v3602 = vsel %vm3538, %v3600, %v3601
        %v3603 = vrot.slane %v551, 5
        %v3604 = vrot.slane %v3603, 4
        %v3605 = vrot.slane %v553, 5
        %v3606 = vsel %vm3538, %v3604, %v3605
        %v3607 = vrot.slane %v3601, 4
        %v3608 = vrot.slane %v554, 5
        %v3609 = vsel %vm3538, %v3607, %v3608
        %v3610 = vrot.slane %v3605, 4
        %v3611 = vrot.slane %v555, 5
        %v3612 = vsel %vm3538, %v3610, %v3611
        %v3613 = vrot.slane %v3608, 4
        %v3614 = vrot.slane %v556, 5
        %v3615 = vsel %vm3538, %v3613, %v3614
        %v3616 = vrot.slane %v3611, 4
        %v3617 = vrot.slane %v557, 5
        %v3618 = vsel %vm3538, %v3616, %v3617
        %v3619 = vrot.slane %v558, 5
        %v3620 = vrot.slane %v3619, 4
        %v3621 = vrot.slane %v560, 5
        %v3622 = vsel %vm3538, %v3620, %v3621
        %v3623 = vrot.slane %v559, 5
        %v3624 = vrot.slane %v3623, 4
        %v3625 = vrot.slane %v561, 5
        %v3626 = vsel %vm3538, %v3624, %v3625
        %v3627 = vrot.slane %v3621, 4
        %v3628 = vrot.slane %v562, 5
        %v3629 = vsel %vm3538, %v3627, %v3628
        %v3630 = vrot.slane %v3625, 4
        %v3631 = vrot.slane %v563, 5
        %v3632 = vsel %vm3538, %v3630, %v3631
        %v3633 = vrot.slane %v3628, 4
        %v3634 = vrot.slane %v564, 5
        %v3635 = vsel %vm3538, %v3633, %v3634
        %v3636 = vrot.slane %v3631, 4
        %v3637 = vrot.slane %v565, 5
        %v3638 = vsel %vm3538, %v3636, %v3637
        %v3639 = vrot.slane %v566, 5
        %v3640 = vrot.slane %v3639, 4
        %v3641 = vrot.slane %v568, 5
        %v3642 = vsel %vm3538, %v3640, %v3641
        %v3643 = vrot.slane %v567, 5
        %v3644 = vrot.slane %v3643, 4
        %v3645 = vrot.slane %v569, 5
        %v3646 = vsel %vm3538, %v3644, %v3645
        %v3647 = vrot.slane %v3641, 4
        %v3648 = vrot.slane %v570, 5
        %v3649 = vsel %vm3538, %v3647, %v3648
        %v3650 = vrot.slane %v3645, 4
        %v3651 = vrot.slane %v571, 5
        %v3652 = vsel %vm3538, %v3650, %v3651
        %v3653 = vrot.slane %v3648, 4
        %v3654 = vrot.slane %v572, 5
        %v3655 = vsel %vm3538, %v3653, %v3654
        %v3656 = vrot.slane %v3651, 4
        %v3657 = vrot.slane %v573, 5
        %v3658 = vsel %vm3538, %v3656, %v3657
        %v3659 = vrot.slane %v574, 5
        %v3660 = vrot.slane %v3659, 4
        %v3661 = vrot.slane %v576, 5
        %v3662 = vsel %vm3538, %v3660, %v3661
        %v3663 = vrot.slane %v575, 5
        %v3664 = vrot.slane %v3663, 4
        %v3665 = vrot.slane %v577, 5
        %v3666 = vsel %vm3538, %v3664, %v3665
        %v3667 = vrot.slane %v3661, 4
        %v3668 = vrot.slane %v578, 5
        %v3669 = vsel %vm3538, %v3667, %v3668
        %v3670 = vrot.slane %v3665, 4
        %v3671 = vrot.slane %v579, 5
        %v3672 = vsel %vm3538, %v3670, %v3671
        %v3673 = vrot.slane %v3668, 4
        %v3674 = vrot.slane %v580, 5
        %v3675 = vsel %vm3538, %v3673, %v3674
        %v3676 = vrot.slane %v3671, 4
        %v3677 = vrot.slane %v581, 5
        %v3678 = vsel %vm3538, %v3676, %v3677
        %v3679 = vrot.slane %v582, 5
        %v3680 = vrot.slane %v3679, 4
        %v3681 = vrot.slane %v584, 5
        %v3682 = vsel %vm3538, %v3680, %v3681
        %v3683 = vrot.slane %v583, 5
        %v3684 = vrot.slane %v3683, 4
        %v3685 = vrot.slane %v585, 5
        %v3686 = vsel %vm3538, %v3684, %v3685
        %v3687 = vrot.slane %v3681, 4
        %v3688 = vrot.slane %v586, 5
        %v3689 = vsel %vm3538, %v3687, %v3688
        %v3690 = vrot.slane %v3685, 4
        %v3691 = vrot.slane %v587, 5
        %v3692 = vsel %vm3538, %v3690, %v3691
        %v3693 = vrot.slane %v3688, 4
        %v3694 = vrot.slane %v588, 5
        %v3695 = vsel %vm3538, %v3693, %v3694
        %v3696 = vrot.slane %v3691, 4
        %v3697 = vrot.slane %v589, 5
        %v3698 = vsel %vm3538, %v3696, %v3697
        %v3699 = vrot.slane %v590, 5
        %v3700 = vrot.slane %v3699, 4
        %v3701 = vrot.slane %v592, 5
        %v3702 = vsel %vm3538, %v3700, %v3701
        %v3703 = vrot.slane %v591, 5
        %v3704 = vrot.slane %v3703, 4
        %v3705 = vrot.slane %v593, 5
        %v3706 = vsel %vm3538, %v3704, %v3705
        %v3707 = vrot.slane %v3701, 4
        %v3708 = vrot.slane %v594, 5
        %v3709 = vsel %vm3538, %v3707, %v3708
        %v3710 = vrot.slane %v3705, 4
        %v3711 = vrot.slane %v595, 5
        %v3712 = vsel %vm3538, %v3710, %v3711
        %v3713 = vrot.slane %v3708, 4
        %v3714 = vrot.slane %v596, 5
        %v3715 = vsel %vm3538, %v3713, %v3714
        %v3716 = vrot.slane %v3711, 4
        %v3717 = vrot.slane %v597, 5
        %v3718 = vsel %vm3538, %v3716, %v3717
        %v3719 = vrot.slane %v598, 5
        %v3720 = vrot.slane %v3719, 4
        %v3721 = vrot.slane %v600, 5
        %v3722 = vsel %vm3538, %v3720, %v3721
        %v3723 = vrot.slane %v599, 5
        %v3724 = vrot.slane %v3723, 4
        %v3725 = vrot.slane %v601, 5
        %v3726 = vsel %vm3538, %v3724, %v3725
        %v3727 = vrot.slane %v3721, 4
        %v3728 = vrot.slane %v602, 5
        %v3729 = vsel %vm3538, %v3727, %v3728
        %v3730 = vrot.slane %v3725, 4
        %v3731 = vrot.slane %v603, 5
        %v3732 = vsel %vm3538, %v3730, %v3731
        %v3733 = vrot.slane %v3728, 4
        %v3734 = vrot.slane %v604, 5
        %v3735 = vsel %vm3538, %v3733, %v3734
        %v3736 = vrot.slane %v3731, 4
        %v3737 = vrot.slane %v605, 5
        %v3738 = vsel %vm3538, %v3736, %v3737
        %v3739 = vrot.slane %v606, 5
        %v3740 = vrot.slane %v3739, 4
        %v3741 = vrot.slane %v608, 5
        %v3742 = vsel %vm3538, %v3740, %v3741
        %v3743 = vrot.slane %v607, 5
        %v3744 = vrot.slane %v3743, 4
        %v3745 = vrot.slane %v609, 5
        %v3746 = vsel %vm3538, %v3744, %v3745
        %v3747 = vrot.slane %v3741, 4
        %v3748 = vrot.slane %v610, 5
        %v3749 = vsel %vm3538, %v3747, %v3748
        %v3750 = vrot.slane %v3745, 4
        %v3751 = vrot.slane %v611, 5
        %v3752 = vsel %vm3538, %v3750, %v3751
        %v3753 = vrot.slane %v3748, 4
        %v3754 = vrot.slane %v612, 5
        %v3755 = vsel %vm3538, %v3753, %v3754
        %v3756 = vrot.slane %v3751, 4
        %v3757 = vrot.slane %v613, 5
        %v3758 = vsel %vm3538, %v3756, %v3757
        %v3759 = vrot.slane %v614, 5
        %v3760 = vrot.slane %v3759, 4
        %v3761 = vrot.slane %v616, 5
        %v3762 = vsel %vm3538, %v3760, %v3761
        %v3763 = vrot.slane %v615, 5
        %v3764 = vrot.slane %v3763, 4
        %v3765 = vrot.slane %v617, 5
        %v3766 = vsel %vm3538, %v3764, %v3765
        %v3767 = vrot.slane %v3761, 4
        %v3768 = vrot.slane %v618, 5
        %v3769 = vsel %vm3538, %v3767, %v3768
        %v3770 = vrot.slane %v3765, 4
        %v3771 = vrot.slane %v619, 5
        %v3772 = vsel %vm3538, %v3770, %v3771
        %v3773 = vrot.slane %v3768, 4
        %v3774 = vrot.slane %v620, 5
        %v3775 = vsel %vm3538, %v3773, %v3774
        %v3776 = vrot.slane %v3771, 4
        %v3777 = vrot.slane %v621, 5
        %v3778 = vsel %vm3538, %v3776, %v3777
        %v3779 = vrot.slane %v622, 5
        %v3780 = vrot.slane %v3779, 4
        %v3781 = vrot.slane %v624, 5
        %v3782 = vsel %vm3538, %v3780, %v3781
        %v3783 = vrot.slane %v623, 5
        %v3784 = vrot.slane %v3783, 4
        %v3785 = vrot.slane %v625, 5
        %v3786 = vsel %vm3538, %v3784, %v3785
        %v3787 = vrot.slane %v3781, 4
        %v3788 = vrot.slane %v626, 5
        %v3789 = vsel %vm3538, %v3787, %v3788
        %v3790 = vrot.slane %v3785, 4
        %v3791 = vrot.slane %v627, 5
        %v3792 = vsel %vm3538, %v3790, %v3791
        %v3793 = vrot.slane %v3788, 4
        %v3794 = vrot.slane %v628, 5
        %v3795 = vsel %vm3538, %v3793, %v3794
        %v3796 = vrot.slane %v3791, 4
        %v3797 = vrot.slane %v629, 5
        %v3798 = vsel %vm3538, %v3796, %v3797
        %v3799 = vrot.slane %v630, 5
        %v3800 = vrot.slane %v3799, 4
        %v3801 = vrot.slane %v632, 5
        %v3802 = vsel %vm3538, %v3800, %v3801
        %v3803 = vrot.slane %v631, 5
        %v3804 = vrot.slane %v3803, 4
        %v3805 = vrot.slane %v633, 5
        %v3806 = vsel %vm3538, %v3804, %v3805
        %v3807 = vrot.slane %v3801, 4
        %v3808 = vrot.slane %v634, 5
        %v3809 = vsel %vm3538, %v3807, %v3808
        %v3810 = vrot.slane %v3805, 4
        %v3811 = vrot.slane %v635, 5
        %v3812 = vsel %vm3538, %v3810, %v3811
        %v3813 = vrot.slane %v3808, 4
        %v3814 = vrot.slane %v636, 5
        %v3815 = vsel %vm3538, %v3813, %v3814
        %v3816 = vrot.slane %v3811, 4
        %v3817 = vrot.slane %v637, 5
        %v3818 = vsel %vm3538, %v3816, %v3817
        %v3819 = vrot.slane %v638, 5
        %v3820 = vrot.slane %v3819, 4
        %v3821 = vrot.slane %v640, 5
        %v3822 = vsel %vm3538, %v3820, %v3821
        %v3823 = vrot.slane %v639, 5
        %v3824 = vrot.slane %v3823, 4
        %v3825 = vrot.slane %v641, 5
        %v3826 = vsel %vm3538, %v3824, %v3825
        %v3827 = vrot.slane %v3821, 4
        %v3828 = vrot.slane %v642, 5
        %v3829 = vsel %vm3538, %v3827, %v3828
        %v3830 = vrot.slane %v3825, 4
        %v3831 = vrot.slane %v643, 5
        %v3832 = vsel %vm3538, %v3830, %v3831
        %v3833 = vrot.slane %v3828, 4
        %v3834 = vrot.slane %v644, 5
        %v3835 = vsel %vm3538, %v3833, %v3834
        %v3836 = vrot.slane %v3831, 4
        %v3837 = vrot.slane %v645, 5
        %v3838 = vsel %vm3538, %v3836, %v3837
        %v3839 = vrot.slane %v646, 5
        %v3840 = vrot.slane %v3839, 4
        %v3841 = vrot.slane %v648, 5
        %v3842 = vsel %vm3538, %v3840, %v3841
        %v3843 = vrot.slane %v647, 5
        %v3844 = vrot.slane %v3843, 4
        %v3845 = vrot.slane %v649, 5
        %v3846 = vsel %vm3538, %v3844, %v3845
        %v3847 = vrot.slane %v3841, 4
        %v3848 = vrot.slane %v650, 5
        %v3849 = vsel %vm3538, %v3847, %v3848
        %v3850 = vrot.slane %v3845, 4
        %v3851 = vrot.slane %v651, 5
        %v3852 = vsel %vm3538, %v3850, %v3851
        %v3853 = vrot.slane %v3848, 4
        %v3854 = vrot.slane %v652, 5
        %v3855 = vsel %vm3538, %v3853, %v3854
        %v3856 = vrot.slane %v3851, 4
        %v3857 = vrot.slane %v653, 5
        %v3858 = vsel %vm3538, %v3856, %v3857
        %v3859 = vrot.slane %v654, 5
        %v3860 = vrot.slane %v3859, 4
        %v3861 = vrot.slane %v656, 5
        %v3862 = vsel %vm3538, %v3860, %v3861
        %v3863 = vrot.slane %v655, 5
        %v3864 = vrot.slane %v3863, 4
        %v3865 = vrot.slane %v657, 5
        %v3866 = vsel %vm3538, %v3864, %v3865
        %v3867 = vrot.slane %v3861, 4
        %v3868 = vrot.slane %v658, 5
        %v3869 = vsel %vm3538, %v3867, %v3868
        %v3870 = vrot.slane %v3865, 4
        %v3871 = vrot.slane %v659, 5
        %v3872 = vsel %vm3538, %v3870, %v3871
        %v3873 = vrot.slane %v3868, 4
        %v3874 = vrot.slane %v660, 5
        %v3875 = vsel %vm3538, %v3873, %v3874
        %v3876 = vrot.slane %v3871, 4
        %v3877 = vrot.slane %v661, 5
        %v3878 = vsel %vm3538, %v3876, %v3877
        %v3879 = vrot.slane %v662, 5
        %v3880 = vrot.slane %v3879, 4
        %v3881 = vrot.slane %v664, 5
        %v3882 = vsel %vm3538, %v3880, %v3881
        %v3883 = vrot.slane %v663, 5
        %v3884 = vrot.slane %v3883, 4
        %v3885 = vrot.slane %v665, 5
        %v3886 = vsel %vm3538, %v3884, %v3885
        %v3887 = vrot.slane %v3881, 4
        %v3888 = vrot.slane %v666, 5
        %v3889 = vsel %vm3538, %v3887, %v3888
        %v3890 = vrot.slane %v3885, 4
        %v3891 = vrot.slane %v667, 5
        %v3892 = vsel %vm3538, %v3890, %v3891
        %v3893 = vrot.slane %v3888, 4
        %v3894 = vrot.slane %v668, 5
        %v3895 = vsel %vm3538, %v3893, %v3894
        %v3896 = vrot.slane %v3891, 4
        %v3897 = vrot.slane %v669, 5
        %v3898 = vsel %vm3538, %v3896, %v3897
        %s3899 = scalar_lea.vmem %s1, 384
        %v3900 = vld [vmem:[%s3899] sm:$0xf]
        %v3901 = vld [vmem:[%s3899 + $0x4] sm:$0xf]
        %v3902 = vld [vmem:[%s3899 + $0x8] sm:$0xf]
        %v3903 = vld [vmem:[%s3899 + $0xc] sm:$0xf]
        %v3904 = vld [vmem:[%s3899 + $0x10] sm:$0xf]
        %v3905 = vld [vmem:[%s3899 + $0x14] sm:$0xf]
        %v3906 = vld [vmem:[%s3899 + $0x18] sm:$0xf]
        %v3907 = vld [vmem:[%s3899 + $0x1c] sm:$0xf]
        %v3908 = vld [vmem:[%s3899 + $0x20] sm:$0xf]
        %v3909 = vld [vmem:[%s3899 + $0x24] sm:$0xf]
        %v3910 = vld [vmem:[%s3899 + $0x28] sm:$0xf]
        %v3911 = vld [vmem:[%s3899 + $0x2c] sm:$0xf]
        %v3912 = vld [vmem:[%s3899 + $0x30] sm:$0xf]
        %v3913 = vld [vmem:[%s3899 + $0x34] sm:$0xf]
        %v3914 = vld [vmem:[%s3899 + $0x38] sm:$0xf]
        %v3915 = vld [vmem:[%s3899 + $0x3c] sm:$0xf]
        %v3916 = vld [vmem:[%s3899 + $0x40] sm:$0xf]
        %v3917 = vld [vmem:[%s3899 + $0x44] sm:$0xf]
        %v3918 = vld [vmem:[%s3899 + $0x48] sm:$0xf]
        %v3919 = vld [vmem:[%s3899 + $0x4c] sm:$0xf]
        %v3920 = vld [vmem:[%s3899 + $0x50] sm:$0xf]
        %v3921 = vld [vmem:[%s3899 + $0x54] sm:$0xf]
        %v3922 = vld [vmem:[%s3899 + $0x58] sm:$0xf]
        %v3923 = vld [vmem:[%s3899 + $0x5c] sm:$0xf]
        %v3924 = vld [vmem:[%s3899 + $0x60] sm:$0xf]
        %v3925 = vld [vmem:[%s3899 + $0x64] sm:$0xf]
        %v3926 = vld [vmem:[%s3899 + $0x68] sm:$0xf]
        %v3927 = vld [vmem:[%s3899 + $0x6c] sm:$0xf]
        %v3928 = vld [vmem:[%s3899 + $0x70] sm:$0xf]
        %v3929 = vld [vmem:[%s3899 + $0x74] sm:$0xf]
        %v3930 = vld [vmem:[%s3899 + $0x78] sm:$0xf]
        %v3931 = vld [vmem:[%s3899 + $0x7c] sm:$0xf]
        %v3932 = vld [vmem:[%s3899 + $0x80] sm:$0xf]
        %v3933 = vld [vmem:[%s3899 + $0x84] sm:$0xf]
        %v3934 = vld [vmem:[%s3899 + $0x88] sm:$0xf]
        %v3935 = vld [vmem:[%s3899 + $0x8c] sm:$0xf]
        %v3936 = vld [vmem:[%s3899 + $0x90] sm:$0xf]
        %v3937 = vld [vmem:[%s3899 + $0x94] sm:$0xf]
        %v3938 = vld [vmem:[%s3899 + $0x98] sm:$0xf]
        %v3939 = vld [vmem:[%s3899 + $0x9c] sm:$0xf]
        %v3940 = vld [vmem:[%s3899 + $0xa0] sm:$0xf]
        %v3941 = vld [vmem:[%s3899 + $0xa4] sm:$0xf]
        %v3942 = vld [vmem:[%s3899 + $0xa8] sm:$0xf]
        %v3943 = vld [vmem:[%s3899 + $0xac] sm:$0xf]
        %v3944 = vld [vmem:[%s3899 + $0xb0] sm:$0xf]
        %v3945 = vld [vmem:[%s3899 + $0xb4] sm:$0xf]
        %v3946 = vld [vmem:[%s3899 + $0xb8] sm:$0xf]
        %v3947 = vld [vmem:[%s3899 + $0xbc] sm:$0xf]
        %v3948 = vunpack.c.l.b16 %v3542
        %v3949 = vunpack.c.h.b16 %v3542
        %v3950 = vunpack.c.l.b16 %v3546
        %v3951 = vunpack.c.l.b16 %v3549
        %v3952 = vunpack.c.h.b16 %v3549
        %v3953 = vunpack.c.l.b16 %v3552
        %v3954 = vunpack.c.l.b16 %v3555
        %v3955 = vunpack.c.h.b16 %v3555
        %v3956 = vunpack.c.l.b16 %v3558
        %v3957 = vunpack.c.l.b16 %v3562
        %v3958 = vunpack.c.h.b16 %v3562
        %v3959 = vunpack.c.l.b16 %v3566
        %v3960 = vunpack.c.l.b16 %v3569
        %v3961 = vunpack.c.h.b16 %v3569
        %v3962 = vunpack.c.l.b16 %v3572
        %v3963 = vunpack.c.l.b16 %v3575
        %v3964 = vunpack.c.h.b16 %v3575
        %v3965 = vunpack.c.l.b16 %v3578
        %v3966 = vunpack.c.l.b16 %v3582
        %v3967 = vunpack.c.h.b16 %v3582
        %v3968 = vunpack.c.l.b16 %v3586
        %v3969 = vunpack.c.l.b16 %v3589
        %v3970 = vunpack.c.h.b16 %v3589
        %v3971 = vunpack.c.l.b16 %v3592
        %v3972 = vunpack.c.l.b16 %v3595
        %v3973 = vunpack.c.h.b16 %v3595
        %v3974 = vunpack.c.l.b16 %v3598
        %v3975 = vunpack.c.l.b16 %v3602
        %v3976 = vunpack.c.h.b16 %v3602
        %v3977 = vunpack.c.l.b16 %v3606
        %v3978 = vunpack.c.l.b16 %v3609
        %v3979 = vunpack.c.h.b16 %v3609
        %v3980 = vunpack.c.l.b16 %v3612
        %v3981 = vunpack.c.l.b16 %v3615
        %v3982 = vunpack.c.h.b16 %v3615
        %v3983 = vunpack.c.l.b16 %v3618
        %v3984 = vunpack.c.l.b16 %v3622
        %v3985 = vunpack.c.h.b16 %v3622
        %v3986 = vunpack.c.l.b16 %v3626
        %v3987 = vunpack.c.l.b16 %v3629
        %v3988 = vunpack.c.h.b16 %v3629
        %v3989 = vunpack.c.l.b16 %v3632
        %v3990 = vunpack.c.l.b16 %v3635
        %v3991 = vunpack.c.h.b16 %v3635
        %v3992 = vunpack.c.l.b16 %v3638
        %v3993 = vunpack.c.l.b16 %v3642
        %v3994 = vunpack.c.h.b16 %v3642
        %v3995 = vunpack.c.l.b16 %v3646
        %v3996 = vunpack.c.l.b16 %v3649
        %v3997 = vunpack.c.h.b16 %v3649
        %v3998 = vunpack.c.l.b16 %v3652
        %v3999 = vunpack.c.l.b16 %v3655
        %v4000 = vunpack.c.h.b16 %v3655
        %v4001 = vunpack.c.l.b16 %v3658
        %v4002 = vunpack.c.l.b16 %v3662
        %v4003 = vunpack.c.h.b16 %v3662
        %v4004 = vunpack.c.l.b16 %v3666
        %v4005 = vunpack.c.l.b16 %v3669
        %v4006 = vunpack.c.h.b16 %v3669
        %v4007 = vunpack.c.l.b16 %v3672
        %v4008 = vunpack.c.l.b16 %v3675
        %v4009 = vunpack.c.h.b16 %v3675
        %v4010 = vunpack.c.l.b16 %v3678
        %v4011 = vunpack.c.l.b16 %v3682
        %v4012 = vunpack.c.h.b16 %v3682
        %v4013 = vunpack.c.l.b16 %v3686
        %v4014 = vunpack.c.l.b16 %v3689
        %v4015 = vunpack.c.h.b16 %v3689
        %v4016 = vunpack.c.l.b16 %v3692
        %v4017 = vunpack.c.l.b16 %v3695
        %v4018 = vunpack.c.h.b16 %v3695
        %v4019 = vunpack.c.l.b16 %v3698
        %v4020 = vunpack.c.l.b16 %v3702
        %v4021 = vunpack.c.h.b16 %v3702
        %v4022 = vunpack.c.l.b16 %v3706
        %v4023 = vunpack.c.l.b16 %v3709
        %v4024 = vunpack.c.h.b16 %v3709
        %v4025 = vunpack.c.l.b16 %v3712
        %v4026 = vunpack.c.l.b16 %v3715
        %v4027 = vunpack.c.h.b16 %v3715
        %v4028 = vunpack.c.l.b16 %v3718
        %v4029 = vunpack.c.l.b16 %v3722
        %v4030 = vunpack.c.h.b16 %v3722
        %v4031 = vunpack.c.l.b16 %v3726
        %v4032 = vunpack.c.l.b16 %v3729
        %v4033 = vunpack.c.h.b16 %v3729
        %v4034 = vunpack.c.l.b16 %v3732
        %v4035 = vunpack.c.l.b16 %v3735
        %v4036 = vunpack.c.h.b16 %v3735
        %v4037 = vunpack.c.l.b16 %v3738
        %v4038 = vunpack.c.l.b16 %v3742
        %v4039 = vunpack.c.h.b16 %v3742
        %v4040 = vunpack.c.l.b16 %v3746
        %v4041 = vunpack.c.l.b16 %v3749
        %v4042 = vunpack.c.h.b16 %v3749
        %v4043 = vunpack.c.l.b16 %v3752
        %v4044 = vunpack.c.l.b16 %v3755
        %v4045 = vunpack.c.h.b16 %v3755
        %v4046 = vunpack.c.l.b16 %v3758
        %v4047 = vunpack.c.l.b16 %v3762
        %v4048 = vunpack.c.h.b16 %v3762
        %v4049 = vunpack.c.l.b16 %v3766
        %v4050 = vunpack.c.l.b16 %v3769
        %v4051 = vunpack.c.h.b16 %v3769
        %v4052 = vunpack.c.l.b16 %v3772
        %v4053 = vunpack.c.l.b16 %v3775
        %v4054 = vunpack.c.h.b16 %v3775
        %v4055 = vunpack.c.l.b16 %v3778
        %v4056 = vunpack.c.l.b16 %v3782
        %v4057 = vunpack.c.h.b16 %v3782
        %v4058 = vunpack.c.l.b16 %v3786
        %v4059 = vunpack.c.l.b16 %v3789
        %v4060 = vunpack.c.h.b16 %v3789
        %v4061 = vunpack.c.l.b16 %v3792
        %v4062 = vunpack.c.l.b16 %v3795
        %v4063 = vunpack.c.h.b16 %v3795
        %v4064 = vunpack.c.l.b16 %v3798
        %v4065 = vunpack.c.l.b16 %v3802
        %v4066 = vunpack.c.h.b16 %v3802
        %v4067 = vunpack.c.l.b16 %v3806
        %v4068 = vunpack.c.l.b16 %v3809
        %v4069 = vunpack.c.h.b16 %v3809
        %v4070 = vunpack.c.l.b16 %v3812
        %v4071 = vunpack.c.l.b16 %v3815
        %v4072 = vunpack.c.h.b16 %v3815
        %v4073 = vunpack.c.l.b16 %v3818
        %v4074 = vunpack.c.l.b16 %v3822
        %v4075 = vunpack.c.h.b16 %v3822
        %v4076 = vunpack.c.l.b16 %v3826
        %v4077 = vunpack.c.l.b16 %v3829
        %v4078 = vunpack.c.h.b16 %v3829
        %v4079 = vunpack.c.l.b16 %v3832
        %v4080 = vunpack.c.l.b16 %v3835
        %v4081 = vunpack.c.h.b16 %v3835
        %v4082 = vunpack.c.l.b16 %v3838
        %v4083 = vunpack.c.l.b16 %v3842
        %v4084 = vunpack.c.h.b16 %v3842
        %v4085 = vunpack.c.l.b16 %v3846
        %v4086 = vunpack.c.l.b16 %v3849
        %v4087 = vunpack.c.h.b16 %v3849
        %v4088 = vunpack.c.l.b16 %v3852
        %v4089 = vunpack.c.l.b16 %v3855
        %v4090 = vunpack.c.h.b16 %v3855
        %v4091 = vunpack.c.l.b16 %v3858
        %v4092 = vunpack.c.l.b16 %v3862
        %v4093 = vunpack.c.h.b16 %v3862
        %v4094 = vunpack.c.l.b16 %v3866
        %v4095 = vunpack.c.l.b16 %v3869
        %v4096 = vunpack.c.h.b16 %v3869
        %v4097 = vunpack.c.l.b16 %v3872
        %v4098 = vunpack.c.l.b16 %v3875
        %v4099 = vunpack.c.h.b16 %v3875
        %v4100 = vunpack.c.l.b16 %v3878
        %v4101 = vunpack.c.l.b16 %v3882
        %v4102 = vunpack.c.h.b16 %v3882
        %v4103 = vunpack.c.l.b16 %v3886
        %v4104 = vunpack.c.l.b16 %v3889
        %v4105 = vunpack.c.h.b16 %v3889
        %v4106 = vunpack.c.l.b16 %v3892
        %v4107 = vunpack.c.l.b16 %v3895
        %v4108 = vunpack.c.h.b16 %v3895
        %v4109 = vunpack.c.l.b16 %v3898
        %v4110 = vpack.c.b16 %v3951, %v3948
        %v4111 = vpack.c.b16 %v3952, %v3949
        %v4112 = vpack.c.b16 %v3953, %v3950
        %v4113 = vpack.c.b16 %v3957, %v3954
        %v4114 = vpack.c.b16 %v3958, %v3955
        %v4115 = vpack.c.b16 %v3959, %v3956
        %v4116 = vpack.c.b16 %v3963, %v3960
        %v4117 = vpack.c.b16 %v3964, %v3961
        %v4118 = vpack.c.b16 %v3965, %v3962
        %v4119 = vpack.c.b16 %v3969, %v3966
        %v4120 = vpack.c.b16 %v3970, %v3967
        %v4121 = vpack.c.b16 %v3971, %v3968
        %v4122 = vpack.c.b16 %v3975, %v3972
        %v4123 = vpack.c.b16 %v3976, %v3973
        %v4124 = vpack.c.b16 %v3977, %v3974
        %v4125 = vpack.c.b16 %v3981, %v3978
        %v4126 = vpack.c.b16 %v3982, %v3979
        %v4127 = vpack.c.b16 %v3983, %v3980
        %v4128 = vpack.c.b16 %v3987, %v3984
        %v4129 = vpack.c.b16 %v3988, %v3985
        %v4130 = vpack.c.b16 %v3989, %v3986
        %v4131 = vpack.c.b16 %v3993, %v3990
        %v4132 = vpack.c.b16 %v3994, %v3991
        %v4133 = vpack.c.b16 %v3995, %v3992
        %v4134 = vpack.c.b16 %v3999, %v3996
        %v4135 = vpack.c.b16 %v4000, %v3997
        %v4136 = vpack.c.b16 %v4001, %v3998
        %v4137 = vpack.c.b16 %v4005, %v4002
        %v4138 = vpack.c.b16 %v4006, %v4003
        %v4139 = vpack.c.b16 %v4007, %v4004
        %v4140 = vpack.c.b16 %v4011, %v4008
        %v4141 = vpack.c.b16 %v4012, %v4009
        %v4142 = vpack.c.b16 %v4013, %v4010
        %v4143 = vpack.c.b16 %v4017, %v4014
        %v4144 = vpack.c.b16 %v4018, %v4015
        %v4145 = vpack.c.b16 %v4019, %v4016
        %v4146 = vpack.c.b16 %v4023, %v4020
        %v4147 = vpack.c.b16 %v4024, %v4021
        %v4148 = vpack.c.b16 %v4025, %v4022
        %v4149 = vpack.c.b16 %v4029, %v4026
        %v4150 = vpack.c.b16 %v4030, %v4027
        %v4151 = vpack.c.b16 %v4031, %v4028
        %v4152 = vpack.c.b16 %v4035, %v4032
        %v4153 = vpack.c.b16 %v4036, %v4033
        %v4154 = vpack.c.b16 %v4037, %v4034
        %v4155 = vpack.c.b16 %v4041, %v4038
        %v4156 = vpack.c.b16 %v4042, %v4039
        %v4157 = vpack.c.b16 %v4043, %v4040
        %v4158 = vpack.c.b16 %v4047, %v4044
        %v4159 = vpack.c.b16 %v4048, %v4045
        %v4160 = vpack.c.b16 %v4049, %v4046
        %v4161 = vpack.c.b16 %v4053, %v4050
        %v4162 = vpack.c.b16 %v4054, %v4051
        %v4163 = vpack.c.b16 %v4055, %v4052
        %v4164 = vpack.c.b16 %v4059, %v4056
        %v4165 = vpack.c.b16 %v4060, %v4057
        %v4166 = vpack.c.b16 %v4061, %v4058
        %v4167 = vpack.c.b16 %v4065, %v4062
        %v4168 = vpack.c.b16 %v4066, %v4063
        %v4169 = vpack.c.b16 %v4067, %v4064
        %v4170 = vpack.c.b16 %v4071, %v4068
        %v4171 = vpack.c.b16 %v4072, %v4069
        %v4172 = vpack.c.b16 %v4073, %v4070
        %v4173 = vpack.c.b16 %v4077, %v4074
        %v4174 = vpack.c.b16 %v4078, %v4075
        %v4175 = vpack.c.b16 %v4079, %v4076
        %v4176 = vpack.c.b16 %v4083, %v4080
        %v4177 = vpack.c.b16 %v4084, %v4081
        %v4178 = vpack.c.b16 %v4085, %v4082
        %v4179 = vpack.c.b16 %v4089, %v4086
        %v4180 = vpack.c.b16 %v4090, %v4087
        %v4181 = vpack.c.b16 %v4091, %v4088
        %v4182 = vpack.c.b16 %v4095, %v4092
        %v4183 = vpack.c.b16 %v4096, %v4093
        %v4184 = vpack.c.b16 %v4097, %v4094
        %v4185 = vpack.c.b16 %v4101, %v4098
        %v4186 = vpack.c.b16 %v4102, %v4099
        %v4187 = vpack.c.b16 %v4103, %v4100
        %v4188 = vpack.c.b16 %v4107, %v4104
        %v4189 = vpack.c.b16 %v4108, %v4105
        %v4190 = vpack.c.b16 %v4109, %v4106
        %v4320 = vunpack.c.l.b16 %v3900
        %v4321 = vunpack.c.l.b16 %v3901
        %v4322 = vunpack.c.l.b16 %v3902
        %v4323 = vunpack.c.l.b16 %v3903
        %v4324 = vunpack.c.l.b16 %v3904
        %v4325 = vunpack.c.l.b16 %v3905
        %v4326 = vunpack.c.l.b16 %v3906
        %v4327 = vunpack.c.l.b16 %v3907
        %v4328 = vunpack.c.l.b16 %v3908
        %v4329 = vunpack.c.l.b16 %v3909
        %v4330 = vunpack.c.l.b16 %v3910
        %v4331 = vunpack.c.l.b16 %v3911
        %v4332 = vunpack.c.l.b16 %v3912
        %v4333 = vunpack.c.l.b16 %v3913
        %v4334 = vunpack.c.l.b16 %v3914
        %v4335 = vunpack.c.l.b16 %v3915
        %v4336 = vunpack.c.l.b16 %v3916
        %v4337 = vunpack.c.l.b16 %v3917
        %v4338 = vunpack.c.l.b16 %v3918
        %v4339 = vunpack.c.l.b16 %v3919
        %v4340 = vunpack.c.l.b16 %v3920
        %v4341 = vunpack.c.l.b16 %v3921
        %v4342 = vunpack.c.l.b16 %v3922
        %v4343 = vunpack.c.l.b16 %v3923
        %v4344 = vunpack.c.l.b16 %v3924
        %v4345 = vunpack.c.l.b16 %v3925
        %v4346 = vunpack.c.l.b16 %v3926
        %v4347 = vunpack.c.l.b16 %v3927
        %v4348 = vunpack.c.l.b16 %v3928
        %v4349 = vunpack.c.l.b16 %v3929
        %v4350 = vunpack.c.l.b16 %v3930
        %v4351 = vunpack.c.l.b16 %v3931
        %v4352 = vunpack.c.l.b16 %v3932
        %v4353 = vunpack.c.l.b16 %v3933
        %v4354 = vunpack.c.l.b16 %v3934
        %v4355 = vunpack.c.l.b16 %v3935
        %v4356 = vunpack.c.l.b16 %v3936
        %v4357 = vunpack.c.l.b16 %v3937
        %v4358 = vunpack.c.l.b16 %v3938
        %v4359 = vunpack.c.l.b16 %v3939
        %v4360 = vunpack.c.l.b16 %v3940
        %v4361 = vunpack.c.l.b16 %v3941
        %v4362 = vunpack.c.l.b16 %v3942
        %v4363 = vunpack.c.l.b16 %v3943
        %v4364 = vunpack.c.l.b16 %v3944
        %v4365 = vunpack.c.l.b16 %v3945
        %v4366 = vunpack.c.l.b16 %v3946
        %v4367 = vunpack.c.l.b16 %v3947
        %v4368 = vpack.c.b16 %v4321, %v4320
        %v4369 = vpack.c.b16 %v4323, %v4322
        %v4370 = vpack.c.b16 %v4325, %v4324
        %v4371 = vpack.c.b16 %v4327, %v4326
        %v4372 = vpack.c.b16 %v4329, %v4328
        %v4373 = vpack.c.b16 %v4331, %v4330
        %v4374 = vpack.c.b16 %v4333, %v4332
        %v4375 = vpack.c.b16 %v4335, %v4334
        %v4376 = vpack.c.b16 %v4337, %v4336
        %v4377 = vpack.c.b16 %v4339, %v4338
        %v4378 = vpack.c.b16 %v4341, %v4340
        %v4379 = vpack.c.b16 %v4343, %v4342
        %v4380 = vpack.c.b16 %v4345, %v4344
        %v4381 = vpack.c.b16 %v4347, %v4346
        %v4382 = vpack.c.b16 %v4349, %v4348
        %v4383 = vpack.c.b16 %v4351, %v4350
        %v4384 = vpack.c.b16 %v4353, %v4352
        %v4385 = vpack.c.b16 %v4355, %v4354
        %v4386 = vpack.c.b16 %v4357, %v4356
        %v4387 = vpack.c.b16 %v4359, %v4358
        %v4388 = vpack.c.b16 %v4361, %v4360
        %v4389 = vpack.c.b16 %v4363, %v4362
        %v4390 = vpack.c.b16 %v4365, %v4364
        %v4391 = vpack.c.b16 %v4367, %v4366
        %4416 = vmatpush.bf16.msra.mxu0 %v4375
        %4417 = vmatpush.bf16.msra.mxu0 %v4374
        %4418 = vmatpush.bf16.msra.mxu0 %v4373
        %4419 = vmatpush.bf16.msra.mxu0 %v4372
        %4420 = vmatpush.bf16.msra.mxu0 %v4371
        %4421 = vmatpush.bf16.msra.mxu0 %v4370
        %4422 = vmatpush.bf16.msra.mxu0 %v4369
        %4423 = vmatpush.bf16.msra.mxu0 %v4368
        %4424 = vmatmul.bf16.gmra.mxu0 %v4110
        %v4425 = vpop.f32.mrf.mxu0
        %v4426 = vadd.f32 0.0, %v4425
        %v4427 = vpop.f32.mrf.mxu0
        %v4428 = vadd.f32 0.0, %v4427
        %4429 = vmatmul.bf16.gmra.mxu0 %v4113
        %v4430 = vpop.f32.mrf.mxu0
        %v4431 = vadd.f32 0.0, %v4430
        %v4432 = vpop.f32.mrf.mxu0
        %v4433 = vadd.f32 0.0, %v4432
        %4434 = vmatmul.bf16.gmra.mxu0 %v4116
        %v4435 = vpop.f32.mrf.mxu0
        %v4436 = vadd.f32 0.0, %v4435
        %v4437 = vpop.f32.mrf.mxu0
        %v4438 = vadd.f32 0.0, %v4437
        %4439 = vmatmul.bf16.gmra.mxu0 %v4119
        %v4440 = vpop.f32.mrf.mxu0
        %v4441 = vadd.f32 0.0, %v4440
        %v4442 = vpop.f32.mrf.mxu0
        %v4443 = vadd.f32 0.0, %v4442
        %4444 = vmatmul.bf16.gmra.mxu0 %v4122
        %v4445 = vpop.f32.mrf.mxu0
        %v4446 = vadd.f32 0.0, %v4445
        %v4447 = vpop.f32.mrf.mxu0
        %v4448 = vadd.f32 0.0, %v4447
        %4449 = vmatmul.bf16.gmra.mxu0 %v4125
        %v4450 = vpop.f32.mrf.mxu0
        %v4451 = vadd.f32 0.0, %v4450
        %v4452 = vpop.f32.mrf.mxu0
        %v4453 = vadd.f32 0.0, %v4452
        %4454 = vmatmul.bf16.gmra.mxu0 %v4128
        %v4455 = vpop.f32.mrf.mxu0
        %v4456 = vadd.f32 0.0, %v4455
        %v4457 = vpop.f32.mrf.mxu0
        %v4458 = vadd.f32 0.0, %v4457
        %4459 = vmatmul.bf16.gmra.mxu0 %v4131
        %v4460 = vpop.f32.mrf.mxu0
        %v4461 = vadd.f32 0.0, %v4460
        %v4462 = vpop.f32.mrf.mxu0
        %v4463 = vadd.f32 0.0, %v4462
        %4464 = vmatmul.bf16.gmra.mxu0 %v4134
        %v4465 = vpop.f32.mrf.mxu0
        %v4466 = vadd.f32 0.0, %v4465
        %v4467 = vpop.f32.mrf.mxu0
        %v4468 = vadd.f32 0.0, %v4467
        %4469 = vmatmul.bf16.gmra.mxu0 %v4137
        %v4470 = vpop.f32.mrf.mxu0
        %v4471 = vadd.f32 0.0, %v4470
        %v4472 = vpop.f32.mrf.mxu0
        %v4473 = vadd.f32 0.0, %v4472
        %4474 = vmatmul.bf16.gmra.mxu0 %v4140
        %v4475 = vpop.f32.mrf.mxu0
        %v4476 = vadd.f32 0.0, %v4475
        %v4477 = vpop.f32.mrf.mxu0
        %v4478 = vadd.f32 0.0, %v4477
        %4479 = vmatmul.bf16.gmra.mxu0 %v4143
        %v4480 = vpop.f32.mrf.mxu0
        %v4481 = vadd.f32 0.0, %v4480
        %v4482 = vpop.f32.mrf.mxu0
        %v4483 = vadd.f32 0.0, %v4482
        %4484 = vmatmul.bf16.gmra.mxu0 %v4146
        %v4485 = vpop.f32.mrf.mxu0
        %v4486 = vadd.f32 0.0, %v4485
        %v4487 = vpop.f32.mrf.mxu0
        %v4488 = vadd.f32 0.0, %v4487
        %4489 = vmatmul.bf16.gmra.mxu0 %v4149
        %v4490 = vpop.f32.mrf.mxu0
        %v4491 = vadd.f32 0.0, %v4490
        %v4492 = vpop.f32.mrf.mxu0
        %v4493 = vadd.f32 0.0, %v4492
        %4494 = vmatmul.bf16.gmra.mxu0 %v4152
        %v4495 = vpop.f32.mrf.mxu0
        %v4496 = vadd.f32 0.0, %v4495
        %v4497 = vpop.f32.mrf.mxu0
        %v4498 = vadd.f32 0.0, %v4497
        %4499 = vmatmul.bf16.gmra.mxu0 %v4155
        %v4500 = vpop.f32.mrf.mxu0
        %v4501 = vadd.f32 0.0, %v4500
        %v4502 = vpop.f32.mrf.mxu0
        %v4503 = vadd.f32 0.0, %v4502
        %4504 = vmatmul.bf16.gmra.mxu0 %v4158
        %v4505 = vpop.f32.mrf.mxu0
        %v4506 = vadd.f32 0.0, %v4505
        %v4507 = vpop.f32.mrf.mxu0
        %v4508 = vadd.f32 0.0, %v4507
        %4509 = vmatmul.bf16.gmra.mxu0 %v4161
        %v4510 = vpop.f32.mrf.mxu0
        %v4511 = vadd.f32 0.0, %v4510
        %v4512 = vpop.f32.mrf.mxu0
        %v4513 = vadd.f32 0.0, %v4512
        %4514 = vmatmul.bf16.gmra.mxu0 %v4164
        %v4515 = vpop.f32.mrf.mxu0
        %v4516 = vadd.f32 0.0, %v4515
        %v4517 = vpop.f32.mrf.mxu0
        %v4518 = vadd.f32 0.0, %v4517
        %4519 = vmatmul.bf16.gmra.mxu0 %v4167
        %v4520 = vpop.f32.mrf.mxu0
        %v4521 = vadd.f32 0.0, %v4520
        %v4522 = vpop.f32.mrf.mxu0
        %v4523 = vadd.f32 0.0, %v4522
        %4524 = vmatmul.bf16.gmra.mxu0 %v4170
        %v4525 = vpop.f32.mrf.mxu0
        %v4526 = vadd.f32 0.0, %v4525
        %v4527 = vpop.f32.mrf.mxu0
        %v4528 = vadd.f32 0.0, %v4527
        %4529 = vmatmul.bf16.gmra.mxu0 %v4173
        %v4530 = vpop.f32.mrf.mxu0
        %v4531 = vadd.f32 0.0, %v4530
        %v4532 = vpop.f32.mrf.mxu0
        %v4533 = vadd.f32 0.0, %v4532
        %4534 = vmatmul.bf16.gmra.mxu0 %v4176
        %v4535 = vpop.f32.mrf.mxu0
        %v4536 = vadd.f32 0.0, %v4535
        %v4537 = vpop.f32.mrf.mxu0
        %v4538 = vadd.f32 0.0, %v4537
        %4539 = vmatmul.bf16.gmra.mxu0 %v4179
        %v4540 = vpop.f32.mrf.mxu0
        %v4541 = vadd.f32 0.0, %v4540
        %v4542 = vpop.f32.mrf.mxu0
        %v4543 = vadd.f32 0.0, %v4542
        %4544 = vmatmul.bf16.gmra.mxu0 %v4182
        %v4545 = vpop.f32.mrf.mxu0
        %v4546 = vadd.f32 0.0, %v4545
        %v4547 = vpop.f32.mrf.mxu0
        %v4548 = vadd.f32 0.0, %v4547
        %4549 = vmatmul.bf16.gmra.mxu0 %v4185
        %v4550 = vpop.f32.mrf.mxu0
        %v4551 = vadd.f32 0.0, %v4550
        %v4552 = vpop.f32.mrf.mxu0
        %v4553 = vadd.f32 0.0, %v4552
        %4554 = vmatmul.bf16.gmra.mxu0 %v4188
        %v4555 = vpop.f32.mrf.mxu0
        %v4556 = vadd.f32 0.0, %v4555
        %v4557 = vpop.f32.mrf.mxu0
        %v4558 = vadd.f32 0.0, %v4557
        %4559 = vdwg.mxu0
        %4560 = vmatpush.bf16.msra.mxu0 %v4383
        %4561 = vmatpush.bf16.msra.mxu0 %v4382
        %4562 = vmatpush.bf16.msra.mxu0 %v4381
        %4563 = vmatpush.bf16.msra.mxu0 %v4380
        %4564 = vmatpush.bf16.msra.mxu0 %v4379
        %4565 = vmatpush.bf16.msra.mxu0 %v4378
        %4566 = vmatpush.bf16.msra.mxu0 %v4377
        %4567 = vmatpush.bf16.msra.mxu0 %v4376
        %4568 = vmatmul.bf16.gmra.mxu0 %v4111
        %v4569 = vpop.f32.mrf.mxu0
        %v4570 = vadd.f32 %v4426, %v4569
        %v4571 = vpop.f32.mrf.mxu0
        %v4572 = vadd.f32 %v4428, %v4571
        %4573 = vmatmul.bf16.gmra.mxu0 %v4114
        %v4574 = vpop.f32.mrf.mxu0
        %v4575 = vadd.f32 %v4431, %v4574
        %v4576 = vpop.f32.mrf.mxu0
        %v4577 = vadd.f32 %v4433, %v4576
        %4578 = vmatmul.bf16.gmra.mxu0 %v4117
        %v4579 = vpop.f32.mrf.mxu0
        %v4580 = vadd.f32 %v4436, %v4579
        %v4581 = vpop.f32.mrf.mxu0
        %v4582 = vadd.f32 %v4438, %v4581
        %4583 = vmatmul.bf16.gmra.mxu0 %v4120
        %v4584 = vpop.f32.mrf.mxu0
        %v4585 = vadd.f32 %v4441, %v4584
        %v4586 = vpop.f32.mrf.mxu0
        %v4587 = vadd.f32 %v4443, %v4586
        %4588 = vmatmul.bf16.gmra.mxu0 %v4123
        %v4589 = vpop.f32.mrf.mxu0
        %v4590 = vadd.f32 %v4446, %v4589
        %v4591 = vpop.f32.mrf.mxu0
        %v4592 = vadd.f32 %v4448, %v4591
        %4593 = vmatmul.bf16.gmra.mxu0 %v4126
        %v4594 = vpop.f32.mrf.mxu0
        %v4595 = vadd.f32 %v4451, %v4594
        %v4596 = vpop.f32.mrf.mxu0
        %v4597 = vadd.f32 %v4453, %v4596
        %4598 = vmatmul.bf16.gmra.mxu0 %v4129
        %v4599 = vpop.f32.mrf.mxu0
        %v4600 = vadd.f32 %v4456, %v4599
        %v4601 = vpop.f32.mrf.mxu0
        %v4602 = vadd.f32 %v4458, %v4601
        %4603 = vmatmul.bf16.gmra.mxu0 %v4132
        %v4604 = vpop.f32.mrf.mxu0
        %v4605 = vadd.f32 %v4461, %v4604
        %v4606 = vpop.f32.mrf.mxu0
        %v4607 = vadd.f32 %v4463, %v4606
        %4608 = vmatmul.bf16.gmra.mxu0 %v4135
        %v4609 = vpop.f32.mrf.mxu0
        %v4610 = vadd.f32 %v4466, %v4609
        %v4611 = vpop.f32.mrf.mxu0
        %v4612 = vadd.f32 %v4468, %v4611
        %4613 = vmatmul.bf16.gmra.mxu0 %v4138
        %v4614 = vpop.f32.mrf.mxu0
        %v4615 = vadd.f32 %v4471, %v4614
        %v4616 = vpop.f32.mrf.mxu0
        %v4617 = vadd.f32 %v4473, %v4616
        %4618 = vmatmul.bf16.gmra.mxu0 %v4141
        %v4619 = vpop.f32.mrf.mxu0
        %v4620 = vadd.f32 %v4476, %v4619
        %v4621 = vpop.f32.mrf.mxu0
        %v4622 = vadd.f32 %v4478, %v4621
        %4623 = vmatmul.bf16.gmra.mxu0 %v4144
        %v4624 = vpop.f32.mrf.mxu0
        %v4625 = vadd.f32 %v4481, %v4624
        %v4626 = vpop.f32.mrf.mxu0
        %v4627 = vadd.f32 %v4483, %v4626
        %4628 = vmatmul.bf16.gmra.mxu0 %v4147
        %v4629 = vpop.f32.mrf.mxu0
        %v4630 = vadd.f32 %v4486, %v4629
        %v4631 = vpop.f32.mrf.mxu0
        %v4632 = vadd.f32 %v4488, %v4631
        %4633 = vmatmul.bf16.gmra.mxu0 %v4150
        %v4634 = vpop.f32.mrf.mxu0
        %v4635 = vadd.f32 %v4491, %v4634
        %v4636 = vpop.f32.mrf.mxu0
        %v4637 = vadd.f32 %v4493, %v4636
        %4638 = vmatmul.bf16.gmra.mxu0 %v4153
        %v4639 = vpop.f32.mrf.mxu0
        %v4640 = vadd.f32 %v4496, %v4639
        %v4641 = vpop.f32.mrf.mxu0
        %v4642 = vadd.f32 %v4498, %v4641
        %4643 = vmatmul.bf16.gmra.mxu0 %v4156
        %v4644 = vpop.f32.mrf.mxu0
        %v4645 = vadd.f32 %v4501, %v4644
        %v4646 = vpop.f32.mrf.mxu0
        %v4647 = vadd.f32 %v4503, %v4646
        %4648 = vmatmul.bf16.gmra.mxu0 %v4159
        %v4649 = vpop.f32.mrf.mxu0
        %v4650 = vadd.f32 %v4506, %v4649
        %v4651 = vpop.f32.mrf.mxu0
        %v4652 = vadd.f32 %v4508, %v4651
        %4653 = vmatmul.bf16.gmra.mxu0 %v4162
        %v4654 = vpop.f32.mrf.mxu0
        %v4655 = vadd.f32 %v4511, %v4654
        %v4656 = vpop.f32.mrf.mxu0
        %v4657 = vadd.f32 %v4513, %v4656
        %4658 = vmatmul.bf16.gmra.mxu0 %v4165
        %v4659 = vpop.f32.mrf.mxu0
        %v4660 = vadd.f32 %v4516, %v4659
        %v4661 = vpop.f32.mrf.mxu0
        %v4662 = vadd.f32 %v4518, %v4661
        %4663 = vmatmul.bf16.gmra.mxu0 %v4168
        %v4664 = vpop.f32.mrf.mxu0
        %v4665 = vadd.f32 %v4521, %v4664
        %v4666 = vpop.f32.mrf.mxu0
        %v4667 = vadd.f32 %v4523, %v4666
        %4668 = vmatmul.bf16.gmra.mxu0 %v4171
        %v4669 = vpop.f32.mrf.mxu0
        %v4670 = vadd.f32 %v4526, %v4669
        %v4671 = vpop.f32.mrf.mxu0
        %v4672 = vadd.f32 %v4528, %v4671
        %4673 = vmatmul.bf16.gmra.mxu0 %v4174
        %v4674 = vpop.f32.mrf.mxu0
        %v4675 = vadd.f32 %v4531, %v4674
        %v4676 = vpop.f32.mrf.mxu0
        %v4677 = vadd.f32 %v4533, %v4676
        %4678 = vmatmul.bf16.gmra.mxu0 %v4177
        %v4679 = vpop.f32.mrf.mxu0
        %v4680 = vadd.f32 %v4536, %v4679
        %v4681 = vpop.f32.mrf.mxu0
        %v4682 = vadd.f32 %v4538, %v4681
        %4683 = vmatmul.bf16.gmra.mxu0 %v4180
        %v4684 = vpop.f32.mrf.mxu0
        %v4685 = vadd.f32 %v4541, %v4684
        %v4686 = vpop.f32.mrf.mxu0
        %v4687 = vadd.f32 %v4543, %v4686
        %4688 = vmatmul.bf16.gmra.mxu0 %v4183
        %v4689 = vpop.f32.mrf.mxu0
        %v4690 = vadd.f32 %v4546, %v4689
        %v4691 = vpop.f32.mrf.mxu0
        %v4692 = vadd.f32 %v4548, %v4691
        %4693 = vmatmul.bf16.gmra.mxu0 %v4186
        %v4694 = vpop.f32.mrf.mxu0
        %v4695 = vadd.f32 %v4551, %v4694
        %v4696 = vpop.f32.mrf.mxu0
        %v4697 = vadd.f32 %v4553, %v4696
        %4698 = vmatmul.bf16.gmra.mxu0 %v4189
        %v4699 = vpop.f32.mrf.mxu0
        %v4700 = vadd.f32 %v4556, %v4699
        %v4701 = vpop.f32.mrf.mxu0
        %v4702 = vadd.f32 %v4558, %v4701
        %4703 = vdwg.mxu0
        %4704 = vmatpush.bf16.msra.mxu0 %v4391
        %4705 = vmatpush.bf16.msra.mxu0 %v4390
        %4706 = vmatpush.bf16.msra.mxu0 %v4389
        %4707 = vmatpush.bf16.msra.mxu0 %v4388
        %4708 = vmatpush.bf16.msra.mxu0 %v4387
        %4709 = vmatpush.bf16.msra.mxu0 %v4386
        %4710 = vmatpush.bf16.msra.mxu0 %v4385
        %4711 = vmatpush.bf16.msra.mxu0 %v4384
        %4712 = vmatmul.bf16.gmra.mxu0 %v4112
        %v4713 = vpop.f32.mrf.mxu0
        %v4714 = vadd.f32 %v4570, %v4713
        %v4715 = vpop.f32.mrf.mxu0
        %v4716 = vadd.f32 %v4572, %v4715
        %4717 = vmatmul.bf16.gmra.mxu0 %v4115
        %v4718 = vpop.f32.mrf.mxu0
        %v4719 = vadd.f32 %v4575, %v4718
        %v4720 = vpop.f32.mrf.mxu0
        %v4721 = vadd.f32 %v4577, %v4720
        %4722 = vmatmul.bf16.gmra.mxu0 %v4118
        %v4723 = vpop.f32.mrf.mxu0
        %v4724 = vadd.f32 %v4580, %v4723
        %v4725 = vpop.f32.mrf.mxu0
        %v4726 = vadd.f32 %v4582, %v4725
        %4727 = vmatmul.bf16.gmra.mxu0 %v4121
        %v4728 = vpop.f32.mrf.mxu0
        %v4729 = vadd.f32 %v4585, %v4728
        %v4730 = vpop.f32.mrf.mxu0
        %v4731 = vadd.f32 %v4587, %v4730
        %4732 = vmatmul.bf16.gmra.mxu0 %v4124
        %v4733 = vpop.f32.mrf.mxu0
        %v4734 = vadd.f32 %v4590, %v4733
        %v4735 = vpop.f32.mrf.mxu0
        %v4736 = vadd.f32 %v4592, %v4735
        %4737 = vmatmul.bf16.gmra.mxu0 %v4127
        %v4738 = vpop.f32.mrf.mxu0
        %v4739 = vadd.f32 %v4595, %v4738
        %v4740 = vpop.f32.mrf.mxu0
        %v4741 = vadd.f32 %v4597, %v4740
        %4742 = vmatmul.bf16.gmra.mxu0 %v4130
        %v4743 = vpop.f32.mrf.mxu0
        %v4744 = vadd.f32 %v4600, %v4743
        %v4745 = vpop.f32.mrf.mxu0
        %v4746 = vadd.f32 %v4602, %v4745
        %4747 = vmatmul.bf16.gmra.mxu0 %v4133
        %v4748 = vpop.f32.mrf.mxu0
        %v4749 = vadd.f32 %v4605, %v4748
        %v4750 = vpop.f32.mrf.mxu0
        %v4751 = vadd.f32 %v4607, %v4750
        %4752 = vmatmul.bf16.gmra.mxu0 %v4136
        %v4753 = vpop.f32.mrf.mxu0
        %v4754 = vadd.f32 %v4610, %v4753
        %v4755 = vpop.f32.mrf.mxu0
        %v4756 = vadd.f32 %v4612, %v4755
        %4757 = vmatmul.bf16.gmra.mxu0 %v4139
        %v4758 = vpop.f32.mrf.mxu0
        %v4759 = vadd.f32 %v4615, %v4758
        %v4760 = vpop.f32.mrf.mxu0
        %v4761 = vadd.f32 %v4617, %v4760
        %4762 = vmatmul.bf16.gmra.mxu0 %v4142
        %v4763 = vpop.f32.mrf.mxu0
        %v4764 = vadd.f32 %v4620, %v4763
        %v4765 = vpop.f32.mrf.mxu0
        %v4766 = vadd.f32 %v4622, %v4765
        %4767 = vmatmul.bf16.gmra.mxu0 %v4145
        %v4768 = vpop.f32.mrf.mxu0
        %v4769 = vadd.f32 %v4625, %v4768
        %v4770 = vpop.f32.mrf.mxu0
        %v4771 = vadd.f32 %v4627, %v4770
        %4772 = vmatmul.bf16.gmra.mxu0 %v4148
        %v4773 = vpop.f32.mrf.mxu0
        %v4774 = vadd.f32 %v4630, %v4773
        %v4775 = vpop.f32.mrf.mxu0
        %v4776 = vadd.f32 %v4632, %v4775
        %4777 = vmatmul.bf16.gmra.mxu0 %v4151
        %v4778 = vpop.f32.mrf.mxu0
        %v4779 = vadd.f32 %v4635, %v4778
        %v4780 = vpop.f32.mrf.mxu0
        %v4781 = vadd.f32 %v4637, %v4780
        %4782 = vmatmul.bf16.gmra.mxu0 %v4154
        %v4783 = vpop.f32.mrf.mxu0
        %v4784 = vadd.f32 %v4640, %v4783
        %v4785 = vpop.f32.mrf.mxu0
        %v4786 = vadd.f32 %v4642, %v4785
        %4787 = vmatmul.bf16.gmra.mxu0 %v4157
        %v4788 = vpop.f32.mrf.mxu0
        %v4789 = vadd.f32 %v4645, %v4788
        %v4790 = vpop.f32.mrf.mxu0
        %v4791 = vadd.f32 %v4647, %v4790
        %4792 = vmatmul.bf16.gmra.mxu0 %v4160
        %v4793 = vpop.f32.mrf.mxu0
        %v4794 = vadd.f32 %v4650, %v4793
        %v4795 = vpop.f32.mrf.mxu0
        %v4796 = vadd.f32 %v4652, %v4795
        %4797 = vmatmul.bf16.gmra.mxu0 %v4163
        %v4798 = vpop.f32.mrf.mxu0
        %v4799 = vadd.f32 %v4655, %v4798
        %v4800 = vpop.f32.mrf.mxu0
        %v4801 = vadd.f32 %v4657, %v4800
        %4802 = vmatmul.bf16.gmra.mxu0 %v4166
        %v4803 = vpop.f32.mrf.mxu0
        %v4804 = vadd.f32 %v4660, %v4803
        %v4805 = vpop.f32.mrf.mxu0
        %v4806 = vadd.f32 %v4662, %v4805
        %4807 = vmatmul.bf16.gmra.mxu0 %v4169
        %v4808 = vpop.f32.mrf.mxu0
        %v4809 = vadd.f32 %v4665, %v4808
        %v4810 = vpop.f32.mrf.mxu0
        %v4811 = vadd.f32 %v4667, %v4810
        %4812 = vmatmul.bf16.gmra.mxu0 %v4172
        %v4813 = vpop.f32.mrf.mxu0
        %v4814 = vadd.f32 %v4670, %v4813
        %v4815 = vpop.f32.mrf.mxu0
        %v4816 = vadd.f32 %v4672, %v4815
        %4817 = vmatmul.bf16.gmra.mxu0 %v4175
        %v4818 = vpop.f32.mrf.mxu0
        %v4819 = vadd.f32 %v4675, %v4818
        %v4820 = vpop.f32.mrf.mxu0
        %v4821 = vadd.f32 %v4677, %v4820
        %4822 = vmatmul.bf16.gmra.mxu0 %v4178
        %v4823 = vpop.f32.mrf.mxu0
        %v4824 = vadd.f32 %v4680, %v4823
        %v4825 = vpop.f32.mrf.mxu0
        %v4826 = vadd.f32 %v4682, %v4825
        %4827 = vmatmul.bf16.gmra.mxu0 %v4181
        %v4828 = vpop.f32.mrf.mxu0
        %v4829 = vadd.f32 %v4685, %v4828
        %v4830 = vpop.f32.mrf.mxu0
        %v4831 = vadd.f32 %v4687, %v4830
        %4832 = vmatmul.bf16.gmra.mxu0 %v4184
        %v4833 = vpop.f32.mrf.mxu0
        %v4834 = vadd.f32 %v4690, %v4833
        %v4835 = vpop.f32.mrf.mxu0
        %v4836 = vadd.f32 %v4692, %v4835
        %4837 = vmatmul.bf16.gmra.mxu0 %v4187
        %v4838 = vpop.f32.mrf.mxu0
        %v4839 = vadd.f32 %v4695, %v4838
        %v4840 = vpop.f32.mrf.mxu0
        %v4841 = vadd.f32 %v4697, %v4840
        %4842 = vmatmul.bf16.gmra.mxu0 %v4190
        %v4843 = vpop.f32.mrf.mxu0
        %v4844 = vadd.f32 %v4700, %v4843
        %v4845 = vpop.f32.mrf.mxu0
        %v4846 = vadd.f32 %v4702, %v4845
        %4847 = vdwg.mxu0
        %v4848 = vadd.f32 %v3402, %v4714
        %v4849 = vadd.f32 %v3404, %v4716
        %v4850 = vadd.f32 %v3407, %v4719
        %v4851 = vadd.f32 %v3409, %v4721
        %v4852 = vadd.f32 %v3412, %v4724
        %v4853 = vadd.f32 %v3414, %v4726
        %v4854 = vadd.f32 %v3417, %v4729
        %v4855 = vadd.f32 %v3419, %v4731
        %v4856 = vadd.f32 %v3422, %v4734
        %v4857 = vadd.f32 %v3424, %v4736
        %v4858 = vadd.f32 %v3427, %v4739
        %v4859 = vadd.f32 %v3429, %v4741
        %v4860 = vadd.f32 %v3432, %v4744
        %v4861 = vadd.f32 %v3434, %v4746
        %v4862 = vadd.f32 %v3437, %v4749
        %v4863 = vadd.f32 %v3439, %v4751
        %v4864 = vadd.f32 %v3442, %v4754
        %v4865 = vadd.f32 %v3444, %v4756
        %v4866 = vadd.f32 %v3447, %v4759
        %v4867 = vadd.f32 %v3449, %v4761
        %v4868 = vadd.f32 %v3452, %v4764
        %v4869 = vadd.f32 %v3454, %v4766
        %v4870 = vadd.f32 %v3457, %v4769
        %v4871 = vadd.f32 %v3459, %v4771
        %v4872 = vadd.f32 %v3462, %v4774
        %v4873 = vadd.f32 %v3464, %v4776
        %v4874 = vadd.f32 %v3467, %v4779
        %v4875 = vadd.f32 %v3469, %v4781
        %v4876 = vadd.f32 %v3472, %v4784
        %v4877 = vadd.f32 %v3474, %v4786
        %v4878 = vadd.f32 %v3477, %v4789
        %v4879 = vadd.f32 %v3479, %v4791
        %v4880 = vadd.f32 %v3482, %v4794
        %v4881 = vadd.f32 %v3484, %v4796
        %v4882 = vadd.f32 %v3487, %v4799
        %v4883 = vadd.f32 %v3489, %v4801
        %v4884 = vadd.f32 %v3492, %v4804
        %v4885 = vadd.f32 %v3494, %v4806
        %v4886 = vadd.f32 %v3497, %v4809
        %v4887 = vadd.f32 %v3499, %v4811
        %v4888 = vadd.f32 %v3502, %v4814
        %v4889 = vadd.f32 %v3504, %v4816
        %v4890 = vadd.f32 %v3507, %v4819
        %v4891 = vadd.f32 %v3509, %v4821
        %v4892 = vadd.f32 %v3512, %v4824
        %v4893 = vadd.f32 %v3514, %v4826
        %v4894 = vadd.f32 %v3517, %v4829
        %v4895 = vadd.f32 %v3519, %v4831
        %v4896 = vadd.f32 %v3522, %v4834
        %v4897 = vadd.f32 %v3524, %v4836
        %v4898 = vadd.f32 %v3527, %v4839
        %v4899 = vadd.f32 %v3529, %v4841
        %v4900 = vadd.f32 %v3532, %v4844
        %v4901 = vadd.f32 %v3534, %v4846
        %v4902 = vld [vmem:[%s2] sm:$0x1]
        %v4904 = vperm.slane %v4902, 0
        %v4906 = vadd.f32 %v4848, %v4904
        %v4907 = vadd.f32 %v4849, %v4904
        %v4908 = vadd.f32 %v4850, %v4904
        %v4909 = vadd.f32 %v4851, %v4904
        %v4910 = vadd.f32 %v4852, %v4904
        %v4911 = vadd.f32 %v4853, %v4904
        %v4912 = vadd.f32 %v4854, %v4904
        %v4913 = vadd.f32 %v4855, %v4904
        %v4914 = vadd.f32 %v4856, %v4904
        %v4915 = vadd.f32 %v4857, %v4904
        %v4916 = vadd.f32 %v4858, %v4904
        %v4917 = vadd.f32 %v4859, %v4904
        %v4918 = vadd.f32 %v4860, %v4904
        %v4919 = vadd.f32 %v4861, %v4904
        %v4920 = vadd.f32 %v4862, %v4904
        %v4921 = vadd.f32 %v4863, %v4904
        %v4922 = vadd.f32 %v4864, %v4904
        %v4923 = vadd.f32 %v4865, %v4904
        %v4924 = vadd.f32 %v4866, %v4904
        %v4925 = vadd.f32 %v4867, %v4904
        %v4926 = vadd.f32 %v4868, %v4904
        %v4927 = vadd.f32 %v4869, %v4904
        %v4928 = vadd.f32 %v4870, %v4904
        %v4929 = vadd.f32 %v4871, %v4904
        %v4930 = vadd.f32 %v4872, %v4904
        %v4931 = vadd.f32 %v4873, %v4904
        %v4932 = vadd.f32 %v4874, %v4904
        %v4933 = vadd.f32 %v4875, %v4904
        %v4934 = vadd.f32 %v4876, %v4904
        %v4935 = vadd.f32 %v4877, %v4904
        %v4936 = vadd.f32 %v4878, %v4904
        %v4937 = vadd.f32 %v4879, %v4904
        %v4938 = vadd.f32 %v4880, %v4904
        %v4939 = vadd.f32 %v4881, %v4904
        %v4940 = vadd.f32 %v4882, %v4904
        %v4941 = vadd.f32 %v4883, %v4904
        %v4942 = vadd.f32 %v4884, %v4904
        %v4943 = vadd.f32 %v4885, %v4904
        %v4944 = vadd.f32 %v4886, %v4904
        %v4945 = vadd.f32 %v4887, %v4904
        %v4946 = vadd.f32 %v4888, %v4904
        %v4947 = vadd.f32 %v4889, %v4904
        %v4948 = vadd.f32 %v4890, %v4904
        %v4949 = vadd.f32 %v4891, %v4904
        %v4950 = vadd.f32 %v4892, %v4904
        %v4951 = vadd.f32 %v4893, %v4904
        %v4952 = vadd.f32 %v4894, %v4904
        %v4953 = vadd.f32 %v4895, %v4904
        %v4954 = vadd.f32 %v4896, %v4904
        %v4955 = vadd.f32 %v4897, %v4904
        %v4956 = vadd.f32 %v4898, %v4904
        %v4957 = vadd.f32 %v4899, %v4904
        %v4958 = vadd.f32 %v4900, %v4904
        %v4959 = vadd.f32 %v4901, %v4904
        %v4960 = vmax.f32 %v4906, 0.0
        %v4961 = vmax.f32 %v4907, 0.0
        %v4962 = vmax.f32 %v4908, 0.0
        %v4963 = vmax.f32 %v4909, 0.0
        %v4964 = vmax.f32 %v4910, 0.0
        %v4965 = vmax.f32 %v4911, 0.0
        %v4966 = vmax.f32 %v4912, 0.0
        %v4967 = vmax.f32 %v4913, 0.0
        %v4968 = vmax.f32 %v4914, 0.0
        %v4969 = vmax.f32 %v4915, 0.0
        %v4970 = vmax.f32 %v4916, 0.0
        %v4971 = vmax.f32 %v4917, 0.0
        %v4972 = vmax.f32 %v4918, 0.0
        %v4973 = vmax.f32 %v4919, 0.0
        %v4974 = vmax.f32 %v4920, 0.0
        %v4975 = vmax.f32 %v4921, 0.0
        %v4976 = vmax.f32 %v4922, 0.0
        %v4977 = vmax.f32 %v4923, 0.0
        %v4978 = vmax.f32 %v4924, 0.0
        %v4979 = vmax.f32 %v4925, 0.0
        %v4980 = vmax.f32 %v4926, 0.0
        %v4981 = vmax.f32 %v4927, 0.0
        %v4982 = vmax.f32 %v4928, 0.0
        %v4983 = vmax.f32 %v4929, 0.0
        %v4984 = vmax.f32 %v4930, 0.0
        %v4985 = vmax.f32 %v4931, 0.0
        %v4986 = vmax.f32 %v4932, 0.0
        %v4987 = vmax.f32 %v4933, 0.0
        %v4988 = vmax.f32 %v4934, 0.0
        %v4989 = vmax.f32 %v4935, 0.0
        %v4990 = vmax.f32 %v4936, 0.0
        %v4991 = vmax.f32 %v4937, 0.0
        %v4992 = vmax.f32 %v4938, 0.0
        %v4993 = vmax.f32 %v4939, 0.0
        %v4994 = vmax.f32 %v4940, 0.0
        %v4995 = vmax.f32 %v4941, 0.0
        %v4996 = vmax.f32 %v4942, 0.0
        %v4997 = vmax.f32 %v4943, 0.0
        %v4998 = vmax.f32 %v4944, 0.0
        %v4999 = vmax.f32 %v4945, 0.0
        %v5000 = vmax.f32 %v4946, 0.0
        %v5001 = vmax.f32 %v4947, 0.0
        %v5002 = vmax.f32 %v4948, 0.0
        %v5003 = vmax.f32 %v4949, 0.0
        %v5004 = vmax.f32 %v4950, 0.0
        %v5005 = vmax.f32 %v4951, 0.0
        %v5006 = vmax.f32 %v4952, 0.0
        %v5007 = vmax.f32 %v4953, 0.0
        %v5008 = vmax.f32 %v4954, 0.0
        %v5009 = vmax.f32 %v4955, 0.0
        %v5010 = vmax.f32 %v4956, 0.0
        %v5011 = vmax.f32 %v4957, 0.0
        %v5012 = vmax.f32 %v4958, 0.0
        %v5013 = vmax.f32 %v4959, 0.0
        %s5014 = smul.u32 %s24, 16
        %s5015 = ssub.s32 %s5014, 1
        %v5016 = vstv %s5015
        %v5017 = vadd.s32 %v5016, 1
        %v5018 = vadd.s32 %v5016, 2
        %v5019 = vadd.s32 %v5016, 3
        %v5020 = vadd.s32 %v5016, 4
        %v5021 = vadd.s32 %v5016, 5
        %v5022 = vadd.s32 %v5016, 6
        %v5023 = vadd.s32 %v5016, 7
        %v5024 = vadd.s32 %v5016, 8
        %v5025 = vadd.s32 %v5016, 9
        %v5026 = vadd.s32 %v5016, 10
        %v5027 = vadd.s32 %v5016, 11
        %v5028 = vadd.s32 %v5016, 12
        %v5029 = vadd.s32 %v5016, 13
        %v5030 = vadd.s32 %v5016, 14
        %v5031 = vadd.s32 %v5016, 15
        %v5032 = vadd.s32 %v5016, 16
        %v5033 = vadd.s32 %v5016, 17
        %v5034 = vlaneseq
        %v5035 = vshrl.u32 %v5034, 7
        %v5036 = vadd.s32 %v5035, 8
        %v5037 = vadd.s32 %v5035, 16
        %v5038 = vsub.s32 %v5035, 1
        %v5039 = vsub.s32 %v5036, 1
        %v5040 = vsub.s32 %v5037, 1
        %vm5041 = vcmp.ge.s32.totalorder %v5016, 0
        %vm5042 = vcmp.ge.s32.totalorder %v5017, 0
        %vm5043 = vcmp.ge.s32.totalorder %v5018, 0
        %vm5044 = vcmp.ge.s32.totalorder %v5019, 0
        %vm5045 = vcmp.ge.s32.totalorder %v5020, 0
        %vm5046 = vcmp.ge.s32.totalorder %v5021, 0
        %vm5047 = vcmp.ge.s32.totalorder %v5022, 0
        %vm5048 = vcmp.ge.s32.totalorder %v5023, 0
        %vm5049 = vcmp.ge.s32.totalorder %v5024, 0
        %vm5050 = vcmp.ge.s32.totalorder %v5025, 0
        %vm5051 = vcmp.ge.s32.totalorder %v5026, 0
        %vm5052 = vcmp.ge.s32.totalorder %v5027, 0
        %vm5053 = vcmp.ge.s32.totalorder %v5028, 0
        %vm5054 = vcmp.ge.s32.totalorder %v5029, 0
        %vm5055 = vcmp.ge.s32.totalorder %v5030, 0
        %vm5056 = vcmp.ge.s32.totalorder %v5031, 0
        %vm5057 = vcmp.ge.s32.totalorder %v5032, 0
        %vm5058 = vcmp.ge.s32.totalorder %v5033, 0
        %vm5059 = vcmp.lt.s32.totalorder %v5016, 16
        %vm5060 = vcmp.lt.s32.totalorder %v5017, 16
        %vm5061 = vcmp.lt.s32.totalorder %v5018, 16
        %vm5062 = vcmp.lt.s32.totalorder %v5019, 16
        %vm5063 = vcmp.lt.s32.totalorder %v5020, 16
        %vm5064 = vcmp.lt.s32.totalorder %v5021, 16
        %vm5065 = vcmp.lt.s32.totalorder %v5022, 16
        %vm5066 = vcmp.lt.s32.totalorder %v5023, 16
        %vm5067 = vcmp.lt.s32.totalorder %v5024, 16
        %vm5068 = vcmp.lt.s32.totalorder %v5025, 16
        %vm5069 = vcmp.lt.s32.totalorder %v5026, 16
        %vm5070 = vcmp.lt.s32.totalorder %v5027, 16
        %vm5071 = vcmp.lt.s32.totalorder %v5028, 16
        %vm5072 = vcmp.lt.s32.totalorder %v5029, 16
        %vm5073 = vcmp.lt.s32.totalorder %v5030, 16
        %vm5074 = vcmp.lt.s32.totalorder %v5031, 16
        %vm5075 = vcmp.lt.s32.totalorder %v5032, 16
        %vm5076 = vcmp.lt.s32.totalorder %v5033, 16
        %vm5077 = vmand %vm5041, %vm5059
        %vm5078 = vmand %vm5042, %vm5060
        %vm5079 = vmand %vm5043, %vm5061
        %vm5080 = vmand %vm5044, %vm5062
        %vm5081 = vmand %vm5045, %vm5063
        %vm5082 = vmand %vm5046, %vm5064
        %vm5083 = vmand %vm5047, %vm5065
        %vm5084 = vmand %vm5048, %vm5066
        %vm5085 = vmand %vm5049, %vm5067
        %vm5086 = vmand %vm5050, %vm5068
        %vm5087 = vmand %vm5051, %vm5069
        %vm5088 = vmand %vm5052, %vm5070
        %vm5089 = vmand %vm5053, %vm5071
        %vm5090 = vmand %vm5054, %vm5072
        %vm5091 = vmand %vm5055, %vm5073
        %vm5092 = vmand %vm5056, %vm5074
        %vm5093 = vmand %vm5057, %vm5075
        %vm5094 = vmand %vm5058, %vm5076
        %vm5095 = vcmp.ge.s32.totalorder %v5038, 0
        %vm5096 = vcmp.ge.s32.totalorder %v5039, 0
        %vm5097 = vcmp.ge.s32.totalorder %v5040, 0
        %vm5098 = vmand %vm5077, %vm5095
        %vm5099 = vmand %vm5077, %vm5096
        %vm5100 = vmand %vm5077, %vm5097
        %vm5101 = vmand %vm5078, %vm5095
        %vm5102 = vmand %vm5078, %vm5096
        %vm5103 = vmand %vm5078, %vm5097
        %vm5104 = vmand %vm5079, %vm5095
        %vm5105 = vmand %vm5079, %vm5096
        %vm5106 = vmand %vm5079, %vm5097
        %vm5107 = vmand %vm5080, %vm5095
        %vm5108 = vmand %vm5080, %vm5096
        %vm5109 = vmand %vm5080, %vm5097
        %vm5110 = vmand %vm5081, %vm5095
        %vm5111 = vmand %vm5081, %vm5096
        %vm5112 = vmand %vm5081, %vm5097
        %vm5113 = vmand %vm5082, %vm5095
        %vm5114 = vmand %vm5082, %vm5096
        %vm5115 = vmand %vm5082, %vm5097
        %vm5116 = vmand %vm5083, %vm5095
        %vm5117 = vmand %vm5083, %vm5096
        %vm5118 = vmand %vm5083, %vm5097
        %vm5119 = vmand %vm5084, %vm5095
        %vm5120 = vmand %vm5084, %vm5096
        %vm5121 = vmand %vm5084, %vm5097
        %vm5122 = vmand %vm5085, %vm5095
        %vm5123 = vmand %vm5085, %vm5096
        %vm5124 = vmand %vm5085, %vm5097
        %vm5125 = vmand %vm5086, %vm5095
        %vm5126 = vmand %vm5086, %vm5096
        %vm5127 = vmand %vm5086, %vm5097
        %vm5128 = vmand %vm5087, %vm5095
        %vm5129 = vmand %vm5087, %vm5096
        %vm5130 = vmand %vm5087, %vm5097
        %vm5131 = vmand %vm5088, %vm5095
        %vm5132 = vmand %vm5088, %vm5096
        %vm5133 = vmand %vm5088, %vm5097
        %vm5134 = vmand %vm5089, %vm5095
        %vm5135 = vmand %vm5089, %vm5096
        %vm5136 = vmand %vm5089, %vm5097
        %vm5137 = vmand %vm5090, %vm5095
        %vm5138 = vmand %vm5090, %vm5096
        %vm5139 = vmand %vm5090, %vm5097
        %vm5140 = vmand %vm5091, %vm5095
        %vm5141 = vmand %vm5091, %vm5096
        %vm5142 = vmand %vm5091, %vm5097
        %vm5143 = vmand %vm5092, %vm5095
        %vm5144 = vmand %vm5092, %vm5096
        %vm5145 = vmand %vm5092, %vm5097
        %vm5146 = vmand %vm5093, %vm5095
        %vm5147 = vmand %vm5093, %vm5096
        %vm5148 = vmand %vm5093, %vm5097
        %vm5149 = vmand %vm5094, %vm5095
        %vm5150 = vmand %vm5094, %vm5096
        %vm5151 = vmand %vm5094, %vm5097
        %vm5152 = vcmp.lt.s32.totalorder %v5038, 16
        %vm5153 = vcmp.lt.s32.totalorder %v5039, 16
        %vm5154 = vcmp.lt.s32.totalorder %v5040, 16
        %vm5155 = vmand %vm5098, %vm5152
        %vm5156 = vmand %vm5099, %vm5153
        %vm5157 = vmand %vm5100, %vm5154
        %vm5158 = vmand %vm5101, %vm5152
        %vm5159 = vmand %vm5102, %vm5153
        %vm5160 = vmand %vm5103, %vm5154
        %vm5161 = vmand %vm5104, %vm5152
        %vm5162 = vmand %vm5105, %vm5153
        %vm5163 = vmand %vm5106, %vm5154
        %vm5164 = vmand %vm5107, %vm5152
        %vm5165 = vmand %vm5108, %vm5153
        %vm5166 = vmand %vm5109, %vm5154
        %vm5167 = vmand %vm5110, %vm5152
        %vm5168 = vmand %vm5111, %vm5153
        %vm5169 = vmand %vm5112, %vm5154
        %vm5170 = vmand %vm5113, %vm5152
        %vm5171 = vmand %vm5114, %vm5153
        %vm5172 = vmand %vm5115, %vm5154
        %vm5173 = vmand %vm5116, %vm5152
        %vm5174 = vmand %vm5117, %vm5153
        %vm5175 = vmand %vm5118, %vm5154
        %vm5176 = vmand %vm5119, %vm5152
        %vm5177 = vmand %vm5120, %vm5153
        %vm5178 = vmand %vm5121, %vm5154
        %vm5179 = vmand %vm5122, %vm5152
        %vm5180 = vmand %vm5123, %vm5153
        %vm5181 = vmand %vm5124, %vm5154
        %vm5182 = vmand %vm5125, %vm5152
        %vm5183 = vmand %vm5126, %vm5153
        %vm5184 = vmand %vm5127, %vm5154
        %vm5185 = vmand %vm5128, %vm5152
        %vm5186 = vmand %vm5129, %vm5153
        %vm5187 = vmand %vm5130, %vm5154
        %vm5188 = vmand %vm5131, %vm5152
        %vm5189 = vmand %vm5132, %vm5153
        %vm5190 = vmand %vm5133, %vm5154
        %vm5191 = vmand %vm5134, %vm5152
        %vm5192 = vmand %vm5135, %vm5153
        %vm5193 = vmand %vm5136, %vm5154
        %vm5194 = vmand %vm5137, %vm5152
        %vm5195 = vmand %vm5138, %vm5153
        %vm5196 = vmand %vm5139, %vm5154
        %vm5197 = vmand %vm5140, %vm5152
        %vm5198 = vmand %vm5141, %vm5153
        %vm5199 = vmand %vm5142, %vm5154
        %vm5200 = vmand %vm5143, %vm5152
        %vm5201 = vmand %vm5144, %vm5153
        %vm5202 = vmand %vm5145, %vm5154
        %vm5203 = vmand %vm5146, %vm5152
        %vm5204 = vmand %vm5147, %vm5153
        %vm5205 = vmand %vm5148, %vm5154
        %vm5206 = vmand %vm5149, %vm5152
        %vm5207 = vmand %vm5150, %vm5153
        %vm5208 = vmand %vm5151, %vm5154
        %v5209 = vsel %vm5155, 1, 0
        %v5210 = vsel %vm5156, 1, 0
        %v5211 = vsel %vm5157, 1, 0
        %v5212 = vsel %vm5158, 1, 0
        %v5213 = vsel %vm5159, 1, 0
        %v5214 = vsel %vm5160, 1, 0
        %v5215 = vsel %vm5161, 1, 0
        %v5216 = vsel %vm5162, 1, 0
        %v5217 = vsel %vm5163, 1, 0
        %v5218 = vsel %vm5164, 1, 0
        %v5219 = vsel %vm5165, 1, 0
        %v5220 = vsel %vm5166, 1, 0
        %v5221 = vsel %vm5167, 1, 0
        %v5222 = vsel %vm5168, 1, 0
        %v5223 = vsel %vm5169, 1, 0
        %v5224 = vsel %vm5170, 1, 0
        %v5225 = vsel %vm5171, 1, 0
        %v5226 = vsel %vm5172, 1, 0
        %v5227 = vsel %vm5173, 1, 0
        %v5228 = vsel %vm5174, 1, 0
        %v5229 = vsel %vm5175, 1, 0
        %v5230 = vsel %vm5176, 1, 0
        %v5231 = vsel %vm5177, 1, 0
        %v5232 = vsel %vm5178, 1, 0
        %v5233 = vsel %vm5179, 1, 0
        %v5234 = vsel %vm5180, 1, 0
        %v5235 = vsel %vm5181, 1, 0
        %v5236 = vsel %vm5182, 1, 0
        %v5237 = vsel %vm5183, 1, 0
        %v5238 = vsel %vm5184, 1, 0
        %v5239 = vsel %vm5185, 1, 0
        %v5240 = vsel %vm5186, 1, 0
        %v5241 = vsel %vm5187, 1, 0
        %v5242 = vsel %vm5188, 1, 0
        %v5243 = vsel %vm5189, 1, 0
        %v5244 = vsel %vm5190, 1, 0
        %v5245 = vsel %vm5191, 1, 0
        %v5246 = vsel %vm5192, 1, 0
        %v5247 = vsel %vm5193, 1, 0
        %v5248 = vsel %vm5194, 1, 0
        %v5249 = vsel %vm5195, 1, 0
        %v5250 = vsel %vm5196, 1, 0
        %v5251 = vsel %vm5197, 1, 0
        %v5252 = vsel %vm5198, 1, 0
        %v5253 = vsel %vm5199, 1, 0
        %v5254 = vsel %vm5200, 1, 0
        %v5255 = vsel %vm5201, 1, 0
        %v5256 = vsel %vm5202, 1, 0
        %v5257 = vsel %vm5203, 1, 0
        %v5258 = vsel %vm5204, 1, 0
        %v5259 = vsel %vm5205, 1, 0
        %v5260 = vsel %vm5206, 1, 0
        %v5261 = vsel %vm5207, 1, 0
        %v5262 = vsel %vm5208, 1, 0
        %vm5263 = vcmp.eq.s32.totalorder %v5209, 1
        %vm5264 = vcmp.eq.s32.totalorder %v5210, 1
        %vm5265 = vcmp.eq.s32.totalorder %v5211, 1
        %vm5266 = vcmp.eq.s32.totalorder %v5212, 1
        %vm5267 = vcmp.eq.s32.totalorder %v5213, 1
        %vm5268 = vcmp.eq.s32.totalorder %v5214, 1
        %vm5269 = vcmp.eq.s32.totalorder %v5215, 1
        %vm5270 = vcmp.eq.s32.totalorder %v5216, 1
        %vm5271 = vcmp.eq.s32.totalorder %v5217, 1
        %vm5272 = vcmp.eq.s32.totalorder %v5218, 1
        %vm5273 = vcmp.eq.s32.totalorder %v5219, 1
        %vm5274 = vcmp.eq.s32.totalorder %v5220, 1
        %vm5275 = vcmp.eq.s32.totalorder %v5221, 1
        %vm5276 = vcmp.eq.s32.totalorder %v5222, 1
        %vm5277 = vcmp.eq.s32.totalorder %v5223, 1
        %vm5278 = vcmp.eq.s32.totalorder %v5224, 1
        %vm5279 = vcmp.eq.s32.totalorder %v5225, 1
        %vm5280 = vcmp.eq.s32.totalorder %v5226, 1
        %vm5281 = vcmp.eq.s32.totalorder %v5227, 1
        %vm5282 = vcmp.eq.s32.totalorder %v5228, 1
        %vm5283 = vcmp.eq.s32.totalorder %v5229, 1
        %vm5284 = vcmp.eq.s32.totalorder %v5230, 1
        %vm5285 = vcmp.eq.s32.totalorder %v5231, 1
        %vm5286 = vcmp.eq.s32.totalorder %v5232, 1
        %vm5287 = vcmp.eq.s32.totalorder %v5233, 1
        %vm5288 = vcmp.eq.s32.totalorder %v5234, 1
        %vm5289 = vcmp.eq.s32.totalorder %v5235, 1
        %vm5290 = vcmp.eq.s32.totalorder %v5236, 1
        %vm5291 = vcmp.eq.s32.totalorder %v5237, 1
        %vm5292 = vcmp.eq.s32.totalorder %v5238, 1
        %vm5293 = vcmp.eq.s32.totalorder %v5239, 1
        %vm5294 = vcmp.eq.s32.totalorder %v5240, 1
        %vm5295 = vcmp.eq.s32.totalorder %v5241, 1
        %vm5296 = vcmp.eq.s32.totalorder %v5242, 1
        %vm5297 = vcmp.eq.s32.totalorder %v5243, 1
        %vm5298 = vcmp.eq.s32.totalorder %v5244, 1
        %vm5299 = vcmp.eq.s32.totalorder %v5245, 1
        %vm5300 = vcmp.eq.s32.totalorder %v5246, 1
        %vm5301 = vcmp.eq.s32.totalorder %v5247, 1
        %vm5302 = vcmp.eq.s32.totalorder %v5248, 1
        %vm5303 = vcmp.eq.s32.totalorder %v5249, 1
        %vm5304 = vcmp.eq.s32.totalorder %v5250, 1
        %vm5305 = vcmp.eq.s32.totalorder %v5251, 1
        %vm5306 = vcmp.eq.s32.totalorder %v5252, 1
        %vm5307 = vcmp.eq.s32.totalorder %v5253, 1
        %vm5308 = vcmp.eq.s32.totalorder %v5254, 1
        %vm5309 = vcmp.eq.s32.totalorder %v5255, 1
        %vm5310 = vcmp.eq.s32.totalorder %v5256, 1
        %vm5311 = vcmp.eq.s32.totalorder %v5257, 1
        %vm5312 = vcmp.eq.s32.totalorder %v5258, 1
        %vm5313 = vcmp.eq.s32.totalorder %v5259, 1
        %vm5314 = vcmp.eq.s32.totalorder %v5260, 1
        %vm5315 = vcmp.eq.s32.totalorder %v5261, 1
        %vm5316 = vcmp.eq.s32.totalorder %v5262, 1
        %v5317 = vsel %vm5263, %v4960, 0.0
        %v5318 = vsel %vm5264, %v4961, 0.0
        %v5319 = vsel %vm5265, %v4962, 0.0
        %v5320 = vsel %vm5266, %v4963, 0.0
        %v5321 = vsel %vm5267, %v4964, 0.0
        %v5322 = vsel %vm5268, %v4965, 0.0
        %v5323 = vsel %vm5269, %v4966, 0.0
        %v5324 = vsel %vm5270, %v4967, 0.0
        %v5325 = vsel %vm5271, %v4968, 0.0
        %v5326 = vsel %vm5272, %v4969, 0.0
        %v5327 = vsel %vm5273, %v4970, 0.0
        %v5328 = vsel %vm5274, %v4971, 0.0
        %v5329 = vsel %vm5275, %v4972, 0.0
        %v5330 = vsel %vm5276, %v4973, 0.0
        %v5331 = vsel %vm5277, %v4974, 0.0
        %v5332 = vsel %vm5278, %v4975, 0.0
        %v5333 = vsel %vm5279, %v4976, 0.0
        %v5334 = vsel %vm5280, %v4977, 0.0
        %v5335 = vsel %vm5281, %v4978, 0.0
        %v5336 = vsel %vm5282, %v4979, 0.0
        %v5337 = vsel %vm5283, %v4980, 0.0
        %v5338 = vsel %vm5284, %v4981, 0.0
        %v5339 = vsel %vm5285, %v4982, 0.0
        %v5340 = vsel %vm5286, %v4983, 0.0
        %v5341 = vsel %vm5287, %v4984, 0.0
        %v5342 = vsel %vm5288, %v4985, 0.0
        %v5343 = vsel %vm5289, %v4986, 0.0
        %v5344 = vsel %vm5290, %v4987, 0.0
        %v5345 = vsel %vm5291, %v4988, 0.0
        %v5346 = vsel %vm5292, %v4989, 0.0
        %v5347 = vsel %vm5293, %v4990, 0.0
        %v5348 = vsel %vm5294, %v4991, 0.0
        %v5349 = vsel %vm5295, %v4992, 0.0
        %v5350 = vsel %vm5296, %v4993, 0.0
        %v5351 = vsel %vm5297, %v4994, 0.0
        %v5352 = vsel %vm5298, %v4995, 0.0
        %v5353 = vsel %vm5299, %v4996, 0.0
        %v5354 = vsel %vm5300, %v4997, 0.0
        %v5355 = vsel %vm5301, %v4998, 0.0
        %v5356 = vsel %vm5302, %v4999, 0.0
        %v5357 = vsel %vm5303, %v5000, 0.0
        %v5358 = vsel %vm5304, %v5001, 0.0
        %v5359 = vsel %vm5305, %v5002, 0.0
        %v5360 = vsel %vm5306, %v5003, 0.0
        %v5361 = vsel %vm5307, %v5004, 0.0
        %v5362 = vsel %vm5308, %v5005, 0.0
        %v5363 = vsel %vm5309, %v5006, 0.0
        %v5364 = vsel %vm5310, %v5007, 0.0
        %v5365 = vsel %vm5311, %v5008, 0.0
        %v5366 = vsel %vm5312, %v5009, 0.0
        %v5367 = vsel %vm5313, %v5010, 0.0
        %v5368 = vsel %vm5314, %v5011, 0.0
        %v5369 = vsel %vm5315, %v5012, 0.0
        %v5370 = vsel %vm5316, %v5013, 0.0
        %v5371 = vpack.c.bf16 %v5317, %v5317
        %v5372 = vpack.c.bf16 %v5318, %v5318
        %v5373 = vpack.c.bf16 %v5319, %v5319
        %v5374 = vpack.c.bf16 %v5320, %v5320
        %v5375 = vpack.c.bf16 %v5321, %v5321
        %v5376 = vpack.c.bf16 %v5322, %v5322
        %v5377 = vpack.c.bf16 %v5323, %v5323
        %v5378 = vpack.c.bf16 %v5324, %v5324
        %v5379 = vpack.c.bf16 %v5325, %v5325
        %v5380 = vpack.c.bf16 %v5326, %v5326
        %v5381 = vpack.c.bf16 %v5327, %v5327
        %v5382 = vpack.c.bf16 %v5328, %v5328
        %v5383 = vpack.c.bf16 %v5329, %v5329
        %v5384 = vpack.c.bf16 %v5330, %v5330
        %v5385 = vpack.c.bf16 %v5331, %v5331
        %v5386 = vpack.c.bf16 %v5332, %v5332
        %v5387 = vpack.c.bf16 %v5333, %v5333
        %v5388 = vpack.c.bf16 %v5334, %v5334
        %v5389 = vpack.c.bf16 %v5335, %v5335
        %v5390 = vpack.c.bf16 %v5336, %v5336
        %v5391 = vpack.c.bf16 %v5337, %v5337
        %v5392 = vpack.c.bf16 %v5338, %v5338
        %v5393 = vpack.c.bf16 %v5339, %v5339
        %v5394 = vpack.c.bf16 %v5340, %v5340
        %v5395 = vpack.c.bf16 %v5341, %v5341
        %v5396 = vpack.c.bf16 %v5342, %v5342
        %v5397 = vpack.c.bf16 %v5343, %v5343
        %v5398 = vpack.c.bf16 %v5344, %v5344
        %v5399 = vpack.c.bf16 %v5345, %v5345
        %v5400 = vpack.c.bf16 %v5346, %v5346
        %v5401 = vpack.c.bf16 %v5347, %v5347
        %v5402 = vpack.c.bf16 %v5348, %v5348
        %v5403 = vpack.c.bf16 %v5349, %v5349
        %v5404 = vpack.c.bf16 %v5350, %v5350
        %v5405 = vpack.c.bf16 %v5351, %v5351
        %v5406 = vpack.c.bf16 %v5352, %v5352
        %v5407 = vpack.c.bf16 %v5353, %v5353
        %v5408 = vpack.c.bf16 %v5354, %v5354
        %v5409 = vpack.c.bf16 %v5355, %v5355
        %v5410 = vpack.c.bf16 %v5356, %v5356
        %v5411 = vpack.c.bf16 %v5357, %v5357
        %v5412 = vpack.c.bf16 %v5358, %v5358
        %v5413 = vpack.c.bf16 %v5359, %v5359
        %v5414 = vpack.c.bf16 %v5360, %v5360
        %v5415 = vpack.c.bf16 %v5361, %v5361
        %v5416 = vpack.c.bf16 %v5362, %v5362
        %v5417 = vpack.c.bf16 %v5363, %v5363
        %v5418 = vpack.c.bf16 %v5364, %v5364
        %v5419 = vpack.c.bf16 %v5365, %v5365
        %v5420 = vpack.c.bf16 %v5366, %v5366
        %v5421 = vpack.c.bf16 %v5367, %v5367
        %v5422 = vpack.c.bf16 %v5368, %v5368
        %v5423 = vpack.c.bf16 %v5369, %v5369
        %v5424 = vpack.c.bf16 %v5370, %v5370
        %v5457 = vunpack.c.l.b16 %v5371
        %v5458 = vunpack.c.l.b16 %v5372
        %v5459 = vunpack.c.l.b16 %v5374
        %v5460 = vunpack.c.l.b16 %v5375
        %v5461 = vunpack.c.l.b16 %v5377
        %v5462 = vunpack.c.l.b16 %v5378
        %v5463 = vunpack.c.l.b16 %v5380
        %v5464 = vunpack.c.l.b16 %v5381
        %v5465 = vunpack.c.l.b16 %v5383
        %v5466 = vunpack.c.l.b16 %v5384
        %v5467 = vunpack.c.l.b16 %v5386
        %v5468 = vunpack.c.l.b16 %v5387
        %v5469 = vunpack.c.l.b16 %v5389
        %v5470 = vunpack.c.l.b16 %v5390
        %v5471 = vunpack.c.l.b16 %v5392
        %v5472 = vunpack.c.l.b16 %v5393
        %v5473 = vunpack.c.l.b16 %v5395
        %v5474 = vunpack.c.l.b16 %v5396
        %v5475 = vunpack.c.l.b16 %v5398
        %v5476 = vunpack.c.l.b16 %v5399
        %v5477 = vunpack.c.l.b16 %v5401
        %v5478 = vunpack.c.l.b16 %v5402
        %v5479 = vunpack.c.l.b16 %v5404
        %v5480 = vunpack.c.l.b16 %v5405
        %v5481 = vunpack.c.l.b16 %v5407
        %v5482 = vunpack.c.l.b16 %v5408
        %v5483 = vunpack.c.l.b16 %v5410
        %v5484 = vunpack.c.l.b16 %v5411
        %v5485 = vunpack.c.l.b16 %v5413
        %v5486 = vunpack.c.l.b16 %v5414
        %v5487 = vunpack.c.l.b16 %v5416
        %v5488 = vunpack.c.l.b16 %v5417
        %v5489 = vpack.c.b16 %v5458, %v5457
        %v5490 = vpack.c.b16 %v5460, %v5459
        %v5491 = vpack.c.b16 %v5462, %v5461
        %v5492 = vpack.c.b16 %v5464, %v5463
        %v5493 = vpack.c.b16 %v5466, %v5465
        %v5494 = vpack.c.b16 %v5468, %v5467
        %v5495 = vpack.c.b16 %v5470, %v5469
        %v5496 = vpack.c.b16 %v5472, %v5471
        %v5497 = vpack.c.b16 %v5474, %v5473
        %v5498 = vpack.c.b16 %v5476, %v5475
        %v5499 = vpack.c.b16 %v5478, %v5477
        %v5500 = vpack.c.b16 %v5480, %v5479
        %v5501 = vpack.c.b16 %v5482, %v5481
        %v5502 = vpack.c.b16 %v5484, %v5483
        %v5503 = vpack.c.b16 %v5486, %v5485
        %v5504 = vpack.c.b16 %v5488, %v5487
        %v5523 = vunpack.c.l.b16 %v5419
        %v5524 = vunpack.c.l.b16 %v5420
        %v5525 = vpack.c.b16 %v5524, %v5523
        %v5529 = vunpack.c.l.b16 %v5422
        %v5530 = vunpack.c.l.b16 %v5423
        %v5531 = vpack.c.b16 %v5530, %v5529
        %v5533 = vld [vmem:[%s3] sm:$0xf]
        %v5534 = vld [vmem:[%s3 + $0x4] sm:$0xf]
        %v5535 = vld [vmem:[%s3 + $0x8] sm:$0xf]
        %v5536 = vld [vmem:[%s3 + $0xc] sm:$0xf]
        %v5537 = vld [vmem:[%s3 + $0x10] sm:$0xf]
        %v5538 = vld [vmem:[%s3 + $0x14] sm:$0xf]
        %v5539 = vld [vmem:[%s3 + $0x18] sm:$0xf]
        %v5540 = vld [vmem:[%s3 + $0x1c] sm:$0xf]
        %v5541 = vld [vmem:[%s3 + $0x20] sm:$0xf]
        %v5542 = vld [vmem:[%s3 + $0x24] sm:$0xf]
        %v5543 = vld [vmem:[%s3 + $0x28] sm:$0xf]
        %v5544 = vld [vmem:[%s3 + $0x2c] sm:$0xf]
        %v5545 = vld [vmem:[%s3 + $0x30] sm:$0xf]
        %v5546 = vld [vmem:[%s3 + $0x34] sm:$0xf]
        %v5547 = vld [vmem:[%s3 + $0x38] sm:$0xf]
        %v5548 = vld [vmem:[%s3 + $0x3c] sm:$0xf]
        %v5549 = vld [vmem:[%s3 + $0x40] sm:$0xf]
        %v5550 = vld [vmem:[%s3 + $0x44] sm:$0xf]
        %v5551 = vld [vmem:[%s3 + $0x48] sm:$0xf]
        %v5552 = vld [vmem:[%s3 + $0x4c] sm:$0xf]
        %v5553 = vld [vmem:[%s3 + $0x50] sm:$0xf]
        %v5554 = vld [vmem:[%s3 + $0x54] sm:$0xf]
        %v5555 = vld [vmem:[%s3 + $0x58] sm:$0xf]
        %v5556 = vld [vmem:[%s3 + $0x5c] sm:$0xf]
        %v5557 = vld [vmem:[%s3 + $0x60] sm:$0xf]
        %v5558 = vld [vmem:[%s3 + $0x64] sm:$0xf]
        %v5559 = vld [vmem:[%s3 + $0x68] sm:$0xf]
        %v5560 = vld [vmem:[%s3 + $0x6c] sm:$0xf]
        %v5561 = vld [vmem:[%s3 + $0x70] sm:$0xf]
        %v5562 = vld [vmem:[%s3 + $0x74] sm:$0xf]
        %v5563 = vld [vmem:[%s3 + $0x78] sm:$0xf]
        %v5564 = vld [vmem:[%s3 + $0x7c] sm:$0xf]
        %v5565 = vld [vmem:[%s3 + $0x80] sm:$0xf]
        %v5566 = vld [vmem:[%s3 + $0x84] sm:$0xf]
        %v5567 = vld [vmem:[%s3 + $0x88] sm:$0xf]
        %v5568 = vld [vmem:[%s3 + $0x8c] sm:$0xf]
        %v5569 = vld [vmem:[%s3 + $0x90] sm:$0xf]
        %v5570 = vld [vmem:[%s3 + $0x94] sm:$0xf]
        %v5571 = vld [vmem:[%s3 + $0x98] sm:$0xf]
        %v5572 = vld [vmem:[%s3 + $0x9c] sm:$0xf]
        %v5573 = vld [vmem:[%s3 + $0xa0] sm:$0xf]
        %v5574 = vld [vmem:[%s3 + $0xa4] sm:$0xf]
        %v5575 = vld [vmem:[%s3 + $0xa8] sm:$0xf]
        %v5576 = vld [vmem:[%s3 + $0xac] sm:$0xf]
        %v5577 = vld [vmem:[%s3 + $0xb0] sm:$0xf]
        %v5578 = vld [vmem:[%s3 + $0xb4] sm:$0xf]
        %v5579 = vld [vmem:[%s3 + $0xb8] sm:$0xf]
        %v5580 = vld [vmem:[%s3 + $0xbc] sm:$0xf]
        %v5597 = vunpack.c.l.b16 %v5373
        %v5598 = vunpack.c.l.b16 %v5376
        %v5599 = vunpack.c.l.b16 %v5379
        %v5600 = vunpack.c.l.b16 %v5382
        %v5601 = vunpack.c.l.b16 %v5385
        %v5602 = vunpack.c.l.b16 %v5388
        %v5603 = vunpack.c.l.b16 %v5391
        %v5604 = vunpack.c.l.b16 %v5394
        %v5605 = vunpack.c.l.b16 %v5397
        %v5606 = vunpack.c.l.b16 %v5400
        %v5607 = vunpack.c.l.b16 %v5403
        %v5608 = vunpack.c.l.b16 %v5406
        %v5609 = vunpack.c.l.b16 %v5409
        %v5610 = vunpack.c.l.b16 %v5412
        %v5611 = vunpack.c.l.b16 %v5415
        %v5612 = vunpack.c.l.b16 %v5418
        %v5613 = vpack.c.b16 %v5597, %v5597
        %v5614 = vpack.c.b16 %v5598, %v5598
        %v5615 = vpack.c.b16 %v5599, %v5599
        %v5616 = vpack.c.b16 %v5600, %v5600
        %v5617 = vpack.c.b16 %v5601, %v5601
        %v5618 = vpack.c.b16 %v5602, %v5602
        %v5619 = vpack.c.b16 %v5603, %v5603
        %v5620 = vpack.c.b16 %v5604, %v5604
        %v5621 = vpack.c.b16 %v5605, %v5605
        %v5622 = vpack.c.b16 %v5606, %v5606
        %v5623 = vpack.c.b16 %v5607, %v5607
        %v5624 = vpack.c.b16 %v5608, %v5608
        %v5625 = vpack.c.b16 %v5609, %v5609
        %v5626 = vpack.c.b16 %v5610, %v5610
        %v5627 = vpack.c.b16 %v5611, %v5611
        %v5628 = vpack.c.b16 %v5612, %v5612
        %v5630 = vunpack.c.l.b16 %v5421
        %v5631 = vpack.c.b16 %v5630, %v5630
        %v5633 = vunpack.c.l.b16 %v5424
        %v5634 = vpack.c.b16 %v5633, %v5633
        %vm5635 = vsmask.f32 7424
        %v5637 = vshrl.u32 %v5489, 16
        %v5639 = vshll.u32 %v5489, 16
        %v5641 = vrot.slane %v5639, 1
        %v5642 = vor.u32 %v5637, %v5641
        %v5644 = vshll.u32 %v5613, 16
        %v5646 = vrot.slane %v5644, 1
        %v5647 = vsel %vm5635, %v5642, %v5646
        %v5649 = vshrl.u32 %v5490, 16
        %v5651 = vshll.u32 %v5490, 16
        %v5653 = vrot.slane %v5651, 1
        %v5654 = vor.u32 %v5649, %v5653
        %v5656 = vshll.u32 %v5614, 16
        %v5658 = vrot.slane %v5656, 1
        %v5659 = vsel %vm5635, %v5654, %v5658
        %v5661 = vshrl.u32 %v5491, 16
        %v5663 = vshll.u32 %v5491, 16
        %v5665 = vrot.slane %v5663, 1
        %v5666 = vor.u32 %v5661, %v5665
        %v5668 = vshll.u32 %v5615, 16
        %v5670 = vrot.slane %v5668, 1
        %v5671 = vsel %vm5635, %v5666, %v5670
        %v5673 = vshrl.u32 %v5492, 16
        %v5675 = vshll.u32 %v5492, 16
        %v5677 = vrot.slane %v5675, 1
        %v5678 = vor.u32 %v5673, %v5677
        %v5680 = vshll.u32 %v5616, 16
        %v5682 = vrot.slane %v5680, 1
        %v5683 = vsel %vm5635, %v5678, %v5682
        %v5685 = vshrl.u32 %v5493, 16
        %v5687 = vshll.u32 %v5493, 16
        %v5689 = vrot.slane %v5687, 1
        %v5690 = vor.u32 %v5685, %v5689
        %v5692 = vshll.u32 %v5617, 16
        %v5694 = vrot.slane %v5692, 1
        %v5695 = vsel %vm5635, %v5690, %v5694
        %v5697 = vshrl.u32 %v5494, 16
        %v5699 = vshll.u32 %v5494, 16
        %v5701 = vrot.slane %v5699, 1
        %v5702 = vor.u32 %v5697, %v5701
        %v5704 = vshll.u32 %v5618, 16
        %v5706 = vrot.slane %v5704, 1
        %v5707 = vsel %vm5635, %v5702, %v5706
        %v5709 = vshrl.u32 %v5495, 16
        %v5711 = vshll.u32 %v5495, 16
        %v5713 = vrot.slane %v5711, 1
        %v5714 = vor.u32 %v5709, %v5713
        %v5716 = vshll.u32 %v5619, 16
        %v5718 = vrot.slane %v5716, 1
        %v5719 = vsel %vm5635, %v5714, %v5718
        %v5721 = vshrl.u32 %v5496, 16
        %v5723 = vshll.u32 %v5496, 16
        %v5725 = vrot.slane %v5723, 1
        %v5726 = vor.u32 %v5721, %v5725
        %v5728 = vshll.u32 %v5620, 16
        %v5730 = vrot.slane %v5728, 1
        %v5731 = vsel %vm5635, %v5726, %v5730
        %v5733 = vshrl.u32 %v5497, 16
        %v5735 = vshll.u32 %v5497, 16
        %v5737 = vrot.slane %v5735, 1
        %v5738 = vor.u32 %v5733, %v5737
        %v5740 = vshll.u32 %v5621, 16
        %v5742 = vrot.slane %v5740, 1
        %v5743 = vsel %vm5635, %v5738, %v5742
        %v5745 = vshrl.u32 %v5498, 16
        %v5747 = vshll.u32 %v5498, 16
        %v5749 = vrot.slane %v5747, 1
        %v5750 = vor.u32 %v5745, %v5749
        %v5752 = vshll.u32 %v5622, 16
        %v5754 = vrot.slane %v5752, 1
        %v5755 = vsel %vm5635, %v5750, %v5754
        %v5757 = vshrl.u32 %v5499, 16
        %v5759 = vshll.u32 %v5499, 16
        %v5761 = vrot.slane %v5759, 1
        %v5762 = vor.u32 %v5757, %v5761
        %v5764 = vshll.u32 %v5623, 16
        %v5766 = vrot.slane %v5764, 1
        %v5767 = vsel %vm5635, %v5762, %v5766
        %v5769 = vshrl.u32 %v5500, 16
        %v5771 = vshll.u32 %v5500, 16
        %v5773 = vrot.slane %v5771, 1
        %v5774 = vor.u32 %v5769, %v5773
        %v5776 = vshll.u32 %v5624, 16
        %v5778 = vrot.slane %v5776, 1
        %v5779 = vsel %vm5635, %v5774, %v5778
        %v5781 = vshrl.u32 %v5501, 16
        %v5783 = vshll.u32 %v5501, 16
        %v5785 = vrot.slane %v5783, 1
        %v5786 = vor.u32 %v5781, %v5785
        %v5788 = vshll.u32 %v5625, 16
        %v5790 = vrot.slane %v5788, 1
        %v5791 = vsel %vm5635, %v5786, %v5790
        %v5793 = vshrl.u32 %v5502, 16
        %v5795 = vshll.u32 %v5502, 16
        %v5797 = vrot.slane %v5795, 1
        %v5798 = vor.u32 %v5793, %v5797
        %v5800 = vshll.u32 %v5626, 16
        %v5802 = vrot.slane %v5800, 1
        %v5803 = vsel %vm5635, %v5798, %v5802
        %v5805 = vshrl.u32 %v5503, 16
        %v5807 = vshll.u32 %v5503, 16
        %v5809 = vrot.slane %v5807, 1
        %v5810 = vor.u32 %v5805, %v5809
        %v5812 = vshll.u32 %v5627, 16
        %v5814 = vrot.slane %v5812, 1
        %v5815 = vsel %vm5635, %v5810, %v5814
        %v5817 = vshrl.u32 %v5504, 16
        %v5819 = vshll.u32 %v5504, 16
        %v5821 = vrot.slane %v5819, 1
        %v5822 = vor.u32 %v5817, %v5821
        %v5824 = vshll.u32 %v5628, 16
        %v5826 = vrot.slane %v5824, 1
        %v5827 = vsel %vm5635, %v5822, %v5826
        %v5829 = vshrl.u32 %v5525, 16
        %v5831 = vshll.u32 %v5525, 16
        %v5833 = vrot.slane %v5831, 1
        %v5834 = vor.u32 %v5829, %v5833
        %v5836 = vshll.u32 %v5631, 16
        %v5838 = vrot.slane %v5836, 1
        %v5839 = vsel %vm5635, %v5834, %v5838
        %v5841 = vshrl.u32 %v5531, 16
        %v5843 = vshll.u32 %v5531, 16
        %v5845 = vrot.slane %v5843, 1
        %v5846 = vor.u32 %v5841, %v5845
        %v5848 = vshll.u32 %v5634, 16
        %v5850 = vrot.slane %v5848, 1
        %v5851 = vsel %vm5635, %v5846, %v5850
        %s5870 = scalar_lea.vmem %s3, 192
        %v5871 = vld [vmem:[%s5870] sm:$0xf]
        %v5872 = vld [vmem:[%s5870 + $0x4] sm:$0xf]
        %v5873 = vld [vmem:[%s5870 + $0x8] sm:$0xf]
        %v5874 = vld [vmem:[%s5870 + $0xc] sm:$0xf]
        %v5875 = vld [vmem:[%s5870 + $0x10] sm:$0xf]
        %v5876 = vld [vmem:[%s5870 + $0x14] sm:$0xf]
        %v5877 = vld [vmem:[%s5870 + $0x18] sm:$0xf]
        %v5878 = vld [vmem:[%s5870 + $0x1c] sm:$0xf]
        %v5879 = vld [vmem:[%s5870 + $0x20] sm:$0xf]
        %v5880 = vld [vmem:[%s5870 + $0x24] sm:$0xf]
        %v5881 = vld [vmem:[%s5870 + $0x28] sm:$0xf]
        %v5882 = vld [vmem:[%s5870 + $0x2c] sm:$0xf]
        %v5883 = vld [vmem:[%s5870 + $0x30] sm:$0xf]
        %v5884 = vld [vmem:[%s5870 + $0x34] sm:$0xf]
        %v5885 = vld [vmem:[%s5870 + $0x38] sm:$0xf]
        %v5886 = vld [vmem:[%s5870 + $0x3c] sm:$0xf]
        %v5887 = vld [vmem:[%s5870 + $0x40] sm:$0xf]
        %v5888 = vld [vmem:[%s5870 + $0x44] sm:$0xf]
        %v5889 = vld [vmem:[%s5870 + $0x48] sm:$0xf]
        %v5890 = vld [vmem:[%s5870 + $0x4c] sm:$0xf]
        %v5891 = vld [vmem:[%s5870 + $0x50] sm:$0xf]
        %v5892 = vld [vmem:[%s5870 + $0x54] sm:$0xf]
        %v5893 = vld [vmem:[%s5870 + $0x58] sm:$0xf]
        %v5894 = vld [vmem:[%s5870 + $0x5c] sm:$0xf]
        %v5895 = vld [vmem:[%s5870 + $0x60] sm:$0xf]
        %v5896 = vld [vmem:[%s5870 + $0x64] sm:$0xf]
        %v5897 = vld [vmem:[%s5870 + $0x68] sm:$0xf]
        %v5898 = vld [vmem:[%s5870 + $0x6c] sm:$0xf]
        %v5899 = vld [vmem:[%s5870 + $0x70] sm:$0xf]
        %v5900 = vld [vmem:[%s5870 + $0x74] sm:$0xf]
        %v5901 = vld [vmem:[%s5870 + $0x78] sm:$0xf]
        %v5902 = vld [vmem:[%s5870 + $0x7c] sm:$0xf]
        %v5903 = vld [vmem:[%s5870 + $0x80] sm:$0xf]
        %v5904 = vld [vmem:[%s5870 + $0x84] sm:$0xf]
        %v5905 = vld [vmem:[%s5870 + $0x88] sm:$0xf]
        %v5906 = vld [vmem:[%s5870 + $0x8c] sm:$0xf]
        %v5907 = vld [vmem:[%s5870 + $0x90] sm:$0xf]
        %v5908 = vld [vmem:[%s5870 + $0x94] sm:$0xf]
        %v5909 = vld [vmem:[%s5870 + $0x98] sm:$0xf]
        %v5910 = vld [vmem:[%s5870 + $0x9c] sm:$0xf]
        %v5911 = vld [vmem:[%s5870 + $0xa0] sm:$0xf]
        %v5912 = vld [vmem:[%s5870 + $0xa4] sm:$0xf]
        %v5913 = vld [vmem:[%s5870 + $0xa8] sm:$0xf]
        %v5914 = vld [vmem:[%s5870 + $0xac] sm:$0xf]
        %v5915 = vld [vmem:[%s5870 + $0xb0] sm:$0xf]
        %v5916 = vld [vmem:[%s5870 + $0xb4] sm:$0xf]
        %v5917 = vld [vmem:[%s5870 + $0xb8] sm:$0xf]
        %v5918 = vld [vmem:[%s5870 + $0xbc] sm:$0xf]
        %v5967 = vunpack.c.l.b16 %v5871
        %v5968 = vunpack.c.l.b16 %v5872
        %v5969 = vunpack.c.l.b16 %v5873
        %v5970 = vunpack.c.l.b16 %v5874
        %v5971 = vunpack.c.l.b16 %v5875
        %v5972 = vunpack.c.l.b16 %v5876
        %v5973 = vunpack.c.l.b16 %v5877
        %v5974 = vunpack.c.l.b16 %v5878
        %v5975 = vunpack.c.l.b16 %v5879
        %v5976 = vunpack.c.l.b16 %v5880
        %v5977 = vunpack.c.l.b16 %v5881
        %v5978 = vunpack.c.l.b16 %v5882
        %v5979 = vunpack.c.l.b16 %v5883
        %v5980 = vunpack.c.l.b16 %v5884
        %v5981 = vunpack.c.l.b16 %v5885
        %v5982 = vunpack.c.l.b16 %v5886
        %v5983 = vunpack.c.l.b16 %v5887
        %v5984 = vunpack.c.l.b16 %v5888
        %v5985 = vunpack.c.l.b16 %v5889
        %v5986 = vunpack.c.l.b16 %v5890
        %v5987 = vunpack.c.l.b16 %v5891
        %v5988 = vunpack.c.l.b16 %v5892
        %v5989 = vunpack.c.l.b16 %v5893
        %v5990 = vunpack.c.l.b16 %v5894
        %v5991 = vunpack.c.l.b16 %v5895
        %v5992 = vunpack.c.l.b16 %v5896
        %v5993 = vunpack.c.l.b16 %v5897
        %v5994 = vunpack.c.l.b16 %v5898
        %v5995 = vunpack.c.l.b16 %v5899
        %v5996 = vunpack.c.l.b16 %v5900
        %v5997 = vunpack.c.l.b16 %v5901
        %v5998 = vunpack.c.l.b16 %v5902
        %v5999 = vunpack.c.l.b16 %v5903
        %v6000 = vunpack.c.l.b16 %v5904
        %v6001 = vunpack.c.l.b16 %v5905
        %v6002 = vunpack.c.l.b16 %v5906
        %v6003 = vunpack.c.l.b16 %v5907
        %v6004 = vunpack.c.l.b16 %v5908
        %v6005 = vunpack.c.l.b16 %v5909
        %v6006 = vunpack.c.l.b16 %v5910
        %v6007 = vunpack.c.l.b16 %v5911
        %v6008 = vunpack.c.l.b16 %v5912
        %v6009 = vunpack.c.l.b16 %v5913
        %v6010 = vunpack.c.l.b16 %v5914
        %v6011 = vunpack.c.l.b16 %v5915
        %v6012 = vunpack.c.l.b16 %v5916
        %v6013 = vunpack.c.l.b16 %v5917
        %v6014 = vunpack.c.l.b16 %v5918
        %v6015 = vpack.c.b16 %v5968, %v5967
        %v6016 = vpack.c.b16 %v5970, %v5969
        %v6017 = vpack.c.b16 %v5972, %v5971
        %v6018 = vpack.c.b16 %v5974, %v5973
        %v6019 = vpack.c.b16 %v5976, %v5975
        %v6020 = vpack.c.b16 %v5978, %v5977
        %v6021 = vpack.c.b16 %v5980, %v5979
        %v6022 = vpack.c.b16 %v5982, %v5981
        %v6023 = vpack.c.b16 %v5984, %v5983
        %v6024 = vpack.c.b16 %v5986, %v5985
        %v6025 = vpack.c.b16 %v5988, %v5987
        %v6026 = vpack.c.b16 %v5990, %v5989
        %v6027 = vpack.c.b16 %v5992, %v5991
        %v6028 = vpack.c.b16 %v5994, %v5993
        %v6029 = vpack.c.b16 %v5996, %v5995
        %v6030 = vpack.c.b16 %v5998, %v5997
        %v6031 = vpack.c.b16 %v6000, %v5999
        %v6032 = vpack.c.b16 %v6002, %v6001
        %v6033 = vpack.c.b16 %v6004, %v6003
        %v6034 = vpack.c.b16 %v6006, %v6005
        %v6035 = vpack.c.b16 %v6008, %v6007
        %v6036 = vpack.c.b16 %v6010, %v6009
        %v6037 = vpack.c.b16 %v6012, %v6011
        %v6038 = vpack.c.b16 %v6014, %v6013
        %6063 = vmatpush.bf16.msra.mxu0 %v6022
        %6064 = vmatpush.bf16.msra.mxu0 %v6021
        %6065 = vmatpush.bf16.msra.mxu0 %v6020
        %6066 = vmatpush.bf16.msra.mxu0 %v6019
        %6067 = vmatpush.bf16.msra.mxu0 %v6018
        %6068 = vmatpush.bf16.msra.mxu0 %v6017
        %6069 = vmatpush.bf16.msra.mxu0 %v6016
        %6070 = vmatpush.bf16.msra.mxu0 %v6015
        %6071 = vmatmul.bf16.gmra.mxu0 %v5647
        %v6072 = vpop.f32.mrf.mxu0
        %v6073 = vadd.f32 0.0, %v6072
        %v6074 = vpop.f32.mrf.mxu0
        %v6075 = vadd.f32 0.0, %v6074
        %6076 = vmatmul.bf16.gmra.mxu0 %v5659
        %v6077 = vpop.f32.mrf.mxu0
        %v6078 = vadd.f32 0.0, %v6077
        %v6079 = vpop.f32.mrf.mxu0
        %v6080 = vadd.f32 0.0, %v6079
        %6081 = vmatmul.bf16.gmra.mxu0 %v5671
        %v6082 = vpop.f32.mrf.mxu0
        %v6083 = vadd.f32 0.0, %v6082
        %v6084 = vpop.f32.mrf.mxu0
        %v6085 = vadd.f32 0.0, %v6084
        %6086 = vmatmul.bf16.gmra.mxu0 %v5683
        %v6087 = vpop.f32.mrf.mxu0
        %v6088 = vadd.f32 0.0, %v6087
        %v6089 = vpop.f32.mrf.mxu0
        %v6090 = vadd.f32 0.0, %v6089
        %6091 = vmatmul.bf16.gmra.mxu0 %v5695
        %v6092 = vpop.f32.mrf.mxu0
        %v6093 = vadd.f32 0.0, %v6092
        %v6094 = vpop.f32.mrf.mxu0
        %v6095 = vadd.f32 0.0, %v6094
        %6096 = vmatmul.bf16.gmra.mxu0 %v5707
        %v6097 = vpop.f32.mrf.mxu0
        %v6098 = vadd.f32 0.0, %v6097
        %v6099 = vpop.f32.mrf.mxu0
        %v6100 = vadd.f32 0.0, %v6099
        %6101 = vmatmul.bf16.gmra.mxu0 %v5719
        %v6102 = vpop.f32.mrf.mxu0
        %v6103 = vadd.f32 0.0, %v6102
        %v6104 = vpop.f32.mrf.mxu0
        %v6105 = vadd.f32 0.0, %v6104
        %6106 = vmatmul.bf16.gmra.mxu0 %v5731
        %v6107 = vpop.f32.mrf.mxu0
        %v6108 = vadd.f32 0.0, %v6107
        %v6109 = vpop.f32.mrf.mxu0
        %v6110 = vadd.f32 0.0, %v6109
        %6111 = vmatmul.bf16.gmra.mxu0 %v5743
        %v6112 = vpop.f32.mrf.mxu0
        %v6113 = vadd.f32 0.0, %v6112
        %v6114 = vpop.f32.mrf.mxu0
        %v6115 = vadd.f32 0.0, %v6114
        %6116 = vmatmul.bf16.gmra.mxu0 %v5755
        %v6117 = vpop.f32.mrf.mxu0
        %v6118 = vadd.f32 0.0, %v6117
        %v6119 = vpop.f32.mrf.mxu0
        %v6120 = vadd.f32 0.0, %v6119
        %6121 = vmatmul.bf16.gmra.mxu0 %v5767
        %v6122 = vpop.f32.mrf.mxu0
        %v6123 = vadd.f32 0.0, %v6122
        %v6124 = vpop.f32.mrf.mxu0
        %v6125 = vadd.f32 0.0, %v6124
        %6126 = vmatmul.bf16.gmra.mxu0 %v5779
        %v6127 = vpop.f32.mrf.mxu0
        %v6128 = vadd.f32 0.0, %v6127
        %v6129 = vpop.f32.mrf.mxu0
        %v6130 = vadd.f32 0.0, %v6129
        %6131 = vmatmul.bf16.gmra.mxu0 %v5791
        %v6132 = vpop.f32.mrf.mxu0
        %v6133 = vadd.f32 0.0, %v6132
        %v6134 = vpop.f32.mrf.mxu0
        %v6135 = vadd.f32 0.0, %v6134
        %6136 = vmatmul.bf16.gmra.mxu0 %v5803
        %v6137 = vpop.f32.mrf.mxu0
        %v6138 = vadd.f32 0.0, %v6137
        %v6139 = vpop.f32.mrf.mxu0
        %v6140 = vadd.f32 0.0, %v6139
        %6141 = vmatmul.bf16.gmra.mxu0 %v5815
        %v6142 = vpop.f32.mrf.mxu0
        %v6143 = vadd.f32 0.0, %v6142
        %v6144 = vpop.f32.mrf.mxu0
        %v6145 = vadd.f32 0.0, %v6144
        %6146 = vmatmul.bf16.gmra.mxu0 %v5827
        %v6147 = vpop.f32.mrf.mxu0
        %v6148 = vadd.f32 0.0, %v6147
        %v6149 = vpop.f32.mrf.mxu0
        %v6150 = vadd.f32 0.0, %v6149
        %6151 = vdwg.mxu0
        %6152 = vmatpush.bf16.msra.mxu0 %v6030
        %6153 = vmatpush.bf16.msra.mxu0 %v6029
        %6154 = vmatpush.bf16.msra.mxu0 %v6028
        %6155 = vmatpush.bf16.msra.mxu0 %v6027
        %6156 = vmatpush.bf16.msra.mxu0 %v6026
        %6157 = vmatpush.bf16.msra.mxu0 %v6025
        %6158 = vmatpush.bf16.msra.mxu0 %v6024
        %6159 = vmatpush.bf16.msra.mxu0 %v6023
        %6160 = vmatmul.bf16.gmra.mxu0 %v5659
        %v6161 = vpop.f32.mrf.mxu0
        %v6162 = vadd.f32 %v6073, %v6161
        %v6163 = vpop.f32.mrf.mxu0
        %v6164 = vadd.f32 %v6075, %v6163
        %6165 = vmatmul.bf16.gmra.mxu0 %v5671
        %v6166 = vpop.f32.mrf.mxu0
        %v6167 = vadd.f32 %v6078, %v6166
        %v6168 = vpop.f32.mrf.mxu0
        %v6169 = vadd.f32 %v6080, %v6168
        %6170 = vmatmul.bf16.gmra.mxu0 %v5683
        %v6171 = vpop.f32.mrf.mxu0
        %v6172 = vadd.f32 %v6083, %v6171
        %v6173 = vpop.f32.mrf.mxu0
        %v6174 = vadd.f32 %v6085, %v6173
        %6175 = vmatmul.bf16.gmra.mxu0 %v5695
        %v6176 = vpop.f32.mrf.mxu0
        %v6177 = vadd.f32 %v6088, %v6176
        %v6178 = vpop.f32.mrf.mxu0
        %v6179 = vadd.f32 %v6090, %v6178
        %6180 = vmatmul.bf16.gmra.mxu0 %v5707
        %v6181 = vpop.f32.mrf.mxu0
        %v6182 = vadd.f32 %v6093, %v6181
        %v6183 = vpop.f32.mrf.mxu0
        %v6184 = vadd.f32 %v6095, %v6183
        %6185 = vmatmul.bf16.gmra.mxu0 %v5719
        %v6186 = vpop.f32.mrf.mxu0
        %v6187 = vadd.f32 %v6098, %v6186
        %v6188 = vpop.f32.mrf.mxu0
        %v6189 = vadd.f32 %v6100, %v6188
        %6190 = vmatmul.bf16.gmra.mxu0 %v5731
        %v6191 = vpop.f32.mrf.mxu0
        %v6192 = vadd.f32 %v6103, %v6191
        %v6193 = vpop.f32.mrf.mxu0
        %v6194 = vadd.f32 %v6105, %v6193
        %6195 = vmatmul.bf16.gmra.mxu0 %v5743
        %v6196 = vpop.f32.mrf.mxu0
        %v6197 = vadd.f32 %v6108, %v6196
        %v6198 = vpop.f32.mrf.mxu0
        %v6199 = vadd.f32 %v6110, %v6198
        %6200 = vmatmul.bf16.gmra.mxu0 %v5755
        %v6201 = vpop.f32.mrf.mxu0
        %v6202 = vadd.f32 %v6113, %v6201
        %v6203 = vpop.f32.mrf.mxu0
        %v6204 = vadd.f32 %v6115, %v6203
        %6205 = vmatmul.bf16.gmra.mxu0 %v5767
        %v6206 = vpop.f32.mrf.mxu0
        %v6207 = vadd.f32 %v6118, %v6206
        %v6208 = vpop.f32.mrf.mxu0
        %v6209 = vadd.f32 %v6120, %v6208
        %6210 = vmatmul.bf16.gmra.mxu0 %v5779
        %v6211 = vpop.f32.mrf.mxu0
        %v6212 = vadd.f32 %v6123, %v6211
        %v6213 = vpop.f32.mrf.mxu0
        %v6214 = vadd.f32 %v6125, %v6213
        %6215 = vmatmul.bf16.gmra.mxu0 %v5791
        %v6216 = vpop.f32.mrf.mxu0
        %v6217 = vadd.f32 %v6128, %v6216
        %v6218 = vpop.f32.mrf.mxu0
        %v6219 = vadd.f32 %v6130, %v6218
        %6220 = vmatmul.bf16.gmra.mxu0 %v5803
        %v6221 = vpop.f32.mrf.mxu0
        %v6222 = vadd.f32 %v6133, %v6221
        %v6223 = vpop.f32.mrf.mxu0
        %v6224 = vadd.f32 %v6135, %v6223
        %6225 = vmatmul.bf16.gmra.mxu0 %v5815
        %v6226 = vpop.f32.mrf.mxu0
        %v6227 = vadd.f32 %v6138, %v6226
        %v6228 = vpop.f32.mrf.mxu0
        %v6229 = vadd.f32 %v6140, %v6228
        %6230 = vmatmul.bf16.gmra.mxu0 %v5827
        %v6231 = vpop.f32.mrf.mxu0
        %v6232 = vadd.f32 %v6143, %v6231
        %v6233 = vpop.f32.mrf.mxu0
        %v6234 = vadd.f32 %v6145, %v6233
        %6235 = vmatmul.bf16.gmra.mxu0 %v5839
        %v6236 = vpop.f32.mrf.mxu0
        %v6237 = vadd.f32 %v6148, %v6236
        %v6238 = vpop.f32.mrf.mxu0
        %v6239 = vadd.f32 %v6150, %v6238
        %6240 = vdwg.mxu0
        %6241 = vmatpush.bf16.msra.mxu0 %v6038
        %6242 = vmatpush.bf16.msra.mxu0 %v6037
        %6243 = vmatpush.bf16.msra.mxu0 %v6036
        %6244 = vmatpush.bf16.msra.mxu0 %v6035
        %6245 = vmatpush.bf16.msra.mxu0 %v6034
        %6246 = vmatpush.bf16.msra.mxu0 %v6033
        %6247 = vmatpush.bf16.msra.mxu0 %v6032
        %6248 = vmatpush.bf16.msra.mxu0 %v6031
        %6249 = vmatmul.bf16.gmra.mxu0 %v5671
        %v6250 = vpop.f32.mrf.mxu0
        %v6251 = vadd.f32 %v6162, %v6250
        %v6252 = vpop.f32.mrf.mxu0
        %v6253 = vadd.f32 %v6164, %v6252
        %6254 = vmatmul.bf16.gmra.mxu0 %v5683
        %v6255 = vpop.f32.mrf.mxu0
        %v6256 = vadd.f32 %v6167, %v6255
        %v6257 = vpop.f32.mrf.mxu0
        %v6258 = vadd.f32 %v6169, %v6257
        %6259 = vmatmul.bf16.gmra.mxu0 %v5695
        %v6260 = vpop.f32.mrf.mxu0
        %v6261 = vadd.f32 %v6172, %v6260
        %v6262 = vpop.f32.mrf.mxu0
        %v6263 = vadd.f32 %v6174, %v6262
        %6264 = vmatmul.bf16.gmra.mxu0 %v5707
        %v6265 = vpop.f32.mrf.mxu0
        %v6266 = vadd.f32 %v6177, %v6265
        %v6267 = vpop.f32.mrf.mxu0
        %v6268 = vadd.f32 %v6179, %v6267
        %6269 = vmatmul.bf16.gmra.mxu0 %v5719
        %v6270 = vpop.f32.mrf.mxu0
        %v6271 = vadd.f32 %v6182, %v6270
        %v6272 = vpop.f32.mrf.mxu0
        %v6273 = vadd.f32 %v6184, %v6272
        %6274 = vmatmul.bf16.gmra.mxu0 %v5731
        %v6275 = vpop.f32.mrf.mxu0
        %v6276 = vadd.f32 %v6187, %v6275
        %v6277 = vpop.f32.mrf.mxu0
        %v6278 = vadd.f32 %v6189, %v6277
        %6279 = vmatmul.bf16.gmra.mxu0 %v5743
        %v6280 = vpop.f32.mrf.mxu0
        %v6281 = vadd.f32 %v6192, %v6280
        %v6282 = vpop.f32.mrf.mxu0
        %v6283 = vadd.f32 %v6194, %v6282
        %6284 = vmatmul.bf16.gmra.mxu0 %v5755
        %v6285 = vpop.f32.mrf.mxu0
        %v6286 = vadd.f32 %v6197, %v6285
        %v6287 = vpop.f32.mrf.mxu0
        %v6288 = vadd.f32 %v6199, %v6287
        %6289 = vmatmul.bf16.gmra.mxu0 %v5767
        %v6290 = vpop.f32.mrf.mxu0
        %v6291 = vadd.f32 %v6202, %v6290
        %v6292 = vpop.f32.mrf.mxu0
        %v6293 = vadd.f32 %v6204, %v6292
        %6294 = vmatmul.bf16.gmra.mxu0 %v5779
        %v6295 = vpop.f32.mrf.mxu0
        %v6296 = vadd.f32 %v6207, %v6295
        %v6297 = vpop.f32.mrf.mxu0
        %v6298 = vadd.f32 %v6209, %v6297
        %6299 = vmatmul.bf16.gmra.mxu0 %v5791
        %v6300 = vpop.f32.mrf.mxu0
        %v6301 = vadd.f32 %v6212, %v6300
        %v6302 = vpop.f32.mrf.mxu0
        %v6303 = vadd.f32 %v6214, %v6302
        %6304 = vmatmul.bf16.gmra.mxu0 %v5803
        %v6305 = vpop.f32.mrf.mxu0
        %v6306 = vadd.f32 %v6217, %v6305
        %v6307 = vpop.f32.mrf.mxu0
        %v6308 = vadd.f32 %v6219, %v6307
        %6309 = vmatmul.bf16.gmra.mxu0 %v5815
        %v6310 = vpop.f32.mrf.mxu0
        %v6311 = vadd.f32 %v6222, %v6310
        %v6312 = vpop.f32.mrf.mxu0
        %v6313 = vadd.f32 %v6224, %v6312
        %6314 = vmatmul.bf16.gmra.mxu0 %v5827
        %v6315 = vpop.f32.mrf.mxu0
        %v6316 = vadd.f32 %v6227, %v6315
        %v6317 = vpop.f32.mrf.mxu0
        %v6318 = vadd.f32 %v6229, %v6317
        %6319 = vmatmul.bf16.gmra.mxu0 %v5839
        %v6320 = vpop.f32.mrf.mxu0
        %v6321 = vadd.f32 %v6232, %v6320
        %v6322 = vpop.f32.mrf.mxu0
        %v6323 = vadd.f32 %v6234, %v6322
        %6324 = vmatmul.bf16.gmra.mxu0 %v5851
        %v6325 = vpop.f32.mrf.mxu0
        %v6326 = vadd.f32 %v6237, %v6325
        %v6327 = vpop.f32.mrf.mxu0
        %v6328 = vadd.f32 %v6239, %v6327
        %6329 = vdwg.mxu0
        %v6378 = vunpack.c.l.b16 %v5533
        %v6379 = vunpack.c.l.b16 %v5534
        %v6380 = vunpack.c.l.b16 %v5535
        %v6381 = vunpack.c.l.b16 %v5536
        %v6382 = vunpack.c.l.b16 %v5537
        %v6383 = vunpack.c.l.b16 %v5538
        %v6384 = vunpack.c.l.b16 %v5539
        %v6385 = vunpack.c.l.b16 %v5540
        %v6386 = vunpack.c.l.b16 %v5541
        %v6387 = vunpack.c.l.b16 %v5542
        %v6388 = vunpack.c.l.b16 %v5543
        %v6389 = vunpack.c.l.b16 %v5544
        %v6390 = vunpack.c.l.b16 %v5545
        %v6391 = vunpack.c.l.b16 %v5546
        %v6392 = vunpack.c.l.b16 %v5547
        %v6393 = vunpack.c.l.b16 %v5548
        %v6394 = vunpack.c.l.b16 %v5549
        %v6395 = vunpack.c.l.b16 %v5550
        %v6396 = vunpack.c.l.b16 %v5551
        %v6397 = vunpack.c.l.b16 %v5552
        %v6398 = vunpack.c.l.b16 %v5553
        %v6399 = vunpack.c.l.b16 %v5554
        %v6400 = vunpack.c.l.b16 %v5555
        %v6401 = vunpack.c.l.b16 %v5556
        %v6402 = vunpack.c.l.b16 %v5557
        %v6403 = vunpack.c.l.b16 %v5558
        %v6404 = vunpack.c.l.b16 %v5559
        %v6405 = vunpack.c.l.b16 %v5560
        %v6406 = vunpack.c.l.b16 %v5561
        %v6407 = vunpack.c.l.b16 %v5562
        %v6408 = vunpack.c.l.b16 %v5563
        %v6409 = vunpack.c.l.b16 %v5564
        %v6410 = vunpack.c.l.b16 %v5565
        %v6411 = vunpack.c.l.b16 %v5566
        %v6412 = vunpack.c.l.b16 %v5567
        %v6413 = vunpack.c.l.b16 %v5568
        %v6414 = vunpack.c.l.b16 %v5569
        %v6415 = vunpack.c.l.b16 %v5570
        %v6416 = vunpack.c.l.b16 %v5571
        %v6417 = vunpack.c.l.b16 %v5572
        %v6418 = vunpack.c.l.b16 %v5573
        %v6419 = vunpack.c.l.b16 %v5574
        %v6420 = vunpack.c.l.b16 %v5575
        %v6421 = vunpack.c.l.b16 %v5576
        %v6422 = vunpack.c.l.b16 %v5577
        %v6423 = vunpack.c.l.b16 %v5578
        %v6424 = vunpack.c.l.b16 %v5579
        %v6425 = vunpack.c.l.b16 %v5580
        %v6426 = vpack.c.b16 %v6379, %v6378
        %v6427 = vpack.c.b16 %v6381, %v6380
        %v6428 = vpack.c.b16 %v6383, %v6382
        %v6429 = vpack.c.b16 %v6385, %v6384
        %v6430 = vpack.c.b16 %v6387, %v6386
        %v6431 = vpack.c.b16 %v6389, %v6388
        %v6432 = vpack.c.b16 %v6391, %v6390
        %v6433 = vpack.c.b16 %v6393, %v6392
        %v6434 = vpack.c.b16 %v6395, %v6394
        %v6435 = vpack.c.b16 %v6397, %v6396
        %v6436 = vpack.c.b16 %v6399, %v6398
        %v6437 = vpack.c.b16 %v6401, %v6400
        %v6438 = vpack.c.b16 %v6403, %v6402
        %v6439 = vpack.c.b16 %v6405, %v6404
        %v6440 = vpack.c.b16 %v6407, %v6406
        %v6441 = vpack.c.b16 %v6409, %v6408
        %v6442 = vpack.c.b16 %v6411, %v6410
        %v6443 = vpack.c.b16 %v6413, %v6412
        %v6444 = vpack.c.b16 %v6415, %v6414
        %v6445 = vpack.c.b16 %v6417, %v6416
        %v6446 = vpack.c.b16 %v6419, %v6418
        %v6447 = vpack.c.b16 %v6421, %v6420
        %v6448 = vpack.c.b16 %v6423, %v6422
        %v6449 = vpack.c.b16 %v6425, %v6424
        %6474 = vmatpush.bf16.msra.mxu0 %v6433
        %6475 = vmatpush.bf16.msra.mxu0 %v6432
        %6476 = vmatpush.bf16.msra.mxu0 %v6431
        %6477 = vmatpush.bf16.msra.mxu0 %v6430
        %6478 = vmatpush.bf16.msra.mxu0 %v6429
        %6479 = vmatpush.bf16.msra.mxu0 %v6428
        %6480 = vmatpush.bf16.msra.mxu0 %v6427
        %6481 = vmatpush.bf16.msra.mxu0 %v6426
        %6482 = vmatmul.bf16.gmra.mxu0 %v5489
        %v6483 = vpop.f32.mrf.mxu0
        %v6484 = vadd.f32 %v6251, %v6483
        %v6485 = vpop.f32.mrf.mxu0
        %v6486 = vadd.f32 %v6253, %v6485
        %6487 = vmatmul.bf16.gmra.mxu0 %v5490
        %v6488 = vpop.f32.mrf.mxu0
        %v6489 = vadd.f32 %v6256, %v6488
        %v6490 = vpop.f32.mrf.mxu0
        %v6491 = vadd.f32 %v6258, %v6490
        %6492 = vmatmul.bf16.gmra.mxu0 %v5491
        %v6493 = vpop.f32.mrf.mxu0
        %v6494 = vadd.f32 %v6261, %v6493
        %v6495 = vpop.f32.mrf.mxu0
        %v6496 = vadd.f32 %v6263, %v6495
        %6497 = vmatmul.bf16.gmra.mxu0 %v5492
        %v6498 = vpop.f32.mrf.mxu0
        %v6499 = vadd.f32 %v6266, %v6498
        %v6500 = vpop.f32.mrf.mxu0
        %v6501 = vadd.f32 %v6268, %v6500
        %6502 = vmatmul.bf16.gmra.mxu0 %v5493
        %v6503 = vpop.f32.mrf.mxu0
        %v6504 = vadd.f32 %v6271, %v6503
        %v6505 = vpop.f32.mrf.mxu0
        %v6506 = vadd.f32 %v6273, %v6505
        %6507 = vmatmul.bf16.gmra.mxu0 %v5494
        %v6508 = vpop.f32.mrf.mxu0
        %v6509 = vadd.f32 %v6276, %v6508
        %v6510 = vpop.f32.mrf.mxu0
        %v6511 = vadd.f32 %v6278, %v6510
        %6512 = vmatmul.bf16.gmra.mxu0 %v5495
        %v6513 = vpop.f32.mrf.mxu0
        %v6514 = vadd.f32 %v6281, %v6513
        %v6515 = vpop.f32.mrf.mxu0
        %v6516 = vadd.f32 %v6283, %v6515
        %6517 = vmatmul.bf16.gmra.mxu0 %v5496
        %v6518 = vpop.f32.mrf.mxu0
        %v6519 = vadd.f32 %v6286, %v6518
        %v6520 = vpop.f32.mrf.mxu0
        %v6521 = vadd.f32 %v6288, %v6520
        %6522 = vmatmul.bf16.gmra.mxu0 %v5497
        %v6523 = vpop.f32.mrf.mxu0
        %v6524 = vadd.f32 %v6291, %v6523
        %v6525 = vpop.f32.mrf.mxu0
        %v6526 = vadd.f32 %v6293, %v6525
        %6527 = vmatmul.bf16.gmra.mxu0 %v5498
        %v6528 = vpop.f32.mrf.mxu0
        %v6529 = vadd.f32 %v6296, %v6528
        %v6530 = vpop.f32.mrf.mxu0
        %v6531 = vadd.f32 %v6298, %v6530
        %6532 = vmatmul.bf16.gmra.mxu0 %v5499
        %v6533 = vpop.f32.mrf.mxu0
        %v6534 = vadd.f32 %v6301, %v6533
        %v6535 = vpop.f32.mrf.mxu0
        %v6536 = vadd.f32 %v6303, %v6535
        %6537 = vmatmul.bf16.gmra.mxu0 %v5500
        %v6538 = vpop.f32.mrf.mxu0
        %v6539 = vadd.f32 %v6306, %v6538
        %v6540 = vpop.f32.mrf.mxu0
        %v6541 = vadd.f32 %v6308, %v6540
        %6542 = vmatmul.bf16.gmra.mxu0 %v5501
        %v6543 = vpop.f32.mrf.mxu0
        %v6544 = vadd.f32 %v6311, %v6543
        %v6545 = vpop.f32.mrf.mxu0
        %v6546 = vadd.f32 %v6313, %v6545
        %6547 = vmatmul.bf16.gmra.mxu0 %v5502
        %v6548 = vpop.f32.mrf.mxu0
        %v6549 = vadd.f32 %v6316, %v6548
        %v6550 = vpop.f32.mrf.mxu0
        %v6551 = vadd.f32 %v6318, %v6550
        %6552 = vmatmul.bf16.gmra.mxu0 %v5503
        %v6553 = vpop.f32.mrf.mxu0
        %v6554 = vadd.f32 %v6321, %v6553
        %v6555 = vpop.f32.mrf.mxu0
        %v6556 = vadd.f32 %v6323, %v6555
        %6557 = vmatmul.bf16.gmra.mxu0 %v5504
        %v6558 = vpop.f32.mrf.mxu0
        %v6559 = vadd.f32 %v6326, %v6558
        %v6560 = vpop.f32.mrf.mxu0
        %v6561 = vadd.f32 %v6328, %v6560
        %6562 = vdwg.mxu0
        %6563 = vmatpush.bf16.msra.mxu0 %v6441
        %6564 = vmatpush.bf16.msra.mxu0 %v6440
        %6565 = vmatpush.bf16.msra.mxu0 %v6439
        %6566 = vmatpush.bf16.msra.mxu0 %v6438
        %6567 = vmatpush.bf16.msra.mxu0 %v6437
        %6568 = vmatpush.bf16.msra.mxu0 %v6436
        %6569 = vmatpush.bf16.msra.mxu0 %v6435
        %6570 = vmatpush.bf16.msra.mxu0 %v6434
        %6571 = vmatmul.bf16.gmra.mxu0 %v5490
        %v6572 = vpop.f32.mrf.mxu0
        %v6573 = vadd.f32 %v6484, %v6572
        %v6574 = vpop.f32.mrf.mxu0
        %v6575 = vadd.f32 %v6486, %v6574
        %6576 = vmatmul.bf16.gmra.mxu0 %v5491
        %v6577 = vpop.f32.mrf.mxu0
        %v6578 = vadd.f32 %v6489, %v6577
        %v6579 = vpop.f32.mrf.mxu0
        %v6580 = vadd.f32 %v6491, %v6579
        %6581 = vmatmul.bf16.gmra.mxu0 %v5492
        %v6582 = vpop.f32.mrf.mxu0
        %v6583 = vadd.f32 %v6494, %v6582
        %v6584 = vpop.f32.mrf.mxu0
        %v6585 = vadd.f32 %v6496, %v6584
        %6586 = vmatmul.bf16.gmra.mxu0 %v5493
        %v6587 = vpop.f32.mrf.mxu0
        %v6588 = vadd.f32 %v6499, %v6587
        %v6589 = vpop.f32.mrf.mxu0
        %v6590 = vadd.f32 %v6501, %v6589
        %6591 = vmatmul.bf16.gmra.mxu0 %v5494
        %v6592 = vpop.f32.mrf.mxu0
        %v6593 = vadd.f32 %v6504, %v6592
        %v6594 = vpop.f32.mrf.mxu0
        %v6595 = vadd.f32 %v6506, %v6594
        %6596 = vmatmul.bf16.gmra.mxu0 %v5495
        %v6597 = vpop.f32.mrf.mxu0
        %v6598 = vadd.f32 %v6509, %v6597
        %v6599 = vpop.f32.mrf.mxu0
        %v6600 = vadd.f32 %v6511, %v6599
        %6601 = vmatmul.bf16.gmra.mxu0 %v5496
        %v6602 = vpop.f32.mrf.mxu0
        %v6603 = vadd.f32 %v6514, %v6602
        %v6604 = vpop.f32.mrf.mxu0
        %v6605 = vadd.f32 %v6516, %v6604
        %6606 = vmatmul.bf16.gmra.mxu0 %v5497
        %v6607 = vpop.f32.mrf.mxu0
        %v6608 = vadd.f32 %v6519, %v6607
        %v6609 = vpop.f32.mrf.mxu0
        %v6610 = vadd.f32 %v6521, %v6609
        %6611 = vmatmul.bf16.gmra.mxu0 %v5498
        %v6612 = vpop.f32.mrf.mxu0
        %v6613 = vadd.f32 %v6524, %v6612
        %v6614 = vpop.f32.mrf.mxu0
        %v6615 = vadd.f32 %v6526, %v6614
        %6616 = vmatmul.bf16.gmra.mxu0 %v5499
        %v6617 = vpop.f32.mrf.mxu0
        %v6618 = vadd.f32 %v6529, %v6617
        %v6619 = vpop.f32.mrf.mxu0
        %v6620 = vadd.f32 %v6531, %v6619
        %6621 = vmatmul.bf16.gmra.mxu0 %v5500
        %v6622 = vpop.f32.mrf.mxu0
        %v6623 = vadd.f32 %v6534, %v6622
        %v6624 = vpop.f32.mrf.mxu0
        %v6625 = vadd.f32 %v6536, %v6624
        %6626 = vmatmul.bf16.gmra.mxu0 %v5501
        %v6627 = vpop.f32.mrf.mxu0
        %v6628 = vadd.f32 %v6539, %v6627
        %v6629 = vpop.f32.mrf.mxu0
        %v6630 = vadd.f32 %v6541, %v6629
        %6631 = vmatmul.bf16.gmra.mxu0 %v5502
        %v6632 = vpop.f32.mrf.mxu0
        %v6633 = vadd.f32 %v6544, %v6632
        %v6634 = vpop.f32.mrf.mxu0
        %v6635 = vadd.f32 %v6546, %v6634
        %6636 = vmatmul.bf16.gmra.mxu0 %v5503
        %v6637 = vpop.f32.mrf.mxu0
        %v6638 = vadd.f32 %v6549, %v6637
        %v6639 = vpop.f32.mrf.mxu0
        %v6640 = vadd.f32 %v6551, %v6639
        %6641 = vmatmul.bf16.gmra.mxu0 %v5504
        %v6642 = vpop.f32.mrf.mxu0
        %v6643 = vadd.f32 %v6554, %v6642
        %v6644 = vpop.f32.mrf.mxu0
        %v6645 = vadd.f32 %v6556, %v6644
        %6646 = vmatmul.bf16.gmra.mxu0 %v5525
        %v6647 = vpop.f32.mrf.mxu0
        %v6648 = vadd.f32 %v6559, %v6647
        %v6649 = vpop.f32.mrf.mxu0
        %v6650 = vadd.f32 %v6561, %v6649
        %6651 = vdwg.mxu0
        %6652 = vmatpush.bf16.msra.mxu0 %v6449
        %6653 = vmatpush.bf16.msra.mxu0 %v6448
        %6654 = vmatpush.bf16.msra.mxu0 %v6447
        %6655 = vmatpush.bf16.msra.mxu0 %v6446
        %6656 = vmatpush.bf16.msra.mxu0 %v6445
        %6657 = vmatpush.bf16.msra.mxu0 %v6444
        %6658 = vmatpush.bf16.msra.mxu0 %v6443
        %6659 = vmatpush.bf16.msra.mxu0 %v6442
        %6660 = vmatmul.bf16.gmra.mxu0 %v5491
        %v6661 = vpop.f32.mrf.mxu0
        %v6662 = vadd.f32 %v6573, %v6661
        %v6663 = vpop.f32.mrf.mxu0
        %v6664 = vadd.f32 %v6575, %v6663
        %6665 = vmatmul.bf16.gmra.mxu0 %v5492
        %v6666 = vpop.f32.mrf.mxu0
        %v6667 = vadd.f32 %v6578, %v6666
        %v6668 = vpop.f32.mrf.mxu0
        %v6669 = vadd.f32 %v6580, %v6668
        %6670 = vmatmul.bf16.gmra.mxu0 %v5493
        %v6671 = vpop.f32.mrf.mxu0
        %v6672 = vadd.f32 %v6583, %v6671
        %v6673 = vpop.f32.mrf.mxu0
        %v6674 = vadd.f32 %v6585, %v6673
        %6675 = vmatmul.bf16.gmra.mxu0 %v5494
        %v6676 = vpop.f32.mrf.mxu0
        %v6677 = vadd.f32 %v6588, %v6676
        %v6678 = vpop.f32.mrf.mxu0
        %v6679 = vadd.f32 %v6590, %v6678
        %6680 = vmatmul.bf16.gmra.mxu0 %v5495
        %v6681 = vpop.f32.mrf.mxu0
        %v6682 = vadd.f32 %v6593, %v6681
        %v6683 = vpop.f32.mrf.mxu0
        %v6684 = vadd.f32 %v6595, %v6683
        %6685 = vmatmul.bf16.gmra.mxu0 %v5496
        %v6686 = vpop.f32.mrf.mxu0
        %v6687 = vadd.f32 %v6598, %v6686
        %v6688 = vpop.f32.mrf.mxu0
        %v6689 = vadd.f32 %v6600, %v6688
        %6690 = vmatmul.bf16.gmra.mxu0 %v5497
        %v6691 = vpop.f32.mrf.mxu0
        %v6692 = vadd.f32 %v6603, %v6691
        %v6693 = vpop.f32.mrf.mxu0
        %v6694 = vadd.f32 %v6605, %v6693
        %6695 = vmatmul.bf16.gmra.mxu0 %v5498
        %v6696 = vpop.f32.mrf.mxu0
        %v6697 = vadd.f32 %v6608, %v6696
        %v6698 = vpop.f32.mrf.mxu0
        %v6699 = vadd.f32 %v6610, %v6698
        %6700 = vmatmul.bf16.gmra.mxu0 %v5499
        %v6701 = vpop.f32.mrf.mxu0
        %v6702 = vadd.f32 %v6613, %v6701
        %v6703 = vpop.f32.mrf.mxu0
        %v6704 = vadd.f32 %v6615, %v6703
        %6705 = vmatmul.bf16.gmra.mxu0 %v5500
        %v6706 = vpop.f32.mrf.mxu0
        %v6707 = vadd.f32 %v6618, %v6706
        %v6708 = vpop.f32.mrf.mxu0
        %v6709 = vadd.f32 %v6620, %v6708
        %6710 = vmatmul.bf16.gmra.mxu0 %v5501
        %v6711 = vpop.f32.mrf.mxu0
        %v6712 = vadd.f32 %v6623, %v6711
        %v6713 = vpop.f32.mrf.mxu0
        %v6714 = vadd.f32 %v6625, %v6713
        %6715 = vmatmul.bf16.gmra.mxu0 %v5502
        %v6716 = vpop.f32.mrf.mxu0
        %v6717 = vadd.f32 %v6628, %v6716
        %v6718 = vpop.f32.mrf.mxu0
        %v6719 = vadd.f32 %v6630, %v6718
        %6720 = vmatmul.bf16.gmra.mxu0 %v5503
        %v6721 = vpop.f32.mrf.mxu0
        %v6722 = vadd.f32 %v6633, %v6721
        %v6723 = vpop.f32.mrf.mxu0
        %v6724 = vadd.f32 %v6635, %v6723
        %6725 = vmatmul.bf16.gmra.mxu0 %v5504
        %v6726 = vpop.f32.mrf.mxu0
        %v6727 = vadd.f32 %v6638, %v6726
        %v6728 = vpop.f32.mrf.mxu0
        %v6729 = vadd.f32 %v6640, %v6728
        %6730 = vmatmul.bf16.gmra.mxu0 %v5525
        %v6731 = vpop.f32.mrf.mxu0
        %v6732 = vadd.f32 %v6643, %v6731
        %v6733 = vpop.f32.mrf.mxu0
        %v6734 = vadd.f32 %v6645, %v6733
        %6735 = vmatmul.bf16.gmra.mxu0 %v5531
        %v6736 = vpop.f32.mrf.mxu0
        %v6737 = vadd.f32 %v6648, %v6736
        %v6738 = vpop.f32.mrf.mxu0
        %v6739 = vadd.f32 %v6650, %v6738
        %6740 = vdwg.mxu0
        %vm6741 = vcmask 1046528
        %v6742 = vrot.slane %v5489, 1
        %v6743 = vrot.slane %v5613, 1
        %v6744 = vsel %vm6741, %v6742, %v6743
        %v6745 = vrot.slane %v5490, 1
        %v6746 = vrot.slane %v5614, 1
        %v6747 = vsel %vm6741, %v6745, %v6746
        %v6748 = vrot.slane %v5491, 1
        %v6749 = vrot.slane %v5615, 1
        %v6750 = vsel %vm6741, %v6748, %v6749
        %v6751 = vrot.slane %v5492, 1
        %v6752 = vrot.slane %v5616, 1
        %v6753 = vsel %vm6741, %v6751, %v6752
        %v6754 = vrot.slane %v5493, 1
        %v6755 = vrot.slane %v5617, 1
        %v6756 = vsel %vm6741, %v6754, %v6755
        %v6757 = vrot.slane %v5494, 1
        %v6758 = vrot.slane %v5618, 1
        %v6759 = vsel %vm6741, %v6757, %v6758
        %v6760 = vrot.slane %v5495, 1
        %v6761 = vrot.slane %v5619, 1
        %v6762 = vsel %vm6741, %v6760, %v6761
        %v6763 = vrot.slane %v5496, 1
        %v6764 = vrot.slane %v5620, 1
        %v6765 = vsel %vm6741, %v6763, %v6764
        %v6766 = vrot.slane %v5497, 1
        %v6767 = vrot.slane %v5621, 1
        %v6768 = vsel %vm6741, %v6766, %v6767
        %v6769 = vrot.slane %v5498, 1
        %v6770 = vrot.slane %v5622, 1
        %v6771 = vsel %vm6741, %v6769, %v6770
        %v6772 = vrot.slane %v5499, 1
        %v6773 = vrot.slane %v5623, 1
        %v6774 = vsel %vm6741, %v6772, %v6773
        %v6775 = vrot.slane %v5500, 1
        %v6776 = vrot.slane %v5624, 1
        %v6777 = vsel %vm6741, %v6775, %v6776
        %v6778 = vrot.slane %v5501, 1
        %v6779 = vrot.slane %v5625, 1
        %v6780 = vsel %vm6741, %v6778, %v6779
        %v6781 = vrot.slane %v5502, 1
        %v6782 = vrot.slane %v5626, 1
        %v6783 = vsel %vm6741, %v6781, %v6782
        %v6784 = vrot.slane %v5503, 1
        %v6785 = vrot.slane %v5627, 1
        %v6786 = vsel %vm6741, %v6784, %v6785
        %v6787 = vrot.slane %v5504, 1
        %v6788 = vrot.slane %v5628, 1
        %v6789 = vsel %vm6741, %v6787, %v6788
        %v6790 = vrot.slane %v5525, 1
        %v6791 = vrot.slane %v5631, 1
        %v6792 = vsel %vm6741, %v6790, %v6791
        %v6793 = vrot.slane %v5531, 1
        %v6794 = vrot.slane %v5634, 1
        %v6795 = vsel %vm6741, %v6793, %v6794
        %s6814 = scalar_lea.vmem %s3, 384
        %v6815 = vld [vmem:[%s6814] sm:$0xf]
        %v6816 = vld [vmem:[%s6814 + $0x4] sm:$0xf]
        %v6817 = vld [vmem:[%s6814 + $0x8] sm:$0xf]
        %v6818 = vld [vmem:[%s6814 + $0xc] sm:$0xf]
        %v6819 = vld [vmem:[%s6814 + $0x10] sm:$0xf]
        %v6820 = vld [vmem:[%s6814 + $0x14] sm:$0xf]
        %v6821 = vld [vmem:[%s6814 + $0x18] sm:$0xf]
        %v6822 = vld [vmem:[%s6814 + $0x1c] sm:$0xf]
        %v6823 = vld [vmem:[%s6814 + $0x20] sm:$0xf]
        %v6824 = vld [vmem:[%s6814 + $0x24] sm:$0xf]
        %v6825 = vld [vmem:[%s6814 + $0x28] sm:$0xf]
        %v6826 = vld [vmem:[%s6814 + $0x2c] sm:$0xf]
        %v6827 = vld [vmem:[%s6814 + $0x30] sm:$0xf]
        %v6828 = vld [vmem:[%s6814 + $0x34] sm:$0xf]
        %v6829 = vld [vmem:[%s6814 + $0x38] sm:$0xf]
        %v6830 = vld [vmem:[%s6814 + $0x3c] sm:$0xf]
        %v6831 = vld [vmem:[%s6814 + $0x40] sm:$0xf]
        %v6832 = vld [vmem:[%s6814 + $0x44] sm:$0xf]
        %v6833 = vld [vmem:[%s6814 + $0x48] sm:$0xf]
        %v6834 = vld [vmem:[%s6814 + $0x4c] sm:$0xf]
        %v6835 = vld [vmem:[%s6814 + $0x50] sm:$0xf]
        %v6836 = vld [vmem:[%s6814 + $0x54] sm:$0xf]
        %v6837 = vld [vmem:[%s6814 + $0x58] sm:$0xf]
        %v6838 = vld [vmem:[%s6814 + $0x5c] sm:$0xf]
        %v6839 = vld [vmem:[%s6814 + $0x60] sm:$0xf]
        %v6840 = vld [vmem:[%s6814 + $0x64] sm:$0xf]
        %v6841 = vld [vmem:[%s6814 + $0x68] sm:$0xf]
        %v6842 = vld [vmem:[%s6814 + $0x6c] sm:$0xf]
        %v6843 = vld [vmem:[%s6814 + $0x70] sm:$0xf]
        %v6844 = vld [vmem:[%s6814 + $0x74] sm:$0xf]
        %v6845 = vld [vmem:[%s6814 + $0x78] sm:$0xf]
        %v6846 = vld [vmem:[%s6814 + $0x7c] sm:$0xf]
        %v6847 = vld [vmem:[%s6814 + $0x80] sm:$0xf]
        %v6848 = vld [vmem:[%s6814 + $0x84] sm:$0xf]
        %v6849 = vld [vmem:[%s6814 + $0x88] sm:$0xf]
        %v6850 = vld [vmem:[%s6814 + $0x8c] sm:$0xf]
        %v6851 = vld [vmem:[%s6814 + $0x90] sm:$0xf]
        %v6852 = vld [vmem:[%s6814 + $0x94] sm:$0xf]
        %v6853 = vld [vmem:[%s6814 + $0x98] sm:$0xf]
        %v6854 = vld [vmem:[%s6814 + $0x9c] sm:$0xf]
        %v6855 = vld [vmem:[%s6814 + $0xa0] sm:$0xf]
        %v6856 = vld [vmem:[%s6814 + $0xa4] sm:$0xf]
        %v6857 = vld [vmem:[%s6814 + $0xa8] sm:$0xf]
        %v6858 = vld [vmem:[%s6814 + $0xac] sm:$0xf]
        %v6859 = vld [vmem:[%s6814 + $0xb0] sm:$0xf]
        %v6860 = vld [vmem:[%s6814 + $0xb4] sm:$0xf]
        %v6861 = vld [vmem:[%s6814 + $0xb8] sm:$0xf]
        %v6862 = vld [vmem:[%s6814 + $0xbc] sm:$0xf]
        %v6911 = vunpack.c.l.b16 %v6815
        %v6912 = vunpack.c.l.b16 %v6816
        %v6913 = vunpack.c.l.b16 %v6817
        %v6914 = vunpack.c.l.b16 %v6818
        %v6915 = vunpack.c.l.b16 %v6819
        %v6916 = vunpack.c.l.b16 %v6820
        %v6917 = vunpack.c.l.b16 %v6821
        %v6918 = vunpack.c.l.b16 %v6822
        %v6919 = vunpack.c.l.b16 %v6823
        %v6920 = vunpack.c.l.b16 %v6824
        %v6921 = vunpack.c.l.b16 %v6825
        %v6922 = vunpack.c.l.b16 %v6826
        %v6923 = vunpack.c.l.b16 %v6827
        %v6924 = vunpack.c.l.b16 %v6828
        %v6925 = vunpack.c.l.b16 %v6829
        %v6926 = vunpack.c.l.b16 %v6830
        %v6927 = vunpack.c.l.b16 %v6831
        %v6928 = vunpack.c.l.b16 %v6832
        %v6929 = vunpack.c.l.b16 %v6833
        %v6930 = vunpack.c.l.b16 %v6834
        %v6931 = vunpack.c.l.b16 %v6835
        %v6932 = vunpack.c.l.b16 %v6836
        %v6933 = vunpack.c.l.b16 %v6837
        %v6934 = vunpack.c.l.b16 %v6838
        %v6935 = vunpack.c.l.b16 %v6839
        %v6936 = vunpack.c.l.b16 %v6840
        %v6937 = vunpack.c.l.b16 %v6841
        %v6938 = vunpack.c.l.b16 %v6842
        %v6939 = vunpack.c.l.b16 %v6843
        %v6940 = vunpack.c.l.b16 %v6844
        %v6941 = vunpack.c.l.b16 %v6845
        %v6942 = vunpack.c.l.b16 %v6846
        %v6943 = vunpack.c.l.b16 %v6847
        %v6944 = vunpack.c.l.b16 %v6848
        %v6945 = vunpack.c.l.b16 %v6849
        %v6946 = vunpack.c.l.b16 %v6850
        %v6947 = vunpack.c.l.b16 %v6851
        %v6948 = vunpack.c.l.b16 %v6852
        %v6949 = vunpack.c.l.b16 %v6853
        %v6950 = vunpack.c.l.b16 %v6854
        %v6951 = vunpack.c.l.b16 %v6855
        %v6952 = vunpack.c.l.b16 %v6856
        %v6953 = vunpack.c.l.b16 %v6857
        %v6954 = vunpack.c.l.b16 %v6858
        %v6955 = vunpack.c.l.b16 %v6859
        %v6956 = vunpack.c.l.b16 %v6860
        %v6957 = vunpack.c.l.b16 %v6861
        %v6958 = vunpack.c.l.b16 %v6862
        %v6959 = vpack.c.b16 %v6912, %v6911
        %v6960 = vpack.c.b16 %v6914, %v6913
        %v6961 = vpack.c.b16 %v6916, %v6915
        %v6962 = vpack.c.b16 %v6918, %v6917
        %v6963 = vpack.c.b16 %v6920, %v6919
        %v6964 = vpack.c.b16 %v6922, %v6921
        %v6965 = vpack.c.b16 %v6924, %v6923
        %v6966 = vpack.c.b16 %v6926, %v6925
        %v6967 = vpack.c.b16 %v6928, %v6927
        %v6968 = vpack.c.b16 %v6930, %v6929
        %v6969 = vpack.c.b16 %v6932, %v6931
        %v6970 = vpack.c.b16 %v6934, %v6933
        %v6971 = vpack.c.b16 %v6936, %v6935
        %v6972 = vpack.c.b16 %v6938, %v6937
        %v6973 = vpack.c.b16 %v6940, %v6939
        %v6974 = vpack.c.b16 %v6942, %v6941
        %v6975 = vpack.c.b16 %v6944, %v6943
        %v6976 = vpack.c.b16 %v6946, %v6945
        %v6977 = vpack.c.b16 %v6948, %v6947
        %v6978 = vpack.c.b16 %v6950, %v6949
        %v6979 = vpack.c.b16 %v6952, %v6951
        %v6980 = vpack.c.b16 %v6954, %v6953
        %v6981 = vpack.c.b16 %v6956, %v6955
        %v6982 = vpack.c.b16 %v6958, %v6957
        %7007 = vmatpush.bf16.msra.mxu0 %v6966
        %7008 = vmatpush.bf16.msra.mxu0 %v6965
        %7009 = vmatpush.bf16.msra.mxu0 %v6964
        %7010 = vmatpush.bf16.msra.mxu0 %v6963
        %7011 = vmatpush.bf16.msra.mxu0 %v6962
        %7012 = vmatpush.bf16.msra.mxu0 %v6961
        %7013 = vmatpush.bf16.msra.mxu0 %v6960
        %7014 = vmatpush.bf16.msra.mxu0 %v6959
        %7015 = vmatmul.bf16.gmra.mxu0 %v6744
        %v7016 = vpop.f32.mrf.mxu0
        %v7017 = vadd.f32 0.0, %v7016
        %v7018 = vpop.f32.mrf.mxu0
        %v7019 = vadd.f32 0.0, %v7018
        %7020 = vmatmul.bf16.gmra.mxu0 %v6747
        %v7021 = vpop.f32.mrf.mxu0
        %v7022 = vadd.f32 0.0, %v7021
        %v7023 = vpop.f32.mrf.mxu0
        %v7024 = vadd.f32 0.0, %v7023
        %7025 = vmatmul.bf16.gmra.mxu0 %v6750
        %v7026 = vpop.f32.mrf.mxu0
        %v7027 = vadd.f32 0.0, %v7026
        %v7028 = vpop.f32.mrf.mxu0
        %v7029 = vadd.f32 0.0, %v7028
        %7030 = vmatmul.bf16.gmra.mxu0 %v6753
        %v7031 = vpop.f32.mrf.mxu0
        %v7032 = vadd.f32 0.0, %v7031
        %v7033 = vpop.f32.mrf.mxu0
        %v7034 = vadd.f32 0.0, %v7033
        %7035 = vmatmul.bf16.gmra.mxu0 %v6756
        %v7036 = vpop.f32.mrf.mxu0
        %v7037 = vadd.f32 0.0, %v7036
        %v7038 = vpop.f32.mrf.mxu0
        %v7039 = vadd.f32 0.0, %v7038
        %7040 = vmatmul.bf16.gmra.mxu0 %v6759
        %v7041 = vpop.f32.mrf.mxu0
        %v7042 = vadd.f32 0.0, %v7041
        %v7043 = vpop.f32.mrf.mxu0
        %v7044 = vadd.f32 0.0, %v7043
        %7045 = vmatmul.bf16.gmra.mxu0 %v6762
        %v7046 = vpop.f32.mrf.mxu0
        %v7047 = vadd.f32 0.0, %v7046
        %v7048 = vpop.f32.mrf.mxu0
        %v7049 = vadd.f32 0.0, %v7048
        %7050 = vmatmul.bf16.gmra.mxu0 %v6765
        %v7051 = vpop.f32.mrf.mxu0
        %v7052 = vadd.f32 0.0, %v7051
        %v7053 = vpop.f32.mrf.mxu0
        %v7054 = vadd.f32 0.0, %v7053
        %7055 = vmatmul.bf16.gmra.mxu0 %v6768
        %v7056 = vpop.f32.mrf.mxu0
        %v7057 = vadd.f32 0.0, %v7056
        %v7058 = vpop.f32.mrf.mxu0
        %v7059 = vadd.f32 0.0, %v7058
        %7060 = vmatmul.bf16.gmra.mxu0 %v6771
        %v7061 = vpop.f32.mrf.mxu0
        %v7062 = vadd.f32 0.0, %v7061
        %v7063 = vpop.f32.mrf.mxu0
        %v7064 = vadd.f32 0.0, %v7063
        %7065 = vmatmul.bf16.gmra.mxu0 %v6774
        %v7066 = vpop.f32.mrf.mxu0
        %v7067 = vadd.f32 0.0, %v7066
        %v7068 = vpop.f32.mrf.mxu0
        %v7069 = vadd.f32 0.0, %v7068
        %7070 = vmatmul.bf16.gmra.mxu0 %v6777
        %v7071 = vpop.f32.mrf.mxu0
        %v7072 = vadd.f32 0.0, %v7071
        %v7073 = vpop.f32.mrf.mxu0
        %v7074 = vadd.f32 0.0, %v7073
        %7075 = vmatmul.bf16.gmra.mxu0 %v6780
        %v7076 = vpop.f32.mrf.mxu0
        %v7077 = vadd.f32 0.0, %v7076
        %v7078 = vpop.f32.mrf.mxu0
        %v7079 = vadd.f32 0.0, %v7078
        %7080 = vmatmul.bf16.gmra.mxu0 %v6783
        %v7081 = vpop.f32.mrf.mxu0
        %v7082 = vadd.f32 0.0, %v7081
        %v7083 = vpop.f32.mrf.mxu0
        %v7084 = vadd.f32 0.0, %v7083
        %7085 = vmatmul.bf16.gmra.mxu0 %v6786
        %v7086 = vpop.f32.mrf.mxu0
        %v7087 = vadd.f32 0.0, %v7086
        %v7088 = vpop.f32.mrf.mxu0
        %v7089 = vadd.f32 0.0, %v7088
        %7090 = vmatmul.bf16.gmra.mxu0 %v6789
        %v7091 = vpop.f32.mrf.mxu0
        %v7092 = vadd.f32 0.0, %v7091
        %v7093 = vpop.f32.mrf.mxu0
        %v7094 = vadd.f32 0.0, %v7093
        %7095 = vdwg.mxu0
        %7096 = vmatpush.bf16.msra.mxu0 %v6974
        %7097 = vmatpush.bf16.msra.mxu0 %v6973
        %7098 = vmatpush.bf16.msra.mxu0 %v6972
        %7099 = vmatpush.bf16.msra.mxu0 %v6971
        %7100 = vmatpush.bf16.msra.mxu0 %v6970
        %7101 = vmatpush.bf16.msra.mxu0 %v6969
        %7102 = vmatpush.bf16.msra.mxu0 %v6968
        %7103 = vmatpush.bf16.msra.mxu0 %v6967
        %7104 = vmatmul.bf16.gmra.mxu0 %v6747
        %v7105 = vpop.f32.mrf.mxu0
        %v7106 = vadd.f32 %v7017, %v7105
        %v7107 = vpop.f32.mrf.mxu0
        %v7108 = vadd.f32 %v7019, %v7107
        %7109 = vmatmul.bf16.gmra.mxu0 %v6750
        %v7110 = vpop.f32.mrf.mxu0
        %v7111 = vadd.f32 %v7022, %v7110
        %v7112 = vpop.f32.mrf.mxu0
        %v7113 = vadd.f32 %v7024, %v7112
        %7114 = vmatmul.bf16.gmra.mxu0 %v6753
        %v7115 = vpop.f32.mrf.mxu0
        %v7116 = vadd.f32 %v7027, %v7115
        %v7117 = vpop.f32.mrf.mxu0
        %v7118 = vadd.f32 %v7029, %v7117
        %7119 = vmatmul.bf16.gmra.mxu0 %v6756
        %v7120 = vpop.f32.mrf.mxu0
        %v7121 = vadd.f32 %v7032, %v7120
        %v7122 = vpop.f32.mrf.mxu0
        %v7123 = vadd.f32 %v7034, %v7122
        %7124 = vmatmul.bf16.gmra.mxu0 %v6759
        %v7125 = vpop.f32.mrf.mxu0
        %v7126 = vadd.f32 %v7037, %v7125
        %v7127 = vpop.f32.mrf.mxu0
        %v7128 = vadd.f32 %v7039, %v7127
        %7129 = vmatmul.bf16.gmra.mxu0 %v6762
        %v7130 = vpop.f32.mrf.mxu0
        %v7131 = vadd.f32 %v7042, %v7130
        %v7132 = vpop.f32.mrf.mxu0
        %v7133 = vadd.f32 %v7044, %v7132
        %7134 = vmatmul.bf16.gmra.mxu0 %v6765
        %v7135 = vpop.f32.mrf.mxu0
        %v7136 = vadd.f32 %v7047, %v7135
        %v7137 = vpop.f32.mrf.mxu0
        %v7138 = vadd.f32 %v7049, %v7137
        %7139 = vmatmul.bf16.gmra.mxu0 %v6768
        %v7140 = vpop.f32.mrf.mxu0
        %v7141 = vadd.f32 %v7052, %v7140
        %v7142 = vpop.f32.mrf.mxu0
        %v7143 = vadd.f32 %v7054, %v7142
        %7144 = vmatmul.bf16.gmra.mxu0 %v6771
        %v7145 = vpop.f32.mrf.mxu0
        %v7146 = vadd.f32 %v7057, %v7145
        %v7147 = vpop.f32.mrf.mxu0
        %v7148 = vadd.f32 %v7059, %v7147
        %7149 = vmatmul.bf16.gmra.mxu0 %v6774
        %v7150 = vpop.f32.mrf.mxu0
        %v7151 = vadd.f32 %v7062, %v7150
        %v7152 = vpop.f32.mrf.mxu0
        %v7153 = vadd.f32 %v7064, %v7152
        %7154 = vmatmul.bf16.gmra.mxu0 %v6777
        %v7155 = vpop.f32.mrf.mxu0
        %v7156 = vadd.f32 %v7067, %v7155
        %v7157 = vpop.f32.mrf.mxu0
        %v7158 = vadd.f32 %v7069, %v7157
        %7159 = vmatmul.bf16.gmra.mxu0 %v6780
        %v7160 = vpop.f32.mrf.mxu0
        %v7161 = vadd.f32 %v7072, %v7160
        %v7162 = vpop.f32.mrf.mxu0
        %v7163 = vadd.f32 %v7074, %v7162
        %7164 = vmatmul.bf16.gmra.mxu0 %v6783
        %v7165 = vpop.f32.mrf.mxu0
        %v7166 = vadd.f32 %v7077, %v7165
        %v7167 = vpop.f32.mrf.mxu0
        %v7168 = vadd.f32 %v7079, %v7167
        %7169 = vmatmul.bf16.gmra.mxu0 %v6786
        %v7170 = vpop.f32.mrf.mxu0
        %v7171 = vadd.f32 %v7082, %v7170
        %v7172 = vpop.f32.mrf.mxu0
        %v7173 = vadd.f32 %v7084, %v7172
        %7174 = vmatmul.bf16.gmra.mxu0 %v6789
        %v7175 = vpop.f32.mrf.mxu0
        %v7176 = vadd.f32 %v7087, %v7175
        %v7177 = vpop.f32.mrf.mxu0
        %v7178 = vadd.f32 %v7089, %v7177
        %7179 = vmatmul.bf16.gmra.mxu0 %v6792
        %v7180 = vpop.f32.mrf.mxu0
        %v7181 = vadd.f32 %v7092, %v7180
        %v7182 = vpop.f32.mrf.mxu0
        %v7183 = vadd.f32 %v7094, %v7182
        %7184 = vdwg.mxu0
        %7185 = vmatpush.bf16.msra.mxu0 %v6982
        %7186 = vmatpush.bf16.msra.mxu0 %v6981
        %7187 = vmatpush.bf16.msra.mxu0 %v6980
        %7188 = vmatpush.bf16.msra.mxu0 %v6979
        %7189 = vmatpush.bf16.msra.mxu0 %v6978
        %7190 = vmatpush.bf16.msra.mxu0 %v6977
        %7191 = vmatpush.bf16.msra.mxu0 %v6976
        %7192 = vmatpush.bf16.msra.mxu0 %v6975
        %7193 = vmatmul.bf16.gmra.mxu0 %v6750
        %v7194 = vpop.f32.mrf.mxu0
        %v7195 = vadd.f32 %v7106, %v7194
        %v7196 = vpop.f32.mrf.mxu0
        %v7197 = vadd.f32 %v7108, %v7196
        %7198 = vmatmul.bf16.gmra.mxu0 %v6753
        %v7199 = vpop.f32.mrf.mxu0
        %v7200 = vadd.f32 %v7111, %v7199
        %v7201 = vpop.f32.mrf.mxu0
        %v7202 = vadd.f32 %v7113, %v7201
        %7203 = vmatmul.bf16.gmra.mxu0 %v6756
        %v7204 = vpop.f32.mrf.mxu0
        %v7205 = vadd.f32 %v7116, %v7204
        %v7206 = vpop.f32.mrf.mxu0
        %v7207 = vadd.f32 %v7118, %v7206
        %7208 = vmatmul.bf16.gmra.mxu0 %v6759
        %v7209 = vpop.f32.mrf.mxu0
        %v7210 = vadd.f32 %v7121, %v7209
        %v7211 = vpop.f32.mrf.mxu0
        %v7212 = vadd.f32 %v7123, %v7211
        %7213 = vmatmul.bf16.gmra.mxu0 %v6762
        %v7214 = vpop.f32.mrf.mxu0
        %v7215 = vadd.f32 %v7126, %v7214
        %v7216 = vpop.f32.mrf.mxu0
        %v7217 = vadd.f32 %v7128, %v7216
        %7218 = vmatmul.bf16.gmra.mxu0 %v6765
        %v7219 = vpop.f32.mrf.mxu0
        %v7220 = vadd.f32 %v7131, %v7219
        %v7221 = vpop.f32.mrf.mxu0
        %v7222 = vadd.f32 %v7133, %v7221
        %7223 = vmatmul.bf16.gmra.mxu0 %v6768
        %v7224 = vpop.f32.mrf.mxu0
        %v7225 = vadd.f32 %v7136, %v7224
        %v7226 = vpop.f32.mrf.mxu0
        %v7227 = vadd.f32 %v7138, %v7226
        %7228 = vmatmul.bf16.gmra.mxu0 %v6771
        %v7229 = vpop.f32.mrf.mxu0
        %v7230 = vadd.f32 %v7141, %v7229
        %v7231 = vpop.f32.mrf.mxu0
        %v7232 = vadd.f32 %v7143, %v7231
        %7233 = vmatmul.bf16.gmra.mxu0 %v6774
        %v7234 = vpop.f32.mrf.mxu0
        %v7235 = vadd.f32 %v7146, %v7234
        %v7236 = vpop.f32.mrf.mxu0
        %v7237 = vadd.f32 %v7148, %v7236
        %7238 = vmatmul.bf16.gmra.mxu0 %v6777
        %v7239 = vpop.f32.mrf.mxu0
        %v7240 = vadd.f32 %v7151, %v7239
        %v7241 = vpop.f32.mrf.mxu0
        %v7242 = vadd.f32 %v7153, %v7241
        %7243 = vmatmul.bf16.gmra.mxu0 %v6780
        %v7244 = vpop.f32.mrf.mxu0
        %v7245 = vadd.f32 %v7156, %v7244
        %v7246 = vpop.f32.mrf.mxu0
        %v7247 = vadd.f32 %v7158, %v7246
        %7248 = vmatmul.bf16.gmra.mxu0 %v6783
        %v7249 = vpop.f32.mrf.mxu0
        %v7250 = vadd.f32 %v7161, %v7249
        %v7251 = vpop.f32.mrf.mxu0
        %v7252 = vadd.f32 %v7163, %v7251
        %7253 = vmatmul.bf16.gmra.mxu0 %v6786
        %v7254 = vpop.f32.mrf.mxu0
        %v7255 = vadd.f32 %v7166, %v7254
        %v7256 = vpop.f32.mrf.mxu0
        %v7257 = vadd.f32 %v7168, %v7256
        %7258 = vmatmul.bf16.gmra.mxu0 %v6789
        %v7259 = vpop.f32.mrf.mxu0
        %v7260 = vadd.f32 %v7171, %v7259
        %v7261 = vpop.f32.mrf.mxu0
        %v7262 = vadd.f32 %v7173, %v7261
        %7263 = vmatmul.bf16.gmra.mxu0 %v6792
        %v7264 = vpop.f32.mrf.mxu0
        %v7265 = vadd.f32 %v7176, %v7264
        %v7266 = vpop.f32.mrf.mxu0
        %v7267 = vadd.f32 %v7178, %v7266
        %7268 = vmatmul.bf16.gmra.mxu0 %v6795
        %v7269 = vpop.f32.mrf.mxu0
        %v7270 = vadd.f32 %v7181, %v7269
        %v7271 = vpop.f32.mrf.mxu0
        %v7272 = vadd.f32 %v7183, %v7271
        %7273 = vdwg.mxu0
        %v7274 = vadd.f32 %v6662, %v7195
        %v7275 = vadd.f32 %v6664, %v7197
        %v7276 = vadd.f32 %v6667, %v7200
        %v7277 = vadd.f32 %v6669, %v7202
        %v7278 = vadd.f32 %v6672, %v7205
        %v7279 = vadd.f32 %v6674, %v7207
        %v7280 = vadd.f32 %v6677, %v7210
        %v7281 = vadd.f32 %v6679, %v7212
        %v7282 = vadd.f32 %v6682, %v7215
        %v7283 = vadd.f32 %v6684, %v7217
        %v7284 = vadd.f32 %v6687, %v7220
        %v7285 = vadd.f32 %v6689, %v7222
        %v7286 = vadd.f32 %v6692, %v7225
        %v7287 = vadd.f32 %v6694, %v7227
        %v7288 = vadd.f32 %v6697, %v7230
        %v7289 = vadd.f32 %v6699, %v7232
        %v7290 = vadd.f32 %v6702, %v7235
        %v7291 = vadd.f32 %v6704, %v7237
        %v7292 = vadd.f32 %v6707, %v7240
        %v7293 = vadd.f32 %v6709, %v7242
        %v7294 = vadd.f32 %v6712, %v7245
        %v7295 = vadd.f32 %v6714, %v7247
        %v7296 = vadd.f32 %v6717, %v7250
        %v7297 = vadd.f32 %v6719, %v7252
        %v7298 = vadd.f32 %v6722, %v7255
        %v7299 = vadd.f32 %v6724, %v7257
        %v7300 = vadd.f32 %v6727, %v7260
        %v7301 = vadd.f32 %v6729, %v7262
        %v7302 = vadd.f32 %v6732, %v7265
        %v7303 = vadd.f32 %v6734, %v7267
        %v7304 = vadd.f32 %v6737, %v7270
        %v7305 = vadd.f32 %v6739, %v7272
        %v7306 = vld [vmem:[%s4] sm:$0x1]
        %v7308 = vperm.slane %v7306, 0
        %v7310 = vadd.f32 %v7274, %v7308
        %v7311 = vadd.f32 %v7275, %v7308
        %v7312 = vadd.f32 %v7276, %v7308
        %v7313 = vadd.f32 %v7277, %v7308
        %v7314 = vadd.f32 %v7278, %v7308
        %v7315 = vadd.f32 %v7279, %v7308
        %v7316 = vadd.f32 %v7280, %v7308
        %v7317 = vadd.f32 %v7281, %v7308
        %v7318 = vadd.f32 %v7282, %v7308
        %v7319 = vadd.f32 %v7283, %v7308
        %v7320 = vadd.f32 %v7284, %v7308
        %v7321 = vadd.f32 %v7285, %v7308
        %v7322 = vadd.f32 %v7286, %v7308
        %v7323 = vadd.f32 %v7287, %v7308
        %v7324 = vadd.f32 %v7288, %v7308
        %v7325 = vadd.f32 %v7289, %v7308
        %v7326 = vadd.f32 %v7290, %v7308
        %v7327 = vadd.f32 %v7291, %v7308
        %v7328 = vadd.f32 %v7292, %v7308
        %v7329 = vadd.f32 %v7293, %v7308
        %v7330 = vadd.f32 %v7294, %v7308
        %v7331 = vadd.f32 %v7295, %v7308
        %v7332 = vadd.f32 %v7296, %v7308
        %v7333 = vadd.f32 %v7297, %v7308
        %v7334 = vadd.f32 %v7298, %v7308
        %v7335 = vadd.f32 %v7299, %v7308
        %v7336 = vadd.f32 %v7300, %v7308
        %v7337 = vadd.f32 %v7301, %v7308
        %v7338 = vadd.f32 %v7302, %v7308
        %v7339 = vadd.f32 %v7303, %v7308
        %v7340 = vadd.f32 %v7304, %v7308
        %v7341 = vadd.f32 %v7305, %v7308
        %v7342 = vunpack.c.l.bf16 %v246
        %v7343 = vunpack.c.l.bf16 %v247
        %v7344 = vunpack.c.l.bf16 %v248
        %v7345 = vunpack.c.l.bf16 %v250
        %v7346 = vunpack.c.l.bf16 %v251
        %v7347 = vunpack.c.l.bf16 %v252
        %v7348 = vunpack.c.l.bf16 %v254
        %v7349 = vunpack.c.l.bf16 %v255
        %v7350 = vunpack.c.l.bf16 %v256
        %v7351 = vunpack.c.l.bf16 %v258
        %v7352 = vunpack.c.l.bf16 %v259
        %v7353 = vunpack.c.l.bf16 %v260
        %v7354 = vunpack.c.l.bf16 %v262
        %v7355 = vunpack.c.l.bf16 %v263
        %v7356 = vunpack.c.l.bf16 %v264
        %v7357 = vunpack.c.l.bf16 %v266
        %v7358 = vunpack.c.l.bf16 %v267
        %v7359 = vunpack.c.l.bf16 %v268
        %v7360 = vunpack.c.l.bf16 %v270
        %v7361 = vunpack.c.l.bf16 %v271
        %v7362 = vunpack.c.l.bf16 %v272
        %v7363 = vunpack.c.l.bf16 %v274
        %v7364 = vunpack.c.l.bf16 %v275
        %v7365 = vunpack.c.l.bf16 %v276
        %v7366 = vunpack.c.l.bf16 %v278
        %v7367 = vunpack.c.l.bf16 %v279
        %v7368 = vunpack.c.l.bf16 %v280
        %v7369 = vunpack.c.l.bf16 %v282
        %v7370 = vunpack.c.l.bf16 %v283
        %v7371 = vunpack.c.l.bf16 %v284
        %v7372 = vunpack.c.l.bf16 %v286
        %v7373 = vunpack.c.l.bf16 %v287
        %v7374 = vunpack.c.l.bf16 %v288
        %v7375 = vunpack.c.l.bf16 %v290
        %v7376 = vunpack.c.l.bf16 %v291
        %v7377 = vunpack.c.l.bf16 %v292
        %v7378 = vunpack.c.l.bf16 %v294
        %v7379 = vunpack.c.l.bf16 %v295
        %v7380 = vunpack.c.l.bf16 %v296
        %v7381 = vunpack.c.l.bf16 %v298
        %v7382 = vunpack.c.l.bf16 %v299
        %v7383 = vunpack.c.l.bf16 %v300
        %v7384 = vunpack.c.l.bf16 %v302
        %v7385 = vunpack.c.l.bf16 %v303
        %v7386 = vunpack.c.l.bf16 %v304
        %v7387 = vunpack.c.l.bf16 %v306
        %v7388 = vunpack.c.l.bf16 %v307
        %v7389 = vunpack.c.l.bf16 %v308
        %vm7438 = vcmask 1045504
        %v7439 = vrot.slane %v7342, 2
        %v7440 = vrot.slane %v7343, 2
        %v7441 = vsel %vm7438, %v7439, %v7440
        %v7442 = vrot.slane %v7344, 2
        %v7443 = vsel %vm7438, %v7440, %v7442
        %v7444 = vrot.slane %v7345, 2
        %v7445 = vrot.slane %v7346, 2
        %v7446 = vsel %vm7438, %v7444, %v7445
        %v7447 = vrot.slane %v7347, 2
        %v7448 = vsel %vm7438, %v7445, %v7447
        %v7449 = vrot.slane %v7348, 2
        %v7450 = vrot.slane %v7349, 2
        %v7451 = vsel %vm7438, %v7449, %v7450
        %v7452 = vrot.slane %v7350, 2
        %v7453 = vsel %vm7438, %v7450, %v7452
        %v7454 = vrot.slane %v7351, 2
        %v7455 = vrot.slane %v7352, 2
        %v7456 = vsel %vm7438, %v7454, %v7455
        %v7457 = vrot.slane %v7353, 2
        %v7458 = vsel %vm7438, %v7455, %v7457
        %v7459 = vrot.slane %v7354, 2
        %v7460 = vrot.slane %v7355, 2
        %v7461 = vsel %vm7438, %v7459, %v7460
        %v7462 = vrot.slane %v7356, 2
        %v7463 = vsel %vm7438, %v7460, %v7462
        %v7464 = vrot.slane %v7357, 2
        %v7465 = vrot.slane %v7358, 2
        %v7466 = vsel %vm7438, %v7464, %v7465
        %v7467 = vrot.slane %v7359, 2
        %v7468 = vsel %vm7438, %v7465, %v7467
        %v7469 = vrot.slane %v7360, 2
        %v7470 = vrot.slane %v7361, 2
        %v7471 = vsel %vm7438, %v7469, %v7470
        %v7472 = vrot.slane %v7362, 2
        %v7473 = vsel %vm7438, %v7470, %v7472
        %v7474 = vrot.slane %v7363, 2
        %v7475 = vrot.slane %v7364, 2
        %v7476 = vsel %vm7438, %v7474, %v7475
        %v7477 = vrot.slane %v7365, 2
        %v7478 = vsel %vm7438, %v7475, %v7477
        %v7479 = vrot.slane %v7366, 2
        %v7480 = vrot.slane %v7367, 2
        %v7481 = vsel %vm7438, %v7479, %v7480
        %v7482 = vrot.slane %v7368, 2
        %v7483 = vsel %vm7438, %v7480, %v7482
        %v7484 = vrot.slane %v7369, 2
        %v7485 = vrot.slane %v7370, 2
        %v7486 = vsel %vm7438, %v7484, %v7485
        %v7487 = vrot.slane %v7371, 2
        %v7488 = vsel %vm7438, %v7485, %v7487
        %v7489 = vrot.slane %v7372, 2
        %v7490 = vrot.slane %v7373, 2
        %v7491 = vsel %vm7438, %v7489, %v7490
        %v7492 = vrot.slane %v7374, 2
        %v7493 = vsel %vm7438, %v7490, %v7492
        %v7494 = vrot.slane %v7375, 2
        %v7495 = vrot.slane %v7376, 2
        %v7496 = vsel %vm7438, %v7494, %v7495
        %v7497 = vrot.slane %v7377, 2
        %v7498 = vsel %vm7438, %v7495, %v7497
        %v7499 = vrot.slane %v7378, 2
        %v7500 = vrot.slane %v7379, 2
        %v7501 = vsel %vm7438, %v7499, %v7500
        %v7502 = vrot.slane %v7380, 2
        %v7503 = vsel %vm7438, %v7500, %v7502
        %v7504 = vrot.slane %v7381, 2
        %v7505 = vrot.slane %v7382, 2
        %v7506 = vsel %vm7438, %v7504, %v7505
        %v7507 = vrot.slane %v7383, 2
        %v7508 = vsel %vm7438, %v7505, %v7507
        %v7509 = vrot.slane %v7384, 2
        %v7510 = vrot.slane %v7385, 2
        %v7511 = vsel %vm7438, %v7509, %v7510
        %v7512 = vrot.slane %v7386, 2
        %v7513 = vsel %vm7438, %v7510, %v7512
        %v7514 = vrot.slane %v7387, 2
        %v7515 = vrot.slane %v7388, 2
        %v7516 = vsel %vm7438, %v7514, %v7515
        %v7517 = vrot.slane %v7389, 2
        %v7518 = vsel %vm7438, %v7515, %v7517
        %v7551 = vadd.f32 %v7310, %v7441
        %v7552 = vadd.f32 %v7311, %v7443
        %v7553 = vadd.f32 %v7312, %v7446
        %v7554 = vadd.f32 %v7313, %v7448
        %v7555 = vadd.f32 %v7314, %v7451
        %v7556 = vadd.f32 %v7315, %v7453
        %v7557 = vadd.f32 %v7316, %v7456
        %v7558 = vadd.f32 %v7317, %v7458
        %v7559 = vadd.f32 %v7318, %v7461
        %v7560 = vadd.f32 %v7319, %v7463
        %v7561 = vadd.f32 %v7320, %v7466
        %v7562 = vadd.f32 %v7321, %v7468
        %v7563 = vadd.f32 %v7322, %v7471
        %v7564 = vadd.f32 %v7323, %v7473
        %v7565 = vadd.f32 %v7324, %v7476
        %v7566 = vadd.f32 %v7325, %v7478
        %v7567 = vadd.f32 %v7326, %v7481
        %v7568 = vadd.f32 %v7327, %v7483
        %v7569 = vadd.f32 %v7328, %v7486
        %v7570 = vadd.f32 %v7329, %v7488
        %v7571 = vadd.f32 %v7330, %v7491
        %v7572 = vadd.f32 %v7331, %v7493
        %v7573 = vadd.f32 %v7332, %v7496
        %v7574 = vadd.f32 %v7333, %v7498
        %v7575 = vadd.f32 %v7334, %v7501
        %v7576 = vadd.f32 %v7335, %v7503
        %v7577 = vadd.f32 %v7336, %v7506
        %v7578 = vadd.f32 %v7337, %v7508
        %v7579 = vadd.f32 %v7338, %v7511
        %v7580 = vadd.f32 %v7339, %v7513
        %v7581 = vadd.f32 %v7340, %v7516
        %v7582 = vadd.f32 %v7341, %v7518
        %v7583 = vmax.f32 %v7551, 0.0
        %v7584 = vmax.f32 %v7552, 0.0
        %v7585 = vmax.f32 %v7553, 0.0
        %v7586 = vmax.f32 %v7554, 0.0
        %v7587 = vmax.f32 %v7555, 0.0
        %v7588 = vmax.f32 %v7556, 0.0
        %v7589 = vmax.f32 %v7557, 0.0
        %v7590 = vmax.f32 %v7558, 0.0
        %v7591 = vmax.f32 %v7559, 0.0
        %v7592 = vmax.f32 %v7560, 0.0
        %v7593 = vmax.f32 %v7561, 0.0
        %v7594 = vmax.f32 %v7562, 0.0
        %v7595 = vmax.f32 %v7563, 0.0
        %v7596 = vmax.f32 %v7564, 0.0
        %v7597 = vmax.f32 %v7565, 0.0
        %v7598 = vmax.f32 %v7566, 0.0
        %v7599 = vmax.f32 %v7567, 0.0
        %v7600 = vmax.f32 %v7568, 0.0
        %v7601 = vmax.f32 %v7569, 0.0
        %v7602 = vmax.f32 %v7570, 0.0
        %v7603 = vmax.f32 %v7571, 0.0
        %v7604 = vmax.f32 %v7572, 0.0
        %v7605 = vmax.f32 %v7573, 0.0
        %v7606 = vmax.f32 %v7574, 0.0
        %v7607 = vmax.f32 %v7575, 0.0
        %v7608 = vmax.f32 %v7576, 0.0
        %v7609 = vmax.f32 %v7577, 0.0
        %v7610 = vmax.f32 %v7578, 0.0
        %v7611 = vmax.f32 %v7579, 0.0
        %v7612 = vmax.f32 %v7580, 0.0
        %v7613 = vmax.f32 %v7581, 0.0
        %v7614 = vmax.f32 %v7582, 0.0
        %v7615 = vpack.c.bf16 %v7583, %v7583
        %v7616 = vpack.c.bf16 %v7584, %v7584
        %v7617 = vpack.c.bf16 %v7585, %v7585
        %v7618 = vpack.c.bf16 %v7586, %v7586
        %v7619 = vpack.c.bf16 %v7587, %v7587
        %v7620 = vpack.c.bf16 %v7588, %v7588
        %v7621 = vpack.c.bf16 %v7589, %v7589
        %v7622 = vpack.c.bf16 %v7590, %v7590
        %v7623 = vpack.c.bf16 %v7591, %v7591
        %v7624 = vpack.c.bf16 %v7592, %v7592
        %v7625 = vpack.c.bf16 %v7593, %v7593
        %v7626 = vpack.c.bf16 %v7594, %v7594
        %v7627 = vpack.c.bf16 %v7595, %v7595
        %v7628 = vpack.c.bf16 %v7596, %v7596
        %v7629 = vpack.c.bf16 %v7597, %v7597
        %v7630 = vpack.c.bf16 %v7598, %v7598
        %v7631 = vpack.c.bf16 %v7599, %v7599
        %v7632 = vpack.c.bf16 %v7600, %v7600
        %v7633 = vpack.c.bf16 %v7601, %v7601
        %v7634 = vpack.c.bf16 %v7602, %v7602
        %v7635 = vpack.c.bf16 %v7603, %v7603
        %v7636 = vpack.c.bf16 %v7604, %v7604
        %v7637 = vpack.c.bf16 %v7605, %v7605
        %v7638 = vpack.c.bf16 %v7606, %v7606
        %v7639 = vpack.c.bf16 %v7607, %v7607
        %v7640 = vpack.c.bf16 %v7608, %v7608
        %v7641 = vpack.c.bf16 %v7609, %v7609
        %v7642 = vpack.c.bf16 %v7610, %v7610
        %v7643 = vpack.c.bf16 %v7611, %v7611
        %v7644 = vpack.c.bf16 %v7612, %v7612
        %v7645 = vpack.c.bf16 %v7613, %v7613
        %v7646 = vpack.c.bf16 %v7614, %v7614
        %7647 = vst [vmem:[%s231] sm:$0xf] %v7615
        %7648 = vst [vmem:[%s231 + $0x4] sm:$0xf] %v7616
        %7649 = vst [vmem:[%s231 + $0x8] sm:$0xf] %v7617
        %7650 = vst [vmem:[%s231 + $0xc] sm:$0xf] %v7618
        %7651 = vst [vmem:[%s231 + $0x10] sm:$0xf] %v7619
        %7652 = vst [vmem:[%s231 + $0x14] sm:$0xf] %v7620
        %7653 = vst [vmem:[%s231 + $0x18] sm:$0xf] %v7621
        %7654 = vst [vmem:[%s231 + $0x1c] sm:$0xf] %v7622
        %7655 = vst [vmem:[%s231 + $0x20] sm:$0xf] %v7623
        %7656 = vst [vmem:[%s231 + $0x24] sm:$0xf] %v7624
        %7657 = vst [vmem:[%s231 + $0x28] sm:$0xf] %v7625
        %7658 = vst [vmem:[%s231 + $0x2c] sm:$0xf] %v7626
        %7659 = vst [vmem:[%s231 + $0x30] sm:$0xf] %v7627
        %7660 = vst [vmem:[%s231 + $0x34] sm:$0xf] %v7628
        %7661 = vst [vmem:[%s231 + $0x38] sm:$0xf] %v7629
        %7662 = vst [vmem:[%s231 + $0x3c] sm:$0xf] %v7630
        %7663 = vst [vmem:[%s231 + $0x40] sm:$0xf] %v7631
        %7664 = vst [vmem:[%s231 + $0x44] sm:$0xf] %v7632
        %7665 = vst [vmem:[%s231 + $0x48] sm:$0xf] %v7633
        %7666 = vst [vmem:[%s231 + $0x4c] sm:$0xf] %v7634
        %7667 = vst [vmem:[%s231 + $0x50] sm:$0xf] %v7635
        %7668 = vst [vmem:[%s231 + $0x54] sm:$0xf] %v7636
        %7669 = vst [vmem:[%s231 + $0x58] sm:$0xf] %v7637
        %7670 = vst [vmem:[%s231 + $0x5c] sm:$0xf] %v7638
        %7671 = vst [vmem:[%s231 + $0x60] sm:$0xf] %v7639
        %7672 = vst [vmem:[%s231 + $0x64] sm:$0xf] %v7640
        %7673 = vst [vmem:[%s231 + $0x68] sm:$0xf] %v7641
        %7674 = vst [vmem:[%s231 + $0x6c] sm:$0xf] %v7642
        %7675 = vst [vmem:[%s231 + $0x70] sm:$0xf] %v7643
        %7676 = vst [vmem:[%s231 + $0x74] sm:$0xf] %v7644
        %7677 = vst [vmem:[%s231 + $0x78] sm:$0xf] %v7645
        %7678 = vst [vmem:[%s231 + $0x7c] sm:$0xf] %v7646
        %s7679 = sand.u32 %s151, 1
        %s7680 = scalar_lea.sflag [#allocation3], %s7679
        %s7681 = sand.u32 %s151, 1
        %s7682 = smul.addr %s7681, 128
        %s7683 = scalar_lea.vmem [#allocation2], %s7682
        // Predicated region
        $region41: #{tpu_custom_call.1} parent=39 // pred_check
          %p7684 = pneg %p161
        $region42: #{tpu_custom_call.1} parent=39 // pred_check_branch
          %7686 = sbr.rel (%p7684) target = $region44
        $region43: #{tpu_custom_call.1} parent=39 // pred_region
          %s7687 = smul.u32 16, %s24
          %7689 = vsyncadd %s7680, 0
          %s7690 = smul.addr %s7687, 2
          %s7691 = smul.addr %s23, 32
          %s7692 = sadd.s32 %s7690, %s7691
          %s7693 = smul.addr %s7692, 4
          %s7694 = scalar_lea.hbm %s5, %s7693
          %s7695 = sshll.u32 %s7683, 4
          %s7696 = int_to_ptr.vmem [resolvable:$true] %s7695
          %s7697 = sshll.u32 %s7694, 4
          %s7698 = int_to_ptr.hbm [resolvable:$true] %s7697
          %7703 = dma.vmem_to_hbm [thread:$0]  %s7696, 2048, %s7698, %s7680, 64, 64, 4
        $region44: #{tpu_custom_call.1} parent=39 // pred_fallthru
          _
      $region40: #{tpu_custom_call.1} parent=5 // pred_fallthru
        _
      %p7704 = scmp.le.s32.totalorder 2, %s14
      // Predicated region
      $region45: #{tpu_custom_call.1} parent=5 // pred_check
        %p7705 = pneg %p7704
      $region46: #{tpu_custom_call.1} parent=5 // pred_check_branch
        %7707 = sbr.rel (%p7705) target = $region48
      $region47: #{tpu_custom_call.1} parent=5 // pred_region
        %s7708 = ssub.s32 %s14, 2
        // Predicated region
        $region49: #{tpu_custom_call.1} parent=47 // pred_check
          %p7709 = pneg %p167
        $region50: #{tpu_custom_call.1} parent=47 // pred_check_branch
          %7711 = sbr.rel (%p7709) target = $region52
        $region51: #{tpu_custom_call.1} parent=47 // pred_region
          %s7712 = sand.u32 %s152, 1
          %s7713 = scalar_lea.sflag [#allocation3], %s7712
          %s7714 = sand.u32 %s152, 1
          %s7715 = smul.addr %s7714, 128
          %s7716 = scalar_lea.vmem [#allocation2], %s7715
          %7718 = dma.done %s7713, 2048
        $region52: #{tpu_custom_call.1} parent=47 // pred_fallthru
          _
      $region48: #{tpu_custom_call.1} parent=5 // pred_fallthru
        _
    $region6: #{tpu_custom_call.1} parent=1 // loop_footer
      %s18 = sadd.s32 1, %s14
    $region7: #{tpu_custom_call.1} parent=1 // loop_footer_branch
      %13 = sbr.rel target = $region3
    $region8: #{tpu_custom_call.1} parent=1 // loop_exit
      _
    %7719 = vsyncpa [#allocation3], 1
    %s7720 = scalar_lea.sflag [#allocation3], 1
    %7721 = vsyncpa %s7720, 1

</llo_original>
